<compile_context>
chip_gen: v6e
topology: v6e:2x2x1
jax: 0.10.0
libtpu: 0.0.40
codegen_flags: <defaults>
</compile_context>

<pallas_src>
import functools

import jax
import jax.numpy as jnp
from jax import lax
from jax.experimental import pallas as pl
from jax.experimental.pallas import tpu as pltpu


def _round_up(n, m):
    return ((n + m - 1) // m) * m


def _device_tuning():
    """Returns (has_two_tensorcores, preferred max batch tile)."""
    try:
        kind = jax.devices()[0].device_kind.lower()
    except Exception:  # pragma: no cover
        kind = ""
    is_v7 = "v7" in kind
    wide_mxu = is_v7 or ("v6" in kind)          # 256-wide MXU on v6e / v7x
    return is_v7, (256 if wide_mxu else 128)


def _lstm_fc_kernel(num_layers, seq_len, b_tile, t_chunk, unroll, x_ref, *refs):
    """refs = (Wih_T, Whh_T, bias) * L, Wfc_T, b_fc, out, seq_scratch, gates_scratch.

    x_ref:      (T*B_tile, Ip)      time-major rows (t, b) for this batch tile
    seq_ref:    (T*B_tile, Hp)      layer-to-layer hidden sequence (compute dtype)
    gates_ref:  (Tc*B_tile, 4*Hp)   hoisted input->hidden gates for one T-chunk (f32)
    """
    L, T, Bt, Tc = num_layers, seq_len, b_tile, t_chunk
    layer_refs = refs[:3 * L]
    wfc_ref, bfc_ref, out_ref, seq_ref, gates_ref = refs[3 * L:]
    Hp = layer_refs[1].shape[0]                   # Whh_T is (Hp, 4*Hp)
    n_chunks = -(-T // Tc)                        # static

    h_last = None
    for layer in range(L):                        # num_layers static -> Python unroll
        wih_ref = layer_refs[3 * layer + 0]       # (in_pad, 4*Hp)  compute dtype
        whh_ref = layer_refs[3 * layer + 1]       # (Hp,     4*Hp)  compute dtype
        bias_ref = layer_refs[3 * layer + 2]      # (1,      4*Hp)  f32 (b_ih + b_hh)
        wdt = whh_ref.dtype
        write_seq = layer < L - 1                 # last layer's per-step hiddens unused

        h = jnp.zeros((Bt, Hp), jnp.float32)
        c = jnp.zeros((Bt, Hp), jnp.float32)

        for ck in range(n_chunks):                # static chunk loop
            t0 = ck * Tc
            cs = min(Tc, T - t0)                  # static chunk length
            row0 = t0 * Bt
            nrows = cs * Bt

            # ---- Hoisted input->hidden projection for this chunk: one MXU GEMM ----
            if layer == 0:
                xin = x_ref[pl.ds(row0, nrows), :]
            else:
                xin = seq_ref[pl.ds(row0, nrows), :]
            gates_ref[pl.ds(0, nrows), :] = (
                jnp.dot(xin.astype(wdt), wih_ref[...],
                        preferred_element_type=jnp.float32)
                + bias_ref[...])

            def step(t, carry, whh_ref=whh_ref, row0=row0, write_seq=write_seq):
                h, c = carry
                lrow = pl.multiple_of(t * Bt, Bt)
                h_w = h.astype(whh_ref.dtype)

                # Per-gate split: keeps the live footprint at (Bt, Hp) per gate
                # instead of a (Bt, 4*Hp) gates tensor (avoids vreg spills).
                def pre_gate(g):
                    gx = gates_ref[pl.ds(lrow, Bt), g * Hp:(g + 1) * Hp]
                    return gx + jnp.dot(h_w, whh_ref[:, g * Hp:(g + 1) * Hp],
                                        preferred_element_type=jnp.float32)

                i_g = jax.nn.sigmoid(pre_gate(0))
                f_g = jax.nn.sigmoid(pre_gate(1))
                g_g = jnp.tanh(pre_gate(2))
                o_g = jax.nn.sigmoid(pre_gate(3))
                c_new = f_g * c + i_g * g_g
                h_new = o_g * jnp.tanh(c_new)
                if write_seq:
                    grow = pl.multiple_of(row0 + t * Bt, Bt)
                    seq_ref[pl.ds(grow, Bt), :] = h_new.astype(seq_ref.dtype)
                return h_new, c_new

            h, c = lax.fori_loop(0, cs, step, (h, c), unroll=unroll)
        h_last = h

    # fc on the last timestep of the last layer (lane-dense Op output).
    out_ref[...] = (
        jnp.dot(h_last.astype(wfc_ref.dtype), wfc_ref[...],
                preferred_element_type=jnp.float32)
        + bfc_ref[...]).astype(out_ref.dtype)


def prepare_params(params, *, input_size, hidden_size, num_layers, output_size,
                   compute_dtype=jnp.bfloat16):
    """One-time (outside the hot path) weight transpose / pad / cast.

    Gate g (PyTorch order i,f,g,o) occupies lanes [g*Hp, g*Hp + H) of the 4*Hp
    axis so in-kernel gate slices are 128-aligned.  Padded rows/columns are zero,
    keeping the padded hidden/cell state exactly zero through the recurrence.
    compute_dtype=bf16 (default) gives the single-pass MXU path; bias stays f32
    and all accumulation is f32.  Use compute_dtype=jnp.float32 for bit-strict
    comparisons against an f32 reference.
    """
    H, L, O = hidden_size, num_layers, output_size
    Hp = _round_up(H, 128)
    Ip = _round_up(input_size, 8)     # layer-0 K dim: sublane multiple is enough
    Op = _round_up(O, 128)

    out = []
    for l in range(L):
        in_l = input_size if l == 0 else H
        in_pad = Ip if l == 0 else Hp
        wih = params[f"w_ih_l{l}"].astype(jnp.float32)                 # (4H, in_l)
        whh = params[f"w_hh_l{l}"].astype(jnp.float32)                 # (4H, H)
        b = (params[f"b_ih_l{l}"] + params[f"b_hh_l{l}"]).astype(jnp.float32)

        wih_p = jnp.zeros((in_pad, 4 * Hp), jnp.float32)
        whh_p = jnp.zeros((Hp, 4 * Hp), jnp.float32)
        b_p = jnp.zeros((1, 4 * Hp), jnp.float32)
        for g in range(4):
            wih_p = wih_p.at[:in_l, g * Hp:g * Hp + H].set(wih[g * H:(g + 1) * H, :].T)
            whh_p = whh_p.at[:H, g * Hp:g * Hp + H].set(whh[g * H:(g + 1) * H, :].T)
            b_p = b_p.at[0, g * Hp:g * Hp + H].set(b[g * H:(g + 1) * H])
        out += [wih_p.astype(compute_dtype), whh_p.astype(compute_dtype), b_p]

    wfc_p = jnp.zeros((Hp, Op), jnp.float32).at[:H, :O].set(
        params["w_fc"].astype(jnp.float32).T)
    bfc_p = jnp.zeros((1, Op), jnp.float32).at[0, :O].set(
        params["b_fc"].astype(jnp.float32))
    out += [wfc_p.astype(compute_dtype), bfc_p]
    return out


@functools.partial(jax.jit, static_argnames=("hidden_size", "num_layers", "output_size"))
def multi_step_lstm_forward(x_btf, weights, *, hidden_size, num_layers, output_size):
    """x_btf: (B, T, input_size) float32, batch_first like PyTorch."""
    B, T, I = x_btf.shape
    H, L, O = hidden_size, num_layers, output_size
    Hp = _round_up(H, 128)
    Op = _round_up(O, 128)
    Ip = weights[0].shape[0]                 # layer-0 K padding chosen in prepare_params
    w_dtype = weights[1].dtype               # compute dtype (Whh_T)

    # --- Generation-aware batch tiling ("parallel" grid axis) ---
    is_v7, max_tile = _device_tuning()
    B_pad = _round_up(B, 8)
    B_tile = min(B_pad, max_tile)
    if is_v7 and B_pad >= 16:
        # Keep both v7x TensorCores busy: at least 2 tiles unless each core
        # already gets >= max_tile rows.  Also halves per-core scratch.
        B_tile = min(B_tile, _round_up(-(-B_pad // 2), 8))
    n_tiles = -(-B_pad // B_tile)
    B_pad = n_tiles * B_tile

    # --- T-chunk for the hoisted gates scratch (caps VMEM independent of T) ---
    per_t_bytes = B_tile * 4 * Hp * 4
    Tc = int(max(1, min(T, 32, (8 << 20) // per_t_bytes)))

    # Wrapper-side layout plumbing (cheap XLA ops): time-major, zero-padded,
    # pre-flattened to (n_tiles, T*B_tile, Ip) so the kernel needs no reshapes.
    x = jnp.transpose(x_btf.astype(jnp.float32), (1, 0, 2))        # (T, B, I)
    x = jnp.pad(x, ((0, 0), (0, B_pad - B), (0, Ip - I)))          # (T, B_pad, Ip)
    x = x.reshape(T, n_tiles, B_tile, Ip).transpose(1, 0, 2, 3).reshape(
        n_tiles, T * B_tile, Ip)

    unroll = True if Tc <= 16 else 8

    in_specs = [pl.BlockSpec((None, T * B_tile, Ip), lambda b: (b, 0, 0))]
    for w in weights:                                  # weights stay VMEM-resident
        in_specs.append(pl.BlockSpec(w.shape, lambda b: (0, 0)))

    # --- Explicit VMEM budget: 2x(x block + weights + out block) for double
    # buffering, plus the two scratches, plus headroom; clamped to v7x's 64 MiB.
    seq_rows = T * B_tile if L > 1 else 8
    itemsize = jnp.dtype(w_dtype).itemsize
    seq_bytes = seq_rows * Hp * itemsize
    gates_bytes = Tc * B_tile * 4 * Hp * 4
    w_bytes = sum(int(w.size) * w.dtype.itemsize for w in weights)
    x_bytes = T * B_tile * Ip * 4
    out_bytes = B_tile * Op * 4
    needed = 2 * (w_bytes + x_bytes + out_bytes) + seq_bytes + gates_bytes + (4 << 20)
    vmem_limit = int(min(max(needed, 32 << 20), 64 << 20))

    kernel = functools.partial(_lstm_fc_kernel, L, T, B_tile, Tc, unroll)
    out = pl.pallas_call(
        kernel,
        out_shape=jax.ShapeDtypeStruct((B_pad, Op), jnp.float32),
        grid=(n_tiles,),
        in_specs=in_specs,
        out_specs=pl.BlockSpec((B_tile, Op), lambda b: (b, 0)),
        scratch_shapes=[
            pltpu.VMEM((seq_rows, Hp), w_dtype),             # layer-to-layer hiddens
            pltpu.VMEM((Tc * B_tile, 4 * Hp), jnp.float32),  # hoisted x-gates (1 chunk)
        ],
        compiler_params=pltpu.CompilerParams(
            dimension_semantics=("parallel",),
            vmem_limit_bytes=vmem_limit),
    )(x, *weights)
    return out[:B, :O]


def _reference_forward(x, params, *, hidden_size, num_layers, output_size):
    """Pure-JAX reference matching PyTorch nn.LSTM semantics."""
    B, T, _ = x.shape
    H = hidden_size
    inp = x
    for l in range(num_layers):
        wih = params[f"w_ih_l{l}"]
        whh = params[f"w_hh_l{l}"]
        b = params[f"b_ih_l{l}"] + params[f"b_hh_l{l}"]
        h = jnp.zeros((B, H), jnp.float32)
        c = jnp.zeros((B, H), jnp.float32)
        outs = []
        for t in range(T):
            gates = inp[:, t, :] @ wih.T + h @ whh.T + b
            i_g = jax.nn.sigmoid(gates[:, :H])
            f_g = jax.nn.sigmoid(gates[:, H:2 * H])
            g_g = jnp.tanh(gates[:, 2 * H:3 * H])
            o_g = jax.nn.sigmoid(gates[:, 3 * H:])
            c = f_g * c + i_g * g_g
            h = o_g * jnp.tanh(c)
            outs.append(h)
        inp = jnp.stack(outs, axis=1)
    return inp[:, -1, :] @ params["w_fc"].T + params["b_fc"]


def _init_params(key, *, input_size, hidden_size, num_layers, output_size):
    """Deterministic synthetic parameters with PyTorch nn.LSTM shapes."""
    H = hidden_size
    params = {}
    scale = 1.0 / jnp.sqrt(jnp.float32(H))
    for l in range(num_layers):
        in_l = input_size if l == 0 else H
        key, k1, k2, k3, k4 = jax.random.split(key, 5)
        params[f"w_ih_l{l}"] = jax.random.uniform(k1, (4 * H, in_l), jnp.float32,
                                                  -scale, scale)
        params[f"w_hh_l{l}"] = jax.random.uniform(k2, (4 * H, H), jnp.float32,
                                                  -scale, scale)
        params[f"b_ih_l{l}"] = jax.random.uniform(k3, (4 * H,), jnp.float32,
                                                  -scale, scale)
        params[f"b_hh_l{l}"] = jax.random.uniform(k4, (4 * H,), jnp.float32,
                                                  -scale, scale)
    key, k1, k2 = jax.random.split(key, 3)
    params["w_fc"] = jax.random.uniform(k1, (output_size, H), jnp.float32, -scale, scale)
    params["b_fc"] = jax.random.uniform(k2, (output_size,), jnp.float32, -scale, scale)
    return params


if __name__ == "__main__":
    # Small shapes implied by the module's forward: x is (batch, seq, input_size).
    B, T = 2, 8
    INPUT_SIZE, HIDDEN_SIZE, NUM_LAYERS, OUTPUT_SIZE = 4, 32, 2, 4

    root = jax.random.PRNGKey(0)
    k_x, k_p = jax.random.split(root)
    x = jax.random.normal(k_x, (B, T, INPUT_SIZE), jnp.float32)
    params = _init_params(k_p, input_size=INPUT_SIZE, hidden_size=HIDDEN_SIZE,
                          num_layers=NUM_LAYERS, output_size=OUTPUT_SIZE)

    ref = _reference_forward(x, params, hidden_size=HIDDEN_SIZE,
                             num_layers=NUM_LAYERS, output_size=OUTPUT_SIZE)

    # f32 weights: strict numerical check against the PyTorch-semantics reference.
    w_f32 = prepare_params(params, input_size=INPUT_SIZE, hidden_size=HIDDEN_SIZE,
                           num_layers=NUM_LAYERS, output_size=OUTPUT_SIZE,
                           compute_dtype=jnp.float32)
    out_f32 = jax.block_until_ready(
        multi_step_lstm_forward(x, w_f32, hidden_size=HIDDEN_SIZE,
                                num_layers=NUM_LAYERS, output_size=OUTPUT_SIZE))
    assert out_f32.shape == (B, OUTPUT_SIZE)
    assert jnp.allclose(out_f32, ref, atol=2e-4, rtol=2e-4), (out_f32, ref)

    # bf16 weights (default fast path): looser tolerance, f32 accumulation inside.
    w_bf16 = prepare_params(params, input_size=INPUT_SIZE, hidden_size=HIDDEN_SIZE,
                            num_layers=NUM_LAYERS, output_size=OUTPUT_SIZE)
    out_bf16 = jax.block_until_ready(
        multi_step_lstm_forward(x, w_bf16, hidden_size=HIDDEN_SIZE,
                                num_layers=NUM_LAYERS, output_size=OUTPUT_SIZE))
    assert out_bf16.shape == (B, OUTPUT_SIZE)
    assert jnp.allclose(out_bf16, ref, atol=5e-2, rtol=5e-2), (out_bf16, ref)

    print("KERNEL_OK")
</pallas_src>

<mosaic_0001>
module attributes {stable_mosaic.version = 11 : i64} {
  func.func @_lstm_fc_kernel(%arg0: i32, %arg1: memref<1x64x8xf32, #tpu.memory_space<vmem>>, %arg2: memref<8x512xf32, #tpu.memory_space<vmem>>, %arg3: memref<128x512xf32, #tpu.memory_space<vmem>>, %arg4: memref<1x512xf32, #tpu.memory_space<vmem>>, %arg5: memref<128x512xf32, #tpu.memory_space<vmem>>, %arg6: memref<128x512xf32, #tpu.memory_space<vmem>>, %arg7: memref<1x512xf32, #tpu.memory_space<vmem>>, %arg8: memref<128x128xf32, #tpu.memory_space<vmem>>, %arg9: memref<1x128xf32, #tpu.memory_space<vmem>>, %arg10: memref<8x128xf32, #tpu.memory_space<vmem>>, %arg11: memref<64x128xf32, #tpu.memory_space<vmem>>, %arg12: memref<64x512xf32, #tpu.memory_space<vmem>>) attributes {dimension_semantics = [#tpu.dimension_semantics<parallel>], iteration_bounds = array<i64: 1>, scalar_prefetch = 0 : i64, scratch_operands = 2 : i64, tpu.core_type = #tpu.core_type<tc>, window_params = [{transform_indices = @transform_0, window_bounds = array<i64: 1, 64, 8>}, {pipeline_mode = #tpu.pipeline_mode<synchronous>, transform_indices = @transform_1, window_bounds = array<i64: 8, 512>}, {pipeline_mode = #tpu.pipeline_mode<synchronous>, transform_indices = @transform_2, window_bounds = array<i64: 128, 512>}, {pipeline_mode = #tpu.pipeline_mode<synchronous>, transform_indices = @transform_3, window_bounds = array<i64: 1, 512>}, {pipeline_mode = #tpu.pipeline_mode<synchronous>, transform_indices = @transform_4, window_bounds = array<i64: 128, 512>}, {pipeline_mode = #tpu.pipeline_mode<synchronous>, transform_indices = @transform_5, window_bounds = array<i64: 128, 512>}, {pipeline_mode = #tpu.pipeline_mode<synchronous>, transform_indices = @transform_6, window_bounds = array<i64: 1, 512>}, {pipeline_mode = #tpu.pipeline_mode<synchronous>, transform_indices = @transform_7, window_bounds = array<i64: 128, 128>}, {pipeline_mode = #tpu.pipeline_mode<synchronous>, transform_indices = @transform_8, window_bounds = array<i64: 1, 128>}, {transform_indices = @transform_9, window_bounds = array<i64: 8, 128>}]} {
    %cst = arith.constant 0.000000e+00 : f32
    %0 = vector.broadcast %cst : f32 to vector<8x128xf32>
    %cst_0 = arith.constant 0.000000e+00 : f32
    %1 = vector.broadcast %cst_0 : f32 to vector<8x128xf32>
    %c0 = arith.constant 0 : index
    %c0_1 = arith.constant 0 : index
    %c0_2 = arith.constant 0 : index
    %2 = vector.load %arg1[%c0, %c0_1, %c0_2] : memref<1x64x8xf32, #tpu.memory_space<vmem>>, vector<1x64x8xf32>
    %3 = vector.shape_cast %2 : vector<1x64x8xf32> to vector<64x8xf32>
    %c0_3 = arith.constant 0 : index
    %c0_4 = arith.constant 0 : index
    %4 = vector.load %arg2[%c0_3, %c0_4] : memref<8x512xf32, #tpu.memory_space<vmem>>, vector<8x512xf32>
    %cst_5 = arith.constant dense<0.000000e+00> : vector<64x512xf32>
    %5 = tpu.matmul %3, %4, %cst_5 {dimension_numbers = #tpu.dot_dimension_numbers<[1], [0], [0], [1], [0, 0, 1, 1], [], []>} : vector<64x8xf32>, vector<8x512xf32>, vector<64x512xf32> -> vector<64x512xf32>
    %c0_6 = arith.constant 0 : index
    %c0_7 = arith.constant 0 : index
    %6 = vector.load %arg4[%c0_6, %c0_7] : memref<1x512xf32, #tpu.memory_space<vmem>>, vector<1x512xf32>
    %7 = vector.broadcast %6 : vector<1x512xf32> to vector<64x512xf32>
    %8 = arith.addf %5, %7 : vector<64x512xf32>
    %c0_8 = arith.constant 0 : index
    %c0_9 = arith.constant 0 : index
    %9 = vector.load %arg12[%c0_8, %c0_9] : memref<64x512xf32, #tpu.memory_space<vmem>>, vector<64x512xf32>
    tpu.vector_store %arg12[%c0_8, %c0_9], %8 {strides = array<i32>} : memref<64x512xf32, #tpu.memory_space<vmem>>, vector<64x512xf32>,
    %c0_i32 = arith.constant 0 : i32
    %c8_i32 = arith.constant 8 : i32
    %10 = arith.muli %c0_i32, %c8_i32 : i32
    %11 = tpu.assume_multiple %10, 8 : i32
    %12 = arith.index_cast %11 : i32 to index
    %c0_10 = arith.constant 0 : index
    %13 = vector.load %arg12[%12, %c0_10] : memref<64x512xf32, #tpu.memory_space<vmem>>, vector<8x128xf32>
    %c0_11 = arith.constant 0 : index
    %c0_12 = arith.constant 0 : index
    %14 = vector.load %arg3[%c0_11, %c0_12] : memref<128x512xf32, #tpu.memory_space<vmem>>, vector<128x128xf32>
    %cst_13 = arith.constant dense<0.000000e+00> : vector<8x128xf32>
    %15 = tpu.matmul %0, %14, %cst_13 {dimension_numbers = #tpu.dot_dimension_numbers<[1], [0], [0], [1], [0, 0, 1, 1], [], []>} : vector<8x128xf32>, vector<128x128xf32>, vector<8x128xf32> -> vector<8x128xf32>
    %16 = arith.addf %13, %15 : vector<8x128xf32>
    %17 = arith.negf %16 : vector<8x128xf32>
    %18 = math.exp %17 : vector<8x128xf32>
    %cst_14 = arith.constant 1.000000e+00 : f32
    %19 = vector.broadcast %cst_14 : f32 to vector<8x128xf32>
    %20 = arith.addf %19, %18 : vector<8x128xf32>
    %21 = arith.divf %19, %20 : vector<8x128xf32>
    %22 = arith.index_cast %11 : i32 to index
    %c128 = arith.constant 128 : index
    %23 = vector.load %arg12[%22, %c128] : memref<64x512xf32, #tpu.memory_space<vmem>>, vector<8x128xf32>
    %c0_15 = arith.constant 0 : index
    %c128_16 = arith.constant 128 : index
    %24 = vector.load %arg3[%c0_15, %c128_16] : memref<128x512xf32, #tpu.memory_space<vmem>>, vector<128x128xf32>
    %cst_17 = arith.constant dense<0.000000e+00> : vector<8x128xf32>
    %25 = tpu.matmul %0, %24, %cst_17 {dimension_numbers = #tpu.dot_dimension_numbers<[1], [0], [0], [1], [0, 0, 1, 1], [], []>} : vector<8x128xf32>, vector<128x128xf32>, vector<8x128xf32> -> vector<8x128xf32>
    %26 = arith.addf %23, %25 : vector<8x128xf32>
    %27 = arith.negf %26 : vector<8x128xf32>
    %28 = math.exp %27 : vector<8x128xf32>
    %cst_18 = arith.constant 1.000000e+00 : f32
    %29 = vector.broadcast %cst_18 : f32 to vector<8x128xf32>
    %30 = arith.addf %29, %28 : vector<8x128xf32>
    %31 = arith.divf %29, %30 : vector<8x128xf32>
    %32 = arith.index_cast %11 : i32 to index
    %c256 = arith.constant 256 : index
    %33 = vector.load %arg12[%32, %c256] : memref<64x512xf32, #tpu.memory_space<vmem>>, vector<8x128xf32>
    %c0_19 = arith.constant 0 : index
    %c256_20 = arith.constant 256 : index
    %34 = vector.load %arg3[%c0_19, %c256_20] : memref<128x512xf32, #tpu.memory_space<vmem>>, vector<128x128xf32>
    %cst_21 = arith.constant dense<0.000000e+00> : vector<8x128xf32>
    %35 = tpu.matmul %0, %34, %cst_21 {dimension_numbers = #tpu.dot_dimension_numbers<[1], [0], [0], [1], [0, 0, 1, 1], [], []>} : vector<8x128xf32>, vector<128x128xf32>, vector<8x128xf32> -> vector<8x128xf32>
    %36 = arith.addf %33, %35 : vector<8x128xf32>
    %37 = math.tanh %36 : vector<8x128xf32>
    %38 = arith.index_cast %11 : i32 to index
    %c384 = arith.constant 384 : index
    %39 = vector.load %arg12[%38, %c384] : memref<64x512xf32, #tpu.memory_space<vmem>>, vector<8x128xf32>
    %c0_22 = arith.constant 0 : index
    %c384_23 = arith.constant 384 : index
    %40 = vector.load %arg3[%c0_22, %c384_23] : memref<128x512xf32, #tpu.memory_space<vmem>>, vector<128x128xf32>
    %cst_24 = arith.constant dense<0.000000e+00> : vector<8x128xf32>
    %41 = tpu.matmul %0, %40, %cst_24 {dimension_numbers = #tpu.dot_dimension_numbers<[1], [0], [0], [1], [0, 0, 1, 1], [], []>} : vector<8x128xf32>, vector<128x128xf32>, vector<8x128xf32> -> vector<8x128xf32>
    %42 = arith.addf %39, %41 : vector<8x128xf32>
    %43 = arith.negf %42 : vector<8x128xf32>
    %44 = math.exp %43 : vector<8x128xf32>
    %cst_25 = arith.constant 1.000000e+00 : f32
    %45 = vector.broadcast %cst_25 : f32 to vector<8x128xf32>
    %46 = arith.addf %45, %44 : vector<8x128xf32>
    %47 = arith.divf %45, %46 : vector<8x128xf32>
    %48 = arith.mulf %31, %1 : vector<8x128xf32>
    %49 = arith.mulf %21, %37 : vector<8x128xf32>
    %50 = arith.addf %48, %49 : vector<8x128xf32>
    %51 = math.tanh %50 : vector<8x128xf32>
    %52 = arith.mulf %47, %51 : vector<8x128xf32>
    %c8_i32_26 = arith.constant 8 : i32
    %53 = arith.muli %c0_i32, %c8_i32_26 : i32
    %c0_i32_27 = arith.constant 0 : i32
    %54 = arith.addi %c0_i32_27, %53 : i32
    %55 = tpu.assume_multiple %54, 8 : i32
    %56 = arith.index_cast %55 : i32 to index
    %c0_28 = arith.constant 0 : index
    %57 = vector.load %arg11[%56, %c0_28] : memref<64x128xf32, #tpu.memory_space<vmem>>, vector<8x128xf32>
    tpu.vector_store %arg11[%56, %c0_28], %52 {strides = array<i32>} : memref<64x128xf32, #tpu.memory_space<vmem>>, vector<8x128xf32>,
    %c1_i32 = arith.constant 1 : i32
    %c8_i32_29 = arith.constant 8 : i32
    %58 = arith.muli %c1_i32, %c8_i32_29 : i32
    %59 = tpu.assume_multiple %58, 8 : i32
    %60 = arith.index_cast %59 : i32 to index
    %c0_30 = arith.constant 0 : index
    %61 = vector.load %arg12[%60, %c0_30] : memref<64x512xf32, #tpu.memory_space<vmem>>, vector<8x128xf32>
    %c0_31 = arith.constant 0 : index
    %c0_32 = arith.constant 0 : index
    %62 = vector.load %arg3[%c0_31, %c0_32] : memref<128x512xf32, #tpu.memory_space<vmem>>, vector<128x128xf32>
    %cst_33 = arith.constant dense<0.000000e+00> : vector<8x128xf32>
    %63 = tpu.matmul %52, %62, %cst_33 {dimension_numbers = #tpu.dot_dimension_numbers<[1], [0], [0], [1], [0, 0, 1, 1], [], []>} : vector<8x128xf32>, vector<128x128xf32>, vector<8x128xf32> -> vector<8x128xf32>
    %64 = arith.addf %61, %63 : vector<8x128xf32>
    %65 = arith.negf %64 : vector<8x128xf32>
    %66 = math.exp %65 : vector<8x128xf32>
    %cst_34 = arith.constant 1.000000e+00 : f32
    %67 = vector.broadcast %cst_34 : f32 to vector<8x128xf32>
    %68 = arith.addf %67, %66 : vector<8x128xf32>
    %69 = arith.divf %67, %68 : vector<8x128xf32>
    %70 = arith.index_cast %59 : i32 to index
    %c128_35 = arith.constant 128 : index
    %71 = vector.load %arg12[%70, %c128_35] : memref<64x512xf32, #tpu.memory_space<vmem>>, vector<8x128xf32>
    %c0_36 = arith.constant 0 : index
    %c128_37 = arith.constant 128 : index
    %72 = vector.load %arg3[%c0_36, %c128_37] : memref<128x512xf32, #tpu.memory_space<vmem>>, vector<128x128xf32>
    %cst_38 = arith.constant dense<0.000000e+00> : vector<8x128xf32>
    %73 = tpu.matmul %52, %72, %cst_38 {dimension_numbers = #tpu.dot_dimension_numbers<[1], [0], [0], [1], [0, 0, 1, 1], [], []>} : vector<8x128xf32>, vector<128x128xf32>, vector<8x128xf32> -> vector<8x128xf32>
    %74 = arith.addf %71, %73 : vector<8x128xf32>
    %75 = arith.negf %74 : vector<8x128xf32>
    %76 = math.exp %75 : vector<8x128xf32>
    %cst_39 = arith.constant 1.000000e+00 : f32
    %77 = vector.broadcast %cst_39 : f32 to vector<8x128xf32>
    %78 = arith.addf %77, %76 : vector<8x128xf32>
    %79 = arith.divf %77, %78 : vector<8x128xf32>
    %80 = arith.index_cast %59 : i32 to index
    %c256_40 = arith.constant 256 : index
    %81 = vector.load %arg12[%80, %c256_40] : memref<64x512xf32, #tpu.memory_space<vmem>>, vector<8x128xf32>
    %c0_41 = arith.constant 0 : index
    %c256_42 = arith.constant 256 : index
    %82 = vector.load %arg3[%c0_41, %c256_42] : memref<128x512xf32, #tpu.memory_space<vmem>>, vector<128x128xf32>
    %cst_43 = arith.constant dense<0.000000e+00> : vector<8x128xf32>
    %83 = tpu.matmul %52, %82, %cst_43 {dimension_numbers = #tpu.dot_dimension_numbers<[1], [0], [0], [1], [0, 0, 1, 1], [], []>} : vector<8x128xf32>, vector<128x128xf32>, vector<8x128xf32> -> vector<8x128xf32>
    %84 = arith.addf %81, %83 : vector<8x128xf32>
    %85 = math.tanh %84 : vector<8x128xf32>
    %86 = arith.index_cast %59 : i32 to index
    %c384_44 = arith.constant 384 : index
    %87 = vector.load %arg12[%86, %c384_44] : memref<64x512xf32, #tpu.memory_space<vmem>>, vector<8x128xf32>
    %c0_45 = arith.constant 0 : index
    %c384_46 = arith.constant 384 : index
    %88 = vector.load %arg3[%c0_45, %c384_46] : memref<128x512xf32, #tpu.memory_space<vmem>>, vector<128x128xf32>
    %cst_47 = arith.constant dense<0.000000e+00> : vector<8x128xf32>
    %89 = tpu.matmul %52, %88, %cst_47 {dimension_numbers = #tpu.dot_dimension_numbers<[1], [0], [0], [1], [0, 0, 1, 1], [], []>} : vector<8x128xf32>, vector<128x128xf32>, vector<8x128xf32> -> vector<8x128xf32>
    %90 = arith.addf %87, %89 : vector<8x128xf32>
    %91 = arith.negf %90 : vector<8x128xf32>
    %92 = math.exp %91 : vector<8x128xf32>
    %cst_48 = arith.constant 1.000000e+00 : f32
    %93 = vector.broadcast %cst_48 : f32 to vector<8x128xf32>
    %94 = arith.addf %93, %92 : vector<8x128xf32>
    %95 = arith.divf %93, %94 : vector<8x128xf32>
    %96 = arith.mulf %79, %50 : vector<8x128xf32>
    %97 = arith.mulf %69, %85 : vector<8x128xf32>
    %98 = arith.addf %96, %97 : vector<8x128xf32>
    %99 = math.tanh %98 : vector<8x128xf32>
    %100 = arith.mulf %95, %99 : vector<8x128xf32>
    %c8_i32_49 = arith.constant 8 : i32
    %101 = arith.muli %c1_i32, %c8_i32_49 : i32
    %c0_i32_50 = arith.constant 0 : i32
    %102 = arith.addi %c0_i32_50, %101 : i32
    %103 = tpu.assume_multiple %102, 8 : i32
    %104 = arith.index_cast %103 : i32 to index
    %c0_51 = arith.constant 0 : index
    %105 = vector.load %arg11[%104, %c0_51] : memref<64x128xf32, #tpu.memory_space<vmem>>, vector<8x128xf32>
    tpu.vector_store %arg11[%104, %c0_51], %100 {strides = array<i32>} : memref<64x128xf32, #tpu.memory_space<vmem>>, vector<8x128xf32>,
    %c2_i32 = arith.constant 2 : i32
    %c8_i32_52 = arith.constant 8 : i32
    %106 = arith.muli %c2_i32, %c8_i32_52 : i32
    %107 = tpu.assume_multiple %106, 8 : i32
    %108 = arith.index_cast %107 : i32 to index
    %c0_53 = arith.constant 0 : index
    %109 = vector.load %arg12[%108, %c0_53] : memref<64x512xf32, #tpu.memory_space<vmem>>, vector<8x128xf32>
    %c0_54 = arith.constant 0 : index
    %c0_55 = arith.constant 0 : index
    %110 = vector.load %arg3[%c0_54, %c0_55] : memref<128x512xf32, #tpu.memory_space<vmem>>, vector<128x128xf32>
    %cst_56 = arith.constant dense<0.000000e+00> : vector<8x128xf32>
    %111 = tpu.matmul %100, %110, %cst_56 {dimension_numbers = #tpu.dot_dimension_numbers<[1], [0], [0], [1], [0, 0, 1, 1], [], []>} : vector<8x128xf32>, vector<128x128xf32>, vector<8x128xf32> -> vector<8x128xf32>
    %112 = arith.addf %109, %111 : vector<8x128xf32>
    %113 = arith.negf %112 : vector<8x128xf32>
    %114 = math.exp %113 : vector<8x128xf32>
    %cst_57 = arith.constant 1.000000e+00 : f32
    %115 = vector.broadcast %cst_57 : f32 to vector<8x128xf32>
    %116 = arith.addf %115, %114 : vector<8x128xf32>
    %117 = arith.divf %115, %116 : vector<8x128xf32>
    %118 = arith.index_cast %107 : i32 to index
    %c128_58 = arith.constant 128 : index
    %119 = vector.load %arg12[%118, %c128_58] : memref<64x512xf32, #tpu.memory_space<vmem>>, vector<8x128xf32>
    %c0_59 = arith.constant 0 : index
    %c128_60 = arith.constant 128 : index
    %120 = vector.load %arg3[%c0_59, %c128_60] : memref<128x512xf32, #tpu.memory_space<vmem>>, vector<128x128xf32>
    %cst_61 = arith.constant dense<0.000000e+00> : vector<8x128xf32>
    %121 = tpu.matmul %100, %120, %cst_61 {dimension_numbers = #tpu.dot_dimension_numbers<[1], [0], [0], [1], [0, 0, 1, 1], [], []>} : vector<8x128xf32>, vector<128x128xf32>, vector<8x128xf32> -> vector<8x128xf32>
    %122 = arith.addf %119, %121 : vector<8x128xf32>
    %123 = arith.negf %122 : vector<8x128xf32>
    %124 = math.exp %123 : vector<8x128xf32>
    %cst_62 = arith.constant 1.000000e+00 : f32
    %125 = vector.broadcast %cst_62 : f32 to vector<8x128xf32>
    %126 = arith.addf %125, %124 : vector<8x128xf32>
    %127 = arith.divf %125, %126 : vector<8x128xf32>
    %128 = arith.index_cast %107 : i32 to index
    %c256_63 = arith.constant 256 : index
    %129 = vector.load %arg12[%128, %c256_63] : memref<64x512xf32, #tpu.memory_space<vmem>>, vector<8x128xf32>
    %c0_64 = arith.constant 0 : index
    %c256_65 = arith.constant 256 : index
    %130 = vector.load %arg3[%c0_64, %c256_65] : memref<128x512xf32, #tpu.memory_space<vmem>>, vector<128x128xf32>
    %cst_66 = arith.constant dense<0.000000e+00> : vector<8x128xf32>
    %131 = tpu.matmul %100, %130, %cst_66 {dimension_numbers = #tpu.dot_dimension_numbers<[1], [0], [0], [1], [0, 0, 1, 1], [], []>} : vector<8x128xf32>, vector<128x128xf32>, vector<8x128xf32> -> vector<8x128xf32>
    %132 = arith.addf %129, %131 : vector<8x128xf32>
    %133 = math.tanh %132 : vector<8x128xf32>
    %134 = arith.index_cast %107 : i32 to index
    %c384_67 = arith.constant 384 : index
    %135 = vector.load %arg12[%134, %c384_67] : memref<64x512xf32, #tpu.memory_space<vmem>>, vector<8x128xf32>
    %c0_68 = arith.constant 0 : index
    %c384_69 = arith.constant 384 : index
    %136 = vector.load %arg3[%c0_68, %c384_69] : memref<128x512xf32, #tpu.memory_space<vmem>>, vector<128x128xf32>
    %cst_70 = arith.constant dense<0.000000e+00> : vector<8x128xf32>
    %137 = tpu.matmul %100, %136, %cst_70 {dimension_numbers = #tpu.dot_dimension_numbers<[1], [0], [0], [1], [0, 0, 1, 1], [], []>} : vector<8x128xf32>, vector<128x128xf32>, vector<8x128xf32> -> vector<8x128xf32>
    %138 = arith.addf %135, %137 : vector<8x128xf32>
    %139 = arith.negf %138 : vector<8x128xf32>
    %140 = math.exp %139 : vector<8x128xf32>
    %cst_71 = arith.constant 1.000000e+00 : f32
    %141 = vector.broadcast %cst_71 : f32 to vector<8x128xf32>
    %142 = arith.addf %141, %140 : vector<8x128xf32>
    %143 = arith.divf %141, %142 : vector<8x128xf32>
    %144 = arith.mulf %127, %98 : vector<8x128xf32>
    %145 = arith.mulf %117, %133 : vector<8x128xf32>
    %146 = arith.addf %144, %145 : vector<8x128xf32>
    %147 = math.tanh %146 : vector<8x128xf32>
    %148 = arith.mulf %143, %147 : vector<8x128xf32>
    %c8_i32_72 = arith.constant 8 : i32
    %149 = arith.muli %c2_i32, %c8_i32_72 : i32
    %c0_i32_73 = arith.constant 0 : i32
    %150 = arith.addi %c0_i32_73, %149 : i32
    %151 = tpu.assume_multiple %150, 8 : i32
    %152 = arith.index_cast %151 : i32 to index
    %c0_74 = arith.constant 0 : index
    %153 = vector.load %arg11[%152, %c0_74] : memref<64x128xf32, #tpu.memory_space<vmem>>, vector<8x128xf32>
    tpu.vector_store %arg11[%152, %c0_74], %148 {strides = array<i32>} : memref<64x128xf32, #tpu.memory_space<vmem>>, vector<8x128xf32>,
    %c3_i32 = arith.constant 3 : i32
    %c8_i32_75 = arith.constant 8 : i32
    %154 = arith.muli %c3_i32, %c8_i32_75 : i32
    %155 = tpu.assume_multiple %154, 8 : i32
    %156 = arith.index_cast %155 : i32 to index
    %c0_76 = arith.constant 0 : index
    %157 = vector.load %arg12[%156, %c0_76] : memref<64x512xf32, #tpu.memory_space<vmem>>, vector<8x128xf32>
    %c0_77 = arith.constant 0 : index
    %c0_78 = arith.constant 0 : index
    %158 = vector.load %arg3[%c0_77, %c0_78] : memref<128x512xf32, #tpu.memory_space<vmem>>, vector<128x128xf32>
    %cst_79 = arith.constant dense<0.000000e+00> : vector<8x128xf32>
    %159 = tpu.matmul %148, %158, %cst_79 {dimension_numbers = #tpu.dot_dimension_numbers<[1], [0], [0], [1], [0, 0, 1, 1], [], []>} : vector<8x128xf32>, vector<128x128xf32>, vector<8x128xf32> -> vector<8x128xf32>
    %160 = arith.addf %157, %159 : vector<8x128xf32>
    %161 = arith.negf %160 : vector<8x128xf32>
    %162 = math.exp %161 : vector<8x128xf32>
    %cst_80 = arith.constant 1.000000e+00 : f32
    %163 = vector.broadcast %cst_80 : f32 to vector<8x128xf32>
    %164 = arith.addf %163, %162 : vector<8x128xf32>
    %165 = arith.divf %163, %164 : vector<8x128xf32>
    %166 = arith.index_cast %155 : i32 to index
    %c128_81 = arith.constant 128 : index
    %167 = vector.load %arg12[%166, %c128_81] : memref<64x512xf32, #tpu.memory_space<vmem>>, vector<8x128xf32>
    %c0_82 = arith.constant 0 : index
    %c128_83 = arith.constant 128 : index
    %168 = vector.load %arg3[%c0_82, %c128_83] : memref<128x512xf32, #tpu.memory_space<vmem>>, vector<128x128xf32>
    %cst_84 = arith.constant dense<0.000000e+00> : vector<8x128xf32>
    %169 = tpu.matmul %148, %168, %cst_84 {dimension_numbers = #tpu.dot_dimension_numbers<[1], [0], [0], [1], [0, 0, 1, 1], [], []>} : vector<8x128xf32>, vector<128x128xf32>, vector<8x128xf32> -> vector<8x128xf32>
    %170 = arith.addf %167, %169 : vector<8x128xf32>
    %171 = arith.negf %170 : vector<8x128xf32>
    %172 = math.exp %171 : vector<8x128xf32>
    %cst_85 = arith.constant 1.000000e+00 : f32
    %173 = vector.broadcast %cst_85 : f32 to vector<8x128xf32>
    %174 = arith.addf %173, %172 : vector<8x128xf32>
    %175 = arith.divf %173, %174 : vector<8x128xf32>
    %176 = arith.index_cast %155 : i32 to index
    %c256_86 = arith.constant 256 : index
    %177 = vector.load %arg12[%176, %c256_86] : memref<64x512xf32, #tpu.memory_space<vmem>>, vector<8x128xf32>
    %c0_87 = arith.constant 0 : index
    %c256_88 = arith.constant 256 : index
    %178 = vector.load %arg3[%c0_87, %c256_88] : memref<128x512xf32, #tpu.memory_space<vmem>>, vector<128x128xf32>
    %cst_89 = arith.constant dense<0.000000e+00> : vector<8x128xf32>
    %179 = tpu.matmul %148, %178, %cst_89 {dimension_numbers = #tpu.dot_dimension_numbers<[1], [0], [0], [1], [0, 0, 1, 1], [], []>} : vector<8x128xf32>, vector<128x128xf32>, vector<8x128xf32> -> vector<8x128xf32>
    %180 = arith.addf %177, %179 : vector<8x128xf32>
    %181 = math.tanh %180 : vector<8x128xf32>
    %182 = arith.index_cast %155 : i32 to index
    %c384_90 = arith.constant 384 : index
    %183 = vector.load %arg12[%182, %c384_90] : memref<64x512xf32, #tpu.memory_space<vmem>>, vector<8x128xf32>
    %c0_91 = arith.constant 0 : index
    %c384_92 = arith.constant 384 : index
    %184 = vector.load %arg3[%c0_91, %c384_92] : memref<128x512xf32, #tpu.memory_space<vmem>>, vector<128x128xf32>
    %cst_93 = arith.constant dense<0.000000e+00> : vector<8x128xf32>
    %185 = tpu.matmul %148, %184, %cst_93 {dimension_numbers = #tpu.dot_dimension_numbers<[1], [0], [0], [1], [0, 0, 1, 1], [], []>} : vector<8x128xf32>, vector<128x128xf32>, vector<8x128xf32> -> vector<8x128xf32>
    %186 = arith.addf %183, %185 : vector<8x128xf32>
    %187 = arith.negf %186 : vector<8x128xf32>
    %188 = math.exp %187 : vector<8x128xf32>
    %cst_94 = arith.constant 1.000000e+00 : f32
    %189 = vector.broadcast %cst_94 : f32 to vector<8x128xf32>
    %190 = arith.addf %189, %188 : vector<8x128xf32>
    %191 = arith.divf %189, %190 : vector<8x128xf32>
    %192 = arith.mulf %175, %146 : vector<8x128xf32>
    %193 = arith.mulf %165, %181 : vector<8x128xf32>
    %194 = arith.addf %192, %193 : vector<8x128xf32>
    %195 = math.tanh %194 : vector<8x128xf32>
    %196 = arith.mulf %191, %195 : vector<8x128xf32>
    %c8_i32_95 = arith.constant 8 : i32
    %197 = arith.muli %c3_i32, %c8_i32_95 : i32
    %c0_i32_96 = arith.constant 0 : i32
    %198 = arith.addi %c0_i32_96, %197 : i32
    %199 = tpu.assume_multiple %198, 8 : i32
    %200 = arith.index_cast %199 : i32 to index
    %c0_97 = arith.constant 0 : index
    %201 = vector.load %arg11[%200, %c0_97] : memref<64x128xf32, #tpu.memory_space<vmem>>, vector<8x128xf32>
    tpu.vector_store %arg11[%200, %c0_97], %196 {strides = array<i32>} : memref<64x128xf32, #tpu.memory_space<vmem>>, vector<8x128xf32>,
    %c4_i32 = arith.constant 4 : i32
    %c8_i32_98 = arith.constant 8 : i32
    %202 = arith.muli %c4_i32, %c8_i32_98 : i32
    %203 = tpu.assume_multiple %202, 8 : i32
    %204 = arith.index_cast %203 : i32 to index
    %c0_99 = arith.constant 0 : index
    %205 = vector.load %arg12[%204, %c0_99] : memref<64x512xf32, #tpu.memory_space<vmem>>, vector<8x128xf32>
    %c0_100 = arith.constant 0 : index
    %c0_101 = arith.constant 0 : index
    %206 = vector.load %arg3[%c0_100, %c0_101] : memref<128x512xf32, #tpu.memory_space<vmem>>, vector<128x128xf32>
    %cst_102 = arith.constant dense<0.000000e+00> : vector<8x128xf32>
    %207 = tpu.matmul %196, %206, %cst_102 {dimension_numbers = #tpu.dot_dimension_numbers<[1], [0], [0], [1], [0, 0, 1, 1], [], []>} : vector<8x128xf32>, vector<128x128xf32>, vector<8x128xf32> -> vector<8x128xf32>
    %208 = arith.addf %205, %207 : vector<8x128xf32>
    %209 = arith.negf %208 : vector<8x128xf32>
    %210 = math.exp %209 : vector<8x128xf32>
    %cst_103 = arith.constant 1.000000e+00 : f32
    %211 = vector.broadcast %cst_103 : f32 to vector<8x128xf32>
    %212 = arith.addf %211, %210 : vector<8x128xf32>
    %213 = arith.divf %211, %212 : vector<8x128xf32>
    %214 = arith.index_cast %203 : i32 to index
    %c128_104 = arith.constant 128 : index
    %215 = vector.load %arg12[%214, %c128_104] : memref<64x512xf32, #tpu.memory_space<vmem>>, vector<8x128xf32>
    %c0_105 = arith.constant 0 : index
    %c128_106 = arith.constant 128 : index
    %216 = vector.load %arg3[%c0_105, %c128_106] : memref<128x512xf32, #tpu.memory_space<vmem>>, vector<128x128xf32>
    %cst_107 = arith.constant dense<0.000000e+00> : vector<8x128xf32>
    %217 = tpu.matmul %196, %216, %cst_107 {dimension_numbers = #tpu.dot_dimension_numbers<[1], [0], [0], [1], [0, 0, 1, 1], [], []>} : vector<8x128xf32>, vector<128x128xf32>, vector<8x128xf32> -> vector<8x128xf32>
    %218 = arith.addf %215, %217 : vector<8x128xf32>
    %219 = arith.negf %218 : vector<8x128xf32>
    %220 = math.exp %219 : vector<8x128xf32>
    %cst_108 = arith.constant 1.000000e+00 : f32
    %221 = vector.broadcast %cst_108 : f32 to vector<8x128xf32>
    %222 = arith.addf %221, %220 : vector<8x128xf32>
    %223 = arith.divf %221, %222 : vector<8x128xf32>
    %224 = arith.index_cast %203 : i32 to index
    %c256_109 = arith.constant 256 : index
    %225 = vector.load %arg12[%224, %c256_109] : memref<64x512xf32, #tpu.memory_space<vmem>>, vector<8x128xf32>
    %c0_110 = arith.constant 0 : index
    %c256_111 = arith.constant 256 : index
    %226 = vector.load %arg3[%c0_110, %c256_111] : memref<128x512xf32, #tpu.memory_space<vmem>>, vector<128x128xf32>
    %cst_112 = arith.constant dense<0.000000e+00> : vector<8x128xf32>
    %227 = tpu.matmul %196, %226, %cst_112 {dimension_numbers = #tpu.dot_dimension_numbers<[1], [0], [0], [1], [0, 0, 1, 1], [], []>} : vector<8x128xf32>, vector<128x128xf32>, vector<8x128xf32> -> vector<8x128xf32>
    %228 = arith.addf %225, %227 : vector<8x128xf32>
    %229 = math.tanh %228 : vector<8x128xf32>
    %230 = arith.index_cast %203 : i32 to index
    %c384_113 = arith.constant 384 : index
    %231 = vector.load %arg12[%230, %c384_113] : memref<64x512xf32, #tpu.memory_space<vmem>>, vector<8x128xf32>
    %c0_114 = arith.constant 0 : index
    %c384_115 = arith.constant 384 : index
    %232 = vector.load %arg3[%c0_114, %c384_115] : memref<128x512xf32, #tpu.memory_space<vmem>>, vector<128x128xf32>
    %cst_116 = arith.constant dense<0.000000e+00> : vector<8x128xf32>
    %233 = tpu.matmul %196, %232, %cst_116 {dimension_numbers = #tpu.dot_dimension_numbers<[1], [0], [0], [1], [0, 0, 1, 1], [], []>} : vector<8x128xf32>, vector<128x128xf32>, vector<8x128xf32> -> vector<8x128xf32>
    %234 = arith.addf %231, %233 : vector<8x128xf32>
    %235 = arith.negf %234 : vector<8x128xf32>
    %236 = math.exp %235 : vector<8x128xf32>
    %cst_117 = arith.constant 1.000000e+00 : f32
    %237 = vector.broadcast %cst_117 : f32 to vector<8x128xf32>
    %238 = arith.addf %237, %236 : vector<8x128xf32>
    %239 = arith.divf %237, %238 : vector<8x128xf32>
    %240 = arith.mulf %223, %194 : vector<8x128xf32>
    %241 = arith.mulf %213, %229 : vector<8x128xf32>
    %242 = arith.addf %240, %241 : vector<8x128xf32>
    %243 = math.tanh %242 : vector<8x128xf32>
    %244 = arith.mulf %239, %243 : vector<8x128xf32>
    %c8_i32_118 = arith.constant 8 : i32
    %245 = arith.muli %c4_i32, %c8_i32_118 : i32
    %c0_i32_119 = arith.constant 0 : i32
    %246 = arith.addi %c0_i32_119, %245 : i32
    %247 = tpu.assume_multiple %246, 8 : i32
    %248 = arith.index_cast %247 : i32 to index
    %c0_120 = arith.constant 0 : index
    %249 = vector.load %arg11[%248, %c0_120] : memref<64x128xf32, #tpu.memory_space<vmem>>, vector<8x128xf32>
    tpu.vector_store %arg11[%248, %c0_120], %244 {strides = array<i32>} : memref<64x128xf32, #tpu.memory_space<vmem>>, vector<8x128xf32>,
    %c5_i32 = arith.constant 5 : i32
    %c8_i32_121 = arith.constant 8 : i32
    %250 = arith.muli %c5_i32, %c8_i32_121 : i32
    %251 = tpu.assume_multiple %250, 8 : i32
    %252 = arith.index_cast %251 : i32 to index
    %c0_122 = arith.constant 0 : index
    %253 = vector.load %arg12[%252, %c0_122] : memref<64x512xf32, #tpu.memory_space<vmem>>, vector<8x128xf32>
    %c0_123 = arith.constant 0 : index
    %c0_124 = arith.constant 0 : index
    %254 = vector.load %arg3[%c0_123, %c0_124] : memref<128x512xf32, #tpu.memory_space<vmem>>, vector<128x128xf32>
    %cst_125 = arith.constant dense<0.000000e+00> : vector<8x128xf32>
    %255 = tpu.matmul %244, %254, %cst_125 {dimension_numbers = #tpu.dot_dimension_numbers<[1], [0], [0], [1], [0, 0, 1, 1], [], []>} : vector<8x128xf32>, vector<128x128xf32>, vector<8x128xf32> -> vector<8x128xf32>
    %256 = arith.addf %253, %255 : vector<8x128xf32>
    %257 = arith.negf %256 : vector<8x128xf32>
    %258 = math.exp %257 : vector<8x128xf32>
    %cst_126 = arith.constant 1.000000e+00 : f32
    %259 = vector.broadcast %cst_126 : f32 to vector<8x128xf32>
    %260 = arith.addf %259, %258 : vector<8x128xf32>
    %261 = arith.divf %259, %260 : vector<8x128xf32>
    %262 = arith.index_cast %251 : i32 to index
    %c128_127 = arith.constant 128 : index
    %263 = vector.load %arg12[%262, %c128_127] : memref<64x512xf32, #tpu.memory_space<vmem>>, vector<8x128xf32>
    %c0_128 = arith.constant 0 : index
    %c128_129 = arith.constant 128 : index
    %264 = vector.load %arg3[%c0_128, %c128_129] : memref<128x512xf32, #tpu.memory_space<vmem>>, vector<128x128xf32>
    %cst_130 = arith.constant dense<0.000000e+00> : vector<8x128xf32>
    %265 = tpu.matmul %244, %264, %cst_130 {dimension_numbers = #tpu.dot_dimension_numbers<[1], [0], [0], [1], [0, 0, 1, 1], [], []>} : vector<8x128xf32>, vector<128x128xf32>, vector<8x128xf32> -> vector<8x128xf32>
    %266 = arith.addf %263, %265 : vector<8x128xf32>
    %267 = arith.negf %266 : vector<8x128xf32>
    %268 = math.exp %267 : vector<8x128xf32>
    %cst_131 = arith.constant 1.000000e+00 : f32
    %269 = vector.broadcast %cst_131 : f32 to vector<8x128xf32>
    %270 = arith.addf %269, %268 : vector<8x128xf32>
    %271 = arith.divf %269, %270 : vector<8x128xf32>
    %272 = arith.index_cast %251 : i32 to index
    %c256_132 = arith.constant 256 : index
    %273 = vector.load %arg12[%272, %c256_132] : memref<64x512xf32, #tpu.memory_space<vmem>>, vector<8x128xf32>
    %c0_133 = arith.constant 0 : index
    %c256_134 = arith.constant 256 : index
    %274 = vector.load %arg3[%c0_133, %c256_134] : memref<128x512xf32, #tpu.memory_space<vmem>>, vector<128x128xf32>
    %cst_135 = arith.constant dense<0.000000e+00> : vector<8x128xf32>
    %275 = tpu.matmul %244, %274, %cst_135 {dimension_numbers = #tpu.dot_dimension_numbers<[1], [0], [0], [1], [0, 0, 1, 1], [], []>} : vector<8x128xf32>, vector<128x128xf32>, vector<8x128xf32> -> vector<8x128xf32>
    %276 = arith.addf %273, %275 : vector<8x128xf32>
    %277 = math.tanh %276 : vector<8x128xf32>
    %278 = arith.index_cast %251 : i32 to index
    %c384_136 = arith.constant 384 : index
    %279 = vector.load %arg12[%278, %c384_136] : memref<64x512xf32, #tpu.memory_space<vmem>>, vector<8x128xf32>
    %c0_137 = arith.constant 0 : index
    %c384_138 = arith.constant 384 : index
    %280 = vector.load %arg3[%c0_137, %c384_138] : memref<128x512xf32, #tpu.memory_space<vmem>>, vector<128x128xf32>
    %cst_139 = arith.constant dense<0.000000e+00> : vector<8x128xf32>
    %281 = tpu.matmul %244, %280, %cst_139 {dimension_numbers = #tpu.dot_dimension_numbers<[1], [0], [0], [1], [0, 0, 1, 1], [], []>} : vector<8x128xf32>, vector<128x128xf32>, vector<8x128xf32> -> vector<8x128xf32>
    %282 = arith.addf %279, %281 : vector<8x128xf32>
    %283 = arith.negf %282 : vector<8x128xf32>
    %284 = math.exp %283 : vector<8x128xf32>
    %cst_140 = arith.constant 1.000000e+00 : f32
    %285 = vector.broadcast %cst_140 : f32 to vector<8x128xf32>
    %286 = arith.addf %285, %284 : vector<8x128xf32>
    %287 = arith.divf %285, %286 : vector<8x128xf32>
    %288 = arith.mulf %271, %242 : vector<8x128xf32>
    %289 = arith.mulf %261, %277 : vector<8x128xf32>
    %290 = arith.addf %288, %289 : vector<8x128xf32>
    %291 = math.tanh %290 : vector<8x128xf32>
    %292 = arith.mulf %287, %291 : vector<8x128xf32>
    %c8_i32_141 = arith.constant 8 : i32
    %293 = arith.muli %c5_i32, %c8_i32_141 : i32
    %c0_i32_142 = arith.constant 0 : i32
    %294 = arith.addi %c0_i32_142, %293 : i32
    %295 = tpu.assume_multiple %294, 8 : i32
    %296 = arith.index_cast %295 : i32 to index
    %c0_143 = arith.constant 0 : index
    %297 = vector.load %arg11[%296, %c0_143] : memref<64x128xf32, #tpu.memory_space<vmem>>, vector<8x128xf32>
    tpu.vector_store %arg11[%296, %c0_143], %292 {strides = array<i32>} : memref<64x128xf32, #tpu.memory_space<vmem>>, vector<8x128xf32>,
    %c6_i32 = arith.constant 6 : i32
    %c8_i32_144 = arith.constant 8 : i32
    %298 = arith.muli %c6_i32, %c8_i32_144 : i32
    %299 = tpu.assume_multiple %298, 8 : i32
    %300 = arith.index_cast %299 : i32 to index
    %c0_145 = arith.constant 0 : index
    %301 = vector.load %arg12[%300, %c0_145] : memref<64x512xf32, #tpu.memory_space<vmem>>, vector<8x128xf32>
    %c0_146 = arith.constant 0 : index
    %c0_147 = arith.constant 0 : index
    %302 = vector.load %arg3[%c0_146, %c0_147] : memref<128x512xf32, #tpu.memory_space<vmem>>, vector<128x128xf32>
    %cst_148 = arith.constant dense<0.000000e+00> : vector<8x128xf32>
    %303 = tpu.matmul %292, %302, %cst_148 {dimension_numbers = #tpu.dot_dimension_numbers<[1], [0], [0], [1], [0, 0, 1, 1], [], []>} : vector<8x128xf32>, vector<128x128xf32>, vector<8x128xf32> -> vector<8x128xf32>
    %304 = arith.addf %301, %303 : vector<8x128xf32>
    %305 = arith.negf %304 : vector<8x128xf32>
    %306 = math.exp %305 : vector<8x128xf32>
    %cst_149 = arith.constant 1.000000e+00 : f32
    %307 = vector.broadcast %cst_149 : f32 to vector<8x128xf32>
    %308 = arith.addf %307, %306 : vector<8x128xf32>
    %309 = arith.divf %307, %308 : vector<8x128xf32>
    %310 = arith.index_cast %299 : i32 to index
    %c128_150 = arith.constant 128 : index
    %311 = vector.load %arg12[%310, %c128_150] : memref<64x512xf32, #tpu.memory_space<vmem>>, vector<8x128xf32>
    %c0_151 = arith.constant 0 : index
    %c128_152 = arith.constant 128 : index
    %312 = vector.load %arg3[%c0_151, %c128_152] : memref<128x512xf32, #tpu.memory_space<vmem>>, vector<128x128xf32>
    %cst_153 = arith.constant dense<0.000000e+00> : vector<8x128xf32>
    %313 = tpu.matmul %292, %312, %cst_153 {dimension_numbers = #tpu.dot_dimension_numbers<[1], [0], [0], [1], [0, 0, 1, 1], [], []>} : vector<8x128xf32>, vector<128x128xf32>, vector<8x128xf32> -> vector<8x128xf32>
    %314 = arith.addf %311, %313 : vector<8x128xf32>
    %315 = arith.negf %314 : vector<8x128xf32>
    %316 = math.exp %315 : vector<8x128xf32>
    %cst_154 = arith.constant 1.000000e+00 : f32
    %317 = vector.broadcast %cst_154 : f32 to vector<8x128xf32>
    %318 = arith.addf %317, %316 : vector<8x128xf32>
    %319 = arith.divf %317, %318 : vector<8x128xf32>
    %320 = arith.index_cast %299 : i32 to index
    %c256_155 = arith.constant 256 : index
    %321 = vector.load %arg12[%320, %c256_155] : memref<64x512xf32, #tpu.memory_space<vmem>>, vector<8x128xf32>
    %c0_156 = arith.constant 0 : index
    %c256_157 = arith.constant 256 : index
    %322 = vector.load %arg3[%c0_156, %c256_157] : memref<128x512xf32, #tpu.memory_space<vmem>>, vector<128x128xf32>
    %cst_158 = arith.constant dense<0.000000e+00> : vector<8x128xf32>
    %323 = tpu.matmul %292, %322, %cst_158 {dimension_numbers = #tpu.dot_dimension_numbers<[1], [0], [0], [1], [0, 0, 1, 1], [], []>} : vector<8x128xf32>, vector<128x128xf32>, vector<8x128xf32> -> vector<8x128xf32>
    %324 = arith.addf %321, %323 : vector<8x128xf32>
    %325 = math.tanh %324 : vector<8x128xf32>
    %326 = arith.index_cast %299 : i32 to index
    %c384_159 = arith.constant 384 : index
    %327 = vector.load %arg12[%326, %c384_159] : memref<64x512xf32, #tpu.memory_space<vmem>>, vector<8x128xf32>
    %c0_160 = arith.constant 0 : index
    %c384_161 = arith.constant 384 : index
    %328 = vector.load %arg3[%c0_160, %c384_161] : memref<128x512xf32, #tpu.memory_space<vmem>>, vector<128x128xf32>
    %cst_162 = arith.constant dense<0.000000e+00> : vector<8x128xf32>
    %329 = tpu.matmul %292, %328, %cst_162 {dimension_numbers = #tpu.dot_dimension_numbers<[1], [0], [0], [1], [0, 0, 1, 1], [], []>} : vector<8x128xf32>, vector<128x128xf32>, vector<8x128xf32> -> vector<8x128xf32>
    %330 = arith.addf %327, %329 : vector<8x128xf32>
    %331 = arith.negf %330 : vector<8x128xf32>
    %332 = math.exp %331 : vector<8x128xf32>
    %cst_163 = arith.constant 1.000000e+00 : f32
    %333 = vector.broadcast %cst_163 : f32 to vector<8x128xf32>
    %334 = arith.addf %333, %332 : vector<8x128xf32>
    %335 = arith.divf %333, %334 : vector<8x128xf32>
    %336 = arith.mulf %319, %290 : vector<8x128xf32>
    %337 = arith.mulf %309, %325 : vector<8x128xf32>
    %338 = arith.addf %336, %337 : vector<8x128xf32>
    %339 = math.tanh %338 : vector<8x128xf32>
    %340 = arith.mulf %335, %339 : vector<8x128xf32>
    %c8_i32_164 = arith.constant 8 : i32
    %341 = arith.muli %c6_i32, %c8_i32_164 : i32
    %c0_i32_165 = arith.constant 0 : i32
    %342 = arith.addi %c0_i32_165, %341 : i32
    %343 = tpu.assume_multiple %342, 8 : i32
    %344 = arith.index_cast %343 : i32 to index
    %c0_166 = arith.constant 0 : index
    %345 = vector.load %arg11[%344, %c0_166] : memref<64x128xf32, #tpu.memory_space<vmem>>, vector<8x128xf32>
    tpu.vector_store %arg11[%344, %c0_166], %340 {strides = array<i32>} : memref<64x128xf32, #tpu.memory_space<vmem>>, vector<8x128xf32>,
    %c7_i32 = arith.constant 7 : i32
    %c8_i32_167 = arith.constant 8 : i32
    %346 = arith.muli %c7_i32, %c8_i32_167 : i32
    %347 = tpu.assume_multiple %346, 8 : i32
    %348 = arith.index_cast %347 : i32 to index
    %c0_168 = arith.constant 0 : index
    %349 = vector.load %arg12[%348, %c0_168] : memref<64x512xf32, #tpu.memory_space<vmem>>, vector<8x128xf32>
    %c0_169 = arith.constant 0 : index
    %c0_170 = arith.constant 0 : index
    %350 = vector.load %arg3[%c0_169, %c0_170] : memref<128x512xf32, #tpu.memory_space<vmem>>, vector<128x128xf32>
    %cst_171 = arith.constant dense<0.000000e+00> : vector<8x128xf32>
    %351 = tpu.matmul %340, %350, %cst_171 {dimension_numbers = #tpu.dot_dimension_numbers<[1], [0], [0], [1], [0, 0, 1, 1], [], []>} : vector<8x128xf32>, vector<128x128xf32>, vector<8x128xf32> -> vector<8x128xf32>
    %352 = arith.addf %349, %351 : vector<8x128xf32>
    %353 = arith.negf %352 : vector<8x128xf32>
    %354 = math.exp %353 : vector<8x128xf32>
    %cst_172 = arith.constant 1.000000e+00 : f32
    %355 = vector.broadcast %cst_172 : f32 to vector<8x128xf32>
    %356 = arith.addf %355, %354 : vector<8x128xf32>
    %357 = arith.divf %355, %356 : vector<8x128xf32>
    %358 = arith.index_cast %347 : i32 to index
    %c128_173 = arith.constant 128 : index
    %359 = vector.load %arg12[%358, %c128_173] : memref<64x512xf32, #tpu.memory_space<vmem>>, vector<8x128xf32>
    %c0_174 = arith.constant 0 : index
    %c128_175 = arith.constant 128 : index
    %360 = vector.load %arg3[%c0_174, %c128_175] : memref<128x512xf32, #tpu.memory_space<vmem>>, vector<128x128xf32>
    %cst_176 = arith.constant dense<0.000000e+00> : vector<8x128xf32>
    %361 = tpu.matmul %340, %360, %cst_176 {dimension_numbers = #tpu.dot_dimension_numbers<[1], [0], [0], [1], [0, 0, 1, 1], [], []>} : vector<8x128xf32>, vector<128x128xf32>, vector<8x128xf32> -> vector<8x128xf32>
    %362 = arith.addf %359, %361 : vector<8x128xf32>
    %363 = arith.negf %362 : vector<8x128xf32>
    %364 = math.exp %363 : vector<8x128xf32>
    %cst_177 = arith.constant 1.000000e+00 : f32
    %365 = vector.broadcast %cst_177 : f32 to vector<8x128xf32>
    %366 = arith.addf %365, %364 : vector<8x128xf32>
    %367 = arith.divf %365, %366 : vector<8x128xf32>
    %368 = arith.index_cast %347 : i32 to index
    %c256_178 = arith.constant 256 : index
    %369 = vector.load %arg12[%368, %c256_178] : memref<64x512xf32, #tpu.memory_space<vmem>>, vector<8x128xf32>
    %c0_179 = arith.constant 0 : index
    %c256_180 = arith.constant 256 : index
    %370 = vector.load %arg3[%c0_179, %c256_180] : memref<128x512xf32, #tpu.memory_space<vmem>>, vector<128x128xf32>
    %cst_181 = arith.constant dense<0.000000e+00> : vector<8x128xf32>
    %371 = tpu.matmul %340, %370, %cst_181 {dimension_numbers = #tpu.dot_dimension_numbers<[1], [0], [0], [1], [0, 0, 1, 1], [], []>} : vector<8x128xf32>, vector<128x128xf32>, vector<8x128xf32> -> vector<8x128xf32>
    %372 = arith.addf %369, %371 : vector<8x128xf32>
    %373 = math.tanh %372 : vector<8x128xf32>
    %374 = arith.index_cast %347 : i32 to index
    %c384_182 = arith.constant 384 : index
    %375 = vector.load %arg12[%374, %c384_182] : memref<64x512xf32, #tpu.memory_space<vmem>>, vector<8x128xf32>
    %c0_183 = arith.constant 0 : index
    %c384_184 = arith.constant 384 : index
    %376 = vector.load %arg3[%c0_183, %c384_184] : memref<128x512xf32, #tpu.memory_space<vmem>>, vector<128x128xf32>
    %cst_185 = arith.constant dense<0.000000e+00> : vector<8x128xf32>
    %377 = tpu.matmul %340, %376, %cst_185 {dimension_numbers = #tpu.dot_dimension_numbers<[1], [0], [0], [1], [0, 0, 1, 1], [], []>} : vector<8x128xf32>, vector<128x128xf32>, vector<8x128xf32> -> vector<8x128xf32>
    %378 = arith.addf %375, %377 : vector<8x128xf32>
    %379 = arith.negf %378 : vector<8x128xf32>
    %380 = math.exp %379 : vector<8x128xf32>
    %cst_186 = arith.constant 1.000000e+00 : f32
    %381 = vector.broadcast %cst_186 : f32 to vector<8x128xf32>
    %382 = arith.addf %381, %380 : vector<8x128xf32>
    %383 = arith.divf %381, %382 : vector<8x128xf32>
    %384 = arith.mulf %367, %338 : vector<8x128xf32>
    %385 = arith.mulf %357, %373 : vector<8x128xf32>
    %386 = arith.addf %384, %385 : vector<8x128xf32>
    %387 = math.tanh %386 : vector<8x128xf32>
    %388 = arith.mulf %383, %387 : vector<8x128xf32>
    %c8_i32_187 = arith.constant 8 : i32
    %389 = arith.muli %c7_i32, %c8_i32_187 : i32
    %c0_i32_188 = arith.constant 0 : i32
    %390 = arith.addi %c0_i32_188, %389 : i32
    %391 = tpu.assume_multiple %390, 8 : i32
    %392 = arith.index_cast %391 : i32 to index
    %c0_189 = arith.constant 0 : index
    %393 = vector.load %arg11[%392, %c0_189] : memref<64x128xf32, #tpu.memory_space<vmem>>, vector<8x128xf32>
    tpu.vector_store %arg11[%392, %c0_189], %388 {strides = array<i32>} : memref<64x128xf32, #tpu.memory_space<vmem>>, vector<8x128xf32>,
    %c8_i32_190 = arith.constant 8 : i32
    %cst_191 = arith.constant 0.000000e+00 : f32
    %394 = vector.broadcast %cst_191 : f32 to vector<8x128xf32>
    %cst_192 = arith.constant 0.000000e+00 : f32
    %395 = vector.broadcast %cst_192 : f32 to vector<8x128xf32>
    %c0_193 = arith.constant 0 : index
    %c0_194 = arith.constant 0 : index
    %396 = vector.load %arg11[%c0_193, %c0_194] : memref<64x128xf32, #tpu.memory_space<vmem>>, vector<64x128xf32>
    %c0_195 = arith.constant 0 : index
    %c0_196 = arith.constant 0 : index
    %397 = vector.load %arg5[%c0_195, %c0_196] : memref<128x512xf32, #tpu.memory_space<vmem>>, vector<128x512xf32>
    %cst_197 = arith.constant dense<0.000000e+00> : vector<64x512xf32>
    %398 = tpu.matmul %396, %397, %cst_197 {dimension_numbers = #tpu.dot_dimension_numbers<[1], [0], [0], [1], [0, 0, 1, 1], [], []>} : vector<64x128xf32>, vector<128x512xf32>, vector<64x512xf32> -> vector<64x512xf32>
    %c0_198 = arith.constant 0 : index
    %c0_199 = arith.constant 0 : index
    %399 = vector.load %arg7[%c0_198, %c0_199] : memref<1x512xf32, #tpu.memory_space<vmem>>, vector<1x512xf32>
    %400 = vector.broadcast %399 : vector<1x512xf32> to vector<64x512xf32>
    %401 = arith.addf %398, %400 : vector<64x512xf32>
    %c0_200 = arith.constant 0 : index
    %c0_201 = arith.constant 0 : index
    %402 = vector.load %arg12[%c0_200, %c0_201] : memref<64x512xf32, #tpu.memory_space<vmem>>, vector<64x512xf32>
    tpu.vector_store %arg12[%c0_200, %c0_201], %401 {strides = array<i32>} : memref<64x512xf32, #tpu.memory_space<vmem>>, vector<64x512xf32>,
    %c0_i32_202 = arith.constant 0 : i32
    %c8_i32_203 = arith.constant 8 : i32
    %403 = arith.muli %c0_i32_202, %c8_i32_203 : i32
    %404 = tpu.assume_multiple %403, 8 : i32
    %405 = arith.index_cast %404 : i32 to index
    %c0_204 = arith.constant 0 : index
    %406 = vector.load %arg12[%405, %c0_204] : memref<64x512xf32, #tpu.memory_space<vmem>>, vector<8x128xf32>
    %c0_205 = arith.constant 0 : index
    %c0_206 = arith.constant 0 : index
    %407 = vector.load %arg6[%c0_205, %c0_206] : memref<128x512xf32, #tpu.memory_space<vmem>>, vector<128x128xf32>
    %cst_207 = arith.constant dense<0.000000e+00> : vector<8x128xf32>
    %408 = tpu.matmul %394, %407, %cst_207 {dimension_numbers = #tpu.dot_dimension_numbers<[1], [0], [0], [1], [0, 0, 1, 1], [], []>} : vector<8x128xf32>, vector<128x128xf32>, vector<8x128xf32> -> vector<8x128xf32>
    %409 = arith.addf %406, %408 : vector<8x128xf32>
    %410 = arith.negf %409 : vector<8x128xf32>
    %411 = math.exp %410 : vector<8x128xf32>
    %cst_208 = arith.constant 1.000000e+00 : f32
    %412 = vector.broadcast %cst_208 : f32 to vector<8x128xf32>
    %413 = arith.addf %412, %411 : vector<8x128xf32>
    %414 = arith.divf %412, %413 : vector<8x128xf32>
    %415 = arith.index_cast %404 : i32 to index
    %c128_209 = arith.constant 128 : index
    %416 = vector.load %arg12[%415, %c128_209] : memref<64x512xf32, #tpu.memory_space<vmem>>, vector<8x128xf32>
    %c0_210 = arith.constant 0 : index
    %c128_211 = arith.constant 128 : index
    %417 = vector.load %arg6[%c0_210, %c128_211] : memref<128x512xf32, #tpu.memory_space<vmem>>, vector<128x128xf32>
    %cst_212 = arith.constant dense<0.000000e+00> : vector<8x128xf32>
    %418 = tpu.matmul %394, %417, %cst_212 {dimension_numbers = #tpu.dot_dimension_numbers<[1], [0], [0], [1], [0, 0, 1, 1], [], []>} : vector<8x128xf32>, vector<128x128xf32>, vector<8x128xf32> -> vector<8x128xf32>
    %419 = arith.addf %416, %418 : vector<8x128xf32>
    %420 = arith.negf %419 : vector<8x128xf32>
    %421 = math.exp %420 : vector<8x128xf32>
    %cst_213 = arith.constant 1.000000e+00 : f32
    %422 = vector.broadcast %cst_213 : f32 to vector<8x128xf32>
    %423 = arith.addf %422, %421 : vector<8x128xf32>
    %424 = arith.divf %422, %423 : vector<8x128xf32>
    %425 = arith.index_cast %404 : i32 to index
    %c256_214 = arith.constant 256 : index
    %426 = vector.load %arg12[%425, %c256_214] : memref<64x512xf32, #tpu.memory_space<vmem>>, vector<8x128xf32>
    %c0_215 = arith.constant 0 : index
    %c256_216 = arith.constant 256 : index
    %427 = vector.load %arg6[%c0_215, %c256_216] : memref<128x512xf32, #tpu.memory_space<vmem>>, vector<128x128xf32>
    %cst_217 = arith.constant dense<0.000000e+00> : vector<8x128xf32>
    %428 = tpu.matmul %394, %427, %cst_217 {dimension_numbers = #tpu.dot_dimension_numbers<[1], [0], [0], [1], [0, 0, 1, 1], [], []>} : vector<8x128xf32>, vector<128x128xf32>, vector<8x128xf32> -> vector<8x128xf32>
    %429 = arith.addf %426, %428 : vector<8x128xf32>
    %430 = math.tanh %429 : vector<8x128xf32>
    %431 = arith.index_cast %404 : i32 to index
    %c384_218 = arith.constant 384 : index
    %432 = vector.load %arg12[%431, %c384_218] : memref<64x512xf32, #tpu.memory_space<vmem>>, vector<8x128xf32>
    %c0_219 = arith.constant 0 : index
    %c384_220 = arith.constant 384 : index
    %433 = vector.load %arg6[%c0_219, %c384_220] : memref<128x512xf32, #tpu.memory_space<vmem>>, vector<128x128xf32>
    %cst_221 = arith.constant dense<0.000000e+00> : vector<8x128xf32>
    %434 = tpu.matmul %394, %433, %cst_221 {dimension_numbers = #tpu.dot_dimension_numbers<[1], [0], [0], [1], [0, 0, 1, 1], [], []>} : vector<8x128xf32>, vector<128x128xf32>, vector<8x128xf32> -> vector<8x128xf32>
    %435 = arith.addf %432, %434 : vector<8x128xf32>
    %436 = arith.negf %435 : vector<8x128xf32>
    %437 = math.exp %436 : vector<8x128xf32>
    %cst_222 = arith.constant 1.000000e+00 : f32
    %438 = vector.broadcast %cst_222 : f32 to vector<8x128xf32>
    %439 = arith.addf %438, %437 : vector<8x128xf32>
    %440 = arith.divf %438, %439 : vector<8x128xf32>
    %441 = arith.mulf %424, %395 : vector<8x128xf32>
    %442 = arith.mulf %414, %430 : vector<8x128xf32>
    %443 = arith.addf %441, %442 : vector<8x128xf32>
    %444 = math.tanh %443 : vector<8x128xf32>
    %445 = arith.mulf %440, %444 : vector<8x128xf32>
    %c1_i32_223 = arith.constant 1 : i32
    %c8_i32_224 = arith.constant 8 : i32
    %446 = arith.muli %c1_i32_223, %c8_i32_224 : i32
    %447 = tpu.assume_multiple %446, 8 : i32
    %448 = arith.index_cast %447 : i32 to index
    %c0_225 = arith.constant 0 : index
    %449 = vector.load %arg12[%448, %c0_225] : memref<64x512xf32, #tpu.memory_space<vmem>>, vector<8x128xf32>
    %c0_226 = arith.constant 0 : index
    %c0_227 = arith.constant 0 : index
    %450 = vector.load %arg6[%c0_226, %c0_227] : memref<128x512xf32, #tpu.memory_space<vmem>>, vector<128x128xf32>
    %cst_228 = arith.constant dense<0.000000e+00> : vector<8x128xf32>
    %451 = tpu.matmul %445, %450, %cst_228 {dimension_numbers = #tpu.dot_dimension_numbers<[1], [0], [0], [1], [0, 0, 1, 1], [], []>} : vector<8x128xf32>, vector<128x128xf32>, vector<8x128xf32> -> vector<8x128xf32>
    %452 = arith.addf %449, %451 : vector<8x128xf32>
    %453 = arith.negf %452 : vector<8x128xf32>
    %454 = math.exp %453 : vector<8x128xf32>
    %cst_229 = arith.constant 1.000000e+00 : f32
    %455 = vector.broadcast %cst_229 : f32 to vector<8x128xf32>
    %456 = arith.addf %455, %454 : vector<8x128xf32>
    %457 = arith.divf %455, %456 : vector<8x128xf32>
    %458 = arith.index_cast %447 : i32 to index
    %c128_230 = arith.constant 128 : index
    %459 = vector.load %arg12[%458, %c128_230] : memref<64x512xf32, #tpu.memory_space<vmem>>, vector<8x128xf32>
    %c0_231 = arith.constant 0 : index
    %c128_232 = arith.constant 128 : index
    %460 = vector.load %arg6[%c0_231, %c128_232] : memref<128x512xf32, #tpu.memory_space<vmem>>, vector<128x128xf32>
    %cst_233 = arith.constant dense<0.000000e+00> : vector<8x128xf32>
    %461 = tpu.matmul %445, %460, %cst_233 {dimension_numbers = #tpu.dot_dimension_numbers<[1], [0], [0], [1], [0, 0, 1, 1], [], []>} : vector<8x128xf32>, vector<128x128xf32>, vector<8x128xf32> -> vector<8x128xf32>
    %462 = arith.addf %459, %461 : vector<8x128xf32>
    %463 = arith.negf %462 : vector<8x128xf32>
    %464 = math.exp %463 : vector<8x128xf32>
    %cst_234 = arith.constant 1.000000e+00 : f32
    %465 = vector.broadcast %cst_234 : f32 to vector<8x128xf32>
    %466 = arith.addf %465, %464 : vector<8x128xf32>
    %467 = arith.divf %465, %466 : vector<8x128xf32>
    %468 = arith.index_cast %447 : i32 to index
    %c256_235 = arith.constant 256 : index
    %469 = vector.load %arg12[%468, %c256_235] : memref<64x512xf32, #tpu.memory_space<vmem>>, vector<8x128xf32>
    %c0_236 = arith.constant 0 : index
    %c256_237 = arith.constant 256 : index
    %470 = vector.load %arg6[%c0_236, %c256_237] : memref<128x512xf32, #tpu.memory_space<vmem>>, vector<128x128xf32>
    %cst_238 = arith.constant dense<0.000000e+00> : vector<8x128xf32>
    %471 = tpu.matmul %445, %470, %cst_238 {dimension_numbers = #tpu.dot_dimension_numbers<[1], [0], [0], [1], [0, 0, 1, 1], [], []>} : vector<8x128xf32>, vector<128x128xf32>, vector<8x128xf32> -> vector<8x128xf32>
    %472 = arith.addf %469, %471 : vector<8x128xf32>
    %473 = math.tanh %472 : vector<8x128xf32>
    %474 = arith.index_cast %447 : i32 to index
    %c384_239 = arith.constant 384 : index
    %475 = vector.load %arg12[%474, %c384_239] : memref<64x512xf32, #tpu.memory_space<vmem>>, vector<8x128xf32>
    %c0_240 = arith.constant 0 : index
    %c384_241 = arith.constant 384 : index
    %476 = vector.load %arg6[%c0_240, %c384_241] : memref<128x512xf32, #tpu.memory_space<vmem>>, vector<128x128xf32>
    %cst_242 = arith.constant dense<0.000000e+00> : vector<8x128xf32>
    %477 = tpu.matmul %445, %476, %cst_242 {dimension_numbers = #tpu.dot_dimension_numbers<[1], [0], [0], [1], [0, 0, 1, 1], [], []>} : vector<8x128xf32>, vector<128x128xf32>, vector<8x128xf32> -> vector<8x128xf32>
    %478 = arith.addf %475, %477 : vector<8x128xf32>
    %479 = arith.negf %478 : vector<8x128xf32>
    %480 = math.exp %479 : vector<8x128xf32>
    %cst_243 = arith.constant 1.000000e+00 : f32
    %481 = vector.broadcast %cst_243 : f32 to vector<8x128xf32>
    %482 = arith.addf %481, %480 : vector<8x128xf32>
    %483 = arith.divf %481, %482 : vector<8x128xf32>
    %484 = arith.mulf %467, %443 : vector<8x128xf32>
    %485 = arith.mulf %457, %473 : vector<8x128xf32>
    %486 = arith.addf %484, %485 : vector<8x128xf32>
    %487 = math.tanh %486 : vector<8x128xf32>
    %488 = arith.mulf %483, %487 : vector<8x128xf32>
    %c2_i32_244 = arith.constant 2 : i32
    %c8_i32_245 = arith.constant 8 : i32
    %489 = arith.muli %c2_i32_244, %c8_i32_245 : i32
    %490 = tpu.assume_multiple %489, 8 : i32
    %491 = arith.index_cast %490 : i32 to index
    %c0_246 = arith.constant 0 : index
    %492 = vector.load %arg12[%491, %c0_246] : memref<64x512xf32, #tpu.memory_space<vmem>>, vector<8x128xf32>
    %c0_247 = arith.constant 0 : index
    %c0_248 = arith.constant 0 : index
    %493 = vector.load %arg6[%c0_247, %c0_248] : memref<128x512xf32, #tpu.memory_space<vmem>>, vector<128x128xf32>
    %cst_249 = arith.constant dense<0.000000e+00> : vector<8x128xf32>
    %494 = tpu.matmul %488, %493, %cst_249 {dimension_numbers = #tpu.dot_dimension_numbers<[1], [0], [0], [1], [0, 0, 1, 1], [], []>} : vector<8x128xf32>, vector<128x128xf32>, vector<8x128xf32> -> vector<8x128xf32>
    %495 = arith.addf %492, %494 : vector<8x128xf32>
    %496 = arith.negf %495 : vector<8x128xf32>
    %497 = math.exp %496 : vector<8x128xf32>
    %cst_250 = arith.constant 1.000000e+00 : f32
    %498 = vector.broadcast %cst_250 : f32 to vector<8x128xf32>
    %499 = arith.addf %498, %497 : vector<8x128xf32>
    %500 = arith.divf %498, %499 : vector<8x128xf32>
    %501 = arith.index_cast %490 : i32 to index
    %c128_251 = arith.constant 128 : index
    %502 = vector.load %arg12[%501, %c128_251] : memref<64x512xf32, #tpu.memory_space<vmem>>, vector<8x128xf32>
    %c0_252 = arith.constant 0 : index
    %c128_253 = arith.constant 128 : index
    %503 = vector.load %arg6[%c0_252, %c128_253] : memref<128x512xf32, #tpu.memory_space<vmem>>, vector<128x128xf32>
    %cst_254 = arith.constant dense<0.000000e+00> : vector<8x128xf32>
    %504 = tpu.matmul %488, %503, %cst_254 {dimension_numbers = #tpu.dot_dimension_numbers<[1], [0], [0], [1], [0, 0, 1, 1], [], []>} : vector<8x128xf32>, vector<128x128xf32>, vector<8x128xf32> -> vector<8x128xf32>
    %505 = arith.addf %502, %504 : vector<8x128xf32>
    %506 = arith.negf %505 : vector<8x128xf32>
    %507 = math.exp %506 : vector<8x128xf32>
    %cst_255 = arith.constant 1.000000e+00 : f32
    %508 = vector.broadcast %cst_255 : f32 to vector<8x128xf32>
    %509 = arith.addf %508, %507 : vector<8x128xf32>
    %510 = arith.divf %508, %509 : vector<8x128xf32>
    %511 = arith.index_cast %490 : i32 to index
    %c256_256 = arith.constant 256 : index
    %512 = vector.load %arg12[%511, %c256_256] : memref<64x512xf32, #tpu.memory_space<vmem>>, vector<8x128xf32>
    %c0_257 = arith.constant 0 : index
    %c256_258 = arith.constant 256 : index
    %513 = vector.load %arg6[%c0_257, %c256_258] : memref<128x512xf32, #tpu.memory_space<vmem>>, vector<128x128xf32>
    %cst_259 = arith.constant dense<0.000000e+00> : vector<8x128xf32>
    %514 = tpu.matmul %488, %513, %cst_259 {dimension_numbers = #tpu.dot_dimension_numbers<[1], [0], [0], [1], [0, 0, 1, 1], [], []>} : vector<8x128xf32>, vector<128x128xf32>, vector<8x128xf32> -> vector<8x128xf32>
    %515 = arith.addf %512, %514 : vector<8x128xf32>
    %516 = math.tanh %515 : vector<8x128xf32>
    %517 = arith.index_cast %490 : i32 to index
    %c384_260 = arith.constant 384 : index
    %518 = vector.load %arg12[%517, %c384_260] : memref<64x512xf32, #tpu.memory_space<vmem>>, vector<8x128xf32>
    %c0_261 = arith.constant 0 : index
    %c384_262 = arith.constant 384 : index
    %519 = vector.load %arg6[%c0_261, %c384_262] : memref<128x512xf32, #tpu.memory_space<vmem>>, vector<128x128xf32>
    %cst_263 = arith.constant dense<0.000000e+00> : vector<8x128xf32>
    %520 = tpu.matmul %488, %519, %cst_263 {dimension_numbers = #tpu.dot_dimension_numbers<[1], [0], [0], [1], [0, 0, 1, 1], [], []>} : vector<8x128xf32>, vector<128x128xf32>, vector<8x128xf32> -> vector<8x128xf32>
    %521 = arith.addf %518, %520 : vector<8x128xf32>
    %522 = arith.negf %521 : vector<8x128xf32>
    %523 = math.exp %522 : vector<8x128xf32>
    %cst_264 = arith.constant 1.000000e+00 : f32
    %524 = vector.broadcast %cst_264 : f32 to vector<8x128xf32>
    %525 = arith.addf %524, %523 : vector<8x128xf32>
    %526 = arith.divf %524, %525 : vector<8x128xf32>
    %527 = arith.mulf %510, %486 : vector<8x128xf32>
    %528 = arith.mulf %500, %516 : vector<8x128xf32>
    %529 = arith.addf %527, %528 : vector<8x128xf32>
    %530 = math.tanh %529 : vector<8x128xf32>
    %531 = arith.mulf %526, %530 : vector<8x128xf32>
    %c3_i32_265 = arith.constant 3 : i32
    %c8_i32_266 = arith.constant 8 : i32
    %532 = arith.muli %c3_i32_265, %c8_i32_266 : i32
    %533 = tpu.assume_multiple %532, 8 : i32
    %534 = arith.index_cast %533 : i32 to index
    %c0_267 = arith.constant 0 : index
    %535 = vector.load %arg12[%534, %c0_267] : memref<64x512xf32, #tpu.memory_space<vmem>>, vector<8x128xf32>
    %c0_268 = arith.constant 0 : index
    %c0_269 = arith.constant 0 : index
    %536 = vector.load %arg6[%c0_268, %c0_269] : memref<128x512xf32, #tpu.memory_space<vmem>>, vector<128x128xf32>
    %cst_270 = arith.constant dense<0.000000e+00> : vector<8x128xf32>
    %537 = tpu.matmul %531, %536, %cst_270 {dimension_numbers = #tpu.dot_dimension_numbers<[1], [0], [0], [1], [0, 0, 1, 1], [], []>} : vector<8x128xf32>, vector<128x128xf32>, vector<8x128xf32> -> vector<8x128xf32>
    %538 = arith.addf %535, %537 : vector<8x128xf32>
    %539 = arith.negf %538 : vector<8x128xf32>
    %540 = math.exp %539 : vector<8x128xf32>
    %cst_271 = arith.constant 1.000000e+00 : f32
    %541 = vector.broadcast %cst_271 : f32 to vector<8x128xf32>
    %542 = arith.addf %541, %540 : vector<8x128xf32>
    %543 = arith.divf %541, %542 : vector<8x128xf32>
    %544 = arith.index_cast %533 : i32 to index
    %c128_272 = arith.constant 128 : index
    %545 = vector.load %arg12[%544, %c128_272] : memref<64x512xf32, #tpu.memory_space<vmem>>, vector<8x128xf32>
    %c0_273 = arith.constant 0 : index
    %c128_274 = arith.constant 128 : index
    %546 = vector.load %arg6[%c0_273, %c128_274] : memref<128x512xf32, #tpu.memory_space<vmem>>, vector<128x128xf32>
    %cst_275 = arith.constant dense<0.000000e+00> : vector<8x128xf32>
    %547 = tpu.matmul %531, %546, %cst_275 {dimension_numbers = #tpu.dot_dimension_numbers<[1], [0], [0], [1], [0, 0, 1, 1], [], []>} : vector<8x128xf32>, vector<128x128xf32>, vector<8x128xf32> -> vector<8x128xf32>
    %548 = arith.addf %545, %547 : vector<8x128xf32>
    %549 = arith.negf %548 : vector<8x128xf32>
    %550 = math.exp %549 : vector<8x128xf32>
    %cst_276 = arith.constant 1.000000e+00 : f32
    %551 = vector.broadcast %cst_276 : f32 to vector<8x128xf32>
    %552 = arith.addf %551, %550 : vector<8x128xf32>
    %553 = arith.divf %551, %552 : vector<8x128xf32>
    %554 = arith.index_cast %533 : i32 to index
    %c256_277 = arith.constant 256 : index
    %555 = vector.load %arg12[%554, %c256_277] : memref<64x512xf32, #tpu.memory_space<vmem>>, vector<8x128xf32>
    %c0_278 = arith.constant 0 : index
    %c256_279 = arith.constant 256 : index
    %556 = vector.load %arg6[%c0_278, %c256_279] : memref<128x512xf32, #tpu.memory_space<vmem>>, vector<128x128xf32>
    %cst_280 = arith.constant dense<0.000000e+00> : vector<8x128xf32>
    %557 = tpu.matmul %531, %556, %cst_280 {dimension_numbers = #tpu.dot_dimension_numbers<[1], [0], [0], [1], [0, 0, 1, 1], [], []>} : vector<8x128xf32>, vector<128x128xf32>, vector<8x128xf32> -> vector<8x128xf32>
    %558 = arith.addf %555, %557 : vector<8x128xf32>
    %559 = math.tanh %558 : vector<8x128xf32>
    %560 = arith.index_cast %533 : i32 to index
    %c384_281 = arith.constant 384 : index
    %561 = vector.load %arg12[%560, %c384_281] : memref<64x512xf32, #tpu.memory_space<vmem>>, vector<8x128xf32>
    %c0_282 = arith.constant 0 : index
    %c384_283 = arith.constant 384 : index
    %562 = vector.load %arg6[%c0_282, %c384_283] : memref<128x512xf32, #tpu.memory_space<vmem>>, vector<128x128xf32>
    %cst_284 = arith.constant dense<0.000000e+00> : vector<8x128xf32>
    %563 = tpu.matmul %531, %562, %cst_284 {dimension_numbers = #tpu.dot_dimension_numbers<[1], [0], [0], [1], [0, 0, 1, 1], [], []>} : vector<8x128xf32>, vector<128x128xf32>, vector<8x128xf32> -> vector<8x128xf32>
    %564 = arith.addf %561, %563 : vector<8x128xf32>
    %565 = arith.negf %564 : vector<8x128xf32>
    %566 = math.exp %565 : vector<8x128xf32>
    %cst_285 = arith.constant 1.000000e+00 : f32
    %567 = vector.broadcast %cst_285 : f32 to vector<8x128xf32>
    %568 = arith.addf %567, %566 : vector<8x128xf32>
    %569 = arith.divf %567, %568 : vector<8x128xf32>
    %570 = arith.mulf %553, %529 : vector<8x128xf32>
    %571 = arith.mulf %543, %559 : vector<8x128xf32>
    %572 = arith.addf %570, %571 : vector<8x128xf32>
    %573 = math.tanh %572 : vector<8x128xf32>
    %574 = arith.mulf %569, %573 : vector<8x128xf32>
    %c4_i32_286 = arith.constant 4 : i32
    %c8_i32_287 = arith.constant 8 : i32
    %575 = arith.muli %c4_i32_286, %c8_i32_287 : i32
    %576 = tpu.assume_multiple %575, 8 : i32
    %577 = arith.index_cast %576 : i32 to index
    %c0_288 = arith.constant 0 : index
    %578 = vector.load %arg12[%577, %c0_288] : memref<64x512xf32, #tpu.memory_space<vmem>>, vector<8x128xf32>
    %c0_289 = arith.constant 0 : index
    %c0_290 = arith.constant 0 : index
    %579 = vector.load %arg6[%c0_289, %c0_290] : memref<128x512xf32, #tpu.memory_space<vmem>>, vector<128x128xf32>
    %cst_291 = arith.constant dense<0.000000e+00> : vector<8x128xf32>
    %580 = tpu.matmul %574, %579, %cst_291 {dimension_numbers = #tpu.dot_dimension_numbers<[1], [0], [0], [1], [0, 0, 1, 1], [], []>} : vector<8x128xf32>, vector<128x128xf32>, vector<8x128xf32> -> vector<8x128xf32>
    %581 = arith.addf %578, %580 : vector<8x128xf32>
    %582 = arith.negf %581 : vector<8x128xf32>
    %583 = math.exp %582 : vector<8x128xf32>
    %cst_292 = arith.constant 1.000000e+00 : f32
    %584 = vector.broadcast %cst_292 : f32 to vector<8x128xf32>
    %585 = arith.addf %584, %583 : vector<8x128xf32>
    %586 = arith.divf %584, %585 : vector<8x128xf32>
    %587 = arith.index_cast %576 : i32 to index
    %c128_293 = arith.constant 128 : index
    %588 = vector.load %arg12[%587, %c128_293] : memref<64x512xf32, #tpu.memory_space<vmem>>, vector<8x128xf32>
    %c0_294 = arith.constant 0 : index
    %c128_295 = arith.constant 128 : index
    %589 = vector.load %arg6[%c0_294, %c128_295] : memref<128x512xf32, #tpu.memory_space<vmem>>, vector<128x128xf32>
    %cst_296 = arith.constant dense<0.000000e+00> : vector<8x128xf32>
    %590 = tpu.matmul %574, %589, %cst_296 {dimension_numbers = #tpu.dot_dimension_numbers<[1], [0], [0], [1], [0, 0, 1, 1], [], []>} : vector<8x128xf32>, vector<128x128xf32>, vector<8x128xf32> -> vector<8x128xf32>
    %591 = arith.addf %588, %590 : vector<8x128xf32>
    %592 = arith.negf %591 : vector<8x128xf32>
    %593 = math.exp %592 : vector<8x128xf32>
    %cst_297 = arith.constant 1.000000e+00 : f32
    %594 = vector.broadcast %cst_297 : f32 to vector<8x128xf32>
    %595 = arith.addf %594, %593 : vector<8x128xf32>
    %596 = arith.divf %594, %595 : vector<8x128xf32>
    %597 = arith.index_cast %576 : i32 to index
    %c256_298 = arith.constant 256 : index
    %598 = vector.load %arg12[%597, %c256_298] : memref<64x512xf32, #tpu.memory_space<vmem>>, vector<8x128xf32>
    %c0_299 = arith.constant 0 : index
    %c256_300 = arith.constant 256 : index
    %599 = vector.load %arg6[%c0_299, %c256_300] : memref<128x512xf32, #tpu.memory_space<vmem>>, vector<128x128xf32>
    %cst_301 = arith.constant dense<0.000000e+00> : vector<8x128xf32>
    %600 = tpu.matmul %574, %599, %cst_301 {dimension_numbers = #tpu.dot_dimension_numbers<[1], [0], [0], [1], [0, 0, 1, 1], [], []>} : vector<8x128xf32>, vector<128x128xf32>, vector<8x128xf32> -> vector<8x128xf32>
    %601 = arith.addf %598, %600 : vector<8x128xf32>
    %602 = math.tanh %601 : vector<8x128xf32>
    %603 = arith.index_cast %576 : i32 to index
    %c384_302 = arith.constant 384 : index
    %604 = vector.load %arg12[%603, %c384_302] : memref<64x512xf32, #tpu.memory_space<vmem>>, vector<8x128xf32>
    %c0_303 = arith.constant 0 : index
    %c384_304 = arith.constant 384 : index
    %605 = vector.load %arg6[%c0_303, %c384_304] : memref<128x512xf32, #tpu.memory_space<vmem>>, vector<128x128xf32>
    %cst_305 = arith.constant dense<0.000000e+00> : vector<8x128xf32>
    %606 = tpu.matmul %574, %605, %cst_305 {dimension_numbers = #tpu.dot_dimension_numbers<[1], [0], [0], [1], [0, 0, 1, 1], [], []>} : vector<8x128xf32>, vector<128x128xf32>, vector<8x128xf32> -> vector<8x128xf32>
    %607 = arith.addf %604, %606 : vector<8x128xf32>
    %608 = arith.negf %607 : vector<8x128xf32>
    %609 = math.exp %608 : vector<8x128xf32>
    %cst_306 = arith.constant 1.000000e+00 : f32
    %610 = vector.broadcast %cst_306 : f32 to vector<8x128xf32>
    %611 = arith.addf %610, %609 : vector<8x128xf32>
    %612 = arith.divf %610, %611 : vector<8x128xf32>
    %613 = arith.mulf %596, %572 : vector<8x128xf32>
    %614 = arith.mulf %586, %602 : vector<8x128xf32>
    %615 = arith.addf %613, %614 : vector<8x128xf32>
    %616 = math.tanh %615 : vector<8x128xf32>
    %617 = arith.mulf %612, %616 : vector<8x128xf32>
    %c5_i32_307 = arith.constant 5 : i32
    %c8_i32_308 = arith.constant 8 : i32
    %618 = arith.muli %c5_i32_307, %c8_i32_308 : i32
    %619 = tpu.assume_multiple %618, 8 : i32
    %620 = arith.index_cast %619 : i32 to index
    %c0_309 = arith.constant 0 : index
    %621 = vector.load %arg12[%620, %c0_309] : memref<64x512xf32, #tpu.memory_space<vmem>>, vector<8x128xf32>
    %c0_310 = arith.constant 0 : index
    %c0_311 = arith.constant 0 : index
    %622 = vector.load %arg6[%c0_310, %c0_311] : memref<128x512xf32, #tpu.memory_space<vmem>>, vector<128x128xf32>
    %cst_312 = arith.constant dense<0.000000e+00> : vector<8x128xf32>
    %623 = tpu.matmul %617, %622, %cst_312 {dimension_numbers = #tpu.dot_dimension_numbers<[1], [0], [0], [1], [0, 0, 1, 1], [], []>} : vector<8x128xf32>, vector<128x128xf32>, vector<8x128xf32> -> vector<8x128xf32>
    %624 = arith.addf %621, %623 : vector<8x128xf32>
    %625 = arith.negf %624 : vector<8x128xf32>
    %626 = math.exp %625 : vector<8x128xf32>
    %cst_313 = arith.constant 1.000000e+00 : f32
    %627 = vector.broadcast %cst_313 : f32 to vector<8x128xf32>
    %628 = arith.addf %627, %626 : vector<8x128xf32>
    %629 = arith.divf %627, %628 : vector<8x128xf32>
    %630 = arith.index_cast %619 : i32 to index
    %c128_314 = arith.constant 128 : index
    %631 = vector.load %arg12[%630, %c128_314] : memref<64x512xf32, #tpu.memory_space<vmem>>, vector<8x128xf32>
    %c0_315 = arith.constant 0 : index
    %c128_316 = arith.constant 128 : index
    %632 = vector.load %arg6[%c0_315, %c128_316] : memref<128x512xf32, #tpu.memory_space<vmem>>, vector<128x128xf32>
    %cst_317 = arith.constant dense<0.000000e+00> : vector<8x128xf32>
    %633 = tpu.matmul %617, %632, %cst_317 {dimension_numbers = #tpu.dot_dimension_numbers<[1], [0], [0], [1], [0, 0, 1, 1], [], []>} : vector<8x128xf32>, vector<128x128xf32>, vector<8x128xf32> -> vector<8x128xf32>
    %634 = arith.addf %631, %633 : vector<8x128xf32>
    %635 = arith.negf %634 : vector<8x128xf32>
    %636 = math.exp %635 : vector<8x128xf32>
    %cst_318 = arith.constant 1.000000e+00 : f32
    %637 = vector.broadcast %cst_318 : f32 to vector<8x128xf32>
    %638 = arith.addf %637, %636 : vector<8x128xf32>
    %639 = arith.divf %637, %638 : vector<8x128xf32>
    %640 = arith.index_cast %619 : i32 to index
    %c256_319 = arith.constant 256 : index
    %641 = vector.load %arg12[%640, %c256_319] : memref<64x512xf32, #tpu.memory_space<vmem>>, vector<8x128xf32>
    %c0_320 = arith.constant 0 : index
    %c256_321 = arith.constant 256 : index
    %642 = vector.load %arg6[%c0_320, %c256_321] : memref<128x512xf32, #tpu.memory_space<vmem>>, vector<128x128xf32>
    %cst_322 = arith.constant dense<0.000000e+00> : vector<8x128xf32>
    %643 = tpu.matmul %617, %642, %cst_322 {dimension_numbers = #tpu.dot_dimension_numbers<[1], [0], [0], [1], [0, 0, 1, 1], [], []>} : vector<8x128xf32>, vector<128x128xf32>, vector<8x128xf32> -> vector<8x128xf32>
    %644 = arith.addf %641, %643 : vector<8x128xf32>
    %645 = math.tanh %644 : vector<8x128xf32>
    %646 = arith.index_cast %619 : i32 to index
    %c384_323 = arith.constant 384 : index
    %647 = vector.load %arg12[%646, %c384_323] : memref<64x512xf32, #tpu.memory_space<vmem>>, vector<8x128xf32>
    %c0_324 = arith.constant 0 : index
    %c384_325 = arith.constant 384 : index
    %648 = vector.load %arg6[%c0_324, %c384_325] : memref<128x512xf32, #tpu.memory_space<vmem>>, vector<128x128xf32>
    %cst_326 = arith.constant dense<0.000000e+00> : vector<8x128xf32>
    %649 = tpu.matmul %617, %648, %cst_326 {dimension_numbers = #tpu.dot_dimension_numbers<[1], [0], [0], [1], [0, 0, 1, 1], [], []>} : vector<8x128xf32>, vector<128x128xf32>, vector<8x128xf32> -> vector<8x128xf32>
    %650 = arith.addf %647, %649 : vector<8x128xf32>
    %651 = arith.negf %650 : vector<8x128xf32>
    %652 = math.exp %651 : vector<8x128xf32>
    %cst_327 = arith.constant 1.000000e+00 : f32
    %653 = vector.broadcast %cst_327 : f32 to vector<8x128xf32>
    %654 = arith.addf %653, %652 : vector<8x128xf32>
    %655 = arith.divf %653, %654 : vector<8x128xf32>
    %656 = arith.mulf %639, %615 : vector<8x128xf32>
    %657 = arith.mulf %629, %645 : vector<8x128xf32>
    %658 = arith.addf %656, %657 : vector<8x128xf32>
    %659 = math.tanh %658 : vector<8x128xf32>
    %660 = arith.mulf %655, %659 : vector<8x128xf32>
    %c6_i32_328 = arith.constant 6 : i32
    %c8_i32_329 = arith.constant 8 : i32
    %661 = arith.muli %c6_i32_328, %c8_i32_329 : i32
    %662 = tpu.assume_multiple %661, 8 : i32
    %663 = arith.index_cast %662 : i32 to index
    %c0_330 = arith.constant 0 : index
    %664 = vector.load %arg12[%663, %c0_330] : memref<64x512xf32, #tpu.memory_space<vmem>>, vector<8x128xf32>
    %c0_331 = arith.constant 0 : index
    %c0_332 = arith.constant 0 : index
    %665 = vector.load %arg6[%c0_331, %c0_332] : memref<128x512xf32, #tpu.memory_space<vmem>>, vector<128x128xf32>
    %cst_333 = arith.constant dense<0.000000e+00> : vector<8x128xf32>
    %666 = tpu.matmul %660, %665, %cst_333 {dimension_numbers = #tpu.dot_dimension_numbers<[1], [0], [0], [1], [0, 0, 1, 1], [], []>} : vector<8x128xf32>, vector<128x128xf32>, vector<8x128xf32> -> vector<8x128xf32>
    %667 = arith.addf %664, %666 : vector<8x128xf32>
    %668 = arith.negf %667 : vector<8x128xf32>
    %669 = math.exp %668 : vector<8x128xf32>
    %cst_334 = arith.constant 1.000000e+00 : f32
    %670 = vector.broadcast %cst_334 : f32 to vector<8x128xf32>
    %671 = arith.addf %670, %669 : vector<8x128xf32>
    %672 = arith.divf %670, %671 : vector<8x128xf32>
    %673 = arith.index_cast %662 : i32 to index
    %c128_335 = arith.constant 128 : index
    %674 = vector.load %arg12[%673, %c128_335] : memref<64x512xf32, #tpu.memory_space<vmem>>, vector<8x128xf32>
    %c0_336 = arith.constant 0 : index
    %c128_337 = arith.constant 128 : index
    %675 = vector.load %arg6[%c0_336, %c128_337] : memref<128x512xf32, #tpu.memory_space<vmem>>, vector<128x128xf32>
    %cst_338 = arith.constant dense<0.000000e+00> : vector<8x128xf32>
    %676 = tpu.matmul %660, %675, %cst_338 {dimension_numbers = #tpu.dot_dimension_numbers<[1], [0], [0], [1], [0, 0, 1, 1], [], []>} : vector<8x128xf32>, vector<128x128xf32>, vector<8x128xf32> -> vector<8x128xf32>
    %677 = arith.addf %674, %676 : vector<8x128xf32>
    %678 = arith.negf %677 : vector<8x128xf32>
    %679 = math.exp %678 : vector<8x128xf32>
    %cst_339 = arith.constant 1.000000e+00 : f32
    %680 = vector.broadcast %cst_339 : f32 to vector<8x128xf32>
    %681 = arith.addf %680, %679 : vector<8x128xf32>
    %682 = arith.divf %680, %681 : vector<8x128xf32>
    %683 = arith.index_cast %662 : i32 to index
    %c256_340 = arith.constant 256 : index
    %684 = vector.load %arg12[%683, %c256_340] : memref<64x512xf32, #tpu.memory_space<vmem>>, vector<8x128xf32>
    %c0_341 = arith.constant 0 : index
    %c256_342 = arith.constant 256 : index
    %685 = vector.load %arg6[%c0_341, %c256_342] : memref<128x512xf32, #tpu.memory_space<vmem>>, vector<128x128xf32>
    %cst_343 = arith.constant dense<0.000000e+00> : vector<8x128xf32>
    %686 = tpu.matmul %660, %685, %cst_343 {dimension_numbers = #tpu.dot_dimension_numbers<[1], [0], [0], [1], [0, 0, 1, 1], [], []>} : vector<8x128xf32>, vector<128x128xf32>, vector<8x128xf32> -> vector<8x128xf32>
    %687 = arith.addf %684, %686 : vector<8x128xf32>
    %688 = math.tanh %687 : vector<8x128xf32>
    %689 = arith.index_cast %662 : i32 to index
    %c384_344 = arith.constant 384 : index
    %690 = vector.load %arg12[%689, %c384_344] : memref<64x512xf32, #tpu.memory_space<vmem>>, vector<8x128xf32>
    %c0_345 = arith.constant 0 : index
    %c384_346 = arith.constant 384 : index
    %691 = vector.load %arg6[%c0_345, %c384_346] : memref<128x512xf32, #tpu.memory_space<vmem>>, vector<128x128xf32>
    %cst_347 = arith.constant dense<0.000000e+00> : vector<8x128xf32>
    %692 = tpu.matmul %660, %691, %cst_347 {dimension_numbers = #tpu.dot_dimension_numbers<[1], [0], [0], [1], [0, 0, 1, 1], [], []>} : vector<8x128xf32>, vector<128x128xf32>, vector<8x128xf32> -> vector<8x128xf32>
    %693 = arith.addf %690, %692 : vector<8x128xf32>
    %694 = arith.negf %693 : vector<8x128xf32>
    %695 = math.exp %694 : vector<8x128xf32>
    %cst_348 = arith.constant 1.000000e+00 : f32
    %696 = vector.broadcast %cst_348 : f32 to vector<8x128xf32>
    %697 = arith.addf %696, %695 : vector<8x128xf32>
    %698 = arith.divf %696, %697 : vector<8x128xf32>
    %699 = arith.mulf %682, %658 : vector<8x128xf32>
    %700 = arith.mulf %672, %688 : vector<8x128xf32>
    %701 = arith.addf %699, %700 : vector<8x128xf32>
    %702 = math.tanh %701 : vector<8x128xf32>
    %703 = arith.mulf %698, %702 : vector<8x128xf32>
    %c7_i32_349 = arith.constant 7 : i32
    %c8_i32_350 = arith.constant 8 : i32
    %704 = arith.muli %c7_i32_349, %c8_i32_350 : i32
    %705 = tpu.assume_multiple %704, 8 : i32
    %706 = arith.index_cast %705 : i32 to index
    %c0_351 = arith.constant 0 : index
    %707 = vector.load %arg12[%706, %c0_351] : memref<64x512xf32, #tpu.memory_space<vmem>>, vector<8x128xf32>
    %c0_352 = arith.constant 0 : index
    %c0_353 = arith.constant 0 : index
    %708 = vector.load %arg6[%c0_352, %c0_353] : memref<128x512xf32, #tpu.memory_space<vmem>>, vector<128x128xf32>
    %cst_354 = arith.constant dense<0.000000e+00> : vector<8x128xf32>
    %709 = tpu.matmul %703, %708, %cst_354 {dimension_numbers = #tpu.dot_dimension_numbers<[1], [0], [0], [1], [0, 0, 1, 1], [], []>} : vector<8x128xf32>, vector<128x128xf32>, vector<8x128xf32> -> vector<8x128xf32>
    %710 = arith.addf %707, %709 : vector<8x128xf32>
    %711 = arith.negf %710 : vector<8x128xf32>
    %712 = math.exp %711 : vector<8x128xf32>
    %cst_355 = arith.constant 1.000000e+00 : f32
    %713 = vector.broadcast %cst_355 : f32 to vector<8x128xf32>
    %714 = arith.addf %713, %712 : vector<8x128xf32>
    %715 = arith.divf %713, %714 : vector<8x128xf32>
    %716 = arith.index_cast %705 : i32 to index
    %c128_356 = arith.constant 128 : index
    %717 = vector.load %arg12[%716, %c128_356] : memref<64x512xf32, #tpu.memory_space<vmem>>, vector<8x128xf32>
    %c0_357 = arith.constant 0 : index
    %c128_358 = arith.constant 128 : index
    %718 = vector.load %arg6[%c0_357, %c128_358] : memref<128x512xf32, #tpu.memory_space<vmem>>, vector<128x128xf32>
    %cst_359 = arith.constant dense<0.000000e+00> : vector<8x128xf32>
    %719 = tpu.matmul %703, %718, %cst_359 {dimension_numbers = #tpu.dot_dimension_numbers<[1], [0], [0], [1], [0, 0, 1, 1], [], []>} : vector<8x128xf32>, vector<128x128xf32>, vector<8x128xf32> -> vector<8x128xf32>
    %720 = arith.addf %717, %719 : vector<8x128xf32>
    %721 = arith.negf %720 : vector<8x128xf32>
    %722 = math.exp %721 : vector<8x128xf32>
    %cst_360 = arith.constant 1.000000e+00 : f32
    %723 = vector.broadcast %cst_360 : f32 to vector<8x128xf32>
    %724 = arith.addf %723, %722 : vector<8x128xf32>
    %725 = arith.divf %723, %724 : vector<8x128xf32>
    %726 = arith.index_cast %705 : i32 to index
    %c256_361 = arith.constant 256 : index
    %727 = vector.load %arg12[%726, %c256_361] : memref<64x512xf32, #tpu.memory_space<vmem>>, vector<8x128xf32>
    %c0_362 = arith.constant 0 : index
    %c256_363 = arith.constant 256 : index
    %728 = vector.load %arg6[%c0_362, %c256_363] : memref<128x512xf32, #tpu.memory_space<vmem>>, vector<128x128xf32>
    %cst_364 = arith.constant dense<0.000000e+00> : vector<8x128xf32>
    %729 = tpu.matmul %703, %728, %cst_364 {dimension_numbers = #tpu.dot_dimension_numbers<[1], [0], [0], [1], [0, 0, 1, 1], [], []>} : vector<8x128xf32>, vector<128x128xf32>, vector<8x128xf32> -> vector<8x128xf32>
    %730 = arith.addf %727, %729 : vector<8x128xf32>
    %731 = math.tanh %730 : vector<8x128xf32>
    %732 = arith.index_cast %705 : i32 to index
    %c384_365 = arith.constant 384 : index
    %733 = vector.load %arg12[%732, %c384_365] : memref<64x512xf32, #tpu.memory_space<vmem>>, vector<8x128xf32>
    %c0_366 = arith.constant 0 : index
    %c384_367 = arith.constant 384 : index
    %734 = vector.load %arg6[%c0_366, %c384_367] : memref<128x512xf32, #tpu.memory_space<vmem>>, vector<128x128xf32>
    %cst_368 = arith.constant dense<0.000000e+00> : vector<8x128xf32>
    %735 = tpu.matmul %703, %734, %cst_368 {dimension_numbers = #tpu.dot_dimension_numbers<[1], [0], [0], [1], [0, 0, 1, 1], [], []>} : vector<8x128xf32>, vector<128x128xf32>, vector<8x128xf32> -> vector<8x128xf32>
    %736 = arith.addf %733, %735 : vector<8x128xf32>
    %737 = arith.negf %736 : vector<8x128xf32>
    %738 = math.exp %737 : vector<8x128xf32>
    %cst_369 = arith.constant 1.000000e+00 : f32
    %739 = vector.broadcast %cst_369 : f32 to vector<8x128xf32>
    %740 = arith.addf %739, %738 : vector<8x128xf32>
    %741 = arith.divf %739, %740 : vector<8x128xf32>
    %742 = arith.mulf %725, %701 : vector<8x128xf32>
    %743 = arith.mulf %715, %731 : vector<8x128xf32>
    %744 = arith.addf %742, %743 : vector<8x128xf32>
    %745 = math.tanh %744 : vector<8x128xf32>
    %746 = arith.mulf %741, %745 : vector<8x128xf32>
    %c8_i32_370 = arith.constant 8 : i32
    %c0_371 = arith.constant 0 : index
    %c0_372 = arith.constant 0 : index
    %747 = vector.load %arg8[%c0_371, %c0_372] : memref<128x128xf32, #tpu.memory_space<vmem>>, vector<128x128xf32>
    %cst_373 = arith.constant dense<0.000000e+00> : vector<8x128xf32>
    %748 = tpu.matmul %746, %747, %cst_373 {dimension_numbers = #tpu.dot_dimension_numbers<[1], [0], [0], [1], [0, 0, 1, 1], [], []>} : vector<8x128xf32>, vector<128x128xf32>, vector<8x128xf32> -> vector<8x128xf32>
    %c0_374 = arith.constant 0 : index
    %c0_375 = arith.constant 0 : index
    %749 = vector.load %arg9[%c0_374, %c0_375] : memref<1x128xf32, #tpu.memory_space<vmem>>, vector<1x128xf32>
    %750 = vector.broadcast %749 : vector<1x128xf32> to vector<8x128xf32>
    %751 = arith.addf %748, %750 : vector<8x128xf32>
    %c0_376 = arith.constant 0 : index
    %c0_377 = arith.constant 0 : index
    %752 = vector.load %arg10[%c0_376, %c0_377] : memref<8x128xf32, #tpu.memory_space<vmem>>, vector<8x128xf32>
    tpu.vector_store %arg10[%c0_376, %c0_377], %751 {strides = array<i32>} : memref<8x128xf32, #tpu.memory_space<vmem>>, vector<8x128xf32>,
    return
  }
  func.func @transform_0(%arg0: i32) -> (i32, i32, i32) {
    %c0_i32 = arith.constant 0 : i32
    %c0_i32_0 = arith.constant 0 : i32
    %c0_i32_1 = arith.constant 0 : i32
    return %arg0, %c0_i32, %c0_i32_0 : i32, i32, i32
  }
  func.func @transform_1(%arg0: i32) -> (i32, i32) {
    %c0_i32 = arith.constant 0 : i32
    %c0_i32_0 = arith.constant 0 : i32
    %c0_i32_1 = arith.constant 0 : i32
    return %c0_i32, %c0_i32_0 : i32, i32
  }
  func.func @transform_2(%arg0: i32) -> (i32, i32) {
    %c0_i32 = arith.constant 0 : i32
    %c0_i32_0 = arith.constant 0 : i32
    %c0_i32_1 = arith.constant 0 : i32
    return %c0_i32, %c0_i32_0 : i32, i32
  }
  func.func @transform_3(%arg0: i32) -> (i32, i32) {
    %c0_i32 = arith.constant 0 : i32
    %c0_i32_0 = arith.constant 0 : i32
    %c0_i32_1 = arith.constant 0 : i32
    return %c0_i32, %c0_i32_0 : i32, i32
  }
  func.func @transform_4(%arg0: i32) -> (i32, i32) {
    %c0_i32 = arith.constant 0 : i32
    %c0_i32_0 = arith.constant 0 : i32
    %c0_i32_1 = arith.constant 0 : i32
    return %c0_i32, %c0_i32_0 : i32, i32
  }
  func.func @transform_5(%arg0: i32) -> (i32, i32) {
    %c0_i32 = arith.constant 0 : i32
    %c0_i32_0 = arith.constant 0 : i32
    %c0_i32_1 = arith.constant 0 : i32
    return %c0_i32, %c0_i32_0 : i32, i32
  }
  func.func @transform_6(%arg0: i32) -> (i32, i32) {
    %c0_i32 = arith.constant 0 : i32
    %c0_i32_0 = arith.constant 0 : i32
    %c0_i32_1 = arith.constant 0 : i32
    return %c0_i32, %c0_i32_0 : i32, i32
  }
  func.func @transform_7(%arg0: i32) -> (i32, i32) {
    %c0_i32 = arith.constant 0 : i32
    %c0_i32_0 = arith.constant 0 : i32
    %c0_i32_1 = arith.constant 0 : i32
    return %c0_i32, %c0_i32_0 : i32, i32
  }
  func.func @transform_8(%arg0: i32) -> (i32, i32) {
    %c0_i32 = arith.constant 0 : i32
    %c0_i32_0 = arith.constant 0 : i32
    %c0_i32_1 = arith.constant 0 : i32
    return %c0_i32, %c0_i32_0 : i32, i32
  }
  func.func @transform_9(%arg0: i32) -> (i32, i32) {
    %c0_i32 = arith.constant 0 : i32
    %c0_i32_0 = arith.constant 0 : i32
    return %arg0, %c0_i32 : i32, i32
  }
}

</mosaic_0001>

<llo_original>
// kernel: multi_step_lstm_forward.1
$region0: #{multi_step_lstm_forward.1}
  #allocation0 [shape = 'u32[]', space=smem, size = 0x4, offset = 0x4, fixed_abs, tag = 'smem constant byte address 0x4 - core index']
  #allocation1 [shape = 'u32[144,128]{1,0:T(1,128)}', space=vmem, size = 0x12000, scoped, tag = 'internal scratch']
  #allocation2 [shape = 'f32[64,128]{1,0:T(8,128)}', space=vmem, size = 0x8000, scoped, tag = 'scratch operand']
  #allocation3 [shape = 'f32[64,512]{1,0:T(8,128)}', space=vmem, size = 0x20000, scoped, tag = 'scratch operand']
  %s0 = inlined_call_operand.vmem [shape: f32[1,64,8], index: 0, kind: input, shape index: {}]
  %s1 = inlined_call_operand.vmem [shape: f32[8,512], index: 1, kind: input, shape index: {}]
  %s2 = inlined_call_operand.hbm [shape: f32[128,512], index: 2, kind: input, shape index: {}]
  %s3 = inlined_call_operand.vmem [shape: f32[1,512], index: 3, kind: input, shape index: {}]
  %s4 = inlined_call_operand.hbm [shape: f32[128,512], index: 4, kind: input, shape index: {}]
  %s5 = inlined_call_operand.hbm [shape: f32[128,512], index: 5, kind: input, shape index: {}]
  %s6 = inlined_call_operand.vmem [shape: f32[1,512], index: 6, kind: input, shape index: {}]
  %s7 = inlined_call_operand.hbm [shape: f32[128,128], index: 7, kind: input, shape index: {}]
  %s8 = inlined_call_operand.vmem [shape: f32[1,128], index: 8, kind: input, shape index: {}]
  %s9 = inlined_call_operand.vmem [shape: f32[8,128], index: 9, kind: output, shape index: {}]
  %s10 = sld [smem:[#allocation0]]
  $region62: #{multi_step_lstm_forward.1} parent=0
    _
  %s12 = ssub.s32 1, %s10
  %s13 = scalar_select 0, %s12, %s10
  $region1: #{multi_step_lstm_forward.1} parent=0
    #allocation4 [shape = 'u8[262144]{0}', space=vmem, size = 0x40000, scoped, tag = 'input window, operand 2, single buffered']
    #allocation5 [shape = 's32[1]{0}', space=sflag, size = 0x4, scoped, tag = 'scoped memory for multi_step_lstm_forward.1']
    #allocation6 [shape = 'u8[262144]{0}', space=vmem, size = 0x40000, scoped, tag = 'input window, operand 4, single buffered']
    #allocation7 [shape = 's32[1]{0}', space=sflag, size = 0x4, scoped, tag = 'scoped memory for multi_step_lstm_forward.1']
    #allocation8 [shape = 'u8[262144]{0}', space=vmem, size = 0x40000, scoped, tag = 'input window, operand 5, single buffered']
    #allocation9 [shape = 'u8[65536]{0}', space=vmem, size = 0x10000, scoped, tag = 'input window, operand 7, single buffered']
    #allocation10 [shape = 's32[1]{0}', space=sflag, size = 0x4, scoped, tag = 'scoped memory for multi_step_lstm_forward.1']
    %14 = vsyncpa [#allocation5], 0
    %15 = vsyncpa [#allocation7], 0
    %16 = vsyncpa [#allocation10], 0
    // Predicated region
    $region2: #{multi_step_lstm_forward.1} parent=1 // pred_check
      _
    $region3: #{multi_step_lstm_forward.1} parent=1 // pred_check_branch
      %18 = sbr.rel (0) target = $region5
    $region4: #{multi_step_lstm_forward.1} parent=1 // pred_region
      _
    $region5: #{multi_step_lstm_forward.1} parent=1 // pred_fallthru
      _
    // Predicated region
    $region6: #{multi_step_lstm_forward.1} parent=1 // pred_check
      _
    $region7: #{multi_step_lstm_forward.1} parent=1 // pred_check_branch
      %20 = sbr.rel (0) target = $region9
    $region8: #{multi_step_lstm_forward.1} parent=1 // pred_region
      _
    $region9: #{multi_step_lstm_forward.1} parent=1 // pred_fallthru
      _
    // Predicated region
    $region10: #{multi_step_lstm_forward.1} parent=1 // pred_check
      _
    $region11: #{multi_step_lstm_forward.1} parent=1 // pred_check_branch
      %22 = sbr.rel (0) target = $region13
    $region12: #{multi_step_lstm_forward.1} parent=1 // pred_region
      %s24 = ssub.s32 8192, 8192
      %25 = vsyncadd [#allocation5], %s24
      %s26 = sshll.u32 [#allocation4], 4
      %s27 = int_to_ptr.vmem [resolvable:$true] %s26
      %32 = dma.hbm_to_vmem [thread:$0]  %s2, 8192, %s27, [#allocation5], 512, 512, 32
    $region13: #{multi_step_lstm_forward.1} parent=1 // pred_fallthru
      _
    // Predicated region
    $region14: #{multi_step_lstm_forward.1} parent=1 // pred_check
      _
    $region15: #{multi_step_lstm_forward.1} parent=1 // pred_check_branch
      %34 = sbr.rel (0) target = $region17
    $region16: #{multi_step_lstm_forward.1} parent=1 // pred_region
      _
    $region17: #{multi_step_lstm_forward.1} parent=1 // pred_fallthru
      _
    // Predicated region
    $region18: #{multi_step_lstm_forward.1} parent=1 // pred_check
      _
    $region19: #{multi_step_lstm_forward.1} parent=1 // pred_check_branch
      %36 = sbr.rel (0) target = $region21
    $region20: #{multi_step_lstm_forward.1} parent=1 // pred_region
      %s38 = ssub.s32 8192, 8192
      %39 = vsyncadd [#allocation7], %s38
      %s40 = sshll.u32 [#allocation6], 4
      %s41 = int_to_ptr.vmem [resolvable:$true] %s40
      %46 = dma.hbm_to_vmem [thread:$0]  %s4, 8192, %s41, [#allocation7], 512, 512, 32
    $region21: #{multi_step_lstm_forward.1} parent=1 // pred_fallthru
      _
    // Predicated region
    $region22: #{multi_step_lstm_forward.1} parent=1 // pred_check
      _
    $region23: #{multi_step_lstm_forward.1} parent=1 // pred_check_branch
      %48 = sbr.rel (0) target = $region25
    $region24: #{multi_step_lstm_forward.1} parent=1 // pred_region
      %s50 = ssub.s32 8192, 8192
      %51 = vsyncadd [#allocation7], %s50
      %s52 = sshll.u32 [#allocation8], 4
      %s53 = int_to_ptr.vmem [resolvable:$true] %s52
      %58 = dma.hbm_to_vmem [thread:$0]  %s5, 8192, %s53, [#allocation7], 512, 512, 32
    $region25: #{multi_step_lstm_forward.1} parent=1 // pred_fallthru
      _
    // Predicated region
    $region26: #{multi_step_lstm_forward.1} parent=1 // pred_check
      _
    $region27: #{multi_step_lstm_forward.1} parent=1 // pred_check_branch
      %60 = sbr.rel (0) target = $region29
    $region28: #{multi_step_lstm_forward.1} parent=1 // pred_region
      _
    $region29: #{multi_step_lstm_forward.1} parent=1 // pred_fallthru
      _
    // Predicated region
    $region30: #{multi_step_lstm_forward.1} parent=1 // pred_check
      _
    $region31: #{multi_step_lstm_forward.1} parent=1 // pred_check_branch
      %62 = sbr.rel (0) target = $region33
    $region32: #{multi_step_lstm_forward.1} parent=1 // pred_region
      %s64 = ssub.s32 2048, 2048
      %65 = vsyncadd [#allocation10], %s64
      %s66 = sshll.u32 [#allocation9], 4
      %s67 = int_to_ptr.vmem [resolvable:$true] %s66
      %72 = dma.hbm_to_vmem [thread:$0]  %s7, 2048, %s67, [#allocation10], 128, 128, 8
    $region33: #{multi_step_lstm_forward.1} parent=1 // pred_fallthru
      _
    // Predicated region
    $region34: #{multi_step_lstm_forward.1} parent=1 // pred_check
      _
    $region35: #{multi_step_lstm_forward.1} parent=1 // pred_check_branch
      %74 = sbr.rel (0) target = $region37
    $region36: #{multi_step_lstm_forward.1} parent=1 // pred_region
      _
    $region37: #{multi_step_lstm_forward.1} parent=1 // pred_fallthru
      _
    // Predicated region
    $region38: #{multi_step_lstm_forward.1} parent=1 // pred_check
      _
    $region39: #{multi_step_lstm_forward.1} parent=1 // pred_check_branch
      %76 = sbr.rel (0) target = $region41
    $region40: #{multi_step_lstm_forward.1} parent=1 // pred_region
      %77 = dma.done [#allocation5], 8192
    $region41: #{multi_step_lstm_forward.1} parent=1 // pred_fallthru
      _
    // Predicated region
    $region42: #{multi_step_lstm_forward.1} parent=1 // pred_check
      _
    $region43: #{multi_step_lstm_forward.1} parent=1 // pred_check_branch
      %79 = sbr.rel (0) target = $region45
    $region44: #{multi_step_lstm_forward.1} parent=1 // pred_region
      %80 = dma.done [#allocation7], 8192
    $region45: #{multi_step_lstm_forward.1} parent=1 // pred_fallthru
      _
    // Predicated region
    $region46: #{multi_step_lstm_forward.1} parent=1 // pred_check
      _
    $region47: #{multi_step_lstm_forward.1} parent=1 // pred_check_branch
      %82 = sbr.rel (0) target = $region49
    $region48: #{multi_step_lstm_forward.1} parent=1 // pred_region
      %83 = dma.done [#allocation7], 8192
    $region49: #{multi_step_lstm_forward.1} parent=1 // pred_fallthru
      _
    // Predicated region
    $region50: #{multi_step_lstm_forward.1} parent=1 // pred_check
      _
    $region51: #{multi_step_lstm_forward.1} parent=1 // pred_check_branch
      %85 = sbr.rel (0) target = $region53
    $region52: #{multi_step_lstm_forward.1} parent=1 // pred_region
      %86 = dma.done [#allocation10], 2048
    $region53: #{multi_step_lstm_forward.1} parent=1 // pred_fallthru
      _
    %v87 = vld [vmem:[%s0] sm:$0xff]
    %v88 = vld [vmem:[%s0 + $0x8] sm:$0xff]
    %v89 = vld [vmem:[%s0 + $0x10] sm:$0xff]
    %v90 = vld [vmem:[%s0 + $0x18] sm:$0xff]
    %v91 = vld [vmem:[%s0 + $0x20] sm:$0xff]
    %v92 = vld [vmem:[%s0 + $0x28] sm:$0xff]
    %v93 = vld [vmem:[%s0 + $0x30] sm:$0xff]
    %v94 = vld [vmem:[%s0 + $0x38] sm:$0xff]
    %v95 = vld [vmem:[%s1] sm:$0xff]
    %v96 = vld [vmem:[%s1 + $0x8] sm:$0xff]
    %v97 = vld [vmem:[%s1 + $0x10] sm:$0xff]
    %v98 = vld [vmem:[%s1 + $0x18] sm:$0xff]
    %v99 = vld [vmem:[%s3] sm:$0xf]
    %v101 = vlaneseq
    %v102 = vshrl.u32 %v101, 7
    %v103 = vsub.s32 0, %v102
    %v104 = vrot.slane %v99, %v103
    %v105 = vlaneseq
    %v106 = vshrl.u32 %v105, 7
    %v107 = vsub.s32 1, %v106
    %v108 = vrot.slane %v99, %v107
    %v109 = vlaneseq
    %v110 = vshrl.u32 %v109, 7
    %v111 = vsub.s32 2, %v110
    %v112 = vrot.slane %v99, %v111
    %v113 = vlaneseq
    %v114 = vshrl.u32 %v113, 7
    %v115 = vsub.s32 3, %v114
    %v116 = vrot.slane %v99, %v115
    %vm121 = vcmask 64512
    %v123 = vsel %vm121, %v87, 0
    %v126 = vsel %vm121, %v88, 0
    %v129 = vsel %vm121, %v89, 0
    %v132 = vsel %vm121, %v90, 0
    %v135 = vsel %vm121, %v91, 0
    %v138 = vsel %vm121, %v92, 0
    %v141 = vsel %vm121, %v93, 0
    %v144 = vsel %vm121, %v94, 0
    %146 = vmatprep.subr.mxu0 0.0
    %147 = vmatpush1.msra.mxu0 0.0
    %148 = vmatprep.subr.mxu0 0.0
    %149 = vmatpush1.msra.mxu0 0.0
    %150 = vmatprep.subr.mxu0 0.0
    %151 = vmatpush1.msra.mxu0 0.0
    %152 = vmatprep.subr.mxu0 0.0
    %153 = vmatpush1.msra.mxu0 0.0
    %154 = vmatprep.subr.mxu0 0.0
    %155 = vmatpush1.msra.mxu0 0.0
    %156 = vmatprep.subr.mxu0 0.0
    %157 = vmatpush1.msra.mxu0 0.0
    %158 = vmatprep.subr.mxu0 0.0
    %159 = vmatpush1.msra.mxu0 0.0
    %160 = vmatprep.subr.mxu0 0.0
    %161 = vmatpush1.msra.mxu0 0.0
    %162 = vmatprep.subr.mxu0 0.0
    %163 = vmatpush1.msra.mxu0 0.0
    %164 = vmatprep.subr.mxu0 0.0
    %165 = vmatpush1.msra.mxu0 0.0
    %166 = vmatprep.subr.mxu0 0.0
    %167 = vmatpush1.msra.mxu0 0.0
    %168 = vmatprep.subr.mxu0 0.0
    %169 = vmatpush1.msra.mxu0 0.0
    %170 = vmatprep.subr.mxu0 0.0
    %171 = vmatpush1.msra.mxu0 0.0
    %172 = vmatprep.subr.mxu0 0.0
    %173 = vmatpush1.msra.mxu0 0.0
    %174 = vmatprep.subr.mxu0 0.0
    %175 = vmatpush1.msra.mxu0 0.0
    %176 = vmatprep.subr.mxu0 %v96
    %177 = vmatpush1.msra.mxu0 %v95
    %178 = vmatprep.subr.mxu0 0.0
    %179 = vmatpush2.msra.mxu0 0.0
    %180 = vmatprep.subr.mxu0 0.0
    %181 = vmatpush2.msra.mxu0 0.0
    %182 = vmatprep.subr.mxu0 0.0
    %183 = vmatpush2.msra.mxu0 0.0
    %184 = vmatprep.subr.mxu0 0.0
    %185 = vmatpush2.msra.mxu0 0.0
    %186 = vmatprep.subr.mxu0 0.0
    %187 = vmatpush2.msra.mxu0 0.0
    %188 = vmatprep.subr.mxu0 0.0
    %189 = vmatpush2.msra.mxu0 0.0
    %190 = vmatprep.subr.mxu0 0.0
    %191 = vmatpush2.msra.mxu0 0.0
    %192 = vmatprep.subr.mxu0 0.0
    %193 = vmatpush2.msra.mxu0 0.0
    %194 = vmatprep.subr.mxu0 0.0
    %195 = vmatpush2.msra.mxu0 0.0
    %196 = vmatprep.subr.mxu0 0.0
    %197 = vmatpush2.msra.mxu0 0.0
    %198 = vmatprep.subr.mxu0 0.0
    %199 = vmatpush2.msra.mxu0 0.0
    %200 = vmatprep.subr.mxu0 0.0
    %201 = vmatpush2.msra.mxu0 0.0
    %202 = vmatprep.subr.mxu0 0.0
    %203 = vmatpush2.msra.mxu0 0.0
    %204 = vmatprep.subr.mxu0 0.0
    %205 = vmatpush2.msra.mxu0 0.0
    %206 = vmatprep.subr.mxu0 0.0
    %207 = vmatpush2.msra.mxu0 0.0
    %208 = vmatprep.subr.mxu0 0.0
    %209 = vmatpush2.msra.mxu0 0.0
    %210 = vmatprep.mubr.f32.mxu0 0.0
    %211 = vmatmul.mubr.f32.gmra.mxu0 %v123
    %v212 = vpop.f32.mrf.mxu0
    %v213 = vadd.f32 %v104, %v212
    %v214 = vpop.f32.mrf.mxu0
    %v215 = vadd.f32 %v108, %v214
    %216 = vmatprep.mubr.f32.mxu0 0.0
    %217 = vmatmul.mubr.f32.gmra.mxu0 %v126
    %v218 = vpop.f32.mrf.mxu0
    %v219 = vadd.f32 %v104, %v218
    %v220 = vpop.f32.mrf.mxu0
    %v221 = vadd.f32 %v108, %v220
    %222 = vmatprep.mubr.f32.mxu0 0.0
    %223 = vmatmul.mubr.f32.gmra.mxu0 %v129
    %v224 = vpop.f32.mrf.mxu0
    %v225 = vadd.f32 %v104, %v224
    %v226 = vpop.f32.mrf.mxu0
    %v227 = vadd.f32 %v108, %v226
    %228 = vmatprep.mubr.f32.mxu0 0.0
    %229 = vmatmul.mubr.f32.gmra.mxu0 %v132
    %v230 = vpop.f32.mrf.mxu0
    %v231 = vadd.f32 %v104, %v230
    %v232 = vpop.f32.mrf.mxu0
    %v233 = vadd.f32 %v108, %v232
    %234 = vmatprep.mubr.f32.mxu0 0.0
    %235 = vmatmul.mubr.f32.gmra.mxu0 %v135
    %v236 = vpop.f32.mrf.mxu0
    %v237 = vadd.f32 %v104, %v236
    %v238 = vpop.f32.mrf.mxu0
    %v239 = vadd.f32 %v108, %v238
    %240 = vmatprep.mubr.f32.mxu0 0.0
    %241 = vmatmul.mubr.f32.gmra.mxu0 %v138
    %v242 = vpop.f32.mrf.mxu0
    %v243 = vadd.f32 %v104, %v242
    %v244 = vpop.f32.mrf.mxu0
    %v245 = vadd.f32 %v108, %v244
    %246 = vmatprep.mubr.f32.mxu0 0.0
    %247 = vmatmul.mubr.f32.gmra.mxu0 %v141
    %v248 = vpop.f32.mrf.mxu0
    %v249 = vadd.f32 %v104, %v248
    %v250 = vpop.f32.mrf.mxu0
    %v251 = vadd.f32 %v108, %v250
    %252 = vmatprep.mubr.f32.mxu0 0.0
    %253 = vmatmul.mubr.f32.gmra.mxu0 %v144
    %v254 = vpop.f32.mrf.mxu0
    %v255 = vadd.f32 %v104, %v254
    %v256 = vpop.f32.mrf.mxu0
    %v257 = vadd.f32 %v108, %v256
    %258 = vdwg.mxu0
    %259 = vmatprep.subr.mxu0 0.0
    %260 = vmatpush1.msra.mxu0 0.0
    %261 = vmatprep.subr.mxu0 0.0
    %262 = vmatpush1.msra.mxu0 0.0
    %263 = vmatprep.subr.mxu0 0.0
    %264 = vmatpush1.msra.mxu0 0.0
    %265 = vmatprep.subr.mxu0 0.0
    %266 = vmatpush1.msra.mxu0 0.0
    %267 = vmatprep.subr.mxu0 0.0
    %268 = vmatpush1.msra.mxu0 0.0
    %269 = vmatprep.subr.mxu0 0.0
    %270 = vmatpush1.msra.mxu0 0.0
    %271 = vmatprep.subr.mxu0 0.0
    %272 = vmatpush1.msra.mxu0 0.0
    %273 = vmatprep.subr.mxu0 0.0
    %274 = vmatpush1.msra.mxu0 0.0
    %275 = vmatprep.subr.mxu0 0.0
    %276 = vmatpush1.msra.mxu0 0.0
    %277 = vmatprep.subr.mxu0 0.0
    %278 = vmatpush1.msra.mxu0 0.0
    %279 = vmatprep.subr.mxu0 0.0
    %280 = vmatpush1.msra.mxu0 0.0
    %281 = vmatprep.subr.mxu0 0.0
    %282 = vmatpush1.msra.mxu0 0.0
    %283 = vmatprep.subr.mxu0 0.0
    %284 = vmatpush1.msra.mxu0 0.0
    %285 = vmatprep.subr.mxu0 0.0
    %286 = vmatpush1.msra.mxu0 0.0
    %287 = vmatprep.subr.mxu0 0.0
    %288 = vmatpush1.msra.mxu0 0.0
    %289 = vmatprep.subr.mxu0 %v98
    %290 = vmatpush1.msra.mxu0 %v97
    %291 = vmatprep.subr.mxu0 0.0
    %292 = vmatpush2.msra.mxu0 0.0
    %293 = vmatprep.subr.mxu0 0.0
    %294 = vmatpush2.msra.mxu0 0.0
    %295 = vmatprep.subr.mxu0 0.0
    %296 = vmatpush2.msra.mxu0 0.0
    %297 = vmatprep.subr.mxu0 0.0
    %298 = vmatpush2.msra.mxu0 0.0
    %299 = vmatprep.subr.mxu0 0.0
    %300 = vmatpush2.msra.mxu0 0.0
    %301 = vmatprep.subr.mxu0 0.0
    %302 = vmatpush2.msra.mxu0 0.0
    %303 = vmatprep.subr.mxu0 0.0
    %304 = vmatpush2.msra.mxu0 0.0
    %305 = vmatprep.subr.mxu0 0.0
    %306 = vmatpush2.msra.mxu0 0.0
    %307 = vmatprep.subr.mxu0 0.0
    %308 = vmatpush2.msra.mxu0 0.0
    %309 = vmatprep.subr.mxu0 0.0
    %310 = vmatpush2.msra.mxu0 0.0
    %311 = vmatprep.subr.mxu0 0.0
    %312 = vmatpush2.msra.mxu0 0.0
    %313 = vmatprep.subr.mxu0 0.0
    %314 = vmatpush2.msra.mxu0 0.0
    %315 = vmatprep.subr.mxu0 0.0
    %316 = vmatpush2.msra.mxu0 0.0
    %317 = vmatprep.subr.mxu0 0.0
    %318 = vmatpush2.msra.mxu0 0.0
    %319 = vmatprep.subr.mxu0 0.0
    %320 = vmatpush2.msra.mxu0 0.0
    %321 = vmatprep.subr.mxu0 0.0
    %322 = vmatpush2.msra.mxu0 0.0
    %323 = vmatprep.mubr.f32.mxu0 0.0
    %324 = vmatmul.mubr.f32.gmra.mxu0 %v123
    %v325 = vpop.f32.mrf.mxu0
    %v326 = vadd.f32 %v112, %v325
    %v327 = vpop.f32.mrf.mxu0
    %v328 = vadd.f32 %v116, %v327
    %329 = vmatprep.mubr.f32.mxu0 0.0
    %330 = vmatmul.mubr.f32.gmra.mxu0 %v126
    %v331 = vpop.f32.mrf.mxu0
    %v332 = vadd.f32 %v112, %v331
    %v333 = vpop.f32.mrf.mxu0
    %v334 = vadd.f32 %v116, %v333
    %335 = vmatprep.mubr.f32.mxu0 0.0
    %336 = vmatmul.mubr.f32.gmra.mxu0 %v129
    %v337 = vpop.f32.mrf.mxu0
    %v338 = vadd.f32 %v112, %v337
    %v339 = vpop.f32.mrf.mxu0
    %v340 = vadd.f32 %v116, %v339
    %341 = vmatprep.mubr.f32.mxu0 0.0
    %342 = vmatmul.mubr.f32.gmra.mxu0 %v132
    %v343 = vpop.f32.mrf.mxu0
    %v344 = vadd.f32 %v112, %v343
    %v345 = vpop.f32.mrf.mxu0
    %v346 = vadd.f32 %v116, %v345
    %347 = vmatprep.mubr.f32.mxu0 0.0
    %348 = vmatmul.mubr.f32.gmra.mxu0 %v135
    %v349 = vpop.f32.mrf.mxu0
    %v350 = vadd.f32 %v112, %v349
    %v351 = vpop.f32.mrf.mxu0
    %v352 = vadd.f32 %v116, %v351
    %353 = vmatprep.mubr.f32.mxu0 0.0
    %354 = vmatmul.mubr.f32.gmra.mxu0 %v138
    %v355 = vpop.f32.mrf.mxu0
    %v356 = vadd.f32 %v112, %v355
    %v357 = vpop.f32.mrf.mxu0
    %v358 = vadd.f32 %v116, %v357
    %359 = vmatprep.mubr.f32.mxu0 0.0
    %360 = vmatmul.mubr.f32.gmra.mxu0 %v141
    %v361 = vpop.f32.mrf.mxu0
    %v362 = vadd.f32 %v112, %v361
    %v363 = vpop.f32.mrf.mxu0
    %v364 = vadd.f32 %v116, %v363
    %365 = vmatprep.mubr.f32.mxu0 0.0
    %366 = vmatmul.mubr.f32.gmra.mxu0 %v144
    %v367 = vpop.f32.mrf.mxu0
    %v368 = vadd.f32 %v112, %v367
    %v369 = vpop.f32.mrf.mxu0
    %v370 = vadd.f32 %v116, %v369
    %371 = vdwg.mxu0
    %372 = vst [vmem:[#allocation3] sm:$0xff] %v213
    %373 = vst [vmem:[#allocation3 + $0x8] sm:$0xff] %v215
    %374 = vst [vmem:[#allocation3 + $0x10] sm:$0xff] %v326
    %375 = vst [vmem:[#allocation3 + $0x18] sm:$0xff] %v328
    %376 = vst [vmem:[#allocation3 + $0x20] sm:$0xff] %v219
    %377 = vst [vmem:[#allocation3 + $0x28] sm:$0xff] %v221
    %378 = vst [vmem:[#allocation3 + $0x30] sm:$0xff] %v332
    %379 = vst [vmem:[#allocation3 + $0x38] sm:$0xff] %v334
    %380 = vst [vmem:[#allocation3 + $0x40] sm:$0xff] %v225
    %381 = vst [vmem:[#allocation3 + $0x48] sm:$0xff] %v227
    %382 = vst [vmem:[#allocation3 + $0x50] sm:$0xff] %v338
    %383 = vst [vmem:[#allocation3 + $0x58] sm:$0xff] %v340
    %384 = vst [vmem:[#allocation3 + $0x60] sm:$0xff] %v231
    %385 = vst [vmem:[#allocation3 + $0x68] sm:$0xff] %v233
    %386 = vst [vmem:[#allocation3 + $0x70] sm:$0xff] %v344
    %387 = vst [vmem:[#allocation3 + $0x78] sm:$0xff] %v346
    %388 = vst [vmem:[#allocation3 + $0x80] sm:$0xff] %v237
    %389 = vst [vmem:[#allocation3 + $0x88] sm:$0xff] %v239
    %390 = vst [vmem:[#allocation3 + $0x90] sm:$0xff] %v350
    %391 = vst [vmem:[#allocation3 + $0x98] sm:$0xff] %v352
    %392 = vst [vmem:[#allocation3 + $0xa0] sm:$0xff] %v243
    %393 = vst [vmem:[#allocation3 + $0xa8] sm:$0xff] %v245
    %394 = vst [vmem:[#allocation3 + $0xb0] sm:$0xff] %v356
    %395 = vst [vmem:[#allocation3 + $0xb8] sm:$0xff] %v358
    %396 = vst [vmem:[#allocation3 + $0xc0] sm:$0xff] %v249
    %397 = vst [vmem:[#allocation3 + $0xc8] sm:$0xff] %v251
    %398 = vst [vmem:[#allocation3 + $0xd0] sm:$0xff] %v362
    %399 = vst [vmem:[#allocation3 + $0xd8] sm:$0xff] %v364
    %400 = vst [vmem:[#allocation3 + $0xe0] sm:$0xff] %v255
    %401 = vst [vmem:[#allocation3 + $0xe8] sm:$0xff] %v257
    %402 = vst [vmem:[#allocation3 + $0xf0] sm:$0xff] %v368
    %403 = vst [vmem:[#allocation3 + $0xf8] sm:$0xff] %v370
    %s404 = smul.u32 0, 4
    %s405 = smul.addr %s404, 8
    %s406 = scalar_lea.vmem [#allocation3], %s405
    %v407 = vld [vmem:[%s406] sm:$0xff]
    %v408 = vld [vmem:[#allocation4] sm:$0xff]
    %v409 = vld [vmem:[#allocation4 + $0x20] sm:$0xff]
    %v410 = vld [vmem:[#allocation4 + $0x40] sm:$0xff]
    %v411 = vld [vmem:[#allocation4 + $0x60] sm:$0xff]
    %v412 = vld [vmem:[#allocation4 + $0x80] sm:$0xff]
    %v413 = vld [vmem:[#allocation4 + $0xa0] sm:$0xff]
    %v414 = vld [vmem:[#allocation4 + $0xc0] sm:$0xff]
    %v415 = vld [vmem:[#allocation4 + $0xe0] sm:$0xff]
    %v416 = vld [vmem:[#allocation4 + $0x100] sm:$0xff]
    %v417 = vld [vmem:[#allocation4 + $0x120] sm:$0xff]
    %v418 = vld [vmem:[#allocation4 + $0x140] sm:$0xff]
    %v419 = vld [vmem:[#allocation4 + $0x160] sm:$0xff]
    %v420 = vld [vmem:[#allocation4 + $0x180] sm:$0xff]
    %v421 = vld [vmem:[#allocation4 + $0x1a0] sm:$0xff]
    %v422 = vld [vmem:[#allocation4 + $0x1c0] sm:$0xff]
    %v423 = vld [vmem:[#allocation4 + $0x1e0] sm:$0xff]
    %424 = vmatprep.subr.mxu0 0.0
    %425 = vmatpush1.msra.mxu0 %v423
    %426 = vmatprep.subr.mxu0 0.0
    %427 = vmatpush1.msra.mxu0 %v422
    %428 = vmatprep.subr.mxu0 0.0
    %429 = vmatpush1.msra.mxu0 %v421
    %430 = vmatprep.subr.mxu0 0.0
    %431 = vmatpush1.msra.mxu0 %v420
    %432 = vmatprep.subr.mxu0 0.0
    %433 = vmatpush1.msra.mxu0 %v419
    %434 = vmatprep.subr.mxu0 0.0
    %435 = vmatpush1.msra.mxu0 %v418
    %436 = vmatprep.subr.mxu0 0.0
    %437 = vmatpush1.msra.mxu0 %v417
    %438 = vmatprep.subr.mxu0 0.0
    %439 = vmatpush1.msra.mxu0 %v416
    %440 = vmatprep.subr.mxu0 0.0
    %441 = vmatpush1.msra.mxu0 %v415
    %442 = vmatprep.subr.mxu0 0.0
    %443 = vmatpush1.msra.mxu0 %v414
    %444 = vmatprep.subr.mxu0 0.0
    %445 = vmatpush1.msra.mxu0 %v413
    %446 = vmatprep.subr.mxu0 0.0
    %447 = vmatpush1.msra.mxu0 %v412
    %448 = vmatprep.subr.mxu0 0.0
    %449 = vmatpush1.msra.mxu0 %v411
    %450 = vmatprep.subr.mxu0 0.0
    %451 = vmatpush1.msra.mxu0 %v410
    %452 = vmatprep.subr.mxu0 0.0
    %453 = vmatpush1.msra.mxu0 %v409
    %454 = vmatprep.subr.mxu0 0.0
    %455 = vmatpush1.msra.mxu0 %v408
    %456 = vmatprep.subr.mxu0 0.0
    %457 = vmatpush2.msra.mxu0 0.0
    %458 = vmatprep.subr.mxu0 0.0
    %459 = vmatpush2.msra.mxu0 0.0
    %460 = vmatprep.subr.mxu0 0.0
    %461 = vmatpush2.msra.mxu0 0.0
    %462 = vmatprep.subr.mxu0 0.0
    %463 = vmatpush2.msra.mxu0 0.0
    %464 = vmatprep.subr.mxu0 0.0
    %465 = vmatpush2.msra.mxu0 0.0
    %466 = vmatprep.subr.mxu0 0.0
    %467 = vmatpush2.msra.mxu0 0.0
    %468 = vmatprep.subr.mxu0 0.0
    %469 = vmatpush2.msra.mxu0 0.0
    %470 = vmatprep.subr.mxu0 0.0
    %471 = vmatpush2.msra.mxu0 0.0
    %472 = vmatprep.subr.mxu0 0.0
    %473 = vmatpush2.msra.mxu0 0.0
    %474 = vmatprep.subr.mxu0 0.0
    %475 = vmatpush2.msra.mxu0 0.0
    %476 = vmatprep.subr.mxu0 0.0
    %477 = vmatpush2.msra.mxu0 0.0
    %478 = vmatprep.subr.mxu0 0.0
    %479 = vmatpush2.msra.mxu0 0.0
    %480 = vmatprep.subr.mxu0 0.0
    %481 = vmatpush2.msra.mxu0 0.0
    %482 = vmatprep.subr.mxu0 0.0
    %483 = vmatpush2.msra.mxu0 0.0
    %484 = vmatprep.subr.mxu0 0.0
    %485 = vmatpush2.msra.mxu0 0.0
    %486 = vmatprep.subr.mxu0 0.0
    %487 = vmatpush2.msra.mxu0 0.0
    %488 = vmatprep.mubr.f32.mxu0 0.0
    %489 = vmatmul.mubr.f32.gmra.mxu0 0.0
    %v490 = vpop.f32.mrf.mxu0
    %v491 = vadd.f32 0.0, %v490
    %v492 = vpop.f32.mrf.mxu0
    %493 = vdwg.mxu0
    %v494 = vadd.f32 %v407, %v491
    %v495 = vxor.u32 %v494, 2147483648
    %v496 = vmul.f32 %v495, 1.442695
    %v497 = vpow.pop %v496
    %v498 = vadd.f32 %v497, 1.0
    %v499 = vrcp.pop %v498
    %v500 = vmul.f32 1.0, %v499
    %v501 = vld [vmem:[%s406 + $0x8] sm:$0xff]
    %v502 = vld [vmem:[#allocation4 + $0x8] sm:$0xff]
    %v503 = vld [vmem:[#allocation4 + $0x28] sm:$0xff]
    %v504 = vld [vmem:[#allocation4 + $0x48] sm:$0xff]
    %v505 = vld [vmem:[#allocation4 + $0x68] sm:$0xff]
    %v506 = vld [vmem:[#allocation4 + $0x88] sm:$0xff]
    %v507 = vld [vmem:[#allocation4 + $0xa8] sm:$0xff]
    %v508 = vld [vmem:[#allocation4 + $0xc8] sm:$0xff]
    %v509 = vld [vmem:[#allocation4 + $0xe8] sm:$0xff]
    %v510 = vld [vmem:[#allocation4 + $0x108] sm:$0xff]
    %v511 = vld [vmem:[#allocation4 + $0x128] sm:$0xff]
    %v512 = vld [vmem:[#allocation4 + $0x148] sm:$0xff]
    %v513 = vld [vmem:[#allocation4 + $0x168] sm:$0xff]
    %v514 = vld [vmem:[#allocation4 + $0x188] sm:$0xff]
    %v515 = vld [vmem:[#allocation4 + $0x1a8] sm:$0xff]
    %v516 = vld [vmem:[#allocation4 + $0x1c8] sm:$0xff]
    %v517 = vld [vmem:[#allocation4 + $0x1e8] sm:$0xff]
    %518 = vmatprep.subr.mxu0 0.0
    %519 = vmatpush1.msra.mxu0 %v517
    %520 = vmatprep.subr.mxu0 0.0
    %521 = vmatpush1.msra.mxu0 %v516
    %522 = vmatprep.subr.mxu0 0.0
    %523 = vmatpush1.msra.mxu0 %v515
    %524 = vmatprep.subr.mxu0 0.0
    %525 = vmatpush1.msra.mxu0 %v514
    %526 = vmatprep.subr.mxu0 0.0
    %527 = vmatpush1.msra.mxu0 %v513
    %528 = vmatprep.subr.mxu0 0.0
    %529 = vmatpush1.msra.mxu0 %v512
    %530 = vmatprep.subr.mxu0 0.0
    %531 = vmatpush1.msra.mxu0 %v511
    %532 = vmatprep.subr.mxu0 0.0
    %533 = vmatpush1.msra.mxu0 %v510
    %534 = vmatprep.subr.mxu0 0.0
    %535 = vmatpush1.msra.mxu0 %v509
    %536 = vmatprep.subr.mxu0 0.0
    %537 = vmatpush1.msra.mxu0 %v508
    %538 = vmatprep.subr.mxu0 0.0
    %539 = vmatpush1.msra.mxu0 %v507
    %540 = vmatprep.subr.mxu0 0.0
    %541 = vmatpush1.msra.mxu0 %v506
    %542 = vmatprep.subr.mxu0 0.0
    %543 = vmatpush1.msra.mxu0 %v505
    %544 = vmatprep.subr.mxu0 0.0
    %545 = vmatpush1.msra.mxu0 %v504
    %546 = vmatprep.subr.mxu0 0.0
    %547 = vmatpush1.msra.mxu0 %v503
    %548 = vmatprep.subr.mxu0 0.0
    %549 = vmatpush1.msra.mxu0 %v502
    %550 = vmatprep.subr.mxu0 0.0
    %551 = vmatpush2.msra.mxu0 0.0
    %552 = vmatprep.subr.mxu0 0.0
    %553 = vmatpush2.msra.mxu0 0.0
    %554 = vmatprep.subr.mxu0 0.0
    %555 = vmatpush2.msra.mxu0 0.0
    %556 = vmatprep.subr.mxu0 0.0
    %557 = vmatpush2.msra.mxu0 0.0
    %558 = vmatprep.subr.mxu0 0.0
    %559 = vmatpush2.msra.mxu0 0.0
    %560 = vmatprep.subr.mxu0 0.0
    %561 = vmatpush2.msra.mxu0 0.0
    %562 = vmatprep.subr.mxu0 0.0
    %563 = vmatpush2.msra.mxu0 0.0
    %564 = vmatprep.subr.mxu0 0.0
    %565 = vmatpush2.msra.mxu0 0.0
    %566 = vmatprep.subr.mxu0 0.0
    %567 = vmatpush2.msra.mxu0 0.0
    %568 = vmatprep.subr.mxu0 0.0
    %569 = vmatpush2.msra.mxu0 0.0
    %570 = vmatprep.subr.mxu0 0.0
    %571 = vmatpush2.msra.mxu0 0.0
    %572 = vmatprep.subr.mxu0 0.0
    %573 = vmatpush2.msra.mxu0 0.0
    %574 = vmatprep.subr.mxu0 0.0
    %575 = vmatpush2.msra.mxu0 0.0
    %576 = vmatprep.subr.mxu0 0.0
    %577 = vmatpush2.msra.mxu0 0.0
    %578 = vmatprep.subr.mxu0 0.0
    %579 = vmatpush2.msra.mxu0 0.0
    %580 = vmatprep.subr.mxu0 0.0
    %581 = vmatpush2.msra.mxu0 0.0
    %582 = vmatprep.mubr.f32.mxu0 0.0
    %583 = vmatmul.mubr.f32.gmra.mxu0 0.0
    %v584 = vpop.f32.mrf.mxu0
    %v585 = vadd.f32 0.0, %v584
    %v586 = vpop.f32.mrf.mxu0
    %587 = vdwg.mxu0
    %v588 = vadd.f32 %v501, %v585
    %v589 = vxor.u32 %v588, 2147483648
    %v590 = vmul.f32 %v589, 1.442695
    %v591 = vpow.pop %v590
    %v592 = vadd.f32 %v591, 1.0
    %v593 = vrcp.pop %v592
    %v594 = vmul.f32 1.0, %v593
    %v595 = vld [vmem:[%s406 + $0x10] sm:$0xff]
    %v596 = vld [vmem:[#allocation4 + $0x10] sm:$0xff]
    %v597 = vld [vmem:[#allocation4 + $0x30] sm:$0xff]
    %v598 = vld [vmem:[#allocation4 + $0x50] sm:$0xff]
    %v599 = vld [vmem:[#allocation4 + $0x70] sm:$0xff]
    %v600 = vld [vmem:[#allocation4 + $0x90] sm:$0xff]
    %v601 = vld [vmem:[#allocation4 + $0xb0] sm:$0xff]
    %v602 = vld [vmem:[#allocation4 + $0xd0] sm:$0xff]
    %v603 = vld [vmem:[#allocation4 + $0xf0] sm:$0xff]
    %v604 = vld [vmem:[#allocation4 + $0x110] sm:$0xff]
    %v605 = vld [vmem:[#allocation4 + $0x130] sm:$0xff]
    %v606 = vld [vmem:[#allocation4 + $0x150] sm:$0xff]
    %v607 = vld [vmem:[#allocation4 + $0x170] sm:$0xff]
    %v608 = vld [vmem:[#allocation4 + $0x190] sm:$0xff]
    %v609 = vld [vmem:[#allocation4 + $0x1b0] sm:$0xff]
    %v610 = vld [vmem:[#allocation4 + $0x1d0] sm:$0xff]
    %v611 = vld [vmem:[#allocation4 + $0x1f0] sm:$0xff]
    %612 = vmatprep.subr.mxu0 0.0
    %613 = vmatpush1.msra.mxu0 %v611
    %614 = vmatprep.subr.mxu0 0.0
    %615 = vmatpush1.msra.mxu0 %v610
    %616 = vmatprep.subr.mxu0 0.0
    %617 = vmatpush1.msra.mxu0 %v609
    %618 = vmatprep.subr.mxu0 0.0
    %619 = vmatpush1.msra.mxu0 %v608
    %620 = vmatprep.subr.mxu0 0.0
    %621 = vmatpush1.msra.mxu0 %v607
    %622 = vmatprep.subr.mxu0 0.0
    %623 = vmatpush1.msra.mxu0 %v606
    %624 = vmatprep.subr.mxu0 0.0
    %625 = vmatpush1.msra.mxu0 %v605
    %626 = vmatprep.subr.mxu0 0.0
    %627 = vmatpush1.msra.mxu0 %v604
    %628 = vmatprep.subr.mxu0 0.0
    %629 = vmatpush1.msra.mxu0 %v603
    %630 = vmatprep.subr.mxu0 0.0
    %631 = vmatpush1.msra.mxu0 %v602
    %632 = vmatprep.subr.mxu0 0.0
    %633 = vmatpush1.msra.mxu0 %v601
    %634 = vmatprep.subr.mxu0 0.0
    %635 = vmatpush1.msra.mxu0 %v600
    %636 = vmatprep.subr.mxu0 0.0
    %637 = vmatpush1.msra.mxu0 %v599
    %638 = vmatprep.subr.mxu0 0.0
    %639 = vmatpush1.msra.mxu0 %v598
    %640 = vmatprep.subr.mxu0 0.0
    %641 = vmatpush1.msra.mxu0 %v597
    %642 = vmatprep.subr.mxu0 0.0
    %643 = vmatpush1.msra.mxu0 %v596
    %644 = vmatprep.subr.mxu0 0.0
    %645 = vmatpush2.msra.mxu0 0.0
    %646 = vmatprep.subr.mxu0 0.0
    %647 = vmatpush2.msra.mxu0 0.0
    %648 = vmatprep.subr.mxu0 0.0
    %649 = vmatpush2.msra.mxu0 0.0
    %650 = vmatprep.subr.mxu0 0.0
    %651 = vmatpush2.msra.mxu0 0.0
    %652 = vmatprep.subr.mxu0 0.0
    %653 = vmatpush2.msra.mxu0 0.0
    %654 = vmatprep.subr.mxu0 0.0
    %655 = vmatpush2.msra.mxu0 0.0
    %656 = vmatprep.subr.mxu0 0.0
    %657 = vmatpush2.msra.mxu0 0.0
    %658 = vmatprep.subr.mxu0 0.0
    %659 = vmatpush2.msra.mxu0 0.0
    %660 = vmatprep.subr.mxu0 0.0
    %661 = vmatpush2.msra.mxu0 0.0
    %662 = vmatprep.subr.mxu0 0.0
    %663 = vmatpush2.msra.mxu0 0.0
    %664 = vmatprep.subr.mxu0 0.0
    %665 = vmatpush2.msra.mxu0 0.0
    %666 = vmatprep.subr.mxu0 0.0
    %667 = vmatpush2.msra.mxu0 0.0
    %668 = vmatprep.subr.mxu0 0.0
    %669 = vmatpush2.msra.mxu0 0.0
    %670 = vmatprep.subr.mxu0 0.0
    %671 = vmatpush2.msra.mxu0 0.0
    %672 = vmatprep.subr.mxu0 0.0
    %673 = vmatpush2.msra.mxu0 0.0
    %674 = vmatprep.subr.mxu0 0.0
    %675 = vmatpush2.msra.mxu0 0.0
    %676 = vmatprep.mubr.f32.mxu0 0.0
    %677 = vmatmul.mubr.f32.gmra.mxu0 0.0
    %v678 = vpop.f32.mrf.mxu0
    %v679 = vadd.f32 0.0, %v678
    %v680 = vpop.f32.mrf.mxu0
    %681 = vdwg.mxu0
    %v682 = vadd.f32 %v595, %v679
    %v683 = vtanh.pop %v682
    %v684 = vld [vmem:[%s406 + $0x18] sm:$0xff]
    %v685 = vld [vmem:[#allocation4 + $0x18] sm:$0xff]
    %v686 = vld [vmem:[#allocation4 + $0x38] sm:$0xff]
    %v687 = vld [vmem:[#allocation4 + $0x58] sm:$0xff]
    %v688 = vld [vmem:[#allocation4 + $0x78] sm:$0xff]
    %v689 = vld [vmem:[#allocation4 + $0x98] sm:$0xff]
    %v690 = vld [vmem:[#allocation4 + $0xb8] sm:$0xff]
    %v691 = vld [vmem:[#allocation4 + $0xd8] sm:$0xff]
    %v692 = vld [vmem:[#allocation4 + $0xf8] sm:$0xff]
    %v693 = vld [vmem:[#allocation4 + $0x118] sm:$0xff]
    %v694 = vld [vmem:[#allocation4 + $0x138] sm:$0xff]
    %v695 = vld [vmem:[#allocation4 + $0x158] sm:$0xff]
    %v696 = vld [vmem:[#allocation4 + $0x178] sm:$0xff]
    %v697 = vld [vmem:[#allocation4 + $0x198] sm:$0xff]
    %v698 = vld [vmem:[#allocation4 + $0x1b8] sm:$0xff]
    %v699 = vld [vmem:[#allocation4 + $0x1d8] sm:$0xff]
    %v700 = vld [vmem:[#allocation4 + $0x1f8] sm:$0xff]
    %701 = vmatprep.subr.mxu0 0.0
    %702 = vmatpush1.msra.mxu0 %v700
    %703 = vmatprep.subr.mxu0 0.0
    %704 = vmatpush1.msra.mxu0 %v699
    %705 = vmatprep.subr.mxu0 0.0
    %706 = vmatpush1.msra.mxu0 %v698
    %707 = vmatprep.subr.mxu0 0.0
    %708 = vmatpush1.msra.mxu0 %v697
    %709 = vmatprep.subr.mxu0 0.0
    %710 = vmatpush1.msra.mxu0 %v696
    %711 = vmatprep.subr.mxu0 0.0
    %712 = vmatpush1.msra.mxu0 %v695
    %713 = vmatprep.subr.mxu0 0.0
    %714 = vmatpush1.msra.mxu0 %v694
    %715 = vmatprep.subr.mxu0 0.0
    %716 = vmatpush1.msra.mxu0 %v693
    %717 = vmatprep.subr.mxu0 0.0
    %718 = vmatpush1.msra.mxu0 %v692
    %719 = vmatprep.subr.mxu0 0.0
    %720 = vmatpush1.msra.mxu0 %v691
    %721 = vmatprep.subr.mxu0 0.0
    %722 = vmatpush1.msra.mxu0 %v690
    %723 = vmatprep.subr.mxu0 0.0
    %724 = vmatpush1.msra.mxu0 %v689
    %725 = vmatprep.subr.mxu0 0.0
    %726 = vmatpush1.msra.mxu0 %v688
    %727 = vmatprep.subr.mxu0 0.0
    %728 = vmatpush1.msra.mxu0 %v687
    %729 = vmatprep.subr.mxu0 0.0
    %730 = vmatpush1.msra.mxu0 %v686
    %731 = vmatprep.subr.mxu0 0.0
    %732 = vmatpush1.msra.mxu0 %v685
    %733 = vmatprep.subr.mxu0 0.0
    %734 = vmatpush2.msra.mxu0 0.0
    %735 = vmatprep.subr.mxu0 0.0
    %736 = vmatpush2.msra.mxu0 0.0
    %737 = vmatprep.subr.mxu0 0.0
    %738 = vmatpush2.msra.mxu0 0.0
    %739 = vmatprep.subr.mxu0 0.0
    %740 = vmatpush2.msra.mxu0 0.0
    %741 = vmatprep.subr.mxu0 0.0
    %742 = vmatpush2.msra.mxu0 0.0
    %743 = vmatprep.subr.mxu0 0.0
    %744 = vmatpush2.msra.mxu0 0.0
    %745 = vmatprep.subr.mxu0 0.0
    %746 = vmatpush2.msra.mxu0 0.0
    %747 = vmatprep.subr.mxu0 0.0
    %748 = vmatpush2.msra.mxu0 0.0
    %749 = vmatprep.subr.mxu0 0.0
    %750 = vmatpush2.msra.mxu0 0.0
    %751 = vmatprep.subr.mxu0 0.0
    %752 = vmatpush2.msra.mxu0 0.0
    %753 = vmatprep.subr.mxu0 0.0
    %754 = vmatpush2.msra.mxu0 0.0
    %755 = vmatprep.subr.mxu0 0.0
    %756 = vmatpush2.msra.mxu0 0.0
    %757 = vmatprep.subr.mxu0 0.0
    %758 = vmatpush2.msra.mxu0 0.0
    %759 = vmatprep.subr.mxu0 0.0
    %760 = vmatpush2.msra.mxu0 0.0
    %761 = vmatprep.subr.mxu0 0.0
    %762 = vmatpush2.msra.mxu0 0.0
    %763 = vmatprep.subr.mxu0 0.0
    %764 = vmatpush2.msra.mxu0 0.0
    %765 = vmatprep.mubr.f32.mxu0 0.0
    %766 = vmatmul.mubr.f32.gmra.mxu0 0.0
    %v767 = vpop.f32.mrf.mxu0
    %v768 = vadd.f32 0.0, %v767
    %v769 = vpop.f32.mrf.mxu0
    %770 = vdwg.mxu0
    %v771 = vadd.f32 %v684, %v768
    %v772 = vxor.u32 %v771, 2147483648
    %v773 = vmul.f32 %v772, 1.442695
    %v774 = vpow.pop %v773
    %v775 = vadd.f32 %v774, 1.0
    %v776 = vrcp.pop %v775
    %v777 = vmul.f32 1.0, %v776
    %v778 = vmul.f32 %v594, 0.0
    %v779 = vmul.f32 %v500, %v683
    %v780 = vadd.f32 %v778, %v779
    %v781 = vtanh.pop %v780
    %v782 = vmul.f32 %v777, %v781
    %783 = vst [vmem:[#allocation2] sm:$0xff] %v782
    %s784 = smul.u32 1, 4
    %s785 = smul.addr %s784, 8
    %s786 = scalar_lea.vmem [#allocation3], %s785
    %v787 = vld [vmem:[%s786] sm:$0xff]
    %v788 = vld [vmem:[#allocation4] sm:$0xff]
    %v789 = vld [vmem:[#allocation4 + $0x20] sm:$0xff]
    %v790 = vld [vmem:[#allocation4 + $0x40] sm:$0xff]
    %v791 = vld [vmem:[#allocation4 + $0x60] sm:$0xff]
    %v792 = vld [vmem:[#allocation4 + $0x80] sm:$0xff]
    %v793 = vld [vmem:[#allocation4 + $0xa0] sm:$0xff]
    %v794 = vld [vmem:[#allocation4 + $0xc0] sm:$0xff]
    %v795 = vld [vmem:[#allocation4 + $0xe0] sm:$0xff]
    %v796 = vld [vmem:[#allocation4 + $0x100] sm:$0xff]
    %v797 = vld [vmem:[#allocation4 + $0x120] sm:$0xff]
    %v798 = vld [vmem:[#allocation4 + $0x140] sm:$0xff]
    %v799 = vld [vmem:[#allocation4 + $0x160] sm:$0xff]
    %v800 = vld [vmem:[#allocation4 + $0x180] sm:$0xff]
    %v801 = vld [vmem:[#allocation4 + $0x1a0] sm:$0xff]
    %v802 = vld [vmem:[#allocation4 + $0x1c0] sm:$0xff]
    %v803 = vld [vmem:[#allocation4 + $0x1e0] sm:$0xff]
    %804 = vmatprep.subr.mxu0 0.0
    %805 = vmatpush1.msra.mxu0 %v803
    %806 = vmatprep.subr.mxu0 0.0
    %807 = vmatpush1.msra.mxu0 %v802
    %808 = vmatprep.subr.mxu0 0.0
    %809 = vmatpush1.msra.mxu0 %v801
    %810 = vmatprep.subr.mxu0 0.0
    %811 = vmatpush1.msra.mxu0 %v800
    %812 = vmatprep.subr.mxu0 0.0
    %813 = vmatpush1.msra.mxu0 %v799
    %814 = vmatprep.subr.mxu0 0.0
    %815 = vmatpush1.msra.mxu0 %v798
    %816 = vmatprep.subr.mxu0 0.0
    %817 = vmatpush1.msra.mxu0 %v797
    %818 = vmatprep.subr.mxu0 0.0
    %819 = vmatpush1.msra.mxu0 %v796
    %820 = vmatprep.subr.mxu0 0.0
    %821 = vmatpush1.msra.mxu0 %v795
    %822 = vmatprep.subr.mxu0 0.0
    %823 = vmatpush1.msra.mxu0 %v794
    %824 = vmatprep.subr.mxu0 0.0
    %825 = vmatpush1.msra.mxu0 %v793
    %826 = vmatprep.subr.mxu0 0.0
    %827 = vmatpush1.msra.mxu0 %v792
    %828 = vmatprep.subr.mxu0 0.0
    %829 = vmatpush1.msra.mxu0 %v791
    %830 = vmatprep.subr.mxu0 0.0
    %831 = vmatpush1.msra.mxu0 %v790
    %832 = vmatprep.subr.mxu0 0.0
    %833 = vmatpush1.msra.mxu0 %v789
    %834 = vmatprep.subr.mxu0 0.0
    %835 = vmatpush1.msra.mxu0 %v788
    %836 = vmatprep.subr.mxu0 0.0
    %837 = vmatpush2.msra.mxu0 0.0
    %838 = vmatprep.subr.mxu0 0.0
    %839 = vmatpush2.msra.mxu0 0.0
    %840 = vmatprep.subr.mxu0 0.0
    %841 = vmatpush2.msra.mxu0 0.0
    %842 = vmatprep.subr.mxu0 0.0
    %843 = vmatpush2.msra.mxu0 0.0
    %844 = vmatprep.subr.mxu0 0.0
    %845 = vmatpush2.msra.mxu0 0.0
    %846 = vmatprep.subr.mxu0 0.0
    %847 = vmatpush2.msra.mxu0 0.0
    %848 = vmatprep.subr.mxu0 0.0
    %849 = vmatpush2.msra.mxu0 0.0
    %850 = vmatprep.subr.mxu0 0.0
    %851 = vmatpush2.msra.mxu0 0.0
    %852 = vmatprep.subr.mxu0 0.0
    %853 = vmatpush2.msra.mxu0 0.0
    %854 = vmatprep.subr.mxu0 0.0
    %855 = vmatpush2.msra.mxu0 0.0
    %856 = vmatprep.subr.mxu0 0.0
    %857 = vmatpush2.msra.mxu0 0.0
    %858 = vmatprep.subr.mxu0 0.0
    %859 = vmatpush2.msra.mxu0 0.0
    %860 = vmatprep.subr.mxu0 0.0
    %861 = vmatpush2.msra.mxu0 0.0
    %862 = vmatprep.subr.mxu0 0.0
    %863 = vmatpush2.msra.mxu0 0.0
    %864 = vmatprep.subr.mxu0 0.0
    %865 = vmatpush2.msra.mxu0 0.0
    %866 = vmatprep.subr.mxu0 0.0
    %867 = vmatpush2.msra.mxu0 0.0
    %868 = vmatprep.mubr.f32.mxu0 0.0
    %869 = vmatmul.mubr.f32.gmra.mxu0 %v782
    %v870 = vpop.f32.mrf.mxu0
    %v871 = vadd.f32 0.0, %v870
    %v872 = vpop.f32.mrf.mxu0
    %873 = vdwg.mxu0
    %v874 = vadd.f32 %v787, %v871
    %v875 = vxor.u32 %v874, 2147483648
    %v876 = vmul.f32 %v875, 1.442695
    %v877 = vpow.pop %v876
    %v878 = vadd.f32 %v877, 1.0
    %v879 = vrcp.pop %v878
    %v880 = vmul.f32 1.0, %v879
    %v881 = vld [vmem:[%s786 + $0x8] sm:$0xff]
    %v882 = vld [vmem:[#allocation4 + $0x8] sm:$0xff]
    %v883 = vld [vmem:[#allocation4 + $0x28] sm:$0xff]
    %v884 = vld [vmem:[#allocation4 + $0x48] sm:$0xff]
    %v885 = vld [vmem:[#allocation4 + $0x68] sm:$0xff]
    %v886 = vld [vmem:[#allocation4 + $0x88] sm:$0xff]
    %v887 = vld [vmem:[#allocation4 + $0xa8] sm:$0xff]
    %v888 = vld [vmem:[#allocation4 + $0xc8] sm:$0xff]
    %v889 = vld [vmem:[#allocation4 + $0xe8] sm:$0xff]
    %v890 = vld [vmem:[#allocation4 + $0x108] sm:$0xff]
    %v891 = vld [vmem:[#allocation4 + $0x128] sm:$0xff]
    %v892 = vld [vmem:[#allocation4 + $0x148] sm:$0xff]
    %v893 = vld [vmem:[#allocation4 + $0x168] sm:$0xff]
    %v894 = vld [vmem:[#allocation4 + $0x188] sm:$0xff]
    %v895 = vld [vmem:[#allocation4 + $0x1a8] sm:$0xff]
    %v896 = vld [vmem:[#allocation4 + $0x1c8] sm:$0xff]
    %v897 = vld [vmem:[#allocation4 + $0x1e8] sm:$0xff]
    %898 = vmatprep.subr.mxu0 0.0
    %899 = vmatpush1.msra.mxu0 %v897
    %900 = vmatprep.subr.mxu0 0.0
    %901 = vmatpush1.msra.mxu0 %v896
    %902 = vmatprep.subr.mxu0 0.0
    %903 = vmatpush1.msra.mxu0 %v895
    %904 = vmatprep.subr.mxu0 0.0
    %905 = vmatpush1.msra.mxu0 %v894
    %906 = vmatprep.subr.mxu0 0.0
    %907 = vmatpush1.msra.mxu0 %v893
    %908 = vmatprep.subr.mxu0 0.0
    %909 = vmatpush1.msra.mxu0 %v892
    %910 = vmatprep.subr.mxu0 0.0
    %911 = vmatpush1.msra.mxu0 %v891
    %912 = vmatprep.subr.mxu0 0.0
    %913 = vmatpush1.msra.mxu0 %v890
    %914 = vmatprep.subr.mxu0 0.0
    %915 = vmatpush1.msra.mxu0 %v889
    %916 = vmatprep.subr.mxu0 0.0
    %917 = vmatpush1.msra.mxu0 %v888
    %918 = vmatprep.subr.mxu0 0.0
    %919 = vmatpush1.msra.mxu0 %v887
    %920 = vmatprep.subr.mxu0 0.0
    %921 = vmatpush1.msra.mxu0 %v886
    %922 = vmatprep.subr.mxu0 0.0
    %923 = vmatpush1.msra.mxu0 %v885
    %924 = vmatprep.subr.mxu0 0.0
    %925 = vmatpush1.msra.mxu0 %v884
    %926 = vmatprep.subr.mxu0 0.0
    %927 = vmatpush1.msra.mxu0 %v883
    %928 = vmatprep.subr.mxu0 0.0
    %929 = vmatpush1.msra.mxu0 %v882
    %930 = vmatprep.subr.mxu0 0.0
    %931 = vmatpush2.msra.mxu0 0.0
    %932 = vmatprep.subr.mxu0 0.0
    %933 = vmatpush2.msra.mxu0 0.0
    %934 = vmatprep.subr.mxu0 0.0
    %935 = vmatpush2.msra.mxu0 0.0
    %936 = vmatprep.subr.mxu0 0.0
    %937 = vmatpush2.msra.mxu0 0.0
    %938 = vmatprep.subr.mxu0 0.0
    %939 = vmatpush2.msra.mxu0 0.0
    %940 = vmatprep.subr.mxu0 0.0
    %941 = vmatpush2.msra.mxu0 0.0
    %942 = vmatprep.subr.mxu0 0.0
    %943 = vmatpush2.msra.mxu0 0.0
    %944 = vmatprep.subr.mxu0 0.0
    %945 = vmatpush2.msra.mxu0 0.0
    %946 = vmatprep.subr.mxu0 0.0
    %947 = vmatpush2.msra.mxu0 0.0
    %948 = vmatprep.subr.mxu0 0.0
    %949 = vmatpush2.msra.mxu0 0.0
    %950 = vmatprep.subr.mxu0 0.0
    %951 = vmatpush2.msra.mxu0 0.0
    %952 = vmatprep.subr.mxu0 0.0
    %953 = vmatpush2.msra.mxu0 0.0
    %954 = vmatprep.subr.mxu0 0.0
    %955 = vmatpush2.msra.mxu0 0.0
    %956 = vmatprep.subr.mxu0 0.0
    %957 = vmatpush2.msra.mxu0 0.0
    %958 = vmatprep.subr.mxu0 0.0
    %959 = vmatpush2.msra.mxu0 0.0
    %960 = vmatprep.subr.mxu0 0.0
    %961 = vmatpush2.msra.mxu0 0.0
    %962 = vmatprep.mubr.f32.mxu0 0.0
    %963 = vmatmul.mubr.f32.gmra.mxu0 %v782
    %v964 = vpop.f32.mrf.mxu0
    %v965 = vadd.f32 0.0, %v964
    %v966 = vpop.f32.mrf.mxu0
    %967 = vdwg.mxu0
    %v968 = vadd.f32 %v881, %v965
    %v969 = vxor.u32 %v968, 2147483648
    %v970 = vmul.f32 %v969, 1.442695
    %v971 = vpow.pop %v970
    %v972 = vadd.f32 %v971, 1.0
    %v973 = vrcp.pop %v972
    %v974 = vmul.f32 1.0, %v973
    %v975 = vld [vmem:[%s786 + $0x10] sm:$0xff]
    %v976 = vld [vmem:[#allocation4 + $0x10] sm:$0xff]
    %v977 = vld [vmem:[#allocation4 + $0x30] sm:$0xff]
    %v978 = vld [vmem:[#allocation4 + $0x50] sm:$0xff]
    %v979 = vld [vmem:[#allocation4 + $0x70] sm:$0xff]
    %v980 = vld [vmem:[#allocation4 + $0x90] sm:$0xff]
    %v981 = vld [vmem:[#allocation4 + $0xb0] sm:$0xff]
    %v982 = vld [vmem:[#allocation4 + $0xd0] sm:$0xff]
    %v983 = vld [vmem:[#allocation4 + $0xf0] sm:$0xff]
    %v984 = vld [vmem:[#allocation4 + $0x110] sm:$0xff]
    %v985 = vld [vmem:[#allocation4 + $0x130] sm:$0xff]
    %v986 = vld [vmem:[#allocation4 + $0x150] sm:$0xff]
    %v987 = vld [vmem:[#allocation4 + $0x170] sm:$0xff]
    %v988 = vld [vmem:[#allocation4 + $0x190] sm:$0xff]
    %v989 = vld [vmem:[#allocation4 + $0x1b0] sm:$0xff]
    %v990 = vld [vmem:[#allocation4 + $0x1d0] sm:$0xff]
    %v991 = vld [vmem:[#allocation4 + $0x1f0] sm:$0xff]
    %992 = vmatprep.subr.mxu0 0.0
    %993 = vmatpush1.msra.mxu0 %v991
    %994 = vmatprep.subr.mxu0 0.0
    %995 = vmatpush1.msra.mxu0 %v990
    %996 = vmatprep.subr.mxu0 0.0
    %997 = vmatpush1.msra.mxu0 %v989
    %998 = vmatprep.subr.mxu0 0.0
    %999 = vmatpush1.msra.mxu0 %v988
    %1000 = vmatprep.subr.mxu0 0.0
    %1001 = vmatpush1.msra.mxu0 %v987
    %1002 = vmatprep.subr.mxu0 0.0
    %1003 = vmatpush1.msra.mxu0 %v986
    %1004 = vmatprep.subr.mxu0 0.0
    %1005 = vmatpush1.msra.mxu0 %v985
    %1006 = vmatprep.subr.mxu0 0.0
    %1007 = vmatpush1.msra.mxu0 %v984
    %1008 = vmatprep.subr.mxu0 0.0
    %1009 = vmatpush1.msra.mxu0 %v983
    %1010 = vmatprep.subr.mxu0 0.0
    %1011 = vmatpush1.msra.mxu0 %v982
    %1012 = vmatprep.subr.mxu0 0.0
    %1013 = vmatpush1.msra.mxu0 %v981
    %1014 = vmatprep.subr.mxu0 0.0
    %1015 = vmatpush1.msra.mxu0 %v980
    %1016 = vmatprep.subr.mxu0 0.0
    %1017 = vmatpush1.msra.mxu0 %v979
    %1018 = vmatprep.subr.mxu0 0.0
    %1019 = vmatpush1.msra.mxu0 %v978
    %1020 = vmatprep.subr.mxu0 0.0
    %1021 = vmatpush1.msra.mxu0 %v977
    %1022 = vmatprep.subr.mxu0 0.0
    %1023 = vmatpush1.msra.mxu0 %v976
    %1024 = vmatprep.subr.mxu0 0.0
    %1025 = vmatpush2.msra.mxu0 0.0
    %1026 = vmatprep.subr.mxu0 0.0
    %1027 = vmatpush2.msra.mxu0 0.0
    %1028 = vmatprep.subr.mxu0 0.0
    %1029 = vmatpush2.msra.mxu0 0.0
    %1030 = vmatprep.subr.mxu0 0.0
    %1031 = vmatpush2.msra.mxu0 0.0
    %1032 = vmatprep.subr.mxu0 0.0
    %1033 = vmatpush2.msra.mxu0 0.0
    %1034 = vmatprep.subr.mxu0 0.0
    %1035 = vmatpush2.msra.mxu0 0.0
    %1036 = vmatprep.subr.mxu0 0.0
    %1037 = vmatpush2.msra.mxu0 0.0
    %1038 = vmatprep.subr.mxu0 0.0
    %1039 = vmatpush2.msra.mxu0 0.0
    %1040 = vmatprep.subr.mxu0 0.0
    %1041 = vmatpush2.msra.mxu0 0.0
    %1042 = vmatprep.subr.mxu0 0.0
    %1043 = vmatpush2.msra.mxu0 0.0
    %1044 = vmatprep.subr.mxu0 0.0
    %1045 = vmatpush2.msra.mxu0 0.0
    %1046 = vmatprep.subr.mxu0 0.0
    %1047 = vmatpush2.msra.mxu0 0.0
    %1048 = vmatprep.subr.mxu0 0.0
    %1049 = vmatpush2.msra.mxu0 0.0
    %1050 = vmatprep.subr.mxu0 0.0
    %1051 = vmatpush2.msra.mxu0 0.0
    %1052 = vmatprep.subr.mxu0 0.0
    %1053 = vmatpush2.msra.mxu0 0.0
    %1054 = vmatprep.subr.mxu0 0.0
    %1055 = vmatpush2.msra.mxu0 0.0
    %1056 = vmatprep.mubr.f32.mxu0 0.0
    %1057 = vmatmul.mubr.f32.gmra.mxu0 %v782
    %v1058 = vpop.f32.mrf.mxu0
    %v1059 = vadd.f32 0.0, %v1058
    %v1060 = vpop.f32.mrf.mxu0
    %1061 = vdwg.mxu0
    %v1062 = vadd.f32 %v975, %v1059
    %v1063 = vtanh.pop %v1062
    %v1064 = vld [vmem:[%s786 + $0x18] sm:$0xff]
    %v1065 = vld [vmem:[#allocation4 + $0x18] sm:$0xff]
    %v1066 = vld [vmem:[#allocation4 + $0x38] sm:$0xff]
    %v1067 = vld [vmem:[#allocation4 + $0x58] sm:$0xff]
    %v1068 = vld [vmem:[#allocation4 + $0x78] sm:$0xff]
    %v1069 = vld [vmem:[#allocation4 + $0x98] sm:$0xff]
    %v1070 = vld [vmem:[#allocation4 + $0xb8] sm:$0xff]
    %v1071 = vld [vmem:[#allocation4 + $0xd8] sm:$0xff]
    %v1072 = vld [vmem:[#allocation4 + $0xf8] sm:$0xff]
    %v1073 = vld [vmem:[#allocation4 + $0x118] sm:$0xff]
    %v1074 = vld [vmem:[#allocation4 + $0x138] sm:$0xff]
    %v1075 = vld [vmem:[#allocation4 + $0x158] sm:$0xff]
    %v1076 = vld [vmem:[#allocation4 + $0x178] sm:$0xff]
    %v1077 = vld [vmem:[#allocation4 + $0x198] sm:$0xff]
    %v1078 = vld [vmem:[#allocation4 + $0x1b8] sm:$0xff]
    %v1079 = vld [vmem:[#allocation4 + $0x1d8] sm:$0xff]
    %v1080 = vld [vmem:[#allocation4 + $0x1f8] sm:$0xff]
    %1081 = vmatprep.subr.mxu0 0.0
    %1082 = vmatpush1.msra.mxu0 %v1080
    %1083 = vmatprep.subr.mxu0 0.0
    %1084 = vmatpush1.msra.mxu0 %v1079
    %1085 = vmatprep.subr.mxu0 0.0
    %1086 = vmatpush1.msra.mxu0 %v1078
    %1087 = vmatprep.subr.mxu0 0.0
    %1088 = vmatpush1.msra.mxu0 %v1077
    %1089 = vmatprep.subr.mxu0 0.0
    %1090 = vmatpush1.msra.mxu0 %v1076
    %1091 = vmatprep.subr.mxu0 0.0
    %1092 = vmatpush1.msra.mxu0 %v1075
    %1093 = vmatprep.subr.mxu0 0.0
    %1094 = vmatpush1.msra.mxu0 %v1074
    %1095 = vmatprep.subr.mxu0 0.0
    %1096 = vmatpush1.msra.mxu0 %v1073
    %1097 = vmatprep.subr.mxu0 0.0
    %1098 = vmatpush1.msra.mxu0 %v1072
    %1099 = vmatprep.subr.mxu0 0.0
    %1100 = vmatpush1.msra.mxu0 %v1071
    %1101 = vmatprep.subr.mxu0 0.0
    %1102 = vmatpush1.msra.mxu0 %v1070
    %1103 = vmatprep.subr.mxu0 0.0
    %1104 = vmatpush1.msra.mxu0 %v1069
    %1105 = vmatprep.subr.mxu0 0.0
    %1106 = vmatpush1.msra.mxu0 %v1068
    %1107 = vmatprep.subr.mxu0 0.0
    %1108 = vmatpush1.msra.mxu0 %v1067
    %1109 = vmatprep.subr.mxu0 0.0
    %1110 = vmatpush1.msra.mxu0 %v1066
    %1111 = vmatprep.subr.mxu0 0.0
    %1112 = vmatpush1.msra.mxu0 %v1065
    %1113 = vmatprep.subr.mxu0 0.0
    %1114 = vmatpush2.msra.mxu0 0.0
    %1115 = vmatprep.subr.mxu0 0.0
    %1116 = vmatpush2.msra.mxu0 0.0
    %1117 = vmatprep.subr.mxu0 0.0
    %1118 = vmatpush2.msra.mxu0 0.0
    %1119 = vmatprep.subr.mxu0 0.0
    %1120 = vmatpush2.msra.mxu0 0.0
    %1121 = vmatprep.subr.mxu0 0.0
    %1122 = vmatpush2.msra.mxu0 0.0
    %1123 = vmatprep.subr.mxu0 0.0
    %1124 = vmatpush2.msra.mxu0 0.0
    %1125 = vmatprep.subr.mxu0 0.0
    %1126 = vmatpush2.msra.mxu0 0.0
    %1127 = vmatprep.subr.mxu0 0.0
    %1128 = vmatpush2.msra.mxu0 0.0
    %1129 = vmatprep.subr.mxu0 0.0
    %1130 = vmatpush2.msra.mxu0 0.0
    %1131 = vmatprep.subr.mxu0 0.0
    %1132 = vmatpush2.msra.mxu0 0.0
    %1133 = vmatprep.subr.mxu0 0.0
    %1134 = vmatpush2.msra.mxu0 0.0
    %1135 = vmatprep.subr.mxu0 0.0
    %1136 = vmatpush2.msra.mxu0 0.0
    %1137 = vmatprep.subr.mxu0 0.0
    %1138 = vmatpush2.msra.mxu0 0.0
    %1139 = vmatprep.subr.mxu0 0.0
    %1140 = vmatpush2.msra.mxu0 0.0
    %1141 = vmatprep.subr.mxu0 0.0
    %1142 = vmatpush2.msra.mxu0 0.0
    %1143 = vmatprep.subr.mxu0 0.0
    %1144 = vmatpush2.msra.mxu0 0.0
    %1145 = vmatprep.mubr.f32.mxu0 0.0
    %1146 = vmatmul.mubr.f32.gmra.mxu0 %v782
    %v1147 = vpop.f32.mrf.mxu0
    %v1148 = vadd.f32 0.0, %v1147
    %v1149 = vpop.f32.mrf.mxu0
    %1150 = vdwg.mxu0
    %v1151 = vadd.f32 %v1064, %v1148
    %v1152 = vxor.u32 %v1151, 2147483648
    %v1153 = vmul.f32 %v1152, 1.442695
    %v1154 = vpow.pop %v1153
    %v1155 = vadd.f32 %v1154, 1.0
    %v1156 = vrcp.pop %v1155
    %v1157 = vmul.f32 1.0, %v1156
    %v1158 = vmul.f32 %v974, %v780
    %v1159 = vmul.f32 %v880, %v1063
    %v1160 = vadd.f32 %v1158, %v1159
    %v1161 = vtanh.pop %v1160
    %v1162 = vmul.f32 %v1157, %v1161
    %s1163 = scalar_lea.vmem [#allocation2], 8
    %1164 = vst [vmem:[%s1163] sm:$0xff] %v1162
    %s1165 = smul.u32 2, 4
    %s1166 = smul.addr %s1165, 8
    %s1167 = scalar_lea.vmem [#allocation3], %s1166
    %v1168 = vld [vmem:[%s1167] sm:$0xff]
    %v1169 = vld [vmem:[#allocation4] sm:$0xff]
    %v1170 = vld [vmem:[#allocation4 + $0x20] sm:$0xff]
    %v1171 = vld [vmem:[#allocation4 + $0x40] sm:$0xff]
    %v1172 = vld [vmem:[#allocation4 + $0x60] sm:$0xff]
    %v1173 = vld [vmem:[#allocation4 + $0x80] sm:$0xff]
    %v1174 = vld [vmem:[#allocation4 + $0xa0] sm:$0xff]
    %v1175 = vld [vmem:[#allocation4 + $0xc0] sm:$0xff]
    %v1176 = vld [vmem:[#allocation4 + $0xe0] sm:$0xff]
    %v1177 = vld [vmem:[#allocation4 + $0x100] sm:$0xff]
    %v1178 = vld [vmem:[#allocation4 + $0x120] sm:$0xff]
    %v1179 = vld [vmem:[#allocation4 + $0x140] sm:$0xff]
    %v1180 = vld [vmem:[#allocation4 + $0x160] sm:$0xff]
    %v1181 = vld [vmem:[#allocation4 + $0x180] sm:$0xff]
    %v1182 = vld [vmem:[#allocation4 + $0x1a0] sm:$0xff]
    %v1183 = vld [vmem:[#allocation4 + $0x1c0] sm:$0xff]
    %v1184 = vld [vmem:[#allocation4 + $0x1e0] sm:$0xff]
    %1185 = vmatprep.subr.mxu0 0.0
    %1186 = vmatpush1.msra.mxu0 %v1184
    %1187 = vmatprep.subr.mxu0 0.0
    %1188 = vmatpush1.msra.mxu0 %v1183
    %1189 = vmatprep.subr.mxu0 0.0
    %1190 = vmatpush1.msra.mxu0 %v1182
    %1191 = vmatprep.subr.mxu0 0.0
    %1192 = vmatpush1.msra.mxu0 %v1181
    %1193 = vmatprep.subr.mxu0 0.0
    %1194 = vmatpush1.msra.mxu0 %v1180
    %1195 = vmatprep.subr.mxu0 0.0
    %1196 = vmatpush1.msra.mxu0 %v1179
    %1197 = vmatprep.subr.mxu0 0.0
    %1198 = vmatpush1.msra.mxu0 %v1178
    %1199 = vmatprep.subr.mxu0 0.0
    %1200 = vmatpush1.msra.mxu0 %v1177
    %1201 = vmatprep.subr.mxu0 0.0
    %1202 = vmatpush1.msra.mxu0 %v1176
    %1203 = vmatprep.subr.mxu0 0.0
    %1204 = vmatpush1.msra.mxu0 %v1175
    %1205 = vmatprep.subr.mxu0 0.0
    %1206 = vmatpush1.msra.mxu0 %v1174
    %1207 = vmatprep.subr.mxu0 0.0
    %1208 = vmatpush1.msra.mxu0 %v1173
    %1209 = vmatprep.subr.mxu0 0.0
    %1210 = vmatpush1.msra.mxu0 %v1172
    %1211 = vmatprep.subr.mxu0 0.0
    %1212 = vmatpush1.msra.mxu0 %v1171
    %1213 = vmatprep.subr.mxu0 0.0
    %1214 = vmatpush1.msra.mxu0 %v1170
    %1215 = vmatprep.subr.mxu0 0.0
    %1216 = vmatpush1.msra.mxu0 %v1169
    %1217 = vmatprep.subr.mxu0 0.0
    %1218 = vmatpush2.msra.mxu0 0.0
    %1219 = vmatprep.subr.mxu0 0.0
    %1220 = vmatpush2.msra.mxu0 0.0
    %1221 = vmatprep.subr.mxu0 0.0
    %1222 = vmatpush2.msra.mxu0 0.0
    %1223 = vmatprep.subr.mxu0 0.0
    %1224 = vmatpush2.msra.mxu0 0.0
    %1225 = vmatprep.subr.mxu0 0.0
    %1226 = vmatpush2.msra.mxu0 0.0
    %1227 = vmatprep.subr.mxu0 0.0
    %1228 = vmatpush2.msra.mxu0 0.0
    %1229 = vmatprep.subr.mxu0 0.0
    %1230 = vmatpush2.msra.mxu0 0.0
    %1231 = vmatprep.subr.mxu0 0.0
    %1232 = vmatpush2.msra.mxu0 0.0
    %1233 = vmatprep.subr.mxu0 0.0
    %1234 = vmatpush2.msra.mxu0 0.0
    %1235 = vmatprep.subr.mxu0 0.0
    %1236 = vmatpush2.msra.mxu0 0.0
    %1237 = vmatprep.subr.mxu0 0.0
    %1238 = vmatpush2.msra.mxu0 0.0
    %1239 = vmatprep.subr.mxu0 0.0
    %1240 = vmatpush2.msra.mxu0 0.0
    %1241 = vmatprep.subr.mxu0 0.0
    %1242 = vmatpush2.msra.mxu0 0.0
    %1243 = vmatprep.subr.mxu0 0.0
    %1244 = vmatpush2.msra.mxu0 0.0
    %1245 = vmatprep.subr.mxu0 0.0
    %1246 = vmatpush2.msra.mxu0 0.0
    %1247 = vmatprep.subr.mxu0 0.0
    %1248 = vmatpush2.msra.mxu0 0.0
    %1249 = vmatprep.mubr.f32.mxu0 0.0
    %1250 = vmatmul.mubr.f32.gmra.mxu0 %v1162
    %v1251 = vpop.f32.mrf.mxu0
    %v1252 = vadd.f32 0.0, %v1251
    %v1253 = vpop.f32.mrf.mxu0
    %1254 = vdwg.mxu0
    %v1255 = vadd.f32 %v1168, %v1252
    %v1256 = vxor.u32 %v1255, 2147483648
    %v1257 = vmul.f32 %v1256, 1.442695
    %v1258 = vpow.pop %v1257
    %v1259 = vadd.f32 %v1258, 1.0
    %v1260 = vrcp.pop %v1259
    %v1261 = vmul.f32 1.0, %v1260
    %v1262 = vld [vmem:[%s1167 + $0x8] sm:$0xff]
    %v1263 = vld [vmem:[#allocation4 + $0x8] sm:$0xff]
    %v1264 = vld [vmem:[#allocation4 + $0x28] sm:$0xff]
    %v1265 = vld [vmem:[#allocation4 + $0x48] sm:$0xff]
    %v1266 = vld [vmem:[#allocation4 + $0x68] sm:$0xff]
    %v1267 = vld [vmem:[#allocation4 + $0x88] sm:$0xff]
    %v1268 = vld [vmem:[#allocation4 + $0xa8] sm:$0xff]
    %v1269 = vld [vmem:[#allocation4 + $0xc8] sm:$0xff]
    %v1270 = vld [vmem:[#allocation4 + $0xe8] sm:$0xff]
    %v1271 = vld [vmem:[#allocation4 + $0x108] sm:$0xff]
    %v1272 = vld [vmem:[#allocation4 + $0x128] sm:$0xff]
    %v1273 = vld [vmem:[#allocation4 + $0x148] sm:$0xff]
    %v1274 = vld [vmem:[#allocation4 + $0x168] sm:$0xff]
    %v1275 = vld [vmem:[#allocation4 + $0x188] sm:$0xff]
    %v1276 = vld [vmem:[#allocation4 + $0x1a8] sm:$0xff]
    %v1277 = vld [vmem:[#allocation4 + $0x1c8] sm:$0xff]
    %v1278 = vld [vmem:[#allocation4 + $0x1e8] sm:$0xff]
    %1279 = vmatprep.subr.mxu0 0.0
    %1280 = vmatpush1.msra.mxu0 %v1278
    %1281 = vmatprep.subr.mxu0 0.0
    %1282 = vmatpush1.msra.mxu0 %v1277
    %1283 = vmatprep.subr.mxu0 0.0
    %1284 = vmatpush1.msra.mxu0 %v1276
    %1285 = vmatprep.subr.mxu0 0.0
    %1286 = vmatpush1.msra.mxu0 %v1275
    %1287 = vmatprep.subr.mxu0 0.0
    %1288 = vmatpush1.msra.mxu0 %v1274
    %1289 = vmatprep.subr.mxu0 0.0
    %1290 = vmatpush1.msra.mxu0 %v1273
    %1291 = vmatprep.subr.mxu0 0.0
    %1292 = vmatpush1.msra.mxu0 %v1272
    %1293 = vmatprep.subr.mxu0 0.0
    %1294 = vmatpush1.msra.mxu0 %v1271
    %1295 = vmatprep.subr.mxu0 0.0
    %1296 = vmatpush1.msra.mxu0 %v1270
    %1297 = vmatprep.subr.mxu0 0.0
    %1298 = vmatpush1.msra.mxu0 %v1269
    %1299 = vmatprep.subr.mxu0 0.0
    %1300 = vmatpush1.msra.mxu0 %v1268
    %1301 = vmatprep.subr.mxu0 0.0
    %1302 = vmatpush1.msra.mxu0 %v1267
    %1303 = vmatprep.subr.mxu0 0.0
    %1304 = vmatpush1.msra.mxu0 %v1266
    %1305 = vmatprep.subr.mxu0 0.0
    %1306 = vmatpush1.msra.mxu0 %v1265
    %1307 = vmatprep.subr.mxu0 0.0
    %1308 = vmatpush1.msra.mxu0 %v1264
    %1309 = vmatprep.subr.mxu0 0.0
    %1310 = vmatpush1.msra.mxu0 %v1263
    %1311 = vmatprep.subr.mxu0 0.0
    %1312 = vmatpush2.msra.mxu0 0.0
    %1313 = vmatprep.subr.mxu0 0.0
    %1314 = vmatpush2.msra.mxu0 0.0
    %1315 = vmatprep.subr.mxu0 0.0
    %1316 = vmatpush2.msra.mxu0 0.0
    %1317 = vmatprep.subr.mxu0 0.0
    %1318 = vmatpush2.msra.mxu0 0.0
    %1319 = vmatprep.subr.mxu0 0.0
    %1320 = vmatpush2.msra.mxu0 0.0
    %1321 = vmatprep.subr.mxu0 0.0
    %1322 = vmatpush2.msra.mxu0 0.0
    %1323 = vmatprep.subr.mxu0 0.0
    %1324 = vmatpush2.msra.mxu0 0.0
    %1325 = vmatprep.subr.mxu0 0.0
    %1326 = vmatpush2.msra.mxu0 0.0
    %1327 = vmatprep.subr.mxu0 0.0
    %1328 = vmatpush2.msra.mxu0 0.0
    %1329 = vmatprep.subr.mxu0 0.0
    %1330 = vmatpush2.msra.mxu0 0.0
    %1331 = vmatprep.subr.mxu0 0.0
    %1332 = vmatpush2.msra.mxu0 0.0
    %1333 = vmatprep.subr.mxu0 0.0
    %1334 = vmatpush2.msra.mxu0 0.0
    %1335 = vmatprep.subr.mxu0 0.0
    %1336 = vmatpush2.msra.mxu0 0.0
    %1337 = vmatprep.subr.mxu0 0.0
    %1338 = vmatpush2.msra.mxu0 0.0
    %1339 = vmatprep.subr.mxu0 0.0
    %1340 = vmatpush2.msra.mxu0 0.0
    %1341 = vmatprep.subr.mxu0 0.0
    %1342 = vmatpush2.msra.mxu0 0.0
    %1343 = vmatprep.mubr.f32.mxu0 0.0
    %1344 = vmatmul.mubr.f32.gmra.mxu0 %v1162
    %v1345 = vpop.f32.mrf.mxu0
    %v1346 = vadd.f32 0.0, %v1345
    %v1347 = vpop.f32.mrf.mxu0
    %1348 = vdwg.mxu0
    %v1349 = vadd.f32 %v1262, %v1346
    %v1350 = vxor.u32 %v1349, 2147483648
    %v1351 = vmul.f32 %v1350, 1.442695
    %v1352 = vpow.pop %v1351
    %v1353 = vadd.f32 %v1352, 1.0
    %v1354 = vrcp.pop %v1353
    %v1355 = vmul.f32 1.0, %v1354
    %v1356 = vld [vmem:[%s1167 + $0x10] sm:$0xff]
    %v1357 = vld [vmem:[#allocation4 + $0x10] sm:$0xff]
    %v1358 = vld [vmem:[#allocation4 + $0x30] sm:$0xff]
    %v1359 = vld [vmem:[#allocation4 + $0x50] sm:$0xff]
    %v1360 = vld [vmem:[#allocation4 + $0x70] sm:$0xff]
    %v1361 = vld [vmem:[#allocation4 + $0x90] sm:$0xff]
    %v1362 = vld [vmem:[#allocation4 + $0xb0] sm:$0xff]
    %v1363 = vld [vmem:[#allocation4 + $0xd0] sm:$0xff]
    %v1364 = vld [vmem:[#allocation4 + $0xf0] sm:$0xff]
    %v1365 = vld [vmem:[#allocation4 + $0x110] sm:$0xff]
    %v1366 = vld [vmem:[#allocation4 + $0x130] sm:$0xff]
    %v1367 = vld [vmem:[#allocation4 + $0x150] sm:$0xff]
    %v1368 = vld [vmem:[#allocation4 + $0x170] sm:$0xff]
    %v1369 = vld [vmem:[#allocation4 + $0x190] sm:$0xff]
    %v1370 = vld [vmem:[#allocation4 + $0x1b0] sm:$0xff]
    %v1371 = vld [vmem:[#allocation4 + $0x1d0] sm:$0xff]
    %v1372 = vld [vmem:[#allocation4 + $0x1f0] sm:$0xff]
    %1373 = vmatprep.subr.mxu0 0.0
    %1374 = vmatpush1.msra.mxu0 %v1372
    %1375 = vmatprep.subr.mxu0 0.0
    %1376 = vmatpush1.msra.mxu0 %v1371
    %1377 = vmatprep.subr.mxu0 0.0
    %1378 = vmatpush1.msra.mxu0 %v1370
    %1379 = vmatprep.subr.mxu0 0.0
    %1380 = vmatpush1.msra.mxu0 %v1369
    %1381 = vmatprep.subr.mxu0 0.0
    %1382 = vmatpush1.msra.mxu0 %v1368
    %1383 = vmatprep.subr.mxu0 0.0
    %1384 = vmatpush1.msra.mxu0 %v1367
    %1385 = vmatprep.subr.mxu0 0.0
    %1386 = vmatpush1.msra.mxu0 %v1366
    %1387 = vmatprep.subr.mxu0 0.0
    %1388 = vmatpush1.msra.mxu0 %v1365
    %1389 = vmatprep.subr.mxu0 0.0
    %1390 = vmatpush1.msra.mxu0 %v1364
    %1391 = vmatprep.subr.mxu0 0.0
    %1392 = vmatpush1.msra.mxu0 %v1363
    %1393 = vmatprep.subr.mxu0 0.0
    %1394 = vmatpush1.msra.mxu0 %v1362
    %1395 = vmatprep.subr.mxu0 0.0
    %1396 = vmatpush1.msra.mxu0 %v1361
    %1397 = vmatprep.subr.mxu0 0.0
    %1398 = vmatpush1.msra.mxu0 %v1360
    %1399 = vmatprep.subr.mxu0 0.0
    %1400 = vmatpush1.msra.mxu0 %v1359
    %1401 = vmatprep.subr.mxu0 0.0
    %1402 = vmatpush1.msra.mxu0 %v1358
    %1403 = vmatprep.subr.mxu0 0.0
    %1404 = vmatpush1.msra.mxu0 %v1357
    %1405 = vmatprep.subr.mxu0 0.0
    %1406 = vmatpush2.msra.mxu0 0.0
    %1407 = vmatprep.subr.mxu0 0.0
    %1408 = vmatpush2.msra.mxu0 0.0
    %1409 = vmatprep.subr.mxu0 0.0
    %1410 = vmatpush2.msra.mxu0 0.0
    %1411 = vmatprep.subr.mxu0 0.0
    %1412 = vmatpush2.msra.mxu0 0.0
    %1413 = vmatprep.subr.mxu0 0.0
    %1414 = vmatpush2.msra.mxu0 0.0
    %1415 = vmatprep.subr.mxu0 0.0
    %1416 = vmatpush2.msra.mxu0 0.0
    %1417 = vmatprep.subr.mxu0 0.0
    %1418 = vmatpush2.msra.mxu0 0.0
    %1419 = vmatprep.subr.mxu0 0.0
    %1420 = vmatpush2.msra.mxu0 0.0
    %1421 = vmatprep.subr.mxu0 0.0
    %1422 = vmatpush2.msra.mxu0 0.0
    %1423 = vmatprep.subr.mxu0 0.0
    %1424 = vmatpush2.msra.mxu0 0.0
    %1425 = vmatprep.subr.mxu0 0.0
    %1426 = vmatpush2.msra.mxu0 0.0
    %1427 = vmatprep.subr.mxu0 0.0
    %1428 = vmatpush2.msra.mxu0 0.0
    %1429 = vmatprep.subr.mxu0 0.0
    %1430 = vmatpush2.msra.mxu0 0.0
    %1431 = vmatprep.subr.mxu0 0.0
    %1432 = vmatpush2.msra.mxu0 0.0
    %1433 = vmatprep.subr.mxu0 0.0
    %1434 = vmatpush2.msra.mxu0 0.0
    %1435 = vmatprep.subr.mxu0 0.0
    %1436 = vmatpush2.msra.mxu0 0.0
    %1437 = vmatprep.mubr.f32.mxu0 0.0
    %1438 = vmatmul.mubr.f32.gmra.mxu0 %v1162
    %v1439 = vpop.f32.mrf.mxu0
    %v1440 = vadd.f32 0.0, %v1439
    %v1441 = vpop.f32.mrf.mxu0
    %1442 = vdwg.mxu0
    %v1443 = vadd.f32 %v1356, %v1440
    %v1444 = vtanh.pop %v1443
    %v1445 = vld [vmem:[%s1167 + $0x18] sm:$0xff]
    %v1446 = vld [vmem:[#allocation4 + $0x18] sm:$0xff]
    %v1447 = vld [vmem:[#allocation4 + $0x38] sm:$0xff]
    %v1448 = vld [vmem:[#allocation4 + $0x58] sm:$0xff]
    %v1449 = vld [vmem:[#allocation4 + $0x78] sm:$0xff]
    %v1450 = vld [vmem:[#allocation4 + $0x98] sm:$0xff]
    %v1451 = vld [vmem:[#allocation4 + $0xb8] sm:$0xff]
    %v1452 = vld [vmem:[#allocation4 + $0xd8] sm:$0xff]
    %v1453 = vld [vmem:[#allocation4 + $0xf8] sm:$0xff]
    %v1454 = vld [vmem:[#allocation4 + $0x118] sm:$0xff]
    %v1455 = vld [vmem:[#allocation4 + $0x138] sm:$0xff]
    %v1456 = vld [vmem:[#allocation4 + $0x158] sm:$0xff]
    %v1457 = vld [vmem:[#allocation4 + $0x178] sm:$0xff]
    %v1458 = vld [vmem:[#allocation4 + $0x198] sm:$0xff]
    %v1459 = vld [vmem:[#allocation4 + $0x1b8] sm:$0xff]
    %v1460 = vld [vmem:[#allocation4 + $0x1d8] sm:$0xff]
    %v1461 = vld [vmem:[#allocation4 + $0x1f8] sm:$0xff]
    %1462 = vmatprep.subr.mxu0 0.0
    %1463 = vmatpush1.msra.mxu0 %v1461
    %1464 = vmatprep.subr.mxu0 0.0
    %1465 = vmatpush1.msra.mxu0 %v1460
    %1466 = vmatprep.subr.mxu0 0.0
    %1467 = vmatpush1.msra.mxu0 %v1459
    %1468 = vmatprep.subr.mxu0 0.0
    %1469 = vmatpush1.msra.mxu0 %v1458
    %1470 = vmatprep.subr.mxu0 0.0
    %1471 = vmatpush1.msra.mxu0 %v1457
    %1472 = vmatprep.subr.mxu0 0.0
    %1473 = vmatpush1.msra.mxu0 %v1456
    %1474 = vmatprep.subr.mxu0 0.0
    %1475 = vmatpush1.msra.mxu0 %v1455
    %1476 = vmatprep.subr.mxu0 0.0
    %1477 = vmatpush1.msra.mxu0 %v1454
    %1478 = vmatprep.subr.mxu0 0.0
    %1479 = vmatpush1.msra.mxu0 %v1453
    %1480 = vmatprep.subr.mxu0 0.0
    %1481 = vmatpush1.msra.mxu0 %v1452
    %1482 = vmatprep.subr.mxu0 0.0
    %1483 = vmatpush1.msra.mxu0 %v1451
    %1484 = vmatprep.subr.mxu0 0.0
    %1485 = vmatpush1.msra.mxu0 %v1450
    %1486 = vmatprep.subr.mxu0 0.0
    %1487 = vmatpush1.msra.mxu0 %v1449
    %1488 = vmatprep.subr.mxu0 0.0
    %1489 = vmatpush1.msra.mxu0 %v1448
    %1490 = vmatprep.subr.mxu0 0.0
    %1491 = vmatpush1.msra.mxu0 %v1447
    %1492 = vmatprep.subr.mxu0 0.0
    %1493 = vmatpush1.msra.mxu0 %v1446
    %1494 = vmatprep.subr.mxu0 0.0
    %1495 = vmatpush2.msra.mxu0 0.0
    %1496 = vmatprep.subr.mxu0 0.0
    %1497 = vmatpush2.msra.mxu0 0.0
    %1498 = vmatprep.subr.mxu0 0.0
    %1499 = vmatpush2.msra.mxu0 0.0
    %1500 = vmatprep.subr.mxu0 0.0
    %1501 = vmatpush2.msra.mxu0 0.0
    %1502 = vmatprep.subr.mxu0 0.0
    %1503 = vmatpush2.msra.mxu0 0.0
    %1504 = vmatprep.subr.mxu0 0.0
    %1505 = vmatpush2.msra.mxu0 0.0
    %1506 = vmatprep.subr.mxu0 0.0
    %1507 = vmatpush2.msra.mxu0 0.0
    %1508 = vmatprep.subr.mxu0 0.0
    %1509 = vmatpush2.msra.mxu0 0.0
    %1510 = vmatprep.subr.mxu0 0.0
    %1511 = vmatpush2.msra.mxu0 0.0
    %1512 = vmatprep.subr.mxu0 0.0
    %1513 = vmatpush2.msra.mxu0 0.0
    %1514 = vmatprep.subr.mxu0 0.0
    %1515 = vmatpush2.msra.mxu0 0.0
    %1516 = vmatprep.subr.mxu0 0.0
    %1517 = vmatpush2.msra.mxu0 0.0
    %1518 = vmatprep.subr.mxu0 0.0
    %1519 = vmatpush2.msra.mxu0 0.0
    %1520 = vmatprep.subr.mxu0 0.0
    %1521 = vmatpush2.msra.mxu0 0.0
    %1522 = vmatprep.subr.mxu0 0.0
    %1523 = vmatpush2.msra.mxu0 0.0
    %1524 = vmatprep.subr.mxu0 0.0
    %1525 = vmatpush2.msra.mxu0 0.0
    %1526 = vmatprep.mubr.f32.mxu0 0.0
    %1527 = vmatmul.mubr.f32.gmra.mxu0 %v1162
    %v1528 = vpop.f32.mrf.mxu0
    %v1529 = vadd.f32 0.0, %v1528
    %v1530 = vpop.f32.mrf.mxu0
    %1531 = vdwg.mxu0
    %v1532 = vadd.f32 %v1445, %v1529
    %v1533 = vxor.u32 %v1532, 2147483648
    %v1534 = vmul.f32 %v1533, 1.442695
    %v1535 = vpow.pop %v1534
    %v1536 = vadd.f32 %v1535, 1.0
    %v1537 = vrcp.pop %v1536
    %v1538 = vmul.f32 1.0, %v1537
    %v1539 = vmul.f32 %v1355, %v1160
    %v1540 = vmul.f32 %v1261, %v1444
    %v1541 = vadd.f32 %v1539, %v1540
    %v1542 = vtanh.pop %v1541
    %v1543 = vmul.f32 %v1538, %v1542
    %s1544 = scalar_lea.vmem [#allocation2], 16
    %1545 = vst [vmem:[%s1544] sm:$0xff] %v1543
    %s1546 = smul.u32 3, 4
    %s1547 = smul.addr %s1546, 8
    %s1548 = scalar_lea.vmem [#allocation3], %s1547
    %v1549 = vld [vmem:[%s1548] sm:$0xff]
    %v1550 = vld [vmem:[#allocation4] sm:$0xff]
    %v1551 = vld [vmem:[#allocation4 + $0x20] sm:$0xff]
    %v1552 = vld [vmem:[#allocation4 + $0x40] sm:$0xff]
    %v1553 = vld [vmem:[#allocation4 + $0x60] sm:$0xff]
    %v1554 = vld [vmem:[#allocation4 + $0x80] sm:$0xff]
    %v1555 = vld [vmem:[#allocation4 + $0xa0] sm:$0xff]
    %v1556 = vld [vmem:[#allocation4 + $0xc0] sm:$0xff]
    %v1557 = vld [vmem:[#allocation4 + $0xe0] sm:$0xff]
    %v1558 = vld [vmem:[#allocation4 + $0x100] sm:$0xff]
    %v1559 = vld [vmem:[#allocation4 + $0x120] sm:$0xff]
    %v1560 = vld [vmem:[#allocation4 + $0x140] sm:$0xff]
    %v1561 = vld [vmem:[#allocation4 + $0x160] sm:$0xff]
    %v1562 = vld [vmem:[#allocation4 + $0x180] sm:$0xff]
    %v1563 = vld [vmem:[#allocation4 + $0x1a0] sm:$0xff]
    %v1564 = vld [vmem:[#allocation4 + $0x1c0] sm:$0xff]
    %v1565 = vld [vmem:[#allocation4 + $0x1e0] sm:$0xff]
    %1566 = vmatprep.subr.mxu0 0.0
    %1567 = vmatpush1.msra.mxu0 %v1565
    %1568 = vmatprep.subr.mxu0 0.0
    %1569 = vmatpush1.msra.mxu0 %v1564
    %1570 = vmatprep.subr.mxu0 0.0
    %1571 = vmatpush1.msra.mxu0 %v1563
    %1572 = vmatprep.subr.mxu0 0.0
    %1573 = vmatpush1.msra.mxu0 %v1562
    %1574 = vmatprep.subr.mxu0 0.0
    %1575 = vmatpush1.msra.mxu0 %v1561
    %1576 = vmatprep.subr.mxu0 0.0
    %1577 = vmatpush1.msra.mxu0 %v1560
    %1578 = vmatprep.subr.mxu0 0.0
    %1579 = vmatpush1.msra.mxu0 %v1559
    %1580 = vmatprep.subr.mxu0 0.0
    %1581 = vmatpush1.msra.mxu0 %v1558
    %1582 = vmatprep.subr.mxu0 0.0
    %1583 = vmatpush1.msra.mxu0 %v1557
    %1584 = vmatprep.subr.mxu0 0.0
    %1585 = vmatpush1.msra.mxu0 %v1556
    %1586 = vmatprep.subr.mxu0 0.0
    %1587 = vmatpush1.msra.mxu0 %v1555
    %1588 = vmatprep.subr.mxu0 0.0
    %1589 = vmatpush1.msra.mxu0 %v1554
    %1590 = vmatprep.subr.mxu0 0.0
    %1591 = vmatpush1.msra.mxu0 %v1553
    %1592 = vmatprep.subr.mxu0 0.0
    %1593 = vmatpush1.msra.mxu0 %v1552
    %1594 = vmatprep.subr.mxu0 0.0
    %1595 = vmatpush1.msra.mxu0 %v1551
    %1596 = vmatprep.subr.mxu0 0.0
    %1597 = vmatpush1.msra.mxu0 %v1550
    %1598 = vmatprep.subr.mxu0 0.0
    %1599 = vmatpush2.msra.mxu0 0.0
    %1600 = vmatprep.subr.mxu0 0.0
    %1601 = vmatpush2.msra.mxu0 0.0
    %1602 = vmatprep.subr.mxu0 0.0
    %1603 = vmatpush2.msra.mxu0 0.0
    %1604 = vmatprep.subr.mxu0 0.0
    %1605 = vmatpush2.msra.mxu0 0.0
    %1606 = vmatprep.subr.mxu0 0.0
    %1607 = vmatpush2.msra.mxu0 0.0
    %1608 = vmatprep.subr.mxu0 0.0
    %1609 = vmatpush2.msra.mxu0 0.0
    %1610 = vmatprep.subr.mxu0 0.0
    %1611 = vmatpush2.msra.mxu0 0.0
    %1612 = vmatprep.subr.mxu0 0.0
    %1613 = vmatpush2.msra.mxu0 0.0
    %1614 = vmatprep.subr.mxu0 0.0
    %1615 = vmatpush2.msra.mxu0 0.0
    %1616 = vmatprep.subr.mxu0 0.0
    %1617 = vmatpush2.msra.mxu0 0.0
    %1618 = vmatprep.subr.mxu0 0.0
    %1619 = vmatpush2.msra.mxu0 0.0
    %1620 = vmatprep.subr.mxu0 0.0
    %1621 = vmatpush2.msra.mxu0 0.0
    %1622 = vmatprep.subr.mxu0 0.0
    %1623 = vmatpush2.msra.mxu0 0.0
    %1624 = vmatprep.subr.mxu0 0.0
    %1625 = vmatpush2.msra.mxu0 0.0
    %1626 = vmatprep.subr.mxu0 0.0
    %1627 = vmatpush2.msra.mxu0 0.0
    %1628 = vmatprep.subr.mxu0 0.0
    %1629 = vmatpush2.msra.mxu0 0.0
    %1630 = vmatprep.mubr.f32.mxu0 0.0
    %1631 = vmatmul.mubr.f32.gmra.mxu0 %v1543
    %v1632 = vpop.f32.mrf.mxu0
    %v1633 = vadd.f32 0.0, %v1632
    %v1634 = vpop.f32.mrf.mxu0
    %1635 = vdwg.mxu0
    %v1636 = vadd.f32 %v1549, %v1633
    %v1637 = vxor.u32 %v1636, 2147483648
    %v1638 = vmul.f32 %v1637, 1.442695
    %v1639 = vpow.pop %v1638
    %v1640 = vadd.f32 %v1639, 1.0
    %v1641 = vrcp.pop %v1640
    %v1642 = vmul.f32 1.0, %v1641
    %v1643 = vld [vmem:[%s1548 + $0x8] sm:$0xff]
    %v1644 = vld [vmem:[#allocation4 + $0x8] sm:$0xff]
    %v1645 = vld [vmem:[#allocation4 + $0x28] sm:$0xff]
    %v1646 = vld [vmem:[#allocation4 + $0x48] sm:$0xff]
    %v1647 = vld [vmem:[#allocation4 + $0x68] sm:$0xff]
    %v1648 = vld [vmem:[#allocation4 + $0x88] sm:$0xff]
    %v1649 = vld [vmem:[#allocation4 + $0xa8] sm:$0xff]
    %v1650 = vld [vmem:[#allocation4 + $0xc8] sm:$0xff]
    %v1651 = vld [vmem:[#allocation4 + $0xe8] sm:$0xff]
    %v1652 = vld [vmem:[#allocation4 + $0x108] sm:$0xff]
    %v1653 = vld [vmem:[#allocation4 + $0x128] sm:$0xff]
    %v1654 = vld [vmem:[#allocation4 + $0x148] sm:$0xff]
    %v1655 = vld [vmem:[#allocation4 + $0x168] sm:$0xff]
    %v1656 = vld [vmem:[#allocation4 + $0x188] sm:$0xff]
    %v1657 = vld [vmem:[#allocation4 + $0x1a8] sm:$0xff]
    %v1658 = vld [vmem:[#allocation4 + $0x1c8] sm:$0xff]
    %v1659 = vld [vmem:[#allocation4 + $0x1e8] sm:$0xff]
    %1660 = vmatprep.subr.mxu0 0.0
    %1661 = vmatpush1.msra.mxu0 %v1659
    %1662 = vmatprep.subr.mxu0 0.0
    %1663 = vmatpush1.msra.mxu0 %v1658
    %1664 = vmatprep.subr.mxu0 0.0
    %1665 = vmatpush1.msra.mxu0 %v1657
    %1666 = vmatprep.subr.mxu0 0.0
    %1667 = vmatpush1.msra.mxu0 %v1656
    %1668 = vmatprep.subr.mxu0 0.0
    %1669 = vmatpush1.msra.mxu0 %v1655
    %1670 = vmatprep.subr.mxu0 0.0
    %1671 = vmatpush1.msra.mxu0 %v1654
    %1672 = vmatprep.subr.mxu0 0.0
    %1673 = vmatpush1.msra.mxu0 %v1653
    %1674 = vmatprep.subr.mxu0 0.0
    %1675 = vmatpush1.msra.mxu0 %v1652
    %1676 = vmatprep.subr.mxu0 0.0
    %1677 = vmatpush1.msra.mxu0 %v1651
    %1678 = vmatprep.subr.mxu0 0.0
    %1679 = vmatpush1.msra.mxu0 %v1650
    %1680 = vmatprep.subr.mxu0 0.0
    %1681 = vmatpush1.msra.mxu0 %v1649
    %1682 = vmatprep.subr.mxu0 0.0
    %1683 = vmatpush1.msra.mxu0 %v1648
    %1684 = vmatprep.subr.mxu0 0.0
    %1685 = vmatpush1.msra.mxu0 %v1647
    %1686 = vmatprep.subr.mxu0 0.0
    %1687 = vmatpush1.msra.mxu0 %v1646
    %1688 = vmatprep.subr.mxu0 0.0
    %1689 = vmatpush1.msra.mxu0 %v1645
    %1690 = vmatprep.subr.mxu0 0.0
    %1691 = vmatpush1.msra.mxu0 %v1644
    %1692 = vmatprep.subr.mxu0 0.0
    %1693 = vmatpush2.msra.mxu0 0.0
    %1694 = vmatprep.subr.mxu0 0.0
    %1695 = vmatpush2.msra.mxu0 0.0
    %1696 = vmatprep.subr.mxu0 0.0
    %1697 = vmatpush2.msra.mxu0 0.0
    %1698 = vmatprep.subr.mxu0 0.0
    %1699 = vmatpush2.msra.mxu0 0.0
    %1700 = vmatprep.subr.mxu0 0.0
    %1701 = vmatpush2.msra.mxu0 0.0
    %1702 = vmatprep.subr.mxu0 0.0
    %1703 = vmatpush2.msra.mxu0 0.0
    %1704 = vmatprep.subr.mxu0 0.0
    %1705 = vmatpush2.msra.mxu0 0.0
    %1706 = vmatprep.subr.mxu0 0.0
    %1707 = vmatpush2.msra.mxu0 0.0
    %1708 = vmatprep.subr.mxu0 0.0
    %1709 = vmatpush2.msra.mxu0 0.0
    %1710 = vmatprep.subr.mxu0 0.0
    %1711 = vmatpush2.msra.mxu0 0.0
    %1712 = vmatprep.subr.mxu0 0.0
    %1713 = vmatpush2.msra.mxu0 0.0
    %1714 = vmatprep.subr.mxu0 0.0
    %1715 = vmatpush2.msra.mxu0 0.0
    %1716 = vmatprep.subr.mxu0 0.0
    %1717 = vmatpush2.msra.mxu0 0.0
    %1718 = vmatprep.subr.mxu0 0.0
    %1719 = vmatpush2.msra.mxu0 0.0
    %1720 = vmatprep.subr.mxu0 0.0
    %1721 = vmatpush2.msra.mxu0 0.0
    %1722 = vmatprep.subr.mxu0 0.0
    %1723 = vmatpush2.msra.mxu0 0.0
    %1724 = vmatprep.mubr.f32.mxu0 0.0
    %1725 = vmatmul.mubr.f32.gmra.mxu0 %v1543
    %v1726 = vpop.f32.mrf.mxu0
    %v1727 = vadd.f32 0.0, %v1726
    %v1728 = vpop.f32.mrf.mxu0
    %1729 = vdwg.mxu0
    %v1730 = vadd.f32 %v1643, %v1727
    %v1731 = vxor.u32 %v1730, 2147483648
    %v1732 = vmul.f32 %v1731, 1.442695
    %v1733 = vpow.pop %v1732
    %v1734 = vadd.f32 %v1733, 1.0
    %v1735 = vrcp.pop %v1734
    %v1736 = vmul.f32 1.0, %v1735
    %v1737 = vld [vmem:[%s1548 + $0x10] sm:$0xff]
    %v1738 = vld [vmem:[#allocation4 + $0x10] sm:$0xff]
    %v1739 = vld [vmem:[#allocation4 + $0x30] sm:$0xff]
    %v1740 = vld [vmem:[#allocation4 + $0x50] sm:$0xff]
    %v1741 = vld [vmem:[#allocation4 + $0x70] sm:$0xff]
    %v1742 = vld [vmem:[#allocation4 + $0x90] sm:$0xff]
    %v1743 = vld [vmem:[#allocation4 + $0xb0] sm:$0xff]
    %v1744 = vld [vmem:[#allocation4 + $0xd0] sm:$0xff]
    %v1745 = vld [vmem:[#allocation4 + $0xf0] sm:$0xff]
    %v1746 = vld [vmem:[#allocation4 + $0x110] sm:$0xff]
    %v1747 = vld [vmem:[#allocation4 + $0x130] sm:$0xff]
    %v1748 = vld [vmem:[#allocation4 + $0x150] sm:$0xff]
    %v1749 = vld [vmem:[#allocation4 + $0x170] sm:$0xff]
    %v1750 = vld [vmem:[#allocation4 + $0x190] sm:$0xff]
    %v1751 = vld [vmem:[#allocation4 + $0x1b0] sm:$0xff]
    %v1752 = vld [vmem:[#allocation4 + $0x1d0] sm:$0xff]
    %v1753 = vld [vmem:[#allocation4 + $0x1f0] sm:$0xff]
    %1754 = vmatprep.subr.mxu0 0.0
    %1755 = vmatpush1.msra.mxu0 %v1753
    %1756 = vmatprep.subr.mxu0 0.0
    %1757 = vmatpush1.msra.mxu0 %v1752
    %1758 = vmatprep.subr.mxu0 0.0
    %1759 = vmatpush1.msra.mxu0 %v1751
    %1760 = vmatprep.subr.mxu0 0.0
    %1761 = vmatpush1.msra.mxu0 %v1750
    %1762 = vmatprep.subr.mxu0 0.0
    %1763 = vmatpush1.msra.mxu0 %v1749
    %1764 = vmatprep.subr.mxu0 0.0
    %1765 = vmatpush1.msra.mxu0 %v1748
    %1766 = vmatprep.subr.mxu0 0.0
    %1767 = vmatpush1.msra.mxu0 %v1747
    %1768 = vmatprep.subr.mxu0 0.0
    %1769 = vmatpush1.msra.mxu0 %v1746
    %1770 = vmatprep.subr.mxu0 0.0
    %1771 = vmatpush1.msra.mxu0 %v1745
    %1772 = vmatprep.subr.mxu0 0.0
    %1773 = vmatpush1.msra.mxu0 %v1744
    %1774 = vmatprep.subr.mxu0 0.0
    %1775 = vmatpush1.msra.mxu0 %v1743
    %1776 = vmatprep.subr.mxu0 0.0
    %1777 = vmatpush1.msra.mxu0 %v1742
    %1778 = vmatprep.subr.mxu0 0.0
    %1779 = vmatpush1.msra.mxu0 %v1741
    %1780 = vmatprep.subr.mxu0 0.0
    %1781 = vmatpush1.msra.mxu0 %v1740
    %1782 = vmatprep.subr.mxu0 0.0
    %1783 = vmatpush1.msra.mxu0 %v1739
    %1784 = vmatprep.subr.mxu0 0.0
    %1785 = vmatpush1.msra.mxu0 %v1738
    %1786 = vmatprep.subr.mxu0 0.0
    %1787 = vmatpush2.msra.mxu0 0.0
    %1788 = vmatprep.subr.mxu0 0.0
    %1789 = vmatpush2.msra.mxu0 0.0
    %1790 = vmatprep.subr.mxu0 0.0
    %1791 = vmatpush2.msra.mxu0 0.0
    %1792 = vmatprep.subr.mxu0 0.0
    %1793 = vmatpush2.msra.mxu0 0.0
    %1794 = vmatprep.subr.mxu0 0.0
    %1795 = vmatpush2.msra.mxu0 0.0
    %1796 = vmatprep.subr.mxu0 0.0
    %1797 = vmatpush2.msra.mxu0 0.0
    %1798 = vmatprep.subr.mxu0 0.0
    %1799 = vmatpush2.msra.mxu0 0.0
    %1800 = vmatprep.subr.mxu0 0.0
    %1801 = vmatpush2.msra.mxu0 0.0
    %1802 = vmatprep.subr.mxu0 0.0
    %1803 = vmatpush2.msra.mxu0 0.0
    %1804 = vmatprep.subr.mxu0 0.0
    %1805 = vmatpush2.msra.mxu0 0.0
    %1806 = vmatprep.subr.mxu0 0.0
    %1807 = vmatpush2.msra.mxu0 0.0
    %1808 = vmatprep.subr.mxu0 0.0
    %1809 = vmatpush2.msra.mxu0 0.0
    %1810 = vmatprep.subr.mxu0 0.0
    %1811 = vmatpush2.msra.mxu0 0.0
    %1812 = vmatprep.subr.mxu0 0.0
    %1813 = vmatpush2.msra.mxu0 0.0
    %1814 = vmatprep.subr.mxu0 0.0
    %1815 = vmatpush2.msra.mxu0 0.0
    %1816 = vmatprep.subr.mxu0 0.0
    %1817 = vmatpush2.msra.mxu0 0.0
    %1818 = vmatprep.mubr.f32.mxu0 0.0
    %1819 = vmatmul.mubr.f32.gmra.mxu0 %v1543
    %v1820 = vpop.f32.mrf.mxu0
    %v1821 = vadd.f32 0.0, %v1820
    %v1822 = vpop.f32.mrf.mxu0
    %1823 = vdwg.mxu0
    %v1824 = vadd.f32 %v1737, %v1821
    %v1825 = vtanh.pop %v1824
    %v1826 = vld [vmem:[%s1548 + $0x18] sm:$0xff]
    %v1827 = vld [vmem:[#allocation4 + $0x18] sm:$0xff]
    %v1828 = vld [vmem:[#allocation4 + $0x38] sm:$0xff]
    %v1829 = vld [vmem:[#allocation4 + $0x58] sm:$0xff]
    %v1830 = vld [vmem:[#allocation4 + $0x78] sm:$0xff]
    %v1831 = vld [vmem:[#allocation4 + $0x98] sm:$0xff]
    %v1832 = vld [vmem:[#allocation4 + $0xb8] sm:$0xff]
    %v1833 = vld [vmem:[#allocation4 + $0xd8] sm:$0xff]
    %v1834 = vld [vmem:[#allocation4 + $0xf8] sm:$0xff]
    %v1835 = vld [vmem:[#allocation4 + $0x118] sm:$0xff]
    %v1836 = vld [vmem:[#allocation4 + $0x138] sm:$0xff]
    %v1837 = vld [vmem:[#allocation4 + $0x158] sm:$0xff]
    %v1838 = vld [vmem:[#allocation4 + $0x178] sm:$0xff]
    %v1839 = vld [vmem:[#allocation4 + $0x198] sm:$0xff]
    %v1840 = vld [vmem:[#allocation4 + $0x1b8] sm:$0xff]
    %v1841 = vld [vmem:[#allocation4 + $0x1d8] sm:$0xff]
    %v1842 = vld [vmem:[#allocation4 + $0x1f8] sm:$0xff]
    %1843 = vmatprep.subr.mxu0 0.0
    %1844 = vmatpush1.msra.mxu0 %v1842
    %1845 = vmatprep.subr.mxu0 0.0
    %1846 = vmatpush1.msra.mxu0 %v1841
    %1847 = vmatprep.subr.mxu0 0.0
    %1848 = vmatpush1.msra.mxu0 %v1840
    %1849 = vmatprep.subr.mxu0 0.0
    %1850 = vmatpush1.msra.mxu0 %v1839
    %1851 = vmatprep.subr.mxu0 0.0
    %1852 = vmatpush1.msra.mxu0 %v1838
    %1853 = vmatprep.subr.mxu0 0.0
    %1854 = vmatpush1.msra.mxu0 %v1837
    %1855 = vmatprep.subr.mxu0 0.0
    %1856 = vmatpush1.msra.mxu0 %v1836
    %1857 = vmatprep.subr.mxu0 0.0
    %1858 = vmatpush1.msra.mxu0 %v1835
    %1859 = vmatprep.subr.mxu0 0.0
    %1860 = vmatpush1.msra.mxu0 %v1834
    %1861 = vmatprep.subr.mxu0 0.0
    %1862 = vmatpush1.msra.mxu0 %v1833
    %1863 = vmatprep.subr.mxu0 0.0
    %1864 = vmatpush1.msra.mxu0 %v1832
    %1865 = vmatprep.subr.mxu0 0.0
    %1866 = vmatpush1.msra.mxu0 %v1831
    %1867 = vmatprep.subr.mxu0 0.0
    %1868 = vmatpush1.msra.mxu0 %v1830
    %1869 = vmatprep.subr.mxu0 0.0
    %1870 = vmatpush1.msra.mxu0 %v1829
    %1871 = vmatprep.subr.mxu0 0.0
    %1872 = vmatpush1.msra.mxu0 %v1828
    %1873 = vmatprep.subr.mxu0 0.0
    %1874 = vmatpush1.msra.mxu0 %v1827
    %1875 = vmatprep.subr.mxu0 0.0
    %1876 = vmatpush2.msra.mxu0 0.0
    %1877 = vmatprep.subr.mxu0 0.0
    %1878 = vmatpush2.msra.mxu0 0.0
    %1879 = vmatprep.subr.mxu0 0.0
    %1880 = vmatpush2.msra.mxu0 0.0
    %1881 = vmatprep.subr.mxu0 0.0
    %1882 = vmatpush2.msra.mxu0 0.0
    %1883 = vmatprep.subr.mxu0 0.0
    %1884 = vmatpush2.msra.mxu0 0.0
    %1885 = vmatprep.subr.mxu0 0.0
    %1886 = vmatpush2.msra.mxu0 0.0
    %1887 = vmatprep.subr.mxu0 0.0
    %1888 = vmatpush2.msra.mxu0 0.0
    %1889 = vmatprep.subr.mxu0 0.0
    %1890 = vmatpush2.msra.mxu0 0.0
    %1891 = vmatprep.subr.mxu0 0.0
    %1892 = vmatpush2.msra.mxu0 0.0
    %1893 = vmatprep.subr.mxu0 0.0
    %1894 = vmatpush2.msra.mxu0 0.0
    %1895 = vmatprep.subr.mxu0 0.0
    %1896 = vmatpush2.msra.mxu0 0.0
    %1897 = vmatprep.subr.mxu0 0.0
    %1898 = vmatpush2.msra.mxu0 0.0
    %1899 = vmatprep.subr.mxu0 0.0
    %1900 = vmatpush2.msra.mxu0 0.0
    %1901 = vmatprep.subr.mxu0 0.0
    %1902 = vmatpush2.msra.mxu0 0.0
    %1903 = vmatprep.subr.mxu0 0.0
    %1904 = vmatpush2.msra.mxu0 0.0
    %1905 = vmatprep.subr.mxu0 0.0
    %1906 = vmatpush2.msra.mxu0 0.0
    %1907 = vmatprep.mubr.f32.mxu0 0.0
    %1908 = vmatmul.mubr.f32.gmra.mxu0 %v1543
    %v1909 = vpop.f32.mrf.mxu0
    %v1910 = vadd.f32 0.0, %v1909
    %v1911 = vpop.f32.mrf.mxu0
    %1912 = vdwg.mxu0
    %v1913 = vadd.f32 %v1826, %v1910
    %v1914 = vxor.u32 %v1913, 2147483648
    %v1915 = vmul.f32 %v1914, 1.442695
    %v1916 = vpow.pop %v1915
    %v1917 = vadd.f32 %v1916, 1.0
    %v1918 = vrcp.pop %v1917
    %v1919 = vmul.f32 1.0, %v1918
    %v1920 = vmul.f32 %v1736, %v1541
    %v1921 = vmul.f32 %v1642, %v1825
    %v1922 = vadd.f32 %v1920, %v1921
    %v1923 = vtanh.pop %v1922
    %v1924 = vmul.f32 %v1919, %v1923
    %s1925 = scalar_lea.vmem [#allocation2], 24
    %1926 = vst [vmem:[%s1925] sm:$0xff] %v1924
    %s1927 = smul.u32 4, 4
    %s1928 = smul.addr %s1927, 8
    %s1929 = scalar_lea.vmem [#allocation3], %s1928
    %v1930 = vld [vmem:[%s1929] sm:$0xff]
    %v1931 = vld [vmem:[#allocation4] sm:$0xff]
    %v1932 = vld [vmem:[#allocation4 + $0x20] sm:$0xff]
    %v1933 = vld [vmem:[#allocation4 + $0x40] sm:$0xff]
    %v1934 = vld [vmem:[#allocation4 + $0x60] sm:$0xff]
    %v1935 = vld [vmem:[#allocation4 + $0x80] sm:$0xff]
    %v1936 = vld [vmem:[#allocation4 + $0xa0] sm:$0xff]
    %v1937 = vld [vmem:[#allocation4 + $0xc0] sm:$0xff]
    %v1938 = vld [vmem:[#allocation4 + $0xe0] sm:$0xff]
    %v1939 = vld [vmem:[#allocation4 + $0x100] sm:$0xff]
    %v1940 = vld [vmem:[#allocation4 + $0x120] sm:$0xff]
    %v1941 = vld [vmem:[#allocation4 + $0x140] sm:$0xff]
    %v1942 = vld [vmem:[#allocation4 + $0x160] sm:$0xff]
    %v1943 = vld [vmem:[#allocation4 + $0x180] sm:$0xff]
    %v1944 = vld [vmem:[#allocation4 + $0x1a0] sm:$0xff]
    %v1945 = vld [vmem:[#allocation4 + $0x1c0] sm:$0xff]
    %v1946 = vld [vmem:[#allocation4 + $0x1e0] sm:$0xff]
    %1947 = vmatprep.subr.mxu0 0.0
    %1948 = vmatpush1.msra.mxu0 %v1946
    %1949 = vmatprep.subr.mxu0 0.0
    %1950 = vmatpush1.msra.mxu0 %v1945
    %1951 = vmatprep.subr.mxu0 0.0
    %1952 = vmatpush1.msra.mxu0 %v1944
    %1953 = vmatprep.subr.mxu0 0.0
    %1954 = vmatpush1.msra.mxu0 %v1943
    %1955 = vmatprep.subr.mxu0 0.0
    %1956 = vmatpush1.msra.mxu0 %v1942
    %1957 = vmatprep.subr.mxu0 0.0
    %1958 = vmatpush1.msra.mxu0 %v1941
    %1959 = vmatprep.subr.mxu0 0.0
    %1960 = vmatpush1.msra.mxu0 %v1940
    %1961 = vmatprep.subr.mxu0 0.0
    %1962 = vmatpush1.msra.mxu0 %v1939
    %1963 = vmatprep.subr.mxu0 0.0
    %1964 = vmatpush1.msra.mxu0 %v1938
    %1965 = vmatprep.subr.mxu0 0.0
    %1966 = vmatpush1.msra.mxu0 %v1937
    %1967 = vmatprep.subr.mxu0 0.0
    %1968 = vmatpush1.msra.mxu0 %v1936
    %1969 = vmatprep.subr.mxu0 0.0
    %1970 = vmatpush1.msra.mxu0 %v1935
    %1971 = vmatprep.subr.mxu0 0.0
    %1972 = vmatpush1.msra.mxu0 %v1934
    %1973 = vmatprep.subr.mxu0 0.0
    %1974 = vmatpush1.msra.mxu0 %v1933
    %1975 = vmatprep.subr.mxu0 0.0
    %1976 = vmatpush1.msra.mxu0 %v1932
    %1977 = vmatprep.subr.mxu0 0.0
    %1978 = vmatpush1.msra.mxu0 %v1931
    %1979 = vmatprep.subr.mxu0 0.0
    %1980 = vmatpush2.msra.mxu0 0.0
    %1981 = vmatprep.subr.mxu0 0.0
    %1982 = vmatpush2.msra.mxu0 0.0
    %1983 = vmatprep.subr.mxu0 0.0
    %1984 = vmatpush2.msra.mxu0 0.0
    %1985 = vmatprep.subr.mxu0 0.0
    %1986 = vmatpush2.msra.mxu0 0.0
    %1987 = vmatprep.subr.mxu0 0.0
    %1988 = vmatpush2.msra.mxu0 0.0
    %1989 = vmatprep.subr.mxu0 0.0
    %1990 = vmatpush2.msra.mxu0 0.0
    %1991 = vmatprep.subr.mxu0 0.0
    %1992 = vmatpush2.msra.mxu0 0.0
    %1993 = vmatprep.subr.mxu0 0.0
    %1994 = vmatpush2.msra.mxu0 0.0
    %1995 = vmatprep.subr.mxu0 0.0
    %1996 = vmatpush2.msra.mxu0 0.0
    %1997 = vmatprep.subr.mxu0 0.0
    %1998 = vmatpush2.msra.mxu0 0.0
    %1999 = vmatprep.subr.mxu0 0.0
    %2000 = vmatpush2.msra.mxu0 0.0
    %2001 = vmatprep.subr.mxu0 0.0
    %2002 = vmatpush2.msra.mxu0 0.0
    %2003 = vmatprep.subr.mxu0 0.0
    %2004 = vmatpush2.msra.mxu0 0.0
    %2005 = vmatprep.subr.mxu0 0.0
    %2006 = vmatpush2.msra.mxu0 0.0
    %2007 = vmatprep.subr.mxu0 0.0
    %2008 = vmatpush2.msra.mxu0 0.0
    %2009 = vmatprep.subr.mxu0 0.0
    %2010 = vmatpush2.msra.mxu0 0.0
    %2011 = vmatprep.mubr.f32.mxu0 0.0
    %2012 = vmatmul.mubr.f32.gmra.mxu0 %v1924
    %v2013 = vpop.f32.mrf.mxu0
    %v2014 = vadd.f32 0.0, %v2013
    %v2015 = vpop.f32.mrf.mxu0
    %2016 = vdwg.mxu0
    %v2017 = vadd.f32 %v1930, %v2014
    %v2018 = vxor.u32 %v2017, 2147483648
    %v2019 = vmul.f32 %v2018, 1.442695
    %v2020 = vpow.pop %v2019
    %v2021 = vadd.f32 %v2020, 1.0
    %v2022 = vrcp.pop %v2021
    %v2023 = vmul.f32 1.0, %v2022
    %v2024 = vld [vmem:[%s1929 + $0x8] sm:$0xff]
    %v2025 = vld [vmem:[#allocation4 + $0x8] sm:$0xff]
    %v2026 = vld [vmem:[#allocation4 + $0x28] sm:$0xff]
    %v2027 = vld [vmem:[#allocation4 + $0x48] sm:$0xff]
    %v2028 = vld [vmem:[#allocation4 + $0x68] sm:$0xff]
    %v2029 = vld [vmem:[#allocation4 + $0x88] sm:$0xff]
    %v2030 = vld [vmem:[#allocation4 + $0xa8] sm:$0xff]
    %v2031 = vld [vmem:[#allocation4 + $0xc8] sm:$0xff]
    %v2032 = vld [vmem:[#allocation4 + $0xe8] sm:$0xff]
    %v2033 = vld [vmem:[#allocation4 + $0x108] sm:$0xff]
    %v2034 = vld [vmem:[#allocation4 + $0x128] sm:$0xff]
    %v2035 = vld [vmem:[#allocation4 + $0x148] sm:$0xff]
    %v2036 = vld [vmem:[#allocation4 + $0x168] sm:$0xff]
    %v2037 = vld [vmem:[#allocation4 + $0x188] sm:$0xff]
    %v2038 = vld [vmem:[#allocation4 + $0x1a8] sm:$0xff]
    %v2039 = vld [vmem:[#allocation4 + $0x1c8] sm:$0xff]
    %v2040 = vld [vmem:[#allocation4 + $0x1e8] sm:$0xff]
    %2041 = vmatprep.subr.mxu0 0.0
    %2042 = vmatpush1.msra.mxu0 %v2040
    %2043 = vmatprep.subr.mxu0 0.0
    %2044 = vmatpush1.msra.mxu0 %v2039
    %2045 = vmatprep.subr.mxu0 0.0
    %2046 = vmatpush1.msra.mxu0 %v2038
    %2047 = vmatprep.subr.mxu0 0.0
    %2048 = vmatpush1.msra.mxu0 %v2037
    %2049 = vmatprep.subr.mxu0 0.0
    %2050 = vmatpush1.msra.mxu0 %v2036
    %2051 = vmatprep.subr.mxu0 0.0
    %2052 = vmatpush1.msra.mxu0 %v2035
    %2053 = vmatprep.subr.mxu0 0.0
    %2054 = vmatpush1.msra.mxu0 %v2034
    %2055 = vmatprep.subr.mxu0 0.0
    %2056 = vmatpush1.msra.mxu0 %v2033
    %2057 = vmatprep.subr.mxu0 0.0
    %2058 = vmatpush1.msra.mxu0 %v2032
    %2059 = vmatprep.subr.mxu0 0.0
    %2060 = vmatpush1.msra.mxu0 %v2031
    %2061 = vmatprep.subr.mxu0 0.0
    %2062 = vmatpush1.msra.mxu0 %v2030
    %2063 = vmatprep.subr.mxu0 0.0
    %2064 = vmatpush1.msra.mxu0 %v2029
    %2065 = vmatprep.subr.mxu0 0.0
    %2066 = vmatpush1.msra.mxu0 %v2028
    %2067 = vmatprep.subr.mxu0 0.0
    %2068 = vmatpush1.msra.mxu0 %v2027
    %2069 = vmatprep.subr.mxu0 0.0
    %2070 = vmatpush1.msra.mxu0 %v2026
    %2071 = vmatprep.subr.mxu0 0.0
    %2072 = vmatpush1.msra.mxu0 %v2025
    %2073 = vmatprep.subr.mxu0 0.0
    %2074 = vmatpush2.msra.mxu0 0.0
    %2075 = vmatprep.subr.mxu0 0.0
    %2076 = vmatpush2.msra.mxu0 0.0
    %2077 = vmatprep.subr.mxu0 0.0
    %2078 = vmatpush2.msra.mxu0 0.0
    %2079 = vmatprep.subr.mxu0 0.0
    %2080 = vmatpush2.msra.mxu0 0.0
    %2081 = vmatprep.subr.mxu0 0.0
    %2082 = vmatpush2.msra.mxu0 0.0
    %2083 = vmatprep.subr.mxu0 0.0
    %2084 = vmatpush2.msra.mxu0 0.0
    %2085 = vmatprep.subr.mxu0 0.0
    %2086 = vmatpush2.msra.mxu0 0.0
    %2087 = vmatprep.subr.mxu0 0.0
    %2088 = vmatpush2.msra.mxu0 0.0
    %2089 = vmatprep.subr.mxu0 0.0
    %2090 = vmatpush2.msra.mxu0 0.0
    %2091 = vmatprep.subr.mxu0 0.0
    %2092 = vmatpush2.msra.mxu0 0.0
    %2093 = vmatprep.subr.mxu0 0.0
    %2094 = vmatpush2.msra.mxu0 0.0
    %2095 = vmatprep.subr.mxu0 0.0
    %2096 = vmatpush2.msra.mxu0 0.0
    %2097 = vmatprep.subr.mxu0 0.0
    %2098 = vmatpush2.msra.mxu0 0.0
    %2099 = vmatprep.subr.mxu0 0.0
    %2100 = vmatpush2.msra.mxu0 0.0
    %2101 = vmatprep.subr.mxu0 0.0
    %2102 = vmatpush2.msra.mxu0 0.0
    %2103 = vmatprep.subr.mxu0 0.0
    %2104 = vmatpush2.msra.mxu0 0.0
    %2105 = vmatprep.mubr.f32.mxu0 0.0
    %2106 = vmatmul.mubr.f32.gmra.mxu0 %v1924
    %v2107 = vpop.f32.mrf.mxu0
    %v2108 = vadd.f32 0.0, %v2107
    %v2109 = vpop.f32.mrf.mxu0
    %2110 = vdwg.mxu0
    %v2111 = vadd.f32 %v2024, %v2108
    %v2112 = vxor.u32 %v2111, 2147483648
    %v2113 = vmul.f32 %v2112, 1.442695
    %v2114 = vpow.pop %v2113
    %v2115 = vadd.f32 %v2114, 1.0
    %v2116 = vrcp.pop %v2115
    %v2117 = vmul.f32 1.0, %v2116
    %v2118 = vld [vmem:[%s1929 + $0x10] sm:$0xff]
    %v2119 = vld [vmem:[#allocation4 + $0x10] sm:$0xff]
    %v2120 = vld [vmem:[#allocation4 + $0x30] sm:$0xff]
    %v2121 = vld [vmem:[#allocation4 + $0x50] sm:$0xff]
    %v2122 = vld [vmem:[#allocation4 + $0x70] sm:$0xff]
    %v2123 = vld [vmem:[#allocation4 + $0x90] sm:$0xff]
    %v2124 = vld [vmem:[#allocation4 + $0xb0] sm:$0xff]
    %v2125 = vld [vmem:[#allocation4 + $0xd0] sm:$0xff]
    %v2126 = vld [vmem:[#allocation4 + $0xf0] sm:$0xff]
    %v2127 = vld [vmem:[#allocation4 + $0x110] sm:$0xff]
    %v2128 = vld [vmem:[#allocation4 + $0x130] sm:$0xff]
    %v2129 = vld [vmem:[#allocation4 + $0x150] sm:$0xff]
    %v2130 = vld [vmem:[#allocation4 + $0x170] sm:$0xff]
    %v2131 = vld [vmem:[#allocation4 + $0x190] sm:$0xff]
    %v2132 = vld [vmem:[#allocation4 + $0x1b0] sm:$0xff]
    %v2133 = vld [vmem:[#allocation4 + $0x1d0] sm:$0xff]
    %v2134 = vld [vmem:[#allocation4 + $0x1f0] sm:$0xff]
    %2135 = vmatprep.subr.mxu0 0.0
    %2136 = vmatpush1.msra.mxu0 %v2134
    %2137 = vmatprep.subr.mxu0 0.0
    %2138 = vmatpush1.msra.mxu0 %v2133
    %2139 = vmatprep.subr.mxu0 0.0
    %2140 = vmatpush1.msra.mxu0 %v2132
    %2141 = vmatprep.subr.mxu0 0.0
    %2142 = vmatpush1.msra.mxu0 %v2131
    %2143 = vmatprep.subr.mxu0 0.0
    %2144 = vmatpush1.msra.mxu0 %v2130
    %2145 = vmatprep.subr.mxu0 0.0
    %2146 = vmatpush1.msra.mxu0 %v2129
    %2147 = vmatprep.subr.mxu0 0.0
    %2148 = vmatpush1.msra.mxu0 %v2128
    %2149 = vmatprep.subr.mxu0 0.0
    %2150 = vmatpush1.msra.mxu0 %v2127
    %2151 = vmatprep.subr.mxu0 0.0
    %2152 = vmatpush1.msra.mxu0 %v2126
    %2153 = vmatprep.subr.mxu0 0.0
    %2154 = vmatpush1.msra.mxu0 %v2125
    %2155 = vmatprep.subr.mxu0 0.0
    %2156 = vmatpush1.msra.mxu0 %v2124
    %2157 = vmatprep.subr.mxu0 0.0
    %2158 = vmatpush1.msra.mxu0 %v2123
    %2159 = vmatprep.subr.mxu0 0.0
    %2160 = vmatpush1.msra.mxu0 %v2122
    %2161 = vmatprep.subr.mxu0 0.0
    %2162 = vmatpush1.msra.mxu0 %v2121
    %2163 = vmatprep.subr.mxu0 0.0
    %2164 = vmatpush1.msra.mxu0 %v2120
    %2165 = vmatprep.subr.mxu0 0.0
    %2166 = vmatpush1.msra.mxu0 %v2119
    %2167 = vmatprep.subr.mxu0 0.0
    %2168 = vmatpush2.msra.mxu0 0.0
    %2169 = vmatprep.subr.mxu0 0.0
    %2170 = vmatpush2.msra.mxu0 0.0
    %2171 = vmatprep.subr.mxu0 0.0
    %2172 = vmatpush2.msra.mxu0 0.0
    %2173 = vmatprep.subr.mxu0 0.0
    %2174 = vmatpush2.msra.mxu0 0.0
    %2175 = vmatprep.subr.mxu0 0.0
    %2176 = vmatpush2.msra.mxu0 0.0
    %2177 = vmatprep.subr.mxu0 0.0
    %2178 = vmatpush2.msra.mxu0 0.0
    %2179 = vmatprep.subr.mxu0 0.0
    %2180 = vmatpush2.msra.mxu0 0.0
    %2181 = vmatprep.subr.mxu0 0.0
    %2182 = vmatpush2.msra.mxu0 0.0
    %2183 = vmatprep.subr.mxu0 0.0
    %2184 = vmatpush2.msra.mxu0 0.0
    %2185 = vmatprep.subr.mxu0 0.0
    %2186 = vmatpush2.msra.mxu0 0.0
    %2187 = vmatprep.subr.mxu0 0.0
    %2188 = vmatpush2.msra.mxu0 0.0
    %2189 = vmatprep.subr.mxu0 0.0
    %2190 = vmatpush2.msra.mxu0 0.0
    %2191 = vmatprep.subr.mxu0 0.0
    %2192 = vmatpush2.msra.mxu0 0.0
    %2193 = vmatprep.subr.mxu0 0.0
    %2194 = vmatpush2.msra.mxu0 0.0
    %2195 = vmatprep.subr.mxu0 0.0
    %2196 = vmatpush2.msra.mxu0 0.0
    %2197 = vmatprep.subr.mxu0 0.0
    %2198 = vmatpush2.msra.mxu0 0.0
    %2199 = vmatprep.mubr.f32.mxu0 0.0
    %2200 = vmatmul.mubr.f32.gmra.mxu0 %v1924
    %v2201 = vpop.f32.mrf.mxu0
    %v2202 = vadd.f32 0.0, %v2201
    %v2203 = vpop.f32.mrf.mxu0
    %2204 = vdwg.mxu0
    %v2205 = vadd.f32 %v2118, %v2202
    %v2206 = vtanh.pop %v2205
    %v2207 = vld [vmem:[%s1929 + $0x18] sm:$0xff]
    %v2208 = vld [vmem:[#allocation4 + $0x18] sm:$0xff]
    %v2209 = vld [vmem:[#allocation4 + $0x38] sm:$0xff]
    %v2210 = vld [vmem:[#allocation4 + $0x58] sm:$0xff]
    %v2211 = vld [vmem:[#allocation4 + $0x78] sm:$0xff]
    %v2212 = vld [vmem:[#allocation4 + $0x98] sm:$0xff]
    %v2213 = vld [vmem:[#allocation4 + $0xb8] sm:$0xff]
    %v2214 = vld [vmem:[#allocation4 + $0xd8] sm:$0xff]
    %v2215 = vld [vmem:[#allocation4 + $0xf8] sm:$0xff]
    %v2216 = vld [vmem:[#allocation4 + $0x118] sm:$0xff]
    %v2217 = vld [vmem:[#allocation4 + $0x138] sm:$0xff]
    %v2218 = vld [vmem:[#allocation4 + $0x158] sm:$0xff]
    %v2219 = vld [vmem:[#allocation4 + $0x178] sm:$0xff]
    %v2220 = vld [vmem:[#allocation4 + $0x198] sm:$0xff]
    %v2221 = vld [vmem:[#allocation4 + $0x1b8] sm:$0xff]
    %v2222 = vld [vmem:[#allocation4 + $0x1d8] sm:$0xff]
    %v2223 = vld [vmem:[#allocation4 + $0x1f8] sm:$0xff]
    %2224 = vmatprep.subr.mxu0 0.0
    %2225 = vmatpush1.msra.mxu0 %v2223
    %2226 = vmatprep.subr.mxu0 0.0
    %2227 = vmatpush1.msra.mxu0 %v2222
    %2228 = vmatprep.subr.mxu0 0.0
    %2229 = vmatpush1.msra.mxu0 %v2221
    %2230 = vmatprep.subr.mxu0 0.0
    %2231 = vmatpush1.msra.mxu0 %v2220
    %2232 = vmatprep.subr.mxu0 0.0
    %2233 = vmatpush1.msra.mxu0 %v2219
    %2234 = vmatprep.subr.mxu0 0.0
    %2235 = vmatpush1.msra.mxu0 %v2218
    %2236 = vmatprep.subr.mxu0 0.0
    %2237 = vmatpush1.msra.mxu0 %v2217
    %2238 = vmatprep.subr.mxu0 0.0
    %2239 = vmatpush1.msra.mxu0 %v2216
    %2240 = vmatprep.subr.mxu0 0.0
    %2241 = vmatpush1.msra.mxu0 %v2215
    %2242 = vmatprep.subr.mxu0 0.0
    %2243 = vmatpush1.msra.mxu0 %v2214
    %2244 = vmatprep.subr.mxu0 0.0
    %2245 = vmatpush1.msra.mxu0 %v2213
    %2246 = vmatprep.subr.mxu0 0.0
    %2247 = vmatpush1.msra.mxu0 %v2212
    %2248 = vmatprep.subr.mxu0 0.0
    %2249 = vmatpush1.msra.mxu0 %v2211
    %2250 = vmatprep.subr.mxu0 0.0
    %2251 = vmatpush1.msra.mxu0 %v2210
    %2252 = vmatprep.subr.mxu0 0.0
    %2253 = vmatpush1.msra.mxu0 %v2209
    %2254 = vmatprep.subr.mxu0 0.0
    %2255 = vmatpush1.msra.mxu0 %v2208
    %2256 = vmatprep.subr.mxu0 0.0
    %2257 = vmatpush2.msra.mxu0 0.0
    %2258 = vmatprep.subr.mxu0 0.0
    %2259 = vmatpush2.msra.mxu0 0.0
    %2260 = vmatprep.subr.mxu0 0.0
    %2261 = vmatpush2.msra.mxu0 0.0
    %2262 = vmatprep.subr.mxu0 0.0
    %2263 = vmatpush2.msra.mxu0 0.0
    %2264 = vmatprep.subr.mxu0 0.0
    %2265 = vmatpush2.msra.mxu0 0.0
    %2266 = vmatprep.subr.mxu0 0.0
    %2267 = vmatpush2.msra.mxu0 0.0
    %2268 = vmatprep.subr.mxu0 0.0
    %2269 = vmatpush2.msra.mxu0 0.0
    %2270 = vmatprep.subr.mxu0 0.0
    %2271 = vmatpush2.msra.mxu0 0.0
    %2272 = vmatprep.subr.mxu0 0.0
    %2273 = vmatpush2.msra.mxu0 0.0
    %2274 = vmatprep.subr.mxu0 0.0
    %2275 = vmatpush2.msra.mxu0 0.0
    %2276 = vmatprep.subr.mxu0 0.0
    %2277 = vmatpush2.msra.mxu0 0.0
    %2278 = vmatprep.subr.mxu0 0.0
    %2279 = vmatpush2.msra.mxu0 0.0
    %2280 = vmatprep.subr.mxu0 0.0
    %2281 = vmatpush2.msra.mxu0 0.0
    %2282 = vmatprep.subr.mxu0 0.0
    %2283 = vmatpush2.msra.mxu0 0.0
    %2284 = vmatprep.subr.mxu0 0.0
    %2285 = vmatpush2.msra.mxu0 0.0
    %2286 = vmatprep.subr.mxu0 0.0
    %2287 = vmatpush2.msra.mxu0 0.0
    %2288 = vmatprep.mubr.f32.mxu0 0.0
    %2289 = vmatmul.mubr.f32.gmra.mxu0 %v1924
    %v2290 = vpop.f32.mrf.mxu0
    %v2291 = vadd.f32 0.0, %v2290
    %v2292 = vpop.f32.mrf.mxu0
    %2293 = vdwg.mxu0
    %v2294 = vadd.f32 %v2207, %v2291
    %v2295 = vxor.u32 %v2294, 2147483648
    %v2296 = vmul.f32 %v2295, 1.442695
    %v2297 = vpow.pop %v2296
    %v2298 = vadd.f32 %v2297, 1.0
    %v2299 = vrcp.pop %v2298
    %v2300 = vmul.f32 1.0, %v2299
    %v2301 = vmul.f32 %v2117, %v1922
    %v2302 = vmul.f32 %v2023, %v2206
    %v2303 = vadd.f32 %v2301, %v2302
    %v2304 = vtanh.pop %v2303
    %v2305 = vmul.f32 %v2300, %v2304
    %s2306 = scalar_lea.vmem [#allocation2], 32
    %2307 = vst [vmem:[%s2306] sm:$0xff] %v2305
    %s2308 = smul.u32 5, 4
    %s2309 = smul.addr %s2308, 8
    %s2310 = scalar_lea.vmem [#allocation3], %s2309
    %v2311 = vld [vmem:[%s2310] sm:$0xff]
    %v2312 = vld [vmem:[#allocation4] sm:$0xff]
    %v2313 = vld [vmem:[#allocation4 + $0x20] sm:$0xff]
    %v2314 = vld [vmem:[#allocation4 + $0x40] sm:$0xff]
    %v2315 = vld [vmem:[#allocation4 + $0x60] sm:$0xff]
    %v2316 = vld [vmem:[#allocation4 + $0x80] sm:$0xff]
    %v2317 = vld [vmem:[#allocation4 + $0xa0] sm:$0xff]
    %v2318 = vld [vmem:[#allocation4 + $0xc0] sm:$0xff]
    %v2319 = vld [vmem:[#allocation4 + $0xe0] sm:$0xff]
    %v2320 = vld [vmem:[#allocation4 + $0x100] sm:$0xff]
    %v2321 = vld [vmem:[#allocation4 + $0x120] sm:$0xff]
    %v2322 = vld [vmem:[#allocation4 + $0x140] sm:$0xff]
    %v2323 = vld [vmem:[#allocation4 + $0x160] sm:$0xff]
    %v2324 = vld [vmem:[#allocation4 + $0x180] sm:$0xff]
    %v2325 = vld [vmem:[#allocation4 + $0x1a0] sm:$0xff]
    %v2326 = vld [vmem:[#allocation4 + $0x1c0] sm:$0xff]
    %v2327 = vld [vmem:[#allocation4 + $0x1e0] sm:$0xff]
    %2328 = vmatprep.subr.mxu0 0.0
    %2329 = vmatpush1.msra.mxu0 %v2327
    %2330 = vmatprep.subr.mxu0 0.0
    %2331 = vmatpush1.msra.mxu0 %v2326
    %2332 = vmatprep.subr.mxu0 0.0
    %2333 = vmatpush1.msra.mxu0 %v2325
    %2334 = vmatprep.subr.mxu0 0.0
    %2335 = vmatpush1.msra.mxu0 %v2324
    %2336 = vmatprep.subr.mxu0 0.0
    %2337 = vmatpush1.msra.mxu0 %v2323
    %2338 = vmatprep.subr.mxu0 0.0
    %2339 = vmatpush1.msra.mxu0 %v2322
    %2340 = vmatprep.subr.mxu0 0.0
    %2341 = vmatpush1.msra.mxu0 %v2321
    %2342 = vmatprep.subr.mxu0 0.0
    %2343 = vmatpush1.msra.mxu0 %v2320
    %2344 = vmatprep.subr.mxu0 0.0
    %2345 = vmatpush1.msra.mxu0 %v2319
    %2346 = vmatprep.subr.mxu0 0.0
    %2347 = vmatpush1.msra.mxu0 %v2318
    %2348 = vmatprep.subr.mxu0 0.0
    %2349 = vmatpush1.msra.mxu0 %v2317
    %2350 = vmatprep.subr.mxu0 0.0
    %2351 = vmatpush1.msra.mxu0 %v2316
    %2352 = vmatprep.subr.mxu0 0.0
    %2353 = vmatpush1.msra.mxu0 %v2315
    %2354 = vmatprep.subr.mxu0 0.0
    %2355 = vmatpush1.msra.mxu0 %v2314
    %2356 = vmatprep.subr.mxu0 0.0
    %2357 = vmatpush1.msra.mxu0 %v2313
    %2358 = vmatprep.subr.mxu0 0.0
    %2359 = vmatpush1.msra.mxu0 %v2312
    %2360 = vmatprep.subr.mxu0 0.0
    %2361 = vmatpush2.msra.mxu0 0.0
    %2362 = vmatprep.subr.mxu0 0.0
    %2363 = vmatpush2.msra.mxu0 0.0
    %2364 = vmatprep.subr.mxu0 0.0
    %2365 = vmatpush2.msra.mxu0 0.0
    %2366 = vmatprep.subr.mxu0 0.0
    %2367 = vmatpush2.msra.mxu0 0.0
    %2368 = vmatprep.subr.mxu0 0.0
    %2369 = vmatpush2.msra.mxu0 0.0
    %2370 = vmatprep.subr.mxu0 0.0
    %2371 = vmatpush2.msra.mxu0 0.0
    %2372 = vmatprep.subr.mxu0 0.0
    %2373 = vmatpush2.msra.mxu0 0.0
    %2374 = vmatprep.subr.mxu0 0.0
    %2375 = vmatpush2.msra.mxu0 0.0
    %2376 = vmatprep.subr.mxu0 0.0
    %2377 = vmatpush2.msra.mxu0 0.0
    %2378 = vmatprep.subr.mxu0 0.0
    %2379 = vmatpush2.msra.mxu0 0.0
    %2380 = vmatprep.subr.mxu0 0.0
    %2381 = vmatpush2.msra.mxu0 0.0
    %2382 = vmatprep.subr.mxu0 0.0
    %2383 = vmatpush2.msra.mxu0 0.0
    %2384 = vmatprep.subr.mxu0 0.0
    %2385 = vmatpush2.msra.mxu0 0.0
    %2386 = vmatprep.subr.mxu0 0.0
    %2387 = vmatpush2.msra.mxu0 0.0
    %2388 = vmatprep.subr.mxu0 0.0
    %2389 = vmatpush2.msra.mxu0 0.0
    %2390 = vmatprep.subr.mxu0 0.0
    %2391 = vmatpush2.msra.mxu0 0.0
    %2392 = vmatprep.mubr.f32.mxu0 0.0
    %2393 = vmatmul.mubr.f32.gmra.mxu0 %v2305
    %v2394 = vpop.f32.mrf.mxu0
    %v2395 = vadd.f32 0.0, %v2394
    %v2396 = vpop.f32.mrf.mxu0
    %2397 = vdwg.mxu0
    %v2398 = vadd.f32 %v2311, %v2395
    %v2399 = vxor.u32 %v2398, 2147483648
    %v2400 = vmul.f32 %v2399, 1.442695
    %v2401 = vpow.pop %v2400
    %v2402 = vadd.f32 %v2401, 1.0
    %v2403 = vrcp.pop %v2402
    %v2404 = vmul.f32 1.0, %v2403
    %v2405 = vld [vmem:[%s2310 + $0x8] sm:$0xff]
    %v2406 = vld [vmem:[#allocation4 + $0x8] sm:$0xff]
    %v2407 = vld [vmem:[#allocation4 + $0x28] sm:$0xff]
    %v2408 = vld [vmem:[#allocation4 + $0x48] sm:$0xff]
    %v2409 = vld [vmem:[#allocation4 + $0x68] sm:$0xff]
    %v2410 = vld [vmem:[#allocation4 + $0x88] sm:$0xff]
    %v2411 = vld [vmem:[#allocation4 + $0xa8] sm:$0xff]
    %v2412 = vld [vmem:[#allocation4 + $0xc8] sm:$0xff]
    %v2413 = vld [vmem:[#allocation4 + $0xe8] sm:$0xff]
    %v2414 = vld [vmem:[#allocation4 + $0x108] sm:$0xff]
    %v2415 = vld [vmem:[#allocation4 + $0x128] sm:$0xff]
    %v2416 = vld [vmem:[#allocation4 + $0x148] sm:$0xff]
    %v2417 = vld [vmem:[#allocation4 + $0x168] sm:$0xff]
    %v2418 = vld [vmem:[#allocation4 + $0x188] sm:$0xff]
    %v2419 = vld [vmem:[#allocation4 + $0x1a8] sm:$0xff]
    %v2420 = vld [vmem:[#allocation4 + $0x1c8] sm:$0xff]
    %v2421 = vld [vmem:[#allocation4 + $0x1e8] sm:$0xff]
    %2422 = vmatprep.subr.mxu0 0.0
    %2423 = vmatpush1.msra.mxu0 %v2421
    %2424 = vmatprep.subr.mxu0 0.0
    %2425 = vmatpush1.msra.mxu0 %v2420
    %2426 = vmatprep.subr.mxu0 0.0
    %2427 = vmatpush1.msra.mxu0 %v2419
    %2428 = vmatprep.subr.mxu0 0.0
    %2429 = vmatpush1.msra.mxu0 %v2418
    %2430 = vmatprep.subr.mxu0 0.0
    %2431 = vmatpush1.msra.mxu0 %v2417
    %2432 = vmatprep.subr.mxu0 0.0
    %2433 = vmatpush1.msra.mxu0 %v2416
    %2434 = vmatprep.subr.mxu0 0.0
    %2435 = vmatpush1.msra.mxu0 %v2415
    %2436 = vmatprep.subr.mxu0 0.0
    %2437 = vmatpush1.msra.mxu0 %v2414
    %2438 = vmatprep.subr.mxu0 0.0
    %2439 = vmatpush1.msra.mxu0 %v2413
    %2440 = vmatprep.subr.mxu0 0.0
    %2441 = vmatpush1.msra.mxu0 %v2412
    %2442 = vmatprep.subr.mxu0 0.0
    %2443 = vmatpush1.msra.mxu0 %v2411
    %2444 = vmatprep.subr.mxu0 0.0
    %2445 = vmatpush1.msra.mxu0 %v2410
    %2446 = vmatprep.subr.mxu0 0.0
    %2447 = vmatpush1.msra.mxu0 %v2409
    %2448 = vmatprep.subr.mxu0 0.0
    %2449 = vmatpush1.msra.mxu0 %v2408
    %2450 = vmatprep.subr.mxu0 0.0
    %2451 = vmatpush1.msra.mxu0 %v2407
    %2452 = vmatprep.subr.mxu0 0.0
    %2453 = vmatpush1.msra.mxu0 %v2406
    %2454 = vmatprep.subr.mxu0 0.0
    %2455 = vmatpush2.msra.mxu0 0.0
    %2456 = vmatprep.subr.mxu0 0.0
    %2457 = vmatpush2.msra.mxu0 0.0
    %2458 = vmatprep.subr.mxu0 0.0
    %2459 = vmatpush2.msra.mxu0 0.0
    %2460 = vmatprep.subr.mxu0 0.0
    %2461 = vmatpush2.msra.mxu0 0.0
    %2462 = vmatprep.subr.mxu0 0.0
    %2463 = vmatpush2.msra.mxu0 0.0
    %2464 = vmatprep.subr.mxu0 0.0
    %2465 = vmatpush2.msra.mxu0 0.0
    %2466 = vmatprep.subr.mxu0 0.0
    %2467 = vmatpush2.msra.mxu0 0.0
    %2468 = vmatprep.subr.mxu0 0.0
    %2469 = vmatpush2.msra.mxu0 0.0
    %2470 = vmatprep.subr.mxu0 0.0
    %2471 = vmatpush2.msra.mxu0 0.0
    %2472 = vmatprep.subr.mxu0 0.0
    %2473 = vmatpush2.msra.mxu0 0.0
    %2474 = vmatprep.subr.mxu0 0.0
    %2475 = vmatpush2.msra.mxu0 0.0
    %2476 = vmatprep.subr.mxu0 0.0
    %2477 = vmatpush2.msra.mxu0 0.0
    %2478 = vmatprep.subr.mxu0 0.0
    %2479 = vmatpush2.msra.mxu0 0.0
    %2480 = vmatprep.subr.mxu0 0.0
    %2481 = vmatpush2.msra.mxu0 0.0
    %2482 = vmatprep.subr.mxu0 0.0
    %2483 = vmatpush2.msra.mxu0 0.0
    %2484 = vmatprep.subr.mxu0 0.0
    %2485 = vmatpush2.msra.mxu0 0.0
    %2486 = vmatprep.mubr.f32.mxu0 0.0
    %2487 = vmatmul.mubr.f32.gmra.mxu0 %v2305
    %v2488 = vpop.f32.mrf.mxu0
    %v2489 = vadd.f32 0.0, %v2488
    %v2490 = vpop.f32.mrf.mxu0
    %2491 = vdwg.mxu0
    %v2492 = vadd.f32 %v2405, %v2489
    %v2493 = vxor.u32 %v2492, 2147483648
    %v2494 = vmul.f32 %v2493, 1.442695
    %v2495 = vpow.pop %v2494
    %v2496 = vadd.f32 %v2495, 1.0
    %v2497 = vrcp.pop %v2496
    %v2498 = vmul.f32 1.0, %v2497
    %v2499 = vld [vmem:[%s2310 + $0x10] sm:$0xff]
    %v2500 = vld [vmem:[#allocation4 + $0x10] sm:$0xff]
    %v2501 = vld [vmem:[#allocation4 + $0x30] sm:$0xff]
    %v2502 = vld [vmem:[#allocation4 + $0x50] sm:$0xff]
    %v2503 = vld [vmem:[#allocation4 + $0x70] sm:$0xff]
    %v2504 = vld [vmem:[#allocation4 + $0x90] sm:$0xff]
    %v2505 = vld [vmem:[#allocation4 + $0xb0] sm:$0xff]
    %v2506 = vld [vmem:[#allocation4 + $0xd0] sm:$0xff]
    %v2507 = vld [vmem:[#allocation4 + $0xf0] sm:$0xff]
    %v2508 = vld [vmem:[#allocation4 + $0x110] sm:$0xff]
    %v2509 = vld [vmem:[#allocation4 + $0x130] sm:$0xff]
    %v2510 = vld [vmem:[#allocation4 + $0x150] sm:$0xff]
    %v2511 = vld [vmem:[#allocation4 + $0x170] sm:$0xff]
    %v2512 = vld [vmem:[#allocation4 + $0x190] sm:$0xff]
    %v2513 = vld [vmem:[#allocation4 + $0x1b0] sm:$0xff]
    %v2514 = vld [vmem:[#allocation4 + $0x1d0] sm:$0xff]
    %v2515 = vld [vmem:[#allocation4 + $0x1f0] sm:$0xff]
    %2516 = vmatprep.subr.mxu0 0.0
    %2517 = vmatpush1.msra.mxu0 %v2515
    %2518 = vmatprep.subr.mxu0 0.0
    %2519 = vmatpush1.msra.mxu0 %v2514
    %2520 = vmatprep.subr.mxu0 0.0
    %2521 = vmatpush1.msra.mxu0 %v2513
    %2522 = vmatprep.subr.mxu0 0.0
    %2523 = vmatpush1.msra.mxu0 %v2512
    %2524 = vmatprep.subr.mxu0 0.0
    %2525 = vmatpush1.msra.mxu0 %v2511
    %2526 = vmatprep.subr.mxu0 0.0
    %2527 = vmatpush1.msra.mxu0 %v2510
    %2528 = vmatprep.subr.mxu0 0.0
    %2529 = vmatpush1.msra.mxu0 %v2509
    %2530 = vmatprep.subr.mxu0 0.0
    %2531 = vmatpush1.msra.mxu0 %v2508
    %2532 = vmatprep.subr.mxu0 0.0
    %2533 = vmatpush1.msra.mxu0 %v2507
    %2534 = vmatprep.subr.mxu0 0.0
    %2535 = vmatpush1.msra.mxu0 %v2506
    %2536 = vmatprep.subr.mxu0 0.0
    %2537 = vmatpush1.msra.mxu0 %v2505
    %2538 = vmatprep.subr.mxu0 0.0
    %2539 = vmatpush1.msra.mxu0 %v2504
    %2540 = vmatprep.subr.mxu0 0.0
    %2541 = vmatpush1.msra.mxu0 %v2503
    %2542 = vmatprep.subr.mxu0 0.0
    %2543 = vmatpush1.msra.mxu0 %v2502
    %2544 = vmatprep.subr.mxu0 0.0
    %2545 = vmatpush1.msra.mxu0 %v2501
    %2546 = vmatprep.subr.mxu0 0.0
    %2547 = vmatpush1.msra.mxu0 %v2500
    %2548 = vmatprep.subr.mxu0 0.0
    %2549 = vmatpush2.msra.mxu0 0.0
    %2550 = vmatprep.subr.mxu0 0.0
    %2551 = vmatpush2.msra.mxu0 0.0
    %2552 = vmatprep.subr.mxu0 0.0
    %2553 = vmatpush2.msra.mxu0 0.0
    %2554 = vmatprep.subr.mxu0 0.0
    %2555 = vmatpush2.msra.mxu0 0.0
    %2556 = vmatprep.subr.mxu0 0.0
    %2557 = vmatpush2.msra.mxu0 0.0
    %2558 = vmatprep.subr.mxu0 0.0
    %2559 = vmatpush2.msra.mxu0 0.0
    %2560 = vmatprep.subr.mxu0 0.0
    %2561 = vmatpush2.msra.mxu0 0.0
    %2562 = vmatprep.subr.mxu0 0.0
    %2563 = vmatpush2.msra.mxu0 0.0
    %2564 = vmatprep.subr.mxu0 0.0
    %2565 = vmatpush2.msra.mxu0 0.0
    %2566 = vmatprep.subr.mxu0 0.0
    %2567 = vmatpush2.msra.mxu0 0.0
    %2568 = vmatprep.subr.mxu0 0.0
    %2569 = vmatpush2.msra.mxu0 0.0
    %2570 = vmatprep.subr.mxu0 0.0
    %2571 = vmatpush2.msra.mxu0 0.0
    %2572 = vmatprep.subr.mxu0 0.0
    %2573 = vmatpush2.msra.mxu0 0.0
    %2574 = vmatprep.subr.mxu0 0.0
    %2575 = vmatpush2.msra.mxu0 0.0
    %2576 = vmatprep.subr.mxu0 0.0
    %2577 = vmatpush2.msra.mxu0 0.0
    %2578 = vmatprep.subr.mxu0 0.0
    %2579 = vmatpush2.msra.mxu0 0.0
    %2580 = vmatprep.mubr.f32.mxu0 0.0
    %2581 = vmatmul.mubr.f32.gmra.mxu0 %v2305
    %v2582 = vpop.f32.mrf.mxu0
    %v2583 = vadd.f32 0.0, %v2582
    %v2584 = vpop.f32.mrf.mxu0
    %2585 = vdwg.mxu0
    %v2586 = vadd.f32 %v2499, %v2583
    %v2587 = vtanh.pop %v2586
    %v2588 = vld [vmem:[%s2310 + $0x18] sm:$0xff]
    %v2589 = vld [vmem:[#allocation4 + $0x18] sm:$0xff]
    %v2590 = vld [vmem:[#allocation4 + $0x38] sm:$0xff]
    %v2591 = vld [vmem:[#allocation4 + $0x58] sm:$0xff]
    %v2592 = vld [vmem:[#allocation4 + $0x78] sm:$0xff]
    %v2593 = vld [vmem:[#allocation4 + $0x98] sm:$0xff]
    %v2594 = vld [vmem:[#allocation4 + $0xb8] sm:$0xff]
    %v2595 = vld [vmem:[#allocation4 + $0xd8] sm:$0xff]
    %v2596 = vld [vmem:[#allocation4 + $0xf8] sm:$0xff]
    %v2597 = vld [vmem:[#allocation4 + $0x118] sm:$0xff]
    %v2598 = vld [vmem:[#allocation4 + $0x138] sm:$0xff]
    %v2599 = vld [vmem:[#allocation4 + $0x158] sm:$0xff]
    %v2600 = vld [vmem:[#allocation4 + $0x178] sm:$0xff]
    %v2601 = vld [vmem:[#allocation4 + $0x198] sm:$0xff]
    %v2602 = vld [vmem:[#allocation4 + $0x1b8] sm:$0xff]
    %v2603 = vld [vmem:[#allocation4 + $0x1d8] sm:$0xff]
    %v2604 = vld [vmem:[#allocation4 + $0x1f8] sm:$0xff]
    %2605 = vmatprep.subr.mxu0 0.0
    %2606 = vmatpush1.msra.mxu0 %v2604
    %2607 = vmatprep.subr.mxu0 0.0
    %2608 = vmatpush1.msra.mxu0 %v2603
    %2609 = vmatprep.subr.mxu0 0.0
    %2610 = vmatpush1.msra.mxu0 %v2602
    %2611 = vmatprep.subr.mxu0 0.0
    %2612 = vmatpush1.msra.mxu0 %v2601
    %2613 = vmatprep.subr.mxu0 0.0
    %2614 = vmatpush1.msra.mxu0 %v2600
    %2615 = vmatprep.subr.mxu0 0.0
    %2616 = vmatpush1.msra.mxu0 %v2599
    %2617 = vmatprep.subr.mxu0 0.0
    %2618 = vmatpush1.msra.mxu0 %v2598
    %2619 = vmatprep.subr.mxu0 0.0
    %2620 = vmatpush1.msra.mxu0 %v2597
    %2621 = vmatprep.subr.mxu0 0.0
    %2622 = vmatpush1.msra.mxu0 %v2596
    %2623 = vmatprep.subr.mxu0 0.0
    %2624 = vmatpush1.msra.mxu0 %v2595
    %2625 = vmatprep.subr.mxu0 0.0
    %2626 = vmatpush1.msra.mxu0 %v2594
    %2627 = vmatprep.subr.mxu0 0.0
    %2628 = vmatpush1.msra.mxu0 %v2593
    %2629 = vmatprep.subr.mxu0 0.0
    %2630 = vmatpush1.msra.mxu0 %v2592
    %2631 = vmatprep.subr.mxu0 0.0
    %2632 = vmatpush1.msra.mxu0 %v2591
    %2633 = vmatprep.subr.mxu0 0.0
    %2634 = vmatpush1.msra.mxu0 %v2590
    %2635 = vmatprep.subr.mxu0 0.0
    %2636 = vmatpush1.msra.mxu0 %v2589
    %2637 = vmatprep.subr.mxu0 0.0
    %2638 = vmatpush2.msra.mxu0 0.0
    %2639 = vmatprep.subr.mxu0 0.0
    %2640 = vmatpush2.msra.mxu0 0.0
    %2641 = vmatprep.subr.mxu0 0.0
    %2642 = vmatpush2.msra.mxu0 0.0
    %2643 = vmatprep.subr.mxu0 0.0
    %2644 = vmatpush2.msra.mxu0 0.0
    %2645 = vmatprep.subr.mxu0 0.0
    %2646 = vmatpush2.msra.mxu0 0.0
    %2647 = vmatprep.subr.mxu0 0.0
    %2648 = vmatpush2.msra.mxu0 0.0
    %2649 = vmatprep.subr.mxu0 0.0
    %2650 = vmatpush2.msra.mxu0 0.0
    %2651 = vmatprep.subr.mxu0 0.0
    %2652 = vmatpush2.msra.mxu0 0.0
    %2653 = vmatprep.subr.mxu0 0.0
    %2654 = vmatpush2.msra.mxu0 0.0
    %2655 = vmatprep.subr.mxu0 0.0
    %2656 = vmatpush2.msra.mxu0 0.0
    %2657 = vmatprep.subr.mxu0 0.0
    %2658 = vmatpush2.msra.mxu0 0.0
    %2659 = vmatprep.subr.mxu0 0.0
    %2660 = vmatpush2.msra.mxu0 0.0
    %2661 = vmatprep.subr.mxu0 0.0
    %2662 = vmatpush2.msra.mxu0 0.0
    %2663 = vmatprep.subr.mxu0 0.0
    %2664 = vmatpush2.msra.mxu0 0.0
    %2665 = vmatprep.subr.mxu0 0.0
    %2666 = vmatpush2.msra.mxu0 0.0
    %2667 = vmatprep.subr.mxu0 0.0
    %2668 = vmatpush2.msra.mxu0 0.0
    %2669 = vmatprep.mubr.f32.mxu0 0.0
    %2670 = vmatmul.mubr.f32.gmra.mxu0 %v2305
    %v2671 = vpop.f32.mrf.mxu0
    %v2672 = vadd.f32 0.0, %v2671
    %v2673 = vpop.f32.mrf.mxu0
    %2674 = vdwg.mxu0
    %v2675 = vadd.f32 %v2588, %v2672
    %v2676 = vxor.u32 %v2675, 2147483648
    %v2677 = vmul.f32 %v2676, 1.442695
    %v2678 = vpow.pop %v2677
    %v2679 = vadd.f32 %v2678, 1.0
    %v2680 = vrcp.pop %v2679
    %v2681 = vmul.f32 1.0, %v2680
    %v2682 = vmul.f32 %v2498, %v2303
    %v2683 = vmul.f32 %v2404, %v2587
    %v2684 = vadd.f32 %v2682, %v2683
    %v2685 = vtanh.pop %v2684
    %v2686 = vmul.f32 %v2681, %v2685
    %s2687 = scalar_lea.vmem [#allocation2], 40
    %2688 = vst [vmem:[%s2687] sm:$0xff] %v2686
    %s2689 = smul.u32 6, 4
    %s2690 = smul.addr %s2689, 8
    %s2691 = scalar_lea.vmem [#allocation3], %s2690
    %v2692 = vld [vmem:[%s2691] sm:$0xff]
    %v2693 = vld [vmem:[#allocation4] sm:$0xff]
    %v2694 = vld [vmem:[#allocation4 + $0x20] sm:$0xff]
    %v2695 = vld [vmem:[#allocation4 + $0x40] sm:$0xff]
    %v2696 = vld [vmem:[#allocation4 + $0x60] sm:$0xff]
    %v2697 = vld [vmem:[#allocation4 + $0x80] sm:$0xff]
    %v2698 = vld [vmem:[#allocation4 + $0xa0] sm:$0xff]
    %v2699 = vld [vmem:[#allocation4 + $0xc0] sm:$0xff]
    %v2700 = vld [vmem:[#allocation4 + $0xe0] sm:$0xff]
    %v2701 = vld [vmem:[#allocation4 + $0x100] sm:$0xff]
    %v2702 = vld [vmem:[#allocation4 + $0x120] sm:$0xff]
    %v2703 = vld [vmem:[#allocation4 + $0x140] sm:$0xff]
    %v2704 = vld [vmem:[#allocation4 + $0x160] sm:$0xff]
    %v2705 = vld [vmem:[#allocation4 + $0x180] sm:$0xff]
    %v2706 = vld [vmem:[#allocation4 + $0x1a0] sm:$0xff]
    %v2707 = vld [vmem:[#allocation4 + $0x1c0] sm:$0xff]
    %v2708 = vld [vmem:[#allocation4 + $0x1e0] sm:$0xff]
    %2709 = vmatprep.subr.mxu0 0.0
    %2710 = vmatpush1.msra.mxu0 %v2708
    %2711 = vmatprep.subr.mxu0 0.0
    %2712 = vmatpush1.msra.mxu0 %v2707
    %2713 = vmatprep.subr.mxu0 0.0
    %2714 = vmatpush1.msra.mxu0 %v2706
    %2715 = vmatprep.subr.mxu0 0.0
    %2716 = vmatpush1.msra.mxu0 %v2705
    %2717 = vmatprep.subr.mxu0 0.0
    %2718 = vmatpush1.msra.mxu0 %v2704
    %2719 = vmatprep.subr.mxu0 0.0
    %2720 = vmatpush1.msra.mxu0 %v2703
    %2721 = vmatprep.subr.mxu0 0.0
    %2722 = vmatpush1.msra.mxu0 %v2702
    %2723 = vmatprep.subr.mxu0 0.0
    %2724 = vmatpush1.msra.mxu0 %v2701
    %2725 = vmatprep.subr.mxu0 0.0
    %2726 = vmatpush1.msra.mxu0 %v2700
    %2727 = vmatprep.subr.mxu0 0.0
    %2728 = vmatpush1.msra.mxu0 %v2699
    %2729 = vmatprep.subr.mxu0 0.0
    %2730 = vmatpush1.msra.mxu0 %v2698
    %2731 = vmatprep.subr.mxu0 0.0
    %2732 = vmatpush1.msra.mxu0 %v2697
    %2733 = vmatprep.subr.mxu0 0.0
    %2734 = vmatpush1.msra.mxu0 %v2696
    %2735 = vmatprep.subr.mxu0 0.0
    %2736 = vmatpush1.msra.mxu0 %v2695
    %2737 = vmatprep.subr.mxu0 0.0
    %2738 = vmatpush1.msra.mxu0 %v2694
    %2739 = vmatprep.subr.mxu0 0.0
    %2740 = vmatpush1.msra.mxu0 %v2693
    %2741 = vmatprep.subr.mxu0 0.0
    %2742 = vmatpush2.msra.mxu0 0.0
    %2743 = vmatprep.subr.mxu0 0.0
    %2744 = vmatpush2.msra.mxu0 0.0
    %2745 = vmatprep.subr.mxu0 0.0
    %2746 = vmatpush2.msra.mxu0 0.0
    %2747 = vmatprep.subr.mxu0 0.0
    %2748 = vmatpush2.msra.mxu0 0.0
    %2749 = vmatprep.subr.mxu0 0.0
    %2750 = vmatpush2.msra.mxu0 0.0
    %2751 = vmatprep.subr.mxu0 0.0
    %2752 = vmatpush2.msra.mxu0 0.0
    %2753 = vmatprep.subr.mxu0 0.0
    %2754 = vmatpush2.msra.mxu0 0.0
    %2755 = vmatprep.subr.mxu0 0.0
    %2756 = vmatpush2.msra.mxu0 0.0
    %2757 = vmatprep.subr.mxu0 0.0
    %2758 = vmatpush2.msra.mxu0 0.0
    %2759 = vmatprep.subr.mxu0 0.0
    %2760 = vmatpush2.msra.mxu0 0.0
    %2761 = vmatprep.subr.mxu0 0.0
    %2762 = vmatpush2.msra.mxu0 0.0
    %2763 = vmatprep.subr.mxu0 0.0
    %2764 = vmatpush2.msra.mxu0 0.0
    %2765 = vmatprep.subr.mxu0 0.0
    %2766 = vmatpush2.msra.mxu0 0.0
    %2767 = vmatprep.subr.mxu0 0.0
    %2768 = vmatpush2.msra.mxu0 0.0
    %2769 = vmatprep.subr.mxu0 0.0
    %2770 = vmatpush2.msra.mxu0 0.0
    %2771 = vmatprep.subr.mxu0 0.0
    %2772 = vmatpush2.msra.mxu0 0.0
    %2773 = vmatprep.mubr.f32.mxu0 0.0
    %2774 = vmatmul.mubr.f32.gmra.mxu0 %v2686
    %v2775 = vpop.f32.mrf.mxu0
    %v2776 = vadd.f32 0.0, %v2775
    %v2777 = vpop.f32.mrf.mxu0
    %2778 = vdwg.mxu0
    %v2779 = vadd.f32 %v2692, %v2776
    %v2780 = vxor.u32 %v2779, 2147483648
    %v2781 = vmul.f32 %v2780, 1.442695
    %v2782 = vpow.pop %v2781
    %v2783 = vadd.f32 %v2782, 1.0
    %v2784 = vrcp.pop %v2783
    %v2785 = vmul.f32 1.0, %v2784
    %v2786 = vld [vmem:[%s2691 + $0x8] sm:$0xff]
    %v2787 = vld [vmem:[#allocation4 + $0x8] sm:$0xff]
    %v2788 = vld [vmem:[#allocation4 + $0x28] sm:$0xff]
    %v2789 = vld [vmem:[#allocation4 + $0x48] sm:$0xff]
    %v2790 = vld [vmem:[#allocation4 + $0x68] sm:$0xff]
    %v2791 = vld [vmem:[#allocation4 + $0x88] sm:$0xff]
    %v2792 = vld [vmem:[#allocation4 + $0xa8] sm:$0xff]
    %v2793 = vld [vmem:[#allocation4 + $0xc8] sm:$0xff]
    %v2794 = vld [vmem:[#allocation4 + $0xe8] sm:$0xff]
    %v2795 = vld [vmem:[#allocation4 + $0x108] sm:$0xff]
    %v2796 = vld [vmem:[#allocation4 + $0x128] sm:$0xff]
    %v2797 = vld [vmem:[#allocation4 + $0x148] sm:$0xff]
    %v2798 = vld [vmem:[#allocation4 + $0x168] sm:$0xff]
    %v2799 = vld [vmem:[#allocation4 + $0x188] sm:$0xff]
    %v2800 = vld [vmem:[#allocation4 + $0x1a8] sm:$0xff]
    %v2801 = vld [vmem:[#allocation4 + $0x1c8] sm:$0xff]
    %v2802 = vld [vmem:[#allocation4 + $0x1e8] sm:$0xff]
    %2803 = vmatprep.subr.mxu0 0.0
    %2804 = vmatpush1.msra.mxu0 %v2802
    %2805 = vmatprep.subr.mxu0 0.0
    %2806 = vmatpush1.msra.mxu0 %v2801
    %2807 = vmatprep.subr.mxu0 0.0
    %2808 = vmatpush1.msra.mxu0 %v2800
    %2809 = vmatprep.subr.mxu0 0.0
    %2810 = vmatpush1.msra.mxu0 %v2799
    %2811 = vmatprep.subr.mxu0 0.0
    %2812 = vmatpush1.msra.mxu0 %v2798
    %2813 = vmatprep.subr.mxu0 0.0
    %2814 = vmatpush1.msra.mxu0 %v2797
    %2815 = vmatprep.subr.mxu0 0.0
    %2816 = vmatpush1.msra.mxu0 %v2796
    %2817 = vmatprep.subr.mxu0 0.0
    %2818 = vmatpush1.msra.mxu0 %v2795
    %2819 = vmatprep.subr.mxu0 0.0
    %2820 = vmatpush1.msra.mxu0 %v2794
    %2821 = vmatprep.subr.mxu0 0.0
    %2822 = vmatpush1.msra.mxu0 %v2793
    %2823 = vmatprep.subr.mxu0 0.0
    %2824 = vmatpush1.msra.mxu0 %v2792
    %2825 = vmatprep.subr.mxu0 0.0
    %2826 = vmatpush1.msra.mxu0 %v2791
    %2827 = vmatprep.subr.mxu0 0.0
    %2828 = vmatpush1.msra.mxu0 %v2790
    %2829 = vmatprep.subr.mxu0 0.0
    %2830 = vmatpush1.msra.mxu0 %v2789
    %2831 = vmatprep.subr.mxu0 0.0
    %2832 = vmatpush1.msra.mxu0 %v2788
    %2833 = vmatprep.subr.mxu0 0.0
    %2834 = vmatpush1.msra.mxu0 %v2787
    %2835 = vmatprep.subr.mxu0 0.0
    %2836 = vmatpush2.msra.mxu0 0.0
    %2837 = vmatprep.subr.mxu0 0.0
    %2838 = vmatpush2.msra.mxu0 0.0
    %2839 = vmatprep.subr.mxu0 0.0
    %2840 = vmatpush2.msra.mxu0 0.0
    %2841 = vmatprep.subr.mxu0 0.0
    %2842 = vmatpush2.msra.mxu0 0.0
    %2843 = vmatprep.subr.mxu0 0.0
    %2844 = vmatpush2.msra.mxu0 0.0
    %2845 = vmatprep.subr.mxu0 0.0
    %2846 = vmatpush2.msra.mxu0 0.0
    %2847 = vmatprep.subr.mxu0 0.0
    %2848 = vmatpush2.msra.mxu0 0.0
    %2849 = vmatprep.subr.mxu0 0.0
    %2850 = vmatpush2.msra.mxu0 0.0
    %2851 = vmatprep.subr.mxu0 0.0
    %2852 = vmatpush2.msra.mxu0 0.0
    %2853 = vmatprep.subr.mxu0 0.0
    %2854 = vmatpush2.msra.mxu0 0.0
    %2855 = vmatprep.subr.mxu0 0.0
    %2856 = vmatpush2.msra.mxu0 0.0
    %2857 = vmatprep.subr.mxu0 0.0
    %2858 = vmatpush2.msra.mxu0 0.0
    %2859 = vmatprep.subr.mxu0 0.0
    %2860 = vmatpush2.msra.mxu0 0.0
    %2861 = vmatprep.subr.mxu0 0.0
    %2862 = vmatpush2.msra.mxu0 0.0
    %2863 = vmatprep.subr.mxu0 0.0
    %2864 = vmatpush2.msra.mxu0 0.0
    %2865 = vmatprep.subr.mxu0 0.0
    %2866 = vmatpush2.msra.mxu0 0.0
    %2867 = vmatprep.mubr.f32.mxu0 0.0
    %2868 = vmatmul.mubr.f32.gmra.mxu0 %v2686
    %v2869 = vpop.f32.mrf.mxu0
    %v2870 = vadd.f32 0.0, %v2869
    %v2871 = vpop.f32.mrf.mxu0
    %2872 = vdwg.mxu0
    %v2873 = vadd.f32 %v2786, %v2870
    %v2874 = vxor.u32 %v2873, 2147483648
    %v2875 = vmul.f32 %v2874, 1.442695
    %v2876 = vpow.pop %v2875
    %v2877 = vadd.f32 %v2876, 1.0
    %v2878 = vrcp.pop %v2877
    %v2879 = vmul.f32 1.0, %v2878
    %v2880 = vld [vmem:[%s2691 + $0x10] sm:$0xff]
    %v2881 = vld [vmem:[#allocation4 + $0x10] sm:$0xff]
    %v2882 = vld [vmem:[#allocation4 + $0x30] sm:$0xff]
    %v2883 = vld [vmem:[#allocation4 + $0x50] sm:$0xff]
    %v2884 = vld [vmem:[#allocation4 + $0x70] sm:$0xff]
    %v2885 = vld [vmem:[#allocation4 + $0x90] sm:$0xff]
    %v2886 = vld [vmem:[#allocation4 + $0xb0] sm:$0xff]
    %v2887 = vld [vmem:[#allocation4 + $0xd0] sm:$0xff]
    %v2888 = vld [vmem:[#allocation4 + $0xf0] sm:$0xff]
    %v2889 = vld [vmem:[#allocation4 + $0x110] sm:$0xff]
    %v2890 = vld [vmem:[#allocation4 + $0x130] sm:$0xff]
    %v2891 = vld [vmem:[#allocation4 + $0x150] sm:$0xff]
    %v2892 = vld [vmem:[#allocation4 + $0x170] sm:$0xff]
    %v2893 = vld [vmem:[#allocation4 + $0x190] sm:$0xff]
    %v2894 = vld [vmem:[#allocation4 + $0x1b0] sm:$0xff]
    %v2895 = vld [vmem:[#allocation4 + $0x1d0] sm:$0xff]
    %v2896 = vld [vmem:[#allocation4 + $0x1f0] sm:$0xff]
    %2897 = vmatprep.subr.mxu0 0.0
    %2898 = vmatpush1.msra.mxu0 %v2896
    %2899 = vmatprep.subr.mxu0 0.0
    %2900 = vmatpush1.msra.mxu0 %v2895
    %2901 = vmatprep.subr.mxu0 0.0
    %2902 = vmatpush1.msra.mxu0 %v2894
    %2903 = vmatprep.subr.mxu0 0.0
    %2904 = vmatpush1.msra.mxu0 %v2893
    %2905 = vmatprep.subr.mxu0 0.0
    %2906 = vmatpush1.msra.mxu0 %v2892
    %2907 = vmatprep.subr.mxu0 0.0
    %2908 = vmatpush1.msra.mxu0 %v2891
    %2909 = vmatprep.subr.mxu0 0.0
    %2910 = vmatpush1.msra.mxu0 %v2890
    %2911 = vmatprep.subr.mxu0 0.0
    %2912 = vmatpush1.msra.mxu0 %v2889
    %2913 = vmatprep.subr.mxu0 0.0
    %2914 = vmatpush1.msra.mxu0 %v2888
    %2915 = vmatprep.subr.mxu0 0.0
    %2916 = vmatpush1.msra.mxu0 %v2887
    %2917 = vmatprep.subr.mxu0 0.0
    %2918 = vmatpush1.msra.mxu0 %v2886
    %2919 = vmatprep.subr.mxu0 0.0
    %2920 = vmatpush1.msra.mxu0 %v2885
    %2921 = vmatprep.subr.mxu0 0.0
    %2922 = vmatpush1.msra.mxu0 %v2884
    %2923 = vmatprep.subr.mxu0 0.0
    %2924 = vmatpush1.msra.mxu0 %v2883
    %2925 = vmatprep.subr.mxu0 0.0
    %2926 = vmatpush1.msra.mxu0 %v2882
    %2927 = vmatprep.subr.mxu0 0.0
    %2928 = vmatpush1.msra.mxu0 %v2881
    %2929 = vmatprep.subr.mxu0 0.0
    %2930 = vmatpush2.msra.mxu0 0.0
    %2931 = vmatprep.subr.mxu0 0.0
    %2932 = vmatpush2.msra.mxu0 0.0
    %2933 = vmatprep.subr.mxu0 0.0
    %2934 = vmatpush2.msra.mxu0 0.0
    %2935 = vmatprep.subr.mxu0 0.0
    %2936 = vmatpush2.msra.mxu0 0.0
    %2937 = vmatprep.subr.mxu0 0.0
    %2938 = vmatpush2.msra.mxu0 0.0
    %2939 = vmatprep.subr.mxu0 0.0
    %2940 = vmatpush2.msra.mxu0 0.0
    %2941 = vmatprep.subr.mxu0 0.0
    %2942 = vmatpush2.msra.mxu0 0.0
    %2943 = vmatprep.subr.mxu0 0.0
    %2944 = vmatpush2.msra.mxu0 0.0
    %2945 = vmatprep.subr.mxu0 0.0
    %2946 = vmatpush2.msra.mxu0 0.0
    %2947 = vmatprep.subr.mxu0 0.0
    %2948 = vmatpush2.msra.mxu0 0.0
    %2949 = vmatprep.subr.mxu0 0.0
    %2950 = vmatpush2.msra.mxu0 0.0
    %2951 = vmatprep.subr.mxu0 0.0
    %2952 = vmatpush2.msra.mxu0 0.0
    %2953 = vmatprep.subr.mxu0 0.0
    %2954 = vmatpush2.msra.mxu0 0.0
    %2955 = vmatprep.subr.mxu0 0.0
    %2956 = vmatpush2.msra.mxu0 0.0
    %2957 = vmatprep.subr.mxu0 0.0
    %2958 = vmatpush2.msra.mxu0 0.0
    %2959 = vmatprep.subr.mxu0 0.0
    %2960 = vmatpush2.msra.mxu0 0.0
    %2961 = vmatprep.mubr.f32.mxu0 0.0
    %2962 = vmatmul.mubr.f32.gmra.mxu0 %v2686
    %v2963 = vpop.f32.mrf.mxu0
    %v2964 = vadd.f32 0.0, %v2963
    %v2965 = vpop.f32.mrf.mxu0
    %2966 = vdwg.mxu0
    %v2967 = vadd.f32 %v2880, %v2964
    %v2968 = vtanh.pop %v2967
    %v2969 = vld [vmem:[%s2691 + $0x18] sm:$0xff]
    %v2970 = vld [vmem:[#allocation4 + $0x18] sm:$0xff]
    %v2971 = vld [vmem:[#allocation4 + $0x38] sm:$0xff]
    %v2972 = vld [vmem:[#allocation4 + $0x58] sm:$0xff]
    %v2973 = vld [vmem:[#allocation4 + $0x78] sm:$0xff]
    %v2974 = vld [vmem:[#allocation4 + $0x98] sm:$0xff]
    %v2975 = vld [vmem:[#allocation4 + $0xb8] sm:$0xff]
    %v2976 = vld [vmem:[#allocation4 + $0xd8] sm:$0xff]
    %v2977 = vld [vmem:[#allocation4 + $0xf8] sm:$0xff]
    %v2978 = vld [vmem:[#allocation4 + $0x118] sm:$0xff]
    %v2979 = vld [vmem:[#allocation4 + $0x138] sm:$0xff]
    %v2980 = vld [vmem:[#allocation4 + $0x158] sm:$0xff]
    %v2981 = vld [vmem:[#allocation4 + $0x178] sm:$0xff]
    %v2982 = vld [vmem:[#allocation4 + $0x198] sm:$0xff]
    %v2983 = vld [vmem:[#allocation4 + $0x1b8] sm:$0xff]
    %v2984 = vld [vmem:[#allocation4 + $0x1d8] sm:$0xff]
    %v2985 = vld [vmem:[#allocation4 + $0x1f8] sm:$0xff]
    %2986 = vmatprep.subr.mxu0 0.0
    %2987 = vmatpush1.msra.mxu0 %v2985
    %2988 = vmatprep.subr.mxu0 0.0
    %2989 = vmatpush1.msra.mxu0 %v2984
    %2990 = vmatprep.subr.mxu0 0.0
    %2991 = vmatpush1.msra.mxu0 %v2983
    %2992 = vmatprep.subr.mxu0 0.0
    %2993 = vmatpush1.msra.mxu0 %v2982
    %2994 = vmatprep.subr.mxu0 0.0
    %2995 = vmatpush1.msra.mxu0 %v2981
    %2996 = vmatprep.subr.mxu0 0.0
    %2997 = vmatpush1.msra.mxu0 %v2980
    %2998 = vmatprep.subr.mxu0 0.0
    %2999 = vmatpush1.msra.mxu0 %v2979
    %3000 = vmatprep.subr.mxu0 0.0
    %3001 = vmatpush1.msra.mxu0 %v2978
    %3002 = vmatprep.subr.mxu0 0.0
    %3003 = vmatpush1.msra.mxu0 %v2977
    %3004 = vmatprep.subr.mxu0 0.0
    %3005 = vmatpush1.msra.mxu0 %v2976
    %3006 = vmatprep.subr.mxu0 0.0
    %3007 = vmatpush1.msra.mxu0 %v2975
    %3008 = vmatprep.subr.mxu0 0.0
    %3009 = vmatpush1.msra.mxu0 %v2974
    %3010 = vmatprep.subr.mxu0 0.0
    %3011 = vmatpush1.msra.mxu0 %v2973
    %3012 = vmatprep.subr.mxu0 0.0
    %3013 = vmatpush1.msra.mxu0 %v2972
    %3014 = vmatprep.subr.mxu0 0.0
    %3015 = vmatpush1.msra.mxu0 %v2971
    %3016 = vmatprep.subr.mxu0 0.0
    %3017 = vmatpush1.msra.mxu0 %v2970
    %3018 = vmatprep.subr.mxu0 0.0
    %3019 = vmatpush2.msra.mxu0 0.0
    %3020 = vmatprep.subr.mxu0 0.0
    %3021 = vmatpush2.msra.mxu0 0.0
    %3022 = vmatprep.subr.mxu0 0.0
    %3023 = vmatpush2.msra.mxu0 0.0
    %3024 = vmatprep.subr.mxu0 0.0
    %3025 = vmatpush2.msra.mxu0 0.0
    %3026 = vmatprep.subr.mxu0 0.0
    %3027 = vmatpush2.msra.mxu0 0.0
    %3028 = vmatprep.subr.mxu0 0.0
    %3029 = vmatpush2.msra.mxu0 0.0
    %3030 = vmatprep.subr.mxu0 0.0
    %3031 = vmatpush2.msra.mxu0 0.0
    %3032 = vmatprep.subr.mxu0 0.0
    %3033 = vmatpush2.msra.mxu0 0.0
    %3034 = vmatprep.subr.mxu0 0.0
    %3035 = vmatpush2.msra.mxu0 0.0
    %3036 = vmatprep.subr.mxu0 0.0
    %3037 = vmatpush2.msra.mxu0 0.0
    %3038 = vmatprep.subr.mxu0 0.0
    %3039 = vmatpush2.msra.mxu0 0.0
    %3040 = vmatprep.subr.mxu0 0.0
    %3041 = vmatpush2.msra.mxu0 0.0
    %3042 = vmatprep.subr.mxu0 0.0
    %3043 = vmatpush2.msra.mxu0 0.0
    %3044 = vmatprep.subr.mxu0 0.0
    %3045 = vmatpush2.msra.mxu0 0.0
    %3046 = vmatprep.subr.mxu0 0.0
    %3047 = vmatpush2.msra.mxu0 0.0
    %3048 = vmatprep.subr.mxu0 0.0
    %3049 = vmatpush2.msra.mxu0 0.0
    %3050 = vmatprep.mubr.f32.mxu0 0.0
    %3051 = vmatmul.mubr.f32.gmra.mxu0 %v2686
    %v3052 = vpop.f32.mrf.mxu0
    %v3053 = vadd.f32 0.0, %v3052
    %v3054 = vpop.f32.mrf.mxu0
    %3055 = vdwg.mxu0
    %v3056 = vadd.f32 %v2969, %v3053
    %v3057 = vxor.u32 %v3056, 2147483648
    %v3058 = vmul.f32 %v3057, 1.442695
    %v3059 = vpow.pop %v3058
    %v3060 = vadd.f32 %v3059, 1.0
    %v3061 = vrcp.pop %v3060
    %v3062 = vmul.f32 1.0, %v3061
    %v3063 = vmul.f32 %v2879, %v2684
    %v3064 = vmul.f32 %v2785, %v2968
    %v3065 = vadd.f32 %v3063, %v3064
    %v3066 = vtanh.pop %v3065
    %v3067 = vmul.f32 %v3062, %v3066
    %s3068 = scalar_lea.vmem [#allocation2], 48
    %3069 = vst [vmem:[%s3068] sm:$0xff] %v3067
    %s3070 = smul.u32 7, 4
    %s3071 = smul.addr %s3070, 8
    %s3072 = scalar_lea.vmem [#allocation3], %s3071
    %v3073 = vld [vmem:[%s3072] sm:$0xff]
    %v3074 = vld [vmem:[#allocation4] sm:$0xff]
    %v3075 = vld [vmem:[#allocation4 + $0x20] sm:$0xff]
    %v3076 = vld [vmem:[#allocation4 + $0x40] sm:$0xff]
    %v3077 = vld [vmem:[#allocation4 + $0x60] sm:$0xff]
    %v3078 = vld [vmem:[#allocation4 + $0x80] sm:$0xff]
    %v3079 = vld [vmem:[#allocation4 + $0xa0] sm:$0xff]
    %v3080 = vld [vmem:[#allocation4 + $0xc0] sm:$0xff]
    %v3081 = vld [vmem:[#allocation4 + $0xe0] sm:$0xff]
    %v3082 = vld [vmem:[#allocation4 + $0x100] sm:$0xff]
    %v3083 = vld [vmem:[#allocation4 + $0x120] sm:$0xff]
    %v3084 = vld [vmem:[#allocation4 + $0x140] sm:$0xff]
    %v3085 = vld [vmem:[#allocation4 + $0x160] sm:$0xff]
    %v3086 = vld [vmem:[#allocation4 + $0x180] sm:$0xff]
    %v3087 = vld [vmem:[#allocation4 + $0x1a0] sm:$0xff]
    %v3088 = vld [vmem:[#allocation4 + $0x1c0] sm:$0xff]
    %v3089 = vld [vmem:[#allocation4 + $0x1e0] sm:$0xff]
    %3090 = vmatprep.subr.mxu0 0.0
    %3091 = vmatpush1.msra.mxu0 %v3089
    %3092 = vmatprep.subr.mxu0 0.0
    %3093 = vmatpush1.msra.mxu0 %v3088
    %3094 = vmatprep.subr.mxu0 0.0
    %3095 = vmatpush1.msra.mxu0 %v3087
    %3096 = vmatprep.subr.mxu0 0.0
    %3097 = vmatpush1.msra.mxu0 %v3086
    %3098 = vmatprep.subr.mxu0 0.0
    %3099 = vmatpush1.msra.mxu0 %v3085
    %3100 = vmatprep.subr.mxu0 0.0
    %3101 = vmatpush1.msra.mxu0 %v3084
    %3102 = vmatprep.subr.mxu0 0.0
    %3103 = vmatpush1.msra.mxu0 %v3083
    %3104 = vmatprep.subr.mxu0 0.0
    %3105 = vmatpush1.msra.mxu0 %v3082
    %3106 = vmatprep.subr.mxu0 0.0
    %3107 = vmatpush1.msra.mxu0 %v3081
    %3108 = vmatprep.subr.mxu0 0.0
    %3109 = vmatpush1.msra.mxu0 %v3080
    %3110 = vmatprep.subr.mxu0 0.0
    %3111 = vmatpush1.msra.mxu0 %v3079
    %3112 = vmatprep.subr.mxu0 0.0
    %3113 = vmatpush1.msra.mxu0 %v3078
    %3114 = vmatprep.subr.mxu0 0.0
    %3115 = vmatpush1.msra.mxu0 %v3077
    %3116 = vmatprep.subr.mxu0 0.0
    %3117 = vmatpush1.msra.mxu0 %v3076
    %3118 = vmatprep.subr.mxu0 0.0
    %3119 = vmatpush1.msra.mxu0 %v3075
    %3120 = vmatprep.subr.mxu0 0.0
    %3121 = vmatpush1.msra.mxu0 %v3074
    %3122 = vmatprep.subr.mxu0 0.0
    %3123 = vmatpush2.msra.mxu0 0.0
    %3124 = vmatprep.subr.mxu0 0.0
    %3125 = vmatpush2.msra.mxu0 0.0
    %3126 = vmatprep.subr.mxu0 0.0
    %3127 = vmatpush2.msra.mxu0 0.0
    %3128 = vmatprep.subr.mxu0 0.0
    %3129 = vmatpush2.msra.mxu0 0.0
    %3130 = vmatprep.subr.mxu0 0.0
    %3131 = vmatpush2.msra.mxu0 0.0
    %3132 = vmatprep.subr.mxu0 0.0
    %3133 = vmatpush2.msra.mxu0 0.0
    %3134 = vmatprep.subr.mxu0 0.0
    %3135 = vmatpush2.msra.mxu0 0.0
    %3136 = vmatprep.subr.mxu0 0.0
    %3137 = vmatpush2.msra.mxu0 0.0
    %3138 = vmatprep.subr.mxu0 0.0
    %3139 = vmatpush2.msra.mxu0 0.0
    %3140 = vmatprep.subr.mxu0 0.0
    %3141 = vmatpush2.msra.mxu0 0.0
    %3142 = vmatprep.subr.mxu0 0.0
    %3143 = vmatpush2.msra.mxu0 0.0
    %3144 = vmatprep.subr.mxu0 0.0
    %3145 = vmatpush2.msra.mxu0 0.0
    %3146 = vmatprep.subr.mxu0 0.0
    %3147 = vmatpush2.msra.mxu0 0.0
    %3148 = vmatprep.subr.mxu0 0.0
    %3149 = vmatpush2.msra.mxu0 0.0
    %3150 = vmatprep.subr.mxu0 0.0
    %3151 = vmatpush2.msra.mxu0 0.0
    %3152 = vmatprep.subr.mxu0 0.0
    %3153 = vmatpush2.msra.mxu0 0.0
    %3154 = vmatprep.mubr.f32.mxu0 0.0
    %3155 = vmatmul.mubr.f32.gmra.mxu0 %v3067
    %v3156 = vpop.f32.mrf.mxu0
    %v3157 = vadd.f32 0.0, %v3156
    %v3158 = vpop.f32.mrf.mxu0
    %3159 = vdwg.mxu0
    %v3160 = vadd.f32 %v3073, %v3157
    %v3161 = vxor.u32 %v3160, 2147483648
    %v3162 = vmul.f32 %v3161, 1.442695
    %v3163 = vpow.pop %v3162
    %v3164 = vadd.f32 %v3163, 1.0
    %v3165 = vrcp.pop %v3164
    %v3166 = vmul.f32 1.0, %v3165
    %v3167 = vld [vmem:[%s3072 + $0x8] sm:$0xff]
    %v3168 = vld [vmem:[#allocation4 + $0x8] sm:$0xff]
    %v3169 = vld [vmem:[#allocation4 + $0x28] sm:$0xff]
    %v3170 = vld [vmem:[#allocation4 + $0x48] sm:$0xff]
    %v3171 = vld [vmem:[#allocation4 + $0x68] sm:$0xff]
    %v3172 = vld [vmem:[#allocation4 + $0x88] sm:$0xff]
    %v3173 = vld [vmem:[#allocation4 + $0xa8] sm:$0xff]
    %v3174 = vld [vmem:[#allocation4 + $0xc8] sm:$0xff]
    %v3175 = vld [vmem:[#allocation4 + $0xe8] sm:$0xff]
    %v3176 = vld [vmem:[#allocation4 + $0x108] sm:$0xff]
    %v3177 = vld [vmem:[#allocation4 + $0x128] sm:$0xff]
    %v3178 = vld [vmem:[#allocation4 + $0x148] sm:$0xff]
    %v3179 = vld [vmem:[#allocation4 + $0x168] sm:$0xff]
    %v3180 = vld [vmem:[#allocation4 + $0x188] sm:$0xff]
    %v3181 = vld [vmem:[#allocation4 + $0x1a8] sm:$0xff]
    %v3182 = vld [vmem:[#allocation4 + $0x1c8] sm:$0xff]
    %v3183 = vld [vmem:[#allocation4 + $0x1e8] sm:$0xff]
    %3184 = vmatprep.subr.mxu0 0.0
    %3185 = vmatpush1.msra.mxu0 %v3183
    %3186 = vmatprep.subr.mxu0 0.0
    %3187 = vmatpush1.msra.mxu0 %v3182
    %3188 = vmatprep.subr.mxu0 0.0
    %3189 = vmatpush1.msra.mxu0 %v3181
    %3190 = vmatprep.subr.mxu0 0.0
    %3191 = vmatpush1.msra.mxu0 %v3180
    %3192 = vmatprep.subr.mxu0 0.0
    %3193 = vmatpush1.msra.mxu0 %v3179
    %3194 = vmatprep.subr.mxu0 0.0
    %3195 = vmatpush1.msra.mxu0 %v3178
    %3196 = vmatprep.subr.mxu0 0.0
    %3197 = vmatpush1.msra.mxu0 %v3177
    %3198 = vmatprep.subr.mxu0 0.0
    %3199 = vmatpush1.msra.mxu0 %v3176
    %3200 = vmatprep.subr.mxu0 0.0
    %3201 = vmatpush1.msra.mxu0 %v3175
    %3202 = vmatprep.subr.mxu0 0.0
    %3203 = vmatpush1.msra.mxu0 %v3174
    %3204 = vmatprep.subr.mxu0 0.0
    %3205 = vmatpush1.msra.mxu0 %v3173
    %3206 = vmatprep.subr.mxu0 0.0
    %3207 = vmatpush1.msra.mxu0 %v3172
    %3208 = vmatprep.subr.mxu0 0.0
    %3209 = vmatpush1.msra.mxu0 %v3171
    %3210 = vmatprep.subr.mxu0 0.0
    %3211 = vmatpush1.msra.mxu0 %v3170
    %3212 = vmatprep.subr.mxu0 0.0
    %3213 = vmatpush1.msra.mxu0 %v3169
    %3214 = vmatprep.subr.mxu0 0.0
    %3215 = vmatpush1.msra.mxu0 %v3168
    %3216 = vmatprep.subr.mxu0 0.0
    %3217 = vmatpush2.msra.mxu0 0.0
    %3218 = vmatprep.subr.mxu0 0.0
    %3219 = vmatpush2.msra.mxu0 0.0
    %3220 = vmatprep.subr.mxu0 0.0
    %3221 = vmatpush2.msra.mxu0 0.0
    %3222 = vmatprep.subr.mxu0 0.0
    %3223 = vmatpush2.msra.mxu0 0.0
    %3224 = vmatprep.subr.mxu0 0.0
    %3225 = vmatpush2.msra.mxu0 0.0
    %3226 = vmatprep.subr.mxu0 0.0
    %3227 = vmatpush2.msra.mxu0 0.0
    %3228 = vmatprep.subr.mxu0 0.0
    %3229 = vmatpush2.msra.mxu0 0.0
    %3230 = vmatprep.subr.mxu0 0.0
    %3231 = vmatpush2.msra.mxu0 0.0
    %3232 = vmatprep.subr.mxu0 0.0
    %3233 = vmatpush2.msra.mxu0 0.0
    %3234 = vmatprep.subr.mxu0 0.0
    %3235 = vmatpush2.msra.mxu0 0.0
    %3236 = vmatprep.subr.mxu0 0.0
    %3237 = vmatpush2.msra.mxu0 0.0
    %3238 = vmatprep.subr.mxu0 0.0
    %3239 = vmatpush2.msra.mxu0 0.0
    %3240 = vmatprep.subr.mxu0 0.0
    %3241 = vmatpush2.msra.mxu0 0.0
    %3242 = vmatprep.subr.mxu0 0.0
    %3243 = vmatpush2.msra.mxu0 0.0
    %3244 = vmatprep.subr.mxu0 0.0
    %3245 = vmatpush2.msra.mxu0 0.0
    %3246 = vmatprep.subr.mxu0 0.0
    %3247 = vmatpush2.msra.mxu0 0.0
    %3248 = vmatprep.mubr.f32.mxu0 0.0
    %3249 = vmatmul.mubr.f32.gmra.mxu0 %v3067
    %v3250 = vpop.f32.mrf.mxu0
    %v3251 = vadd.f32 0.0, %v3250
    %v3252 = vpop.f32.mrf.mxu0
    %3253 = vdwg.mxu0
    %v3254 = vadd.f32 %v3167, %v3251
    %v3255 = vxor.u32 %v3254, 2147483648
    %v3256 = vmul.f32 %v3255, 1.442695
    %v3257 = vpow.pop %v3256
    %v3258 = vadd.f32 %v3257, 1.0
    %v3259 = vrcp.pop %v3258
    %v3260 = vmul.f32 1.0, %v3259
    %v3261 = vld [vmem:[%s3072 + $0x10] sm:$0xff]
    %v3262 = vld [vmem:[#allocation4 + $0x10] sm:$0xff]
    %v3263 = vld [vmem:[#allocation4 + $0x30] sm:$0xff]
    %v3264 = vld [vmem:[#allocation4 + $0x50] sm:$0xff]
    %v3265 = vld [vmem:[#allocation4 + $0x70] sm:$0xff]
    %v3266 = vld [vmem:[#allocation4 + $0x90] sm:$0xff]
    %v3267 = vld [vmem:[#allocation4 + $0xb0] sm:$0xff]
    %v3268 = vld [vmem:[#allocation4 + $0xd0] sm:$0xff]
    %v3269 = vld [vmem:[#allocation4 + $0xf0] sm:$0xff]
    %v3270 = vld [vmem:[#allocation4 + $0x110] sm:$0xff]
    %v3271 = vld [vmem:[#allocation4 + $0x130] sm:$0xff]
    %v3272 = vld [vmem:[#allocation4 + $0x150] sm:$0xff]
    %v3273 = vld [vmem:[#allocation4 + $0x170] sm:$0xff]
    %v3274 = vld [vmem:[#allocation4 + $0x190] sm:$0xff]
    %v3275 = vld [vmem:[#allocation4 + $0x1b0] sm:$0xff]
    %v3276 = vld [vmem:[#allocation4 + $0x1d0] sm:$0xff]
    %v3277 = vld [vmem:[#allocation4 + $0x1f0] sm:$0xff]
    %3278 = vmatprep.subr.mxu0 0.0
    %3279 = vmatpush1.msra.mxu0 %v3277
    %3280 = vmatprep.subr.mxu0 0.0
    %3281 = vmatpush1.msra.mxu0 %v3276
    %3282 = vmatprep.subr.mxu0 0.0
    %3283 = vmatpush1.msra.mxu0 %v3275
    %3284 = vmatprep.subr.mxu0 0.0
    %3285 = vmatpush1.msra.mxu0 %v3274
    %3286 = vmatprep.subr.mxu0 0.0
    %3287 = vmatpush1.msra.mxu0 %v3273
    %3288 = vmatprep.subr.mxu0 0.0
    %3289 = vmatpush1.msra.mxu0 %v3272
    %3290 = vmatprep.subr.mxu0 0.0
    %3291 = vmatpush1.msra.mxu0 %v3271
    %3292 = vmatprep.subr.mxu0 0.0
    %3293 = vmatpush1.msra.mxu0 %v3270
    %3294 = vmatprep.subr.mxu0 0.0
    %3295 = vmatpush1.msra.mxu0 %v3269
    %3296 = vmatprep.subr.mxu0 0.0
    %3297 = vmatpush1.msra.mxu0 %v3268
    %3298 = vmatprep.subr.mxu0 0.0
    %3299 = vmatpush1.msra.mxu0 %v3267
    %3300 = vmatprep.subr.mxu0 0.0
    %3301 = vmatpush1.msra.mxu0 %v3266
    %3302 = vmatprep.subr.mxu0 0.0
    %3303 = vmatpush1.msra.mxu0 %v3265
    %3304 = vmatprep.subr.mxu0 0.0
    %3305 = vmatpush1.msra.mxu0 %v3264
    %3306 = vmatprep.subr.mxu0 0.0
    %3307 = vmatpush1.msra.mxu0 %v3263
    %3308 = vmatprep.subr.mxu0 0.0
    %3309 = vmatpush1.msra.mxu0 %v3262
    %3310 = vmatprep.subr.mxu0 0.0
    %3311 = vmatpush2.msra.mxu0 0.0
    %3312 = vmatprep.subr.mxu0 0.0
    %3313 = vmatpush2.msra.mxu0 0.0
    %3314 = vmatprep.subr.mxu0 0.0
    %3315 = vmatpush2.msra.mxu0 0.0
    %3316 = vmatprep.subr.mxu0 0.0
    %3317 = vmatpush2.msra.mxu0 0.0
    %3318 = vmatprep.subr.mxu0 0.0
    %3319 = vmatpush2.msra.mxu0 0.0
    %3320 = vmatprep.subr.mxu0 0.0
    %3321 = vmatpush2.msra.mxu0 0.0
    %3322 = vmatprep.subr.mxu0 0.0
    %3323 = vmatpush2.msra.mxu0 0.0
    %3324 = vmatprep.subr.mxu0 0.0
    %3325 = vmatpush2.msra.mxu0 0.0
    %3326 = vmatprep.subr.mxu0 0.0
    %3327 = vmatpush2.msra.mxu0 0.0
    %3328 = vmatprep.subr.mxu0 0.0
    %3329 = vmatpush2.msra.mxu0 0.0
    %3330 = vmatprep.subr.mxu0 0.0
    %3331 = vmatpush2.msra.mxu0 0.0
    %3332 = vmatprep.subr.mxu0 0.0
    %3333 = vmatpush2.msra.mxu0 0.0
    %3334 = vmatprep.subr.mxu0 0.0
    %3335 = vmatpush2.msra.mxu0 0.0
    %3336 = vmatprep.subr.mxu0 0.0
    %3337 = vmatpush2.msra.mxu0 0.0
    %3338 = vmatprep.subr.mxu0 0.0
    %3339 = vmatpush2.msra.mxu0 0.0
    %3340 = vmatprep.subr.mxu0 0.0
    %3341 = vmatpush2.msra.mxu0 0.0
    %3342 = vmatprep.mubr.f32.mxu0 0.0
    %3343 = vmatmul.mubr.f32.gmra.mxu0 %v3067
    %v3344 = vpop.f32.mrf.mxu0
    %v3345 = vadd.f32 0.0, %v3344
    %v3346 = vpop.f32.mrf.mxu0
    %3347 = vdwg.mxu0
    %v3348 = vadd.f32 %v3261, %v3345
    %v3349 = vtanh.pop %v3348
    %v3350 = vld [vmem:[%s3072 + $0x18] sm:$0xff]
    %v3351 = vld [vmem:[#allocation4 + $0x18] sm:$0xff]
    %v3352 = vld [vmem:[#allocation4 + $0x38] sm:$0xff]
    %v3353 = vld [vmem:[#allocation4 + $0x58] sm:$0xff]
    %v3354 = vld [vmem:[#allocation4 + $0x78] sm:$0xff]
    %v3355 = vld [vmem:[#allocation4 + $0x98] sm:$0xff]
    %v3356 = vld [vmem:[#allocation4 + $0xb8] sm:$0xff]
    %v3357 = vld [vmem:[#allocation4 + $0xd8] sm:$0xff]
    %v3358 = vld [vmem:[#allocation4 + $0xf8] sm:$0xff]
    %v3359 = vld [vmem:[#allocation4 + $0x118] sm:$0xff]
    %v3360 = vld [vmem:[#allocation4 + $0x138] sm:$0xff]
    %v3361 = vld [vmem:[#allocation4 + $0x158] sm:$0xff]
    %v3362 = vld [vmem:[#allocation4 + $0x178] sm:$0xff]
    %v3363 = vld [vmem:[#allocation4 + $0x198] sm:$0xff]
    %v3364 = vld [vmem:[#allocation4 + $0x1b8] sm:$0xff]
    %v3365 = vld [vmem:[#allocation4 + $0x1d8] sm:$0xff]
    %v3366 = vld [vmem:[#allocation4 + $0x1f8] sm:$0xff]
    %3367 = vmatprep.subr.mxu0 0.0
    %3368 = vmatpush1.msra.mxu0 %v3366
    %3369 = vmatprep.subr.mxu0 0.0
    %3370 = vmatpush1.msra.mxu0 %v3365
    %3371 = vmatprep.subr.mxu0 0.0
    %3372 = vmatpush1.msra.mxu0 %v3364
    %3373 = vmatprep.subr.mxu0 0.0
    %3374 = vmatpush1.msra.mxu0 %v3363
    %3375 = vmatprep.subr.mxu0 0.0
    %3376 = vmatpush1.msra.mxu0 %v3362
    %3377 = vmatprep.subr.mxu0 0.0
    %3378 = vmatpush1.msra.mxu0 %v3361
    %3379 = vmatprep.subr.mxu0 0.0
    %3380 = vmatpush1.msra.mxu0 %v3360
    %3381 = vmatprep.subr.mxu0 0.0
    %3382 = vmatpush1.msra.mxu0 %v3359
    %3383 = vmatprep.subr.mxu0 0.0
    %3384 = vmatpush1.msra.mxu0 %v3358
    %3385 = vmatprep.subr.mxu0 0.0
    %3386 = vmatpush1.msra.mxu0 %v3357
    %3387 = vmatprep.subr.mxu0 0.0
    %3388 = vmatpush1.msra.mxu0 %v3356
    %3389 = vmatprep.subr.mxu0 0.0
    %3390 = vmatpush1.msra.mxu0 %v3355
    %3391 = vmatprep.subr.mxu0 0.0
    %3392 = vmatpush1.msra.mxu0 %v3354
    %3393 = vmatprep.subr.mxu0 0.0
    %3394 = vmatpush1.msra.mxu0 %v3353
    %3395 = vmatprep.subr.mxu0 0.0
    %3396 = vmatpush1.msra.mxu0 %v3352
    %3397 = vmatprep.subr.mxu0 0.0
    %3398 = vmatpush1.msra.mxu0 %v3351
    %3399 = vmatprep.subr.mxu0 0.0
    %3400 = vmatpush2.msra.mxu0 0.0
    %3401 = vmatprep.subr.mxu0 0.0
    %3402 = vmatpush2.msra.mxu0 0.0
    %3403 = vmatprep.subr.mxu0 0.0
    %3404 = vmatpush2.msra.mxu0 0.0
    %3405 = vmatprep.subr.mxu0 0.0
    %3406 = vmatpush2.msra.mxu0 0.0
    %3407 = vmatprep.subr.mxu0 0.0
    %3408 = vmatpush2.msra.mxu0 0.0
    %3409 = vmatprep.subr.mxu0 0.0
    %3410 = vmatpush2.msra.mxu0 0.0
    %3411 = vmatprep.subr.mxu0 0.0
    %3412 = vmatpush2.msra.mxu0 0.0
    %3413 = vmatprep.subr.mxu0 0.0
    %3414 = vmatpush2.msra.mxu0 0.0
    %3415 = vmatprep.subr.mxu0 0.0
    %3416 = vmatpush2.msra.mxu0 0.0
    %3417 = vmatprep.subr.mxu0 0.0
    %3418 = vmatpush2.msra.mxu0 0.0
    %3419 = vmatprep.subr.mxu0 0.0
    %3420 = vmatpush2.msra.mxu0 0.0
    %3421 = vmatprep.subr.mxu0 0.0
    %3422 = vmatpush2.msra.mxu0 0.0
    %3423 = vmatprep.subr.mxu0 0.0
    %3424 = vmatpush2.msra.mxu0 0.0
    %3425 = vmatprep.subr.mxu0 0.0
    %3426 = vmatpush2.msra.mxu0 0.0
    %3427 = vmatprep.subr.mxu0 0.0
    %3428 = vmatpush2.msra.mxu0 0.0
    %3429 = vmatprep.subr.mxu0 0.0
    %3430 = vmatpush2.msra.mxu0 0.0
    %3431 = vmatprep.mubr.f32.mxu0 0.0
    %3432 = vmatmul.mubr.f32.gmra.mxu0 %v3067
    %v3433 = vpop.f32.mrf.mxu0
    %v3434 = vadd.f32 0.0, %v3433
    %v3435 = vpop.f32.mrf.mxu0
    %3436 = vdwg.mxu0
    %v3437 = vadd.f32 %v3350, %v3434
    %v3438 = vxor.u32 %v3437, 2147483648
    %v3439 = vmul.f32 %v3438, 1.442695
    %v3440 = vpow.pop %v3439
    %v3441 = vadd.f32 %v3440, 1.0
    %v3442 = vrcp.pop %v3441
    %v3443 = vmul.f32 1.0, %v3442
    %v3444 = vmul.f32 %v3260, %v3065
    %v3445 = vmul.f32 %v3166, %v3349
    %v3446 = vadd.f32 %v3444, %v3445
    %v3447 = vtanh.pop %v3446
    %v3448 = vmul.f32 %v3443, %v3447
    %s3449 = scalar_lea.vmem [#allocation2], 56
    %3450 = vst [vmem:[%s3449] sm:$0xff] %v3448
    %v3451 = vld [vmem:[#allocation2] sm:$0xff]
    %v3452 = vld [vmem:[#allocation2 + $0x8] sm:$0xff]
    %v3453 = vld [vmem:[#allocation2 + $0x10] sm:$0xff]
    %v3454 = vld [vmem:[#allocation2 + $0x18] sm:$0xff]
    %v3455 = vld [vmem:[#allocation2 + $0x20] sm:$0xff]
    %v3456 = vld [vmem:[#allocation2 + $0x28] sm:$0xff]
    %v3457 = vld [vmem:[#allocation2 + $0x30] sm:$0xff]
    %v3458 = vld [vmem:[#allocation2 + $0x38] sm:$0xff]
    %v3459 = vld [vmem:[#allocation6] sm:$0xff]
    %v3460 = vld [vmem:[#allocation6 + $0x8] sm:$0xff]
    %v3461 = vld [vmem:[#allocation6 + $0x10] sm:$0xff]
    %v3462 = vld [vmem:[#allocation6 + $0x18] sm:$0xff]
    %v3463 = vld [vmem:[#allocation6 + $0x20] sm:$0xff]
    %v3464 = vld [vmem:[#allocation6 + $0x28] sm:$0xff]
    %v3465 = vld [vmem:[#allocation6 + $0x30] sm:$0xff]
    %v3466 = vld [vmem:[#allocation6 + $0x38] sm:$0xff]
    %v3467 = vld [vmem:[#allocation6 + $0x40] sm:$0xff]
    %v3468 = vld [vmem:[#allocation6 + $0x48] sm:$0xff]
    %v3469 = vld [vmem:[#allocation6 + $0x50] sm:$0xff]
    %v3470 = vld [vmem:[#allocation6 + $0x58] sm:$0xff]
    %v3471 = vld [vmem:[#allocation6 + $0x60] sm:$0xff]
    %v3472 = vld [vmem:[#allocation6 + $0x68] sm:$0xff]
    %v3473 = vld [vmem:[#allocation6 + $0x70] sm:$0xff]
    %v3474 = vld [vmem:[#allocation6 + $0x78] sm:$0xff]
    %v3475 = vld [vmem:[#allocation6 + $0x80] sm:$0xff]
    %v3476 = vld [vmem:[#allocation6 + $0x88] sm:$0xff]
    %v3477 = vld [vmem:[#allocation6 + $0x90] sm:$0xff]
    %v3478 = vld [vmem:[#allocation6 + $0x98] sm:$0xff]
    %v3479 = vld [vmem:[#allocation6 + $0xa0] sm:$0xff]
    %v3480 = vld [vmem:[#allocation6 + $0xa8] sm:$0xff]
    %v3481 = vld [vmem:[#allocation6 + $0xb0] sm:$0xff]
    %v3482 = vld [vmem:[#allocation6 + $0xb8] sm:$0xff]
    %v3483 = vld [vmem:[#allocation6 + $0xc0] sm:$0xff]
    %v3484 = vld [vmem:[#allocation6 + $0xc8] sm:$0xff]
    %v3485 = vld [vmem:[#allocation6 + $0xd0] sm:$0xff]
    %v3486 = vld [vmem:[#allocation6 + $0xd8] sm:$0xff]
    %v3487 = vld [vmem:[#allocation6 + $0xe0] sm:$0xff]
    %v3488 = vld [vmem:[#allocation6 + $0xe8] sm:$0xff]
    %v3489 = vld [vmem:[#allocation6 + $0xf0] sm:$0xff]
    %v3490 = vld [vmem:[#allocation6 + $0xf8] sm:$0xff]
    %v3491 = vld [vmem:[#allocation6 + $0x100] sm:$0xff]
    %v3492 = vld [vmem:[#allocation6 + $0x108] sm:$0xff]
    %v3493 = vld [vmem:[#allocation6 + $0x110] sm:$0xff]
    %v3494 = vld [vmem:[#allocation6 + $0x118] sm:$0xff]
    %v3495 = vld [vmem:[#allocation6 + $0x120] sm:$0xff]
    %v3496 = vld [vmem:[#allocation6 + $0x128] sm:$0xff]
    %v3497 = vld [vmem:[#allocation6 + $0x130] sm:$0xff]
    %v3498 = vld [vmem:[#allocation6 + $0x138] sm:$0xff]
    %v3499 = vld [vmem:[#allocation6 + $0x140] sm:$0xff]
    %v3500 = vld [vmem:[#allocation6 + $0x148] sm:$0xff]
    %v3501 = vld [vmem:[#allocation6 + $0x150] sm:$0xff]
    %v3502 = vld [vmem:[#allocation6 + $0x158] sm:$0xff]
    %v3503 = vld [vmem:[#allocation6 + $0x160] sm:$0xff]
    %v3504 = vld [vmem:[#allocation6 + $0x168] sm:$0xff]
    %v3505 = vld [vmem:[#allocation6 + $0x170] sm:$0xff]
    %v3506 = vld [vmem:[#allocation6 + $0x178] sm:$0xff]
    %v3507 = vld [vmem:[#allocation6 + $0x180] sm:$0xff]
    %v3508 = vld [vmem:[#allocation6 + $0x188] sm:$0xff]
    %v3509 = vld [vmem:[#allocation6 + $0x190] sm:$0xff]
    %v3510 = vld [vmem:[#allocation6 + $0x198] sm:$0xff]
    %v3511 = vld [vmem:[#allocation6 + $0x1a0] sm:$0xff]
    %v3512 = vld [vmem:[#allocation6 + $0x1a8] sm:$0xff]
    %v3513 = vld [vmem:[#allocation6 + $0x1b0] sm:$0xff]
    %v3514 = vld [vmem:[#allocation6 + $0x1b8] sm:$0xff]
    %v3515 = vld [vmem:[#allocation6 + $0x1c0] sm:$0xff]
    %v3516 = vld [vmem:[#allocation6 + $0x1c8] sm:$0xff]
    %v3517 = vld [vmem:[#allocation6 + $0x1d0] sm:$0xff]
    %v3518 = vld [vmem:[#allocation6 + $0x1d8] sm:$0xff]
    %v3519 = vld [vmem:[#allocation6 + $0x1e0] sm:$0xff]
    %v3520 = vld [vmem:[#allocation6 + $0x1e8] sm:$0xff]
    %v3521 = vld [vmem:[#allocation6 + $0x1f0] sm:$0xff]
    %v3522 = vld [vmem:[#allocation6 + $0x1f8] sm:$0xff]
    %v3523 = vld [vmem:[%s6] sm:$0xf]
    %v3525 = vlaneseq
    %v3526 = vshrl.u32 %v3525, 7
    %v3527 = vsub.s32 0, %v3526
    %v3528 = vrot.slane %v3523, %v3527
    %v3529 = vlaneseq
    %v3530 = vshrl.u32 %v3529, 7
    %v3531 = vsub.s32 1, %v3530
    %v3532 = vrot.slane %v3523, %v3531
    %v3533 = vlaneseq
    %v3534 = vshrl.u32 %v3533, 7
    %v3535 = vsub.s32 2, %v3534
    %v3536 = vrot.slane %v3523, %v3535
    %v3537 = vlaneseq
    %v3538 = vshrl.u32 %v3537, 7
    %v3539 = vsub.s32 3, %v3538
    %v3540 = vrot.slane %v3523, %v3539
    %3545 = vmatprep.subr.mxu0 %v3520
    %3546 = vmatpush1.msra.mxu0 %v3519
    %3547 = vmatprep.subr.mxu0 %v3516
    %3548 = vmatpush1.msra.mxu0 %v3515
    %3549 = vmatprep.subr.mxu0 %v3512
    %3550 = vmatpush1.msra.mxu0 %v3511
    %3551 = vmatprep.subr.mxu0 %v3508
    %3552 = vmatpush1.msra.mxu0 %v3507
    %3553 = vmatprep.subr.mxu0 %v3504
    %3554 = vmatpush1.msra.mxu0 %v3503
    %3555 = vmatprep.subr.mxu0 %v3500
    %3556 = vmatpush1.msra.mxu0 %v3499
    %3557 = vmatprep.subr.mxu0 %v3496
    %3558 = vmatpush1.msra.mxu0 %v3495
    %3559 = vmatprep.subr.mxu0 %v3492
    %3560 = vmatpush1.msra.mxu0 %v3491
    %3561 = vmatprep.subr.mxu0 %v3488
    %3562 = vmatpush1.msra.mxu0 %v3487
    %3563 = vmatprep.subr.mxu0 %v3484
    %3564 = vmatpush1.msra.mxu0 %v3483
    %3565 = vmatprep.subr.mxu0 %v3480
    %3566 = vmatpush1.msra.mxu0 %v3479
    %3567 = vmatprep.subr.mxu0 %v3476
    %3568 = vmatpush1.msra.mxu0 %v3475
    %3569 = vmatprep.subr.mxu0 %v3472
    %3570 = vmatpush1.msra.mxu0 %v3471
    %3571 = vmatprep.subr.mxu0 %v3468
    %3572 = vmatpush1.msra.mxu0 %v3467
    %3573 = vmatprep.subr.mxu0 %v3464
    %3574 = vmatpush1.msra.mxu0 %v3463
    %3575 = vmatprep.subr.mxu0 %v3460
    %3576 = vmatpush1.msra.mxu0 %v3459
    %3577 = vmatprep.subr.mxu0 0.0
    %3578 = vmatpush2.msra.mxu0 0.0
    %3579 = vmatprep.subr.mxu0 0.0
    %3580 = vmatpush2.msra.mxu0 0.0
    %3581 = vmatprep.subr.mxu0 0.0
    %3582 = vmatpush2.msra.mxu0 0.0
    %3583 = vmatprep.subr.mxu0 0.0
    %3584 = vmatpush2.msra.mxu0 0.0
    %3585 = vmatprep.subr.mxu0 0.0
    %3586 = vmatpush2.msra.mxu0 0.0
    %3587 = vmatprep.subr.mxu0 0.0
    %3588 = vmatpush2.msra.mxu0 0.0
    %3589 = vmatprep.subr.mxu0 0.0
    %3590 = vmatpush2.msra.mxu0 0.0
    %3591 = vmatprep.subr.mxu0 0.0
    %3592 = vmatpush2.msra.mxu0 0.0
    %3593 = vmatprep.subr.mxu0 0.0
    %3594 = vmatpush2.msra.mxu0 0.0
    %3595 = vmatprep.subr.mxu0 0.0
    %3596 = vmatpush2.msra.mxu0 0.0
    %3597 = vmatprep.subr.mxu0 0.0
    %3598 = vmatpush2.msra.mxu0 0.0
    %3599 = vmatprep.subr.mxu0 0.0
    %3600 = vmatpush2.msra.mxu0 0.0
    %3601 = vmatprep.subr.mxu0 0.0
    %3602 = vmatpush2.msra.mxu0 0.0
    %3603 = vmatprep.subr.mxu0 0.0
    %3604 = vmatpush2.msra.mxu0 0.0
    %3605 = vmatprep.subr.mxu0 0.0
    %3606 = vmatpush2.msra.mxu0 0.0
    %3607 = vmatprep.subr.mxu0 0.0
    %3608 = vmatpush2.msra.mxu0 0.0
    %3609 = vmatprep.mubr.f32.mxu0 0.0
    %3610 = vmatmul.mubr.f32.gmra.mxu0 %v3451
    %v3611 = vpop.f32.mrf.mxu0
    %v3612 = vadd.f32 %v3528, %v3611
    %v3613 = vpop.f32.mrf.mxu0
    %v3614 = vadd.f32 %v3532, %v3613
    %3615 = vmatprep.mubr.f32.mxu0 0.0
    %3616 = vmatmul.mubr.f32.gmra.mxu0 %v3452
    %v3617 = vpop.f32.mrf.mxu0
    %v3618 = vadd.f32 %v3528, %v3617
    %v3619 = vpop.f32.mrf.mxu0
    %v3620 = vadd.f32 %v3532, %v3619
    %3621 = vmatprep.mubr.f32.mxu0 0.0
    %3622 = vmatmul.mubr.f32.gmra.mxu0 %v3453
    %v3623 = vpop.f32.mrf.mxu0
    %v3624 = vadd.f32 %v3528, %v3623
    %v3625 = vpop.f32.mrf.mxu0
    %v3626 = vadd.f32 %v3532, %v3625
    %3627 = vmatprep.mubr.f32.mxu0 0.0
    %3628 = vmatmul.mubr.f32.gmra.mxu0 %v3454
    %v3629 = vpop.f32.mrf.mxu0
    %v3630 = vadd.f32 %v3528, %v3629
    %v3631 = vpop.f32.mrf.mxu0
    %v3632 = vadd.f32 %v3532, %v3631
    %3633 = vmatprep.mubr.f32.mxu0 0.0
    %3634 = vmatmul.mubr.f32.gmra.mxu0 %v3455
    %v3635 = vpop.f32.mrf.mxu0
    %v3636 = vadd.f32 %v3528, %v3635
    %v3637 = vpop.f32.mrf.mxu0
    %v3638 = vadd.f32 %v3532, %v3637
    %3639 = vmatprep.mubr.f32.mxu0 0.0
    %3640 = vmatmul.mubr.f32.gmra.mxu0 %v3456
    %v3641 = vpop.f32.mrf.mxu0
    %v3642 = vadd.f32 %v3528, %v3641
    %v3643 = vpop.f32.mrf.mxu0
    %v3644 = vadd.f32 %v3532, %v3643
    %3645 = vmatprep.mubr.f32.mxu0 0.0
    %3646 = vmatmul.mubr.f32.gmra.mxu0 %v3457
    %v3647 = vpop.f32.mrf.mxu0
    %v3648 = vadd.f32 %v3528, %v3647
    %v3649 = vpop.f32.mrf.mxu0
    %v3650 = vadd.f32 %v3532, %v3649
    %3651 = vmatprep.mubr.f32.mxu0 0.0
    %3652 = vmatmul.mubr.f32.gmra.mxu0 %v3458
    %v3653 = vpop.f32.mrf.mxu0
    %v3654 = vadd.f32 %v3528, %v3653
    %v3655 = vpop.f32.mrf.mxu0
    %v3656 = vadd.f32 %v3532, %v3655
    %3657 = vdwg.mxu0
    %3658 = vmatprep.subr.mxu0 %v3522
    %3659 = vmatpush1.msra.mxu0 %v3521
    %3660 = vmatprep.subr.mxu0 %v3518
    %3661 = vmatpush1.msra.mxu0 %v3517
    %3662 = vmatprep.subr.mxu0 %v3514
    %3663 = vmatpush1.msra.mxu0 %v3513
    %3664 = vmatprep.subr.mxu0 %v3510
    %3665 = vmatpush1.msra.mxu0 %v3509
    %3666 = vmatprep.subr.mxu0 %v3506
    %3667 = vmatpush1.msra.mxu0 %v3505
    %3668 = vmatprep.subr.mxu0 %v3502
    %3669 = vmatpush1.msra.mxu0 %v3501
    %3670 = vmatprep.subr.mxu0 %v3498
    %3671 = vmatpush1.msra.mxu0 %v3497
    %3672 = vmatprep.subr.mxu0 %v3494
    %3673 = vmatpush1.msra.mxu0 %v3493
    %3674 = vmatprep.subr.mxu0 %v3490
    %3675 = vmatpush1.msra.mxu0 %v3489
    %3676 = vmatprep.subr.mxu0 %v3486
    %3677 = vmatpush1.msra.mxu0 %v3485
    %3678 = vmatprep.subr.mxu0 %v3482
    %3679 = vmatpush1.msra.mxu0 %v3481
    %3680 = vmatprep.subr.mxu0 %v3478
    %3681 = vmatpush1.msra.mxu0 %v3477
    %3682 = vmatprep.subr.mxu0 %v3474
    %3683 = vmatpush1.msra.mxu0 %v3473
    %3684 = vmatprep.subr.mxu0 %v3470
    %3685 = vmatpush1.msra.mxu0 %v3469
    %3686 = vmatprep.subr.mxu0 %v3466
    %3687 = vmatpush1.msra.mxu0 %v3465
    %3688 = vmatprep.subr.mxu0 %v3462
    %3689 = vmatpush1.msra.mxu0 %v3461
    %3690 = vmatprep.subr.mxu0 0.0
    %3691 = vmatpush2.msra.mxu0 0.0
    %3692 = vmatprep.subr.mxu0 0.0
    %3693 = vmatpush2.msra.mxu0 0.0
    %3694 = vmatprep.subr.mxu0 0.0
    %3695 = vmatpush2.msra.mxu0 0.0
    %3696 = vmatprep.subr.mxu0 0.0
    %3697 = vmatpush2.msra.mxu0 0.0
    %3698 = vmatprep.subr.mxu0 0.0
    %3699 = vmatpush2.msra.mxu0 0.0
    %3700 = vmatprep.subr.mxu0 0.0
    %3701 = vmatpush2.msra.mxu0 0.0
    %3702 = vmatprep.subr.mxu0 0.0
    %3703 = vmatpush2.msra.mxu0 0.0
    %3704 = vmatprep.subr.mxu0 0.0
    %3705 = vmatpush2.msra.mxu0 0.0
    %3706 = vmatprep.subr.mxu0 0.0
    %3707 = vmatpush2.msra.mxu0 0.0
    %3708 = vmatprep.subr.mxu0 0.0
    %3709 = vmatpush2.msra.mxu0 0.0
    %3710 = vmatprep.subr.mxu0 0.0
    %3711 = vmatpush2.msra.mxu0 0.0
    %3712 = vmatprep.subr.mxu0 0.0
    %3713 = vmatpush2.msra.mxu0 0.0
    %3714 = vmatprep.subr.mxu0 0.0
    %3715 = vmatpush2.msra.mxu0 0.0
    %3716 = vmatprep.subr.mxu0 0.0
    %3717 = vmatpush2.msra.mxu0 0.0
    %3718 = vmatprep.subr.mxu0 0.0
    %3719 = vmatpush2.msra.mxu0 0.0
    %3720 = vmatprep.subr.mxu0 0.0
    %3721 = vmatpush2.msra.mxu0 0.0
    %3722 = vmatprep.mubr.f32.mxu0 0.0
    %3723 = vmatmul.mubr.f32.gmra.mxu0 %v3451
    %v3724 = vpop.f32.mrf.mxu0
    %v3725 = vadd.f32 %v3536, %v3724
    %v3726 = vpop.f32.mrf.mxu0
    %v3727 = vadd.f32 %v3540, %v3726
    %3728 = vmatprep.mubr.f32.mxu0 0.0
    %3729 = vmatmul.mubr.f32.gmra.mxu0 %v3452
    %v3730 = vpop.f32.mrf.mxu0
    %v3731 = vadd.f32 %v3536, %v3730
    %v3732 = vpop.f32.mrf.mxu0
    %v3733 = vadd.f32 %v3540, %v3732
    %3734 = vmatprep.mubr.f32.mxu0 0.0
    %3735 = vmatmul.mubr.f32.gmra.mxu0 %v3453
    %v3736 = vpop.f32.mrf.mxu0
    %v3737 = vadd.f32 %v3536, %v3736
    %v3738 = vpop.f32.mrf.mxu0
    %v3739 = vadd.f32 %v3540, %v3738
    %3740 = vmatprep.mubr.f32.mxu0 0.0
    %3741 = vmatmul.mubr.f32.gmra.mxu0 %v3454
    %v3742 = vpop.f32.mrf.mxu0
    %v3743 = vadd.f32 %v3536, %v3742
    %v3744 = vpop.f32.mrf.mxu0
    %v3745 = vadd.f32 %v3540, %v3744
    %3746 = vmatprep.mubr.f32.mxu0 0.0
    %3747 = vmatmul.mubr.f32.gmra.mxu0 %v3455
    %v3748 = vpop.f32.mrf.mxu0
    %v3749 = vadd.f32 %v3536, %v3748
    %v3750 = vpop.f32.mrf.mxu0
    %v3751 = vadd.f32 %v3540, %v3750
    %3752 = vmatprep.mubr.f32.mxu0 0.0
    %3753 = vmatmul.mubr.f32.gmra.mxu0 %v3456
    %v3754 = vpop.f32.mrf.mxu0
    %v3755 = vadd.f32 %v3536, %v3754
    %v3756 = vpop.f32.mrf.mxu0
    %v3757 = vadd.f32 %v3540, %v3756
    %3758 = vmatprep.mubr.f32.mxu0 0.0
    %3759 = vmatmul.mubr.f32.gmra.mxu0 %v3457
    %v3760 = vpop.f32.mrf.mxu0
    %v3761 = vadd.f32 %v3536, %v3760
    %v3762 = vpop.f32.mrf.mxu0
    %v3763 = vadd.f32 %v3540, %v3762
    %3764 = vmatprep.mubr.f32.mxu0 0.0
    %3765 = vmatmul.mubr.f32.gmra.mxu0 %v3458
    %v3766 = vpop.f32.mrf.mxu0
    %v3767 = vadd.f32 %v3536, %v3766
    %v3768 = vpop.f32.mrf.mxu0
    %v3769 = vadd.f32 %v3540, %v3768
    %3770 = vdwg.mxu0
    %3771 = vst [vmem:[#allocation3] sm:$0xff] %v3612
    %3772 = vst [vmem:[#allocation3 + $0x8] sm:$0xff] %v3614
    %3773 = vst [vmem:[#allocation3 + $0x10] sm:$0xff] %v3725
    %3774 = vst [vmem:[#allocation3 + $0x18] sm:$0xff] %v3727
    %3775 = vst [vmem:[#allocation3 + $0x20] sm:$0xff] %v3618
    %3776 = vst [vmem:[#allocation3 + $0x28] sm:$0xff] %v3620
    %3777 = vst [vmem:[#allocation3 + $0x30] sm:$0xff] %v3731
    %3778 = vst [vmem:[#allocation3 + $0x38] sm:$0xff] %v3733
    %3779 = vst [vmem:[#allocation3 + $0x40] sm:$0xff] %v3624
    %3780 = vst [vmem:[#allocation3 + $0x48] sm:$0xff] %v3626
    %3781 = vst [vmem:[#allocation3 + $0x50] sm:$0xff] %v3737
    %3782 = vst [vmem:[#allocation3 + $0x58] sm:$0xff] %v3739
    %3783 = vst [vmem:[#allocation3 + $0x60] sm:$0xff] %v3630
    %3784 = vst [vmem:[#allocation3 + $0x68] sm:$0xff] %v3632
    %3785 = vst [vmem:[#allocation3 + $0x70] sm:$0xff] %v3743
    %3786 = vst [vmem:[#allocation3 + $0x78] sm:$0xff] %v3745
    %3787 = vst [vmem:[#allocation3 + $0x80] sm:$0xff] %v3636
    %3788 = vst [vmem:[#allocation3 + $0x88] sm:$0xff] %v3638
    %3789 = vst [vmem:[#allocation3 + $0x90] sm:$0xff] %v3749
    %3790 = vst [vmem:[#allocation3 + $0x98] sm:$0xff] %v3751
    %3791 = vst [vmem:[#allocation3 + $0xa0] sm:$0xff] %v3642
    %3792 = vst [vmem:[#allocation3 + $0xa8] sm:$0xff] %v3644
    %3793 = vst [vmem:[#allocation3 + $0xb0] sm:$0xff] %v3755
    %3794 = vst [vmem:[#allocation3 + $0xb8] sm:$0xff] %v3757
    %3795 = vst [vmem:[#allocation3 + $0xc0] sm:$0xff] %v3648
    %3796 = vst [vmem:[#allocation3 + $0xc8] sm:$0xff] %v3650
    %3797 = vst [vmem:[#allocation3 + $0xd0] sm:$0xff] %v3761
    %3798 = vst [vmem:[#allocation3 + $0xd8] sm:$0xff] %v3763
    %3799 = vst [vmem:[#allocation3 + $0xe0] sm:$0xff] %v3654
    %3800 = vst [vmem:[#allocation3 + $0xe8] sm:$0xff] %v3656
    %3801 = vst [vmem:[#allocation3 + $0xf0] sm:$0xff] %v3767
    %3802 = vst [vmem:[#allocation3 + $0xf8] sm:$0xff] %v3769
    %v3803 = vld [vmem:[%s406] sm:$0xff]
    %v3804 = vld [vmem:[#allocation8] sm:$0xff]
    %v3805 = vld [vmem:[#allocation8 + $0x20] sm:$0xff]
    %v3806 = vld [vmem:[#allocation8 + $0x40] sm:$0xff]
    %v3807 = vld [vmem:[#allocation8 + $0x60] sm:$0xff]
    %v3808 = vld [vmem:[#allocation8 + $0x80] sm:$0xff]
    %v3809 = vld [vmem:[#allocation8 + $0xa0] sm:$0xff]
    %v3810 = vld [vmem:[#allocation8 + $0xc0] sm:$0xff]
    %v3811 = vld [vmem:[#allocation8 + $0xe0] sm:$0xff]
    %v3812 = vld [vmem:[#allocation8 + $0x100] sm:$0xff]
    %v3813 = vld [vmem:[#allocation8 + $0x120] sm:$0xff]
    %v3814 = vld [vmem:[#allocation8 + $0x140] sm:$0xff]
    %v3815 = vld [vmem:[#allocation8 + $0x160] sm:$0xff]
    %v3816 = vld [vmem:[#allocation8 + $0x180] sm:$0xff]
    %v3817 = vld [vmem:[#allocation8 + $0x1a0] sm:$0xff]
    %v3818 = vld [vmem:[#allocation8 + $0x1c0] sm:$0xff]
    %v3819 = vld [vmem:[#allocation8 + $0x1e0] sm:$0xff]
    %3820 = vmatprep.subr.mxu0 0.0
    %3821 = vmatpush1.msra.mxu0 %v3819
    %3822 = vmatprep.subr.mxu0 0.0
    %3823 = vmatpush1.msra.mxu0 %v3818
    %3824 = vmatprep.subr.mxu0 0.0
    %3825 = vmatpush1.msra.mxu0 %v3817
    %3826 = vmatprep.subr.mxu0 0.0
    %3827 = vmatpush1.msra.mxu0 %v3816
    %3828 = vmatprep.subr.mxu0 0.0
    %3829 = vmatpush1.msra.mxu0 %v3815
    %3830 = vmatprep.subr.mxu0 0.0
    %3831 = vmatpush1.msra.mxu0 %v3814
    %3832 = vmatprep.subr.mxu0 0.0
    %3833 = vmatpush1.msra.mxu0 %v3813
    %3834 = vmatprep.subr.mxu0 0.0
    %3835 = vmatpush1.msra.mxu0 %v3812
    %3836 = vmatprep.subr.mxu0 0.0
    %3837 = vmatpush1.msra.mxu0 %v3811
    %3838 = vmatprep.subr.mxu0 0.0
    %3839 = vmatpush1.msra.mxu0 %v3810
    %3840 = vmatprep.subr.mxu0 0.0
    %3841 = vmatpush1.msra.mxu0 %v3809
    %3842 = vmatprep.subr.mxu0 0.0
    %3843 = vmatpush1.msra.mxu0 %v3808
    %3844 = vmatprep.subr.mxu0 0.0
    %3845 = vmatpush1.msra.mxu0 %v3807
    %3846 = vmatprep.subr.mxu0 0.0
    %3847 = vmatpush1.msra.mxu0 %v3806
    %3848 = vmatprep.subr.mxu0 0.0
    %3849 = vmatpush1.msra.mxu0 %v3805
    %3850 = vmatprep.subr.mxu0 0.0
    %3851 = vmatpush1.msra.mxu0 %v3804
    %3852 = vmatprep.subr.mxu0 0.0
    %3853 = vmatpush2.msra.mxu0 0.0
    %3854 = vmatprep.subr.mxu0 0.0
    %3855 = vmatpush2.msra.mxu0 0.0
    %3856 = vmatprep.subr.mxu0 0.0
    %3857 = vmatpush2.msra.mxu0 0.0
    %3858 = vmatprep.subr.mxu0 0.0
    %3859 = vmatpush2.msra.mxu0 0.0
    %3860 = vmatprep.subr.mxu0 0.0
    %3861 = vmatpush2.msra.mxu0 0.0
    %3862 = vmatprep.subr.mxu0 0.0
    %3863 = vmatpush2.msra.mxu0 0.0
    %3864 = vmatprep.subr.mxu0 0.0
    %3865 = vmatpush2.msra.mxu0 0.0
    %3866 = vmatprep.subr.mxu0 0.0
    %3867 = vmatpush2.msra.mxu0 0.0
    %3868 = vmatprep.subr.mxu0 0.0
    %3869 = vmatpush2.msra.mxu0 0.0
    %3870 = vmatprep.subr.mxu0 0.0
    %3871 = vmatpush2.msra.mxu0 0.0
    %3872 = vmatprep.subr.mxu0 0.0
    %3873 = vmatpush2.msra.mxu0 0.0
    %3874 = vmatprep.subr.mxu0 0.0
    %3875 = vmatpush2.msra.mxu0 0.0
    %3876 = vmatprep.subr.mxu0 0.0
    %3877 = vmatpush2.msra.mxu0 0.0
    %3878 = vmatprep.subr.mxu0 0.0
    %3879 = vmatpush2.msra.mxu0 0.0
    %3880 = vmatprep.subr.mxu0 0.0
    %3881 = vmatpush2.msra.mxu0 0.0
    %3882 = vmatprep.subr.mxu0 0.0
    %3883 = vmatpush2.msra.mxu0 0.0
    %3884 = vmatprep.mubr.f32.mxu0 0.0
    %3885 = vmatmul.mubr.f32.gmra.mxu0 0.0
    %v3886 = vpop.f32.mrf.mxu0
    %v3887 = vadd.f32 0.0, %v3886
    %v3888 = vpop.f32.mrf.mxu0
    %3889 = vdwg.mxu0
    %v3890 = vadd.f32 %v3803, %v3887
    %v3891 = vxor.u32 %v3890, 2147483648
    %v3892 = vmul.f32 %v3891, 1.442695
    %v3893 = vpow.pop %v3892
    %v3894 = vadd.f32 %v3893, 1.0
    %v3895 = vrcp.pop %v3894
    %v3896 = vmul.f32 1.0, %v3895
    %v3897 = vld [vmem:[%s406 + $0x8] sm:$0xff]
    %v3898 = vld [vmem:[#allocation8 + $0x8] sm:$0xff]
    %v3899 = vld [vmem:[#allocation8 + $0x28] sm:$0xff]
    %v3900 = vld [vmem:[#allocation8 + $0x48] sm:$0xff]
    %v3901 = vld [vmem:[#allocation8 + $0x68] sm:$0xff]
    %v3902 = vld [vmem:[#allocation8 + $0x88] sm:$0xff]
    %v3903 = vld [vmem:[#allocation8 + $0xa8] sm:$0xff]
    %v3904 = vld [vmem:[#allocation8 + $0xc8] sm:$0xff]
    %v3905 = vld [vmem:[#allocation8 + $0xe8] sm:$0xff]
    %v3906 = vld [vmem:[#allocation8 + $0x108] sm:$0xff]
    %v3907 = vld [vmem:[#allocation8 + $0x128] sm:$0xff]
    %v3908 = vld [vmem:[#allocation8 + $0x148] sm:$0xff]
    %v3909 = vld [vmem:[#allocation8 + $0x168] sm:$0xff]
    %v3910 = vld [vmem:[#allocation8 + $0x188] sm:$0xff]
    %v3911 = vld [vmem:[#allocation8 + $0x1a8] sm:$0xff]
    %v3912 = vld [vmem:[#allocation8 + $0x1c8] sm:$0xff]
    %v3913 = vld [vmem:[#allocation8 + $0x1e8] sm:$0xff]
    %3914 = vmatprep.subr.mxu0 0.0
    %3915 = vmatpush1.msra.mxu0 %v3913
    %3916 = vmatprep.subr.mxu0 0.0
    %3917 = vmatpush1.msra.mxu0 %v3912
    %3918 = vmatprep.subr.mxu0 0.0
    %3919 = vmatpush1.msra.mxu0 %v3911
    %3920 = vmatprep.subr.mxu0 0.0
    %3921 = vmatpush1.msra.mxu0 %v3910
    %3922 = vmatprep.subr.mxu0 0.0
    %3923 = vmatpush1.msra.mxu0 %v3909
    %3924 = vmatprep.subr.mxu0 0.0
    %3925 = vmatpush1.msra.mxu0 %v3908
    %3926 = vmatprep.subr.mxu0 0.0
    %3927 = vmatpush1.msra.mxu0 %v3907
    %3928 = vmatprep.subr.mxu0 0.0
    %3929 = vmatpush1.msra.mxu0 %v3906
    %3930 = vmatprep.subr.mxu0 0.0
    %3931 = vmatpush1.msra.mxu0 %v3905
    %3932 = vmatprep.subr.mxu0 0.0
    %3933 = vmatpush1.msra.mxu0 %v3904
    %3934 = vmatprep.subr.mxu0 0.0
    %3935 = vmatpush1.msra.mxu0 %v3903
    %3936 = vmatprep.subr.mxu0 0.0
    %3937 = vmatpush1.msra.mxu0 %v3902
    %3938 = vmatprep.subr.mxu0 0.0
    %3939 = vmatpush1.msra.mxu0 %v3901
    %3940 = vmatprep.subr.mxu0 0.0
    %3941 = vmatpush1.msra.mxu0 %v3900
    %3942 = vmatprep.subr.mxu0 0.0
    %3943 = vmatpush1.msra.mxu0 %v3899
    %3944 = vmatprep.subr.mxu0 0.0
    %3945 = vmatpush1.msra.mxu0 %v3898
    %3946 = vmatprep.subr.mxu0 0.0
    %3947 = vmatpush2.msra.mxu0 0.0
    %3948 = vmatprep.subr.mxu0 0.0
    %3949 = vmatpush2.msra.mxu0 0.0
    %3950 = vmatprep.subr.mxu0 0.0
    %3951 = vmatpush2.msra.mxu0 0.0
    %3952 = vmatprep.subr.mxu0 0.0
    %3953 = vmatpush2.msra.mxu0 0.0
    %3954 = vmatprep.subr.mxu0 0.0
    %3955 = vmatpush2.msra.mxu0 0.0
    %3956 = vmatprep.subr.mxu0 0.0
    %3957 = vmatpush2.msra.mxu0 0.0
    %3958 = vmatprep.subr.mxu0 0.0
    %3959 = vmatpush2.msra.mxu0 0.0
    %3960 = vmatprep.subr.mxu0 0.0
    %3961 = vmatpush2.msra.mxu0 0.0
    %3962 = vmatprep.subr.mxu0 0.0
    %3963 = vmatpush2.msra.mxu0 0.0
    %3964 = vmatprep.subr.mxu0 0.0
    %3965 = vmatpush2.msra.mxu0 0.0
    %3966 = vmatprep.subr.mxu0 0.0
    %3967 = vmatpush2.msra.mxu0 0.0
    %3968 = vmatprep.subr.mxu0 0.0
    %3969 = vmatpush2.msra.mxu0 0.0
    %3970 = vmatprep.subr.mxu0 0.0
    %3971 = vmatpush2.msra.mxu0 0.0
    %3972 = vmatprep.subr.mxu0 0.0
    %3973 = vmatpush2.msra.mxu0 0.0
    %3974 = vmatprep.subr.mxu0 0.0
    %3975 = vmatpush2.msra.mxu0 0.0
    %3976 = vmatprep.subr.mxu0 0.0
    %3977 = vmatpush2.msra.mxu0 0.0
    %3978 = vmatprep.mubr.f32.mxu0 0.0
    %3979 = vmatmul.mubr.f32.gmra.mxu0 0.0
    %v3980 = vpop.f32.mrf.mxu0
    %v3981 = vadd.f32 0.0, %v3980
    %v3982 = vpop.f32.mrf.mxu0
    %3983 = vdwg.mxu0
    %v3984 = vadd.f32 %v3897, %v3981
    %v3985 = vxor.u32 %v3984, 2147483648
    %v3986 = vmul.f32 %v3985, 1.442695
    %v3987 = vpow.pop %v3986
    %v3988 = vadd.f32 %v3987, 1.0
    %v3989 = vrcp.pop %v3988
    %v3990 = vmul.f32 1.0, %v3989
    %v3991 = vld [vmem:[%s406 + $0x10] sm:$0xff]
    %v3992 = vld [vmem:[#allocation8 + $0x10] sm:$0xff]
    %v3993 = vld [vmem:[#allocation8 + $0x30] sm:$0xff]
    %v3994 = vld [vmem:[#allocation8 + $0x50] sm:$0xff]
    %v3995 = vld [vmem:[#allocation8 + $0x70] sm:$0xff]
    %v3996 = vld [vmem:[#allocation8 + $0x90] sm:$0xff]
    %v3997 = vld [vmem:[#allocation8 + $0xb0] sm:$0xff]
    %v3998 = vld [vmem:[#allocation8 + $0xd0] sm:$0xff]
    %v3999 = vld [vmem:[#allocation8 + $0xf0] sm:$0xff]
    %v4000 = vld [vmem:[#allocation8 + $0x110] sm:$0xff]
    %v4001 = vld [vmem:[#allocation8 + $0x130] sm:$0xff]
    %v4002 = vld [vmem:[#allocation8 + $0x150] sm:$0xff]
    %v4003 = vld [vmem:[#allocation8 + $0x170] sm:$0xff]
    %v4004 = vld [vmem:[#allocation8 + $0x190] sm:$0xff]
    %v4005 = vld [vmem:[#allocation8 + $0x1b0] sm:$0xff]
    %v4006 = vld [vmem:[#allocation8 + $0x1d0] sm:$0xff]
    %v4007 = vld [vmem:[#allocation8 + $0x1f0] sm:$0xff]
    %4008 = vmatprep.subr.mxu0 0.0
    %4009 = vmatpush1.msra.mxu0 %v4007
    %4010 = vmatprep.subr.mxu0 0.0
    %4011 = vmatpush1.msra.mxu0 %v4006
    %4012 = vmatprep.subr.mxu0 0.0
    %4013 = vmatpush1.msra.mxu0 %v4005
    %4014 = vmatprep.subr.mxu0 0.0
    %4015 = vmatpush1.msra.mxu0 %v4004
    %4016 = vmatprep.subr.mxu0 0.0
    %4017 = vmatpush1.msra.mxu0 %v4003
    %4018 = vmatprep.subr.mxu0 0.0
    %4019 = vmatpush1.msra.mxu0 %v4002
    %4020 = vmatprep.subr.mxu0 0.0
    %4021 = vmatpush1.msra.mxu0 %v4001
    %4022 = vmatprep.subr.mxu0 0.0
    %4023 = vmatpush1.msra.mxu0 %v4000
    %4024 = vmatprep.subr.mxu0 0.0
    %4025 = vmatpush1.msra.mxu0 %v3999
    %4026 = vmatprep.subr.mxu0 0.0
    %4027 = vmatpush1.msra.mxu0 %v3998
    %4028 = vmatprep.subr.mxu0 0.0
    %4029 = vmatpush1.msra.mxu0 %v3997
    %4030 = vmatprep.subr.mxu0 0.0
    %4031 = vmatpush1.msra.mxu0 %v3996
    %4032 = vmatprep.subr.mxu0 0.0
    %4033 = vmatpush1.msra.mxu0 %v3995
    %4034 = vmatprep.subr.mxu0 0.0
    %4035 = vmatpush1.msra.mxu0 %v3994
    %4036 = vmatprep.subr.mxu0 0.0
    %4037 = vmatpush1.msra.mxu0 %v3993
    %4038 = vmatprep.subr.mxu0 0.0
    %4039 = vmatpush1.msra.mxu0 %v3992
    %4040 = vmatprep.subr.mxu0 0.0
    %4041 = vmatpush2.msra.mxu0 0.0
    %4042 = vmatprep.subr.mxu0 0.0
    %4043 = vmatpush2.msra.mxu0 0.0
    %4044 = vmatprep.subr.mxu0 0.0
    %4045 = vmatpush2.msra.mxu0 0.0
    %4046 = vmatprep.subr.mxu0 0.0
    %4047 = vmatpush2.msra.mxu0 0.0
    %4048 = vmatprep.subr.mxu0 0.0
    %4049 = vmatpush2.msra.mxu0 0.0
    %4050 = vmatprep.subr.mxu0 0.0
    %4051 = vmatpush2.msra.mxu0 0.0
    %4052 = vmatprep.subr.mxu0 0.0
    %4053 = vmatpush2.msra.mxu0 0.0
    %4054 = vmatprep.subr.mxu0 0.0
    %4055 = vmatpush2.msra.mxu0 0.0
    %4056 = vmatprep.subr.mxu0 0.0
    %4057 = vmatpush2.msra.mxu0 0.0
    %4058 = vmatprep.subr.mxu0 0.0
    %4059 = vmatpush2.msra.mxu0 0.0
    %4060 = vmatprep.subr.mxu0 0.0
    %4061 = vmatpush2.msra.mxu0 0.0
    %4062 = vmatprep.subr.mxu0 0.0
    %4063 = vmatpush2.msra.mxu0 0.0
    %4064 = vmatprep.subr.mxu0 0.0
    %4065 = vmatpush2.msra.mxu0 0.0
    %4066 = vmatprep.subr.mxu0 0.0
    %4067 = vmatpush2.msra.mxu0 0.0
    %4068 = vmatprep.subr.mxu0 0.0
    %4069 = vmatpush2.msra.mxu0 0.0
    %4070 = vmatprep.subr.mxu0 0.0
    %4071 = vmatpush2.msra.mxu0 0.0
    %4072 = vmatprep.mubr.f32.mxu0 0.0
    %4073 = vmatmul.mubr.f32.gmra.mxu0 0.0
    %v4074 = vpop.f32.mrf.mxu0
    %v4075 = vadd.f32 0.0, %v4074
    %v4076 = vpop.f32.mrf.mxu0
    %4077 = vdwg.mxu0
    %v4078 = vadd.f32 %v3991, %v4075
    %v4079 = vtanh.pop %v4078
    %v4080 = vld [vmem:[%s406 + $0x18] sm:$0xff]
    %v4081 = vld [vmem:[#allocation8 + $0x18] sm:$0xff]
    %v4082 = vld [vmem:[#allocation8 + $0x38] sm:$0xff]
    %v4083 = vld [vmem:[#allocation8 + $0x58] sm:$0xff]
    %v4084 = vld [vmem:[#allocation8 + $0x78] sm:$0xff]
    %v4085 = vld [vmem:[#allocation8 + $0x98] sm:$0xff]
    %v4086 = vld [vmem:[#allocation8 + $0xb8] sm:$0xff]
    %v4087 = vld [vmem:[#allocation8 + $0xd8] sm:$0xff]
    %v4088 = vld [vmem:[#allocation8 + $0xf8] sm:$0xff]
    %v4089 = vld [vmem:[#allocation8 + $0x118] sm:$0xff]
    %v4090 = vld [vmem:[#allocation8 + $0x138] sm:$0xff]
    %v4091 = vld [vmem:[#allocation8 + $0x158] sm:$0xff]
    %v4092 = vld [vmem:[#allocation8 + $0x178] sm:$0xff]
    %v4093 = vld [vmem:[#allocation8 + $0x198] sm:$0xff]
    %v4094 = vld [vmem:[#allocation8 + $0x1b8] sm:$0xff]
    %v4095 = vld [vmem:[#allocation8 + $0x1d8] sm:$0xff]
    %v4096 = vld [vmem:[#allocation8 + $0x1f8] sm:$0xff]
    %4097 = vmatprep.subr.mxu0 0.0
    %4098 = vmatpush1.msra.mxu0 %v4096
    %4099 = vmatprep.subr.mxu0 0.0
    %4100 = vmatpush1.msra.mxu0 %v4095
    %4101 = vmatprep.subr.mxu0 0.0
    %4102 = vmatpush1.msra.mxu0 %v4094
    %4103 = vmatprep.subr.mxu0 0.0
    %4104 = vmatpush1.msra.mxu0 %v4093
    %4105 = vmatprep.subr.mxu0 0.0
    %4106 = vmatpush1.msra.mxu0 %v4092
    %4107 = vmatprep.subr.mxu0 0.0
    %4108 = vmatpush1.msra.mxu0 %v4091
    %4109 = vmatprep.subr.mxu0 0.0
    %4110 = vmatpush1.msra.mxu0 %v4090
    %4111 = vmatprep.subr.mxu0 0.0
    %4112 = vmatpush1.msra.mxu0 %v4089
    %4113 = vmatprep.subr.mxu0 0.0
    %4114 = vmatpush1.msra.mxu0 %v4088
    %4115 = vmatprep.subr.mxu0 0.0
    %4116 = vmatpush1.msra.mxu0 %v4087
    %4117 = vmatprep.subr.mxu0 0.0
    %4118 = vmatpush1.msra.mxu0 %v4086
    %4119 = vmatprep.subr.mxu0 0.0
    %4120 = vmatpush1.msra.mxu0 %v4085
    %4121 = vmatprep.subr.mxu0 0.0
    %4122 = vmatpush1.msra.mxu0 %v4084
    %4123 = vmatprep.subr.mxu0 0.0
    %4124 = vmatpush1.msra.mxu0 %v4083
    %4125 = vmatprep.subr.mxu0 0.0
    %4126 = vmatpush1.msra.mxu0 %v4082
    %4127 = vmatprep.subr.mxu0 0.0
    %4128 = vmatpush1.msra.mxu0 %v4081
    %4129 = vmatprep.subr.mxu0 0.0
    %4130 = vmatpush2.msra.mxu0 0.0
    %4131 = vmatprep.subr.mxu0 0.0
    %4132 = vmatpush2.msra.mxu0 0.0
    %4133 = vmatprep.subr.mxu0 0.0
    %4134 = vmatpush2.msra.mxu0 0.0
    %4135 = vmatprep.subr.mxu0 0.0
    %4136 = vmatpush2.msra.mxu0 0.0
    %4137 = vmatprep.subr.mxu0 0.0
    %4138 = vmatpush2.msra.mxu0 0.0
    %4139 = vmatprep.subr.mxu0 0.0
    %4140 = vmatpush2.msra.mxu0 0.0
    %4141 = vmatprep.subr.mxu0 0.0
    %4142 = vmatpush2.msra.mxu0 0.0
    %4143 = vmatprep.subr.mxu0 0.0
    %4144 = vmatpush2.msra.mxu0 0.0
    %4145 = vmatprep.subr.mxu0 0.0
    %4146 = vmatpush2.msra.mxu0 0.0
    %4147 = vmatprep.subr.mxu0 0.0
    %4148 = vmatpush2.msra.mxu0 0.0
    %4149 = vmatprep.subr.mxu0 0.0
    %4150 = vmatpush2.msra.mxu0 0.0
    %4151 = vmatprep.subr.mxu0 0.0
    %4152 = vmatpush2.msra.mxu0 0.0
    %4153 = vmatprep.subr.mxu0 0.0
    %4154 = vmatpush2.msra.mxu0 0.0
    %4155 = vmatprep.subr.mxu0 0.0
    %4156 = vmatpush2.msra.mxu0 0.0
    %4157 = vmatprep.subr.mxu0 0.0
    %4158 = vmatpush2.msra.mxu0 0.0
    %4159 = vmatprep.subr.mxu0 0.0
    %4160 = vmatpush2.msra.mxu0 0.0
    %4161 = vmatprep.mubr.f32.mxu0 0.0
    %4162 = vmatmul.mubr.f32.gmra.mxu0 0.0
    %v4163 = vpop.f32.mrf.mxu0
    %v4164 = vadd.f32 0.0, %v4163
    %v4165 = vpop.f32.mrf.mxu0
    %4166 = vdwg.mxu0
    %v4167 = vadd.f32 %v4080, %v4164
    %v4168 = vxor.u32 %v4167, 2147483648
    %v4169 = vmul.f32 %v4168, 1.442695
    %v4170 = vpow.pop %v4169
    %v4171 = vadd.f32 %v4170, 1.0
    %v4172 = vrcp.pop %v4171
    %v4173 = vmul.f32 1.0, %v4172
    %v4174 = vmul.f32 %v3990, 0.0
    %v4175 = vmul.f32 %v3896, %v4079
    %v4176 = vadd.f32 %v4174, %v4175
    %v4177 = vtanh.pop %v4176
    %v4178 = vmul.f32 %v4173, %v4177
    %v4179 = vld [vmem:[%s786] sm:$0xff]
    %4180 = vmatprep.subr.mxu0 0.0
    %4181 = vmatpush1.msra.mxu0 %v3819
    %4182 = vmatprep.subr.mxu0 0.0
    %4183 = vmatpush1.msra.mxu0 %v3818
    %4184 = vmatprep.subr.mxu0 0.0
    %4185 = vmatpush1.msra.mxu0 %v3817
    %4186 = vmatprep.subr.mxu0 0.0
    %4187 = vmatpush1.msra.mxu0 %v3816
    %4188 = vmatprep.subr.mxu0 0.0
    %4189 = vmatpush1.msra.mxu0 %v3815
    %4190 = vmatprep.subr.mxu0 0.0
    %4191 = vmatpush1.msra.mxu0 %v3814
    %4192 = vmatprep.subr.mxu0 0.0
    %4193 = vmatpush1.msra.mxu0 %v3813
    %4194 = vmatprep.subr.mxu0 0.0
    %4195 = vmatpush1.msra.mxu0 %v3812
    %4196 = vmatprep.subr.mxu0 0.0
    %4197 = vmatpush1.msra.mxu0 %v3811
    %4198 = vmatprep.subr.mxu0 0.0
    %4199 = vmatpush1.msra.mxu0 %v3810
    %4200 = vmatprep.subr.mxu0 0.0
    %4201 = vmatpush1.msra.mxu0 %v3809
    %4202 = vmatprep.subr.mxu0 0.0
    %4203 = vmatpush1.msra.mxu0 %v3808
    %4204 = vmatprep.subr.mxu0 0.0
    %4205 = vmatpush1.msra.mxu0 %v3807
    %4206 = vmatprep.subr.mxu0 0.0
    %4207 = vmatpush1.msra.mxu0 %v3806
    %4208 = vmatprep.subr.mxu0 0.0
    %4209 = vmatpush1.msra.mxu0 %v3805
    %4210 = vmatprep.subr.mxu0 0.0
    %4211 = vmatpush1.msra.mxu0 %v3804
    %4212 = vmatprep.subr.mxu0 0.0
    %4213 = vmatpush2.msra.mxu0 0.0
    %4214 = vmatprep.subr.mxu0 0.0
    %4215 = vmatpush2.msra.mxu0 0.0
    %4216 = vmatprep.subr.mxu0 0.0
    %4217 = vmatpush2.msra.mxu0 0.0
    %4218 = vmatprep.subr.mxu0 0.0
    %4219 = vmatpush2.msra.mxu0 0.0
    %4220 = vmatprep.subr.mxu0 0.0
    %4221 = vmatpush2.msra.mxu0 0.0
    %4222 = vmatprep.subr.mxu0 0.0
    %4223 = vmatpush2.msra.mxu0 0.0
    %4224 = vmatprep.subr.mxu0 0.0
    %4225 = vmatpush2.msra.mxu0 0.0
    %4226 = vmatprep.subr.mxu0 0.0
    %4227 = vmatpush2.msra.mxu0 0.0
    %4228 = vmatprep.subr.mxu0 0.0
    %4229 = vmatpush2.msra.mxu0 0.0
    %4230 = vmatprep.subr.mxu0 0.0
    %4231 = vmatpush2.msra.mxu0 0.0
    %4232 = vmatprep.subr.mxu0 0.0
    %4233 = vmatpush2.msra.mxu0 0.0
    %4234 = vmatprep.subr.mxu0 0.0
    %4235 = vmatpush2.msra.mxu0 0.0
    %4236 = vmatprep.subr.mxu0 0.0
    %4237 = vmatpush2.msra.mxu0 0.0
    %4238 = vmatprep.subr.mxu0 0.0
    %4239 = vmatpush2.msra.mxu0 0.0
    %4240 = vmatprep.subr.mxu0 0.0
    %4241 = vmatpush2.msra.mxu0 0.0
    %4242 = vmatprep.subr.mxu0 0.0
    %4243 = vmatpush2.msra.mxu0 0.0
    %4244 = vmatprep.mubr.f32.mxu0 0.0
    %4245 = vmatmul.mubr.f32.gmra.mxu0 %v4178
    %v4246 = vpop.f32.mrf.mxu0
    %v4247 = vadd.f32 0.0, %v4246
    %v4248 = vpop.f32.mrf.mxu0
    %4249 = vdwg.mxu0
    %v4250 = vadd.f32 %v4179, %v4247
    %v4251 = vxor.u32 %v4250, 2147483648
    %v4252 = vmul.f32 %v4251, 1.442695
    %v4253 = vpow.pop %v4252
    %v4254 = vadd.f32 %v4253, 1.0
    %v4255 = vrcp.pop %v4254
    %v4256 = vmul.f32 1.0, %v4255
    %v4257 = vld [vmem:[%s786 + $0x8] sm:$0xff]
    %4258 = vmatprep.subr.mxu0 0.0
    %4259 = vmatpush1.msra.mxu0 %v3913
    %4260 = vmatprep.subr.mxu0 0.0
    %4261 = vmatpush1.msra.mxu0 %v3912
    %4262 = vmatprep.subr.mxu0 0.0
    %4263 = vmatpush1.msra.mxu0 %v3911
    %4264 = vmatprep.subr.mxu0 0.0
    %4265 = vmatpush1.msra.mxu0 %v3910
    %4266 = vmatprep.subr.mxu0 0.0
    %4267 = vmatpush1.msra.mxu0 %v3909
    %4268 = vmatprep.subr.mxu0 0.0
    %4269 = vmatpush1.msra.mxu0 %v3908
    %4270 = vmatprep.subr.mxu0 0.0
    %4271 = vmatpush1.msra.mxu0 %v3907
    %4272 = vmatprep.subr.mxu0 0.0
    %4273 = vmatpush1.msra.mxu0 %v3906
    %4274 = vmatprep.subr.mxu0 0.0
    %4275 = vmatpush1.msra.mxu0 %v3905
    %4276 = vmatprep.subr.mxu0 0.0
    %4277 = vmatpush1.msra.mxu0 %v3904
    %4278 = vmatprep.subr.mxu0 0.0
    %4279 = vmatpush1.msra.mxu0 %v3903
    %4280 = vmatprep.subr.mxu0 0.0
    %4281 = vmatpush1.msra.mxu0 %v3902
    %4282 = vmatprep.subr.mxu0 0.0
    %4283 = vmatpush1.msra.mxu0 %v3901
    %4284 = vmatprep.subr.mxu0 0.0
    %4285 = vmatpush1.msra.mxu0 %v3900
    %4286 = vmatprep.subr.mxu0 0.0
    %4287 = vmatpush1.msra.mxu0 %v3899
    %4288 = vmatprep.subr.mxu0 0.0
    %4289 = vmatpush1.msra.mxu0 %v3898
    %4290 = vmatprep.subr.mxu0 0.0
    %4291 = vmatpush2.msra.mxu0 0.0
    %4292 = vmatprep.subr.mxu0 0.0
    %4293 = vmatpush2.msra.mxu0 0.0
    %4294 = vmatprep.subr.mxu0 0.0
    %4295 = vmatpush2.msra.mxu0 0.0
    %4296 = vmatprep.subr.mxu0 0.0
    %4297 = vmatpush2.msra.mxu0 0.0
    %4298 = vmatprep.subr.mxu0 0.0
    %4299 = vmatpush2.msra.mxu0 0.0
    %4300 = vmatprep.subr.mxu0 0.0
    %4301 = vmatpush2.msra.mxu0 0.0
    %4302 = vmatprep.subr.mxu0 0.0
    %4303 = vmatpush2.msra.mxu0 0.0
    %4304 = vmatprep.subr.mxu0 0.0
    %4305 = vmatpush2.msra.mxu0 0.0
    %4306 = vmatprep.subr.mxu0 0.0
    %4307 = vmatpush2.msra.mxu0 0.0
    %4308 = vmatprep.subr.mxu0 0.0
    %4309 = vmatpush2.msra.mxu0 0.0
    %4310 = vmatprep.subr.mxu0 0.0
    %4311 = vmatpush2.msra.mxu0 0.0
    %4312 = vmatprep.subr.mxu0 0.0
    %4313 = vmatpush2.msra.mxu0 0.0
    %4314 = vmatprep.subr.mxu0 0.0
    %4315 = vmatpush2.msra.mxu0 0.0
    %4316 = vmatprep.subr.mxu0 0.0
    %4317 = vmatpush2.msra.mxu0 0.0
    %4318 = vmatprep.subr.mxu0 0.0
    %4319 = vmatpush2.msra.mxu0 0.0
    %4320 = vmatprep.subr.mxu0 0.0
    %4321 = vmatpush2.msra.mxu0 0.0
    %4322 = vmatprep.mubr.f32.mxu0 0.0
    %4323 = vmatmul.mubr.f32.gmra.mxu0 %v4178
    %v4324 = vpop.f32.mrf.mxu0
    %v4325 = vadd.f32 0.0, %v4324
    %v4326 = vpop.f32.mrf.mxu0
    %4327 = vdwg.mxu0
    %v4328 = vadd.f32 %v4257, %v4325
    %v4329 = vxor.u32 %v4328, 2147483648
    %v4330 = vmul.f32 %v4329, 1.442695
    %v4331 = vpow.pop %v4330
    %v4332 = vadd.f32 %v4331, 1.0
    %v4333 = vrcp.pop %v4332
    %v4334 = vmul.f32 1.0, %v4333
    %v4335 = vld [vmem:[%s786 + $0x10] sm:$0xff]
    %4336 = vmatprep.subr.mxu0 0.0
    %4337 = vmatpush1.msra.mxu0 %v4007
    %4338 = vmatprep.subr.mxu0 0.0
    %4339 = vmatpush1.msra.mxu0 %v4006
    %4340 = vmatprep.subr.mxu0 0.0
    %4341 = vmatpush1.msra.mxu0 %v4005
    %4342 = vmatprep.subr.mxu0 0.0
    %4343 = vmatpush1.msra.mxu0 %v4004
    %4344 = vmatprep.subr.mxu0 0.0
    %4345 = vmatpush1.msra.mxu0 %v4003
    %4346 = vmatprep.subr.mxu0 0.0
    %4347 = vmatpush1.msra.mxu0 %v4002
    %4348 = vmatprep.subr.mxu0 0.0
    %4349 = vmatpush1.msra.mxu0 %v4001
    %4350 = vmatprep.subr.mxu0 0.0
    %4351 = vmatpush1.msra.mxu0 %v4000
    %4352 = vmatprep.subr.mxu0 0.0
    %4353 = vmatpush1.msra.mxu0 %v3999
    %4354 = vmatprep.subr.mxu0 0.0
    %4355 = vmatpush1.msra.mxu0 %v3998
    %4356 = vmatprep.subr.mxu0 0.0
    %4357 = vmatpush1.msra.mxu0 %v3997
    %4358 = vmatprep.subr.mxu0 0.0
    %4359 = vmatpush1.msra.mxu0 %v3996
    %4360 = vmatprep.subr.mxu0 0.0
    %4361 = vmatpush1.msra.mxu0 %v3995
    %4362 = vmatprep.subr.mxu0 0.0
    %4363 = vmatpush1.msra.mxu0 %v3994
    %4364 = vmatprep.subr.mxu0 0.0
    %4365 = vmatpush1.msra.mxu0 %v3993
    %4366 = vmatprep.subr.mxu0 0.0
    %4367 = vmatpush1.msra.mxu0 %v3992
    %4368 = vmatprep.subr.mxu0 0.0
    %4369 = vmatpush2.msra.mxu0 0.0
    %4370 = vmatprep.subr.mxu0 0.0
    %4371 = vmatpush2.msra.mxu0 0.0
    %4372 = vmatprep.subr.mxu0 0.0
    %4373 = vmatpush2.msra.mxu0 0.0
    %4374 = vmatprep.subr.mxu0 0.0
    %4375 = vmatpush2.msra.mxu0 0.0
    %4376 = vmatprep.subr.mxu0 0.0
    %4377 = vmatpush2.msra.mxu0 0.0
    %4378 = vmatprep.subr.mxu0 0.0
    %4379 = vmatpush2.msra.mxu0 0.0
    %4380 = vmatprep.subr.mxu0 0.0
    %4381 = vmatpush2.msra.mxu0 0.0
    %4382 = vmatprep.subr.mxu0 0.0
    %4383 = vmatpush2.msra.mxu0 0.0
    %4384 = vmatprep.subr.mxu0 0.0
    %4385 = vmatpush2.msra.mxu0 0.0
    %4386 = vmatprep.subr.mxu0 0.0
    %4387 = vmatpush2.msra.mxu0 0.0
    %4388 = vmatprep.subr.mxu0 0.0
    %4389 = vmatpush2.msra.mxu0 0.0
    %4390 = vmatprep.subr.mxu0 0.0
    %4391 = vmatpush2.msra.mxu0 0.0
    %4392 = vmatprep.subr.mxu0 0.0
    %4393 = vmatpush2.msra.mxu0 0.0
    %4394 = vmatprep.subr.mxu0 0.0
    %4395 = vmatpush2.msra.mxu0 0.0
    %4396 = vmatprep.subr.mxu0 0.0
    %4397 = vmatpush2.msra.mxu0 0.0
    %4398 = vmatprep.subr.mxu0 0.0
    %4399 = vmatpush2.msra.mxu0 0.0
    %4400 = vmatprep.mubr.f32.mxu0 0.0
    %4401 = vmatmul.mubr.f32.gmra.mxu0 %v4178
    %v4402 = vpop.f32.mrf.mxu0
    %v4403 = vadd.f32 0.0, %v4402
    %v4404 = vpop.f32.mrf.mxu0
    %4405 = vdwg.mxu0
    %v4406 = vadd.f32 %v4335, %v4403
    %v4407 = vtanh.pop %v4406
    %v4408 = vld [vmem:[%s786 + $0x18] sm:$0xff]
    %4409 = vmatprep.subr.mxu0 0.0
    %4410 = vmatpush1.msra.mxu0 %v4096
    %4411 = vmatprep.subr.mxu0 0.0
    %4412 = vmatpush1.msra.mxu0 %v4095
    %4413 = vmatprep.subr.mxu0 0.0
    %4414 = vmatpush1.msra.mxu0 %v4094
    %4415 = vmatprep.subr.mxu0 0.0
    %4416 = vmatpush1.msra.mxu0 %v4093
    %4417 = vmatprep.subr.mxu0 0.0
    %4418 = vmatpush1.msra.mxu0 %v4092
    %4419 = vmatprep.subr.mxu0 0.0
    %4420 = vmatpush1.msra.mxu0 %v4091
    %4421 = vmatprep.subr.mxu0 0.0
    %4422 = vmatpush1.msra.mxu0 %v4090
    %4423 = vmatprep.subr.mxu0 0.0
    %4424 = vmatpush1.msra.mxu0 %v4089
    %4425 = vmatprep.subr.mxu0 0.0
    %4426 = vmatpush1.msra.mxu0 %v4088
    %4427 = vmatprep.subr.mxu0 0.0
    %4428 = vmatpush1.msra.mxu0 %v4087
    %4429 = vmatprep.subr.mxu0 0.0
    %4430 = vmatpush1.msra.mxu0 %v4086
    %4431 = vmatprep.subr.mxu0 0.0
    %4432 = vmatpush1.msra.mxu0 %v4085
    %4433 = vmatprep.subr.mxu0 0.0
    %4434 = vmatpush1.msra.mxu0 %v4084
    %4435 = vmatprep.subr.mxu0 0.0
    %4436 = vmatpush1.msra.mxu0 %v4083
    %4437 = vmatprep.subr.mxu0 0.0
    %4438 = vmatpush1.msra.mxu0 %v4082
    %4439 = vmatprep.subr.mxu0 0.0
    %4440 = vmatpush1.msra.mxu0 %v4081
    %4441 = vmatprep.subr.mxu0 0.0
    %4442 = vmatpush2.msra.mxu0 0.0
    %4443 = vmatprep.subr.mxu0 0.0
    %4444 = vmatpush2.msra.mxu0 0.0
    %4445 = vmatprep.subr.mxu0 0.0
    %4446 = vmatpush2.msra.mxu0 0.0
    %4447 = vmatprep.subr.mxu0 0.0
    %4448 = vmatpush2.msra.mxu0 0.0
    %4449 = vmatprep.subr.mxu0 0.0
    %4450 = vmatpush2.msra.mxu0 0.0
    %4451 = vmatprep.subr.mxu0 0.0
    %4452 = vmatpush2.msra.mxu0 0.0
    %4453 = vmatprep.subr.mxu0 0.0
    %4454 = vmatpush2.msra.mxu0 0.0
    %4455 = vmatprep.subr.mxu0 0.0
    %4456 = vmatpush2.msra.mxu0 0.0
    %4457 = vmatprep.subr.mxu0 0.0
    %4458 = vmatpush2.msra.mxu0 0.0
    %4459 = vmatprep.subr.mxu0 0.0
    %4460 = vmatpush2.msra.mxu0 0.0
    %4461 = vmatprep.subr.mxu0 0.0
    %4462 = vmatpush2.msra.mxu0 0.0
    %4463 = vmatprep.subr.mxu0 0.0
    %4464 = vmatpush2.msra.mxu0 0.0
    %4465 = vmatprep.subr.mxu0 0.0
    %4466 = vmatpush2.msra.mxu0 0.0
    %4467 = vmatprep.subr.mxu0 0.0
    %4468 = vmatpush2.msra.mxu0 0.0
    %4469 = vmatprep.subr.mxu0 0.0
    %4470 = vmatpush2.msra.mxu0 0.0
    %4471 = vmatprep.subr.mxu0 0.0
    %4472 = vmatpush2.msra.mxu0 0.0
    %4473 = vmatprep.mubr.f32.mxu0 0.0
    %4474 = vmatmul.mubr.f32.gmra.mxu0 %v4178
    %v4475 = vpop.f32.mrf.mxu0
    %v4476 = vadd.f32 0.0, %v4475
    %v4477 = vpop.f32.mrf.mxu0
    %4478 = vdwg.mxu0
    %v4479 = vadd.f32 %v4408, %v4476
    %v4480 = vxor.u32 %v4479, 2147483648
    %v4481 = vmul.f32 %v4480, 1.442695
    %v4482 = vpow.pop %v4481
    %v4483 = vadd.f32 %v4482, 1.0
    %v4484 = vrcp.pop %v4483
    %v4485 = vmul.f32 1.0, %v4484
    %v4486 = vmul.f32 %v4334, %v4176
    %v4487 = vmul.f32 %v4256, %v4407
    %v4488 = vadd.f32 %v4486, %v4487
    %v4489 = vtanh.pop %v4488
    %v4490 = vmul.f32 %v4485, %v4489
    %v4491 = vld [vmem:[%s1167] sm:$0xff]
    %4492 = vmatprep.subr.mxu0 0.0
    %4493 = vmatpush1.msra.mxu0 %v3819
    %4494 = vmatprep.subr.mxu0 0.0
    %4495 = vmatpush1.msra.mxu0 %v3818
    %4496 = vmatprep.subr.mxu0 0.0
    %4497 = vmatpush1.msra.mxu0 %v3817
    %4498 = vmatprep.subr.mxu0 0.0
    %4499 = vmatpush1.msra.mxu0 %v3816
    %4500 = vmatprep.subr.mxu0 0.0
    %4501 = vmatpush1.msra.mxu0 %v3815
    %4502 = vmatprep.subr.mxu0 0.0
    %4503 = vmatpush1.msra.mxu0 %v3814
    %4504 = vmatprep.subr.mxu0 0.0
    %4505 = vmatpush1.msra.mxu0 %v3813
    %4506 = vmatprep.subr.mxu0 0.0
    %4507 = vmatpush1.msra.mxu0 %v3812
    %4508 = vmatprep.subr.mxu0 0.0
    %4509 = vmatpush1.msra.mxu0 %v3811
    %4510 = vmatprep.subr.mxu0 0.0
    %4511 = vmatpush1.msra.mxu0 %v3810
    %4512 = vmatprep.subr.mxu0 0.0
    %4513 = vmatpush1.msra.mxu0 %v3809
    %4514 = vmatprep.subr.mxu0 0.0
    %4515 = vmatpush1.msra.mxu0 %v3808
    %4516 = vmatprep.subr.mxu0 0.0
    %4517 = vmatpush1.msra.mxu0 %v3807
    %4518 = vmatprep.subr.mxu0 0.0
    %4519 = vmatpush1.msra.mxu0 %v3806
    %4520 = vmatprep.subr.mxu0 0.0
    %4521 = vmatpush1.msra.mxu0 %v3805
    %4522 = vmatprep.subr.mxu0 0.0
    %4523 = vmatpush1.msra.mxu0 %v3804
    %4524 = vmatprep.subr.mxu0 0.0
    %4525 = vmatpush2.msra.mxu0 0.0
    %4526 = vmatprep.subr.mxu0 0.0
    %4527 = vmatpush2.msra.mxu0 0.0
    %4528 = vmatprep.subr.mxu0 0.0
    %4529 = vmatpush2.msra.mxu0 0.0
    %4530 = vmatprep.subr.mxu0 0.0
    %4531 = vmatpush2.msra.mxu0 0.0
    %4532 = vmatprep.subr.mxu0 0.0
    %4533 = vmatpush2.msra.mxu0 0.0
    %4534 = vmatprep.subr.mxu0 0.0
    %4535 = vmatpush2.msra.mxu0 0.0
    %4536 = vmatprep.subr.mxu0 0.0
    %4537 = vmatpush2.msra.mxu0 0.0
    %4538 = vmatprep.subr.mxu0 0.0
    %4539 = vmatpush2.msra.mxu0 0.0
    %4540 = vmatprep.subr.mxu0 0.0
    %4541 = vmatpush2.msra.mxu0 0.0
    %4542 = vmatprep.subr.mxu0 0.0
    %4543 = vmatpush2.msra.mxu0 0.0
    %4544 = vmatprep.subr.mxu0 0.0
    %4545 = vmatpush2.msra.mxu0 0.0
    %4546 = vmatprep.subr.mxu0 0.0
    %4547 = vmatpush2.msra.mxu0 0.0
    %4548 = vmatprep.subr.mxu0 0.0
    %4549 = vmatpush2.msra.mxu0 0.0
    %4550 = vmatprep.subr.mxu0 0.0
    %4551 = vmatpush2.msra.mxu0 0.0
    %4552 = vmatprep.subr.mxu0 0.0
    %4553 = vmatpush2.msra.mxu0 0.0
    %4554 = vmatprep.subr.mxu0 0.0
    %4555 = vmatpush2.msra.mxu0 0.0
    %4556 = vmatprep.mubr.f32.mxu0 0.0
    %4557 = vmatmul.mubr.f32.gmra.mxu0 %v4490
    %v4558 = vpop.f32.mrf.mxu0
    %v4559 = vadd.f32 0.0, %v4558
    %v4560 = vpop.f32.mrf.mxu0
    %4561 = vdwg.mxu0
    %v4562 = vadd.f32 %v4491, %v4559
    %v4563 = vxor.u32 %v4562, 2147483648
    %v4564 = vmul.f32 %v4563, 1.442695
    %v4565 = vpow.pop %v4564
    %v4566 = vadd.f32 %v4565, 1.0
    %v4567 = vrcp.pop %v4566
    %v4568 = vmul.f32 1.0, %v4567
    %v4569 = vld [vmem:[%s1167 + $0x8] sm:$0xff]
    %4570 = vmatprep.subr.mxu0 0.0
    %4571 = vmatpush1.msra.mxu0 %v3913
    %4572 = vmatprep.subr.mxu0 0.0
    %4573 = vmatpush1.msra.mxu0 %v3912
    %4574 = vmatprep.subr.mxu0 0.0
    %4575 = vmatpush1.msra.mxu0 %v3911
    %4576 = vmatprep.subr.mxu0 0.0
    %4577 = vmatpush1.msra.mxu0 %v3910
    %4578 = vmatprep.subr.mxu0 0.0
    %4579 = vmatpush1.msra.mxu0 %v3909
    %4580 = vmatprep.subr.mxu0 0.0
    %4581 = vmatpush1.msra.mxu0 %v3908
    %4582 = vmatprep.subr.mxu0 0.0
    %4583 = vmatpush1.msra.mxu0 %v3907
    %4584 = vmatprep.subr.mxu0 0.0
    %4585 = vmatpush1.msra.mxu0 %v3906
    %4586 = vmatprep.subr.mxu0 0.0
    %4587 = vmatpush1.msra.mxu0 %v3905
    %4588 = vmatprep.subr.mxu0 0.0
    %4589 = vmatpush1.msra.mxu0 %v3904
    %4590 = vmatprep.subr.mxu0 0.0
    %4591 = vmatpush1.msra.mxu0 %v3903
    %4592 = vmatprep.subr.mxu0 0.0
    %4593 = vmatpush1.msra.mxu0 %v3902
    %4594 = vmatprep.subr.mxu0 0.0
    %4595 = vmatpush1.msra.mxu0 %v3901
    %4596 = vmatprep.subr.mxu0 0.0
    %4597 = vmatpush1.msra.mxu0 %v3900
    %4598 = vmatprep.subr.mxu0 0.0
    %4599 = vmatpush1.msra.mxu0 %v3899
    %4600 = vmatprep.subr.mxu0 0.0
    %4601 = vmatpush1.msra.mxu0 %v3898
    %4602 = vmatprep.subr.mxu0 0.0
    %4603 = vmatpush2.msra.mxu0 0.0
    %4604 = vmatprep.subr.mxu0 0.0
    %4605 = vmatpush2.msra.mxu0 0.0
    %4606 = vmatprep.subr.mxu0 0.0
    %4607 = vmatpush2.msra.mxu0 0.0
    %4608 = vmatprep.subr.mxu0 0.0
    %4609 = vmatpush2.msra.mxu0 0.0
    %4610 = vmatprep.subr.mxu0 0.0
    %4611 = vmatpush2.msra.mxu0 0.0
    %4612 = vmatprep.subr.mxu0 0.0
    %4613 = vmatpush2.msra.mxu0 0.0
    %4614 = vmatprep.subr.mxu0 0.0
    %4615 = vmatpush2.msra.mxu0 0.0
    %4616 = vmatprep.subr.mxu0 0.0
    %4617 = vmatpush2.msra.mxu0 0.0
    %4618 = vmatprep.subr.mxu0 0.0
    %4619 = vmatpush2.msra.mxu0 0.0
    %4620 = vmatprep.subr.mxu0 0.0
    %4621 = vmatpush2.msra.mxu0 0.0
    %4622 = vmatprep.subr.mxu0 0.0
    %4623 = vmatpush2.msra.mxu0 0.0
    %4624 = vmatprep.subr.mxu0 0.0
    %4625 = vmatpush2.msra.mxu0 0.0
    %4626 = vmatprep.subr.mxu0 0.0
    %4627 = vmatpush2.msra.mxu0 0.0
    %4628 = vmatprep.subr.mxu0 0.0
    %4629 = vmatpush2.msra.mxu0 0.0
    %4630 = vmatprep.subr.mxu0 0.0
    %4631 = vmatpush2.msra.mxu0 0.0
    %4632 = vmatprep.subr.mxu0 0.0
    %4633 = vmatpush2.msra.mxu0 0.0
    %4634 = vmatprep.mubr.f32.mxu0 0.0
    %4635 = vmatmul.mubr.f32.gmra.mxu0 %v4490
    %v4636 = vpop.f32.mrf.mxu0
    %v4637 = vadd.f32 0.0, %v4636
    %v4638 = vpop.f32.mrf.mxu0
    %4639 = vdwg.mxu0
    %v4640 = vadd.f32 %v4569, %v4637
    %v4641 = vxor.u32 %v4640, 2147483648
    %v4642 = vmul.f32 %v4641, 1.442695
    %v4643 = vpow.pop %v4642
    %v4644 = vadd.f32 %v4643, 1.0
    %v4645 = vrcp.pop %v4644
    %v4646 = vmul.f32 1.0, %v4645
    %v4647 = vld [vmem:[%s1167 + $0x10] sm:$0xff]
    %4648 = vmatprep.subr.mxu0 0.0
    %4649 = vmatpush1.msra.mxu0 %v4007
    %4650 = vmatprep.subr.mxu0 0.0
    %4651 = vmatpush1.msra.mxu0 %v4006
    %4652 = vmatprep.subr.mxu0 0.0
    %4653 = vmatpush1.msra.mxu0 %v4005
    %4654 = vmatprep.subr.mxu0 0.0
    %4655 = vmatpush1.msra.mxu0 %v4004
    %4656 = vmatprep.subr.mxu0 0.0
    %4657 = vmatpush1.msra.mxu0 %v4003
    %4658 = vmatprep.subr.mxu0 0.0
    %4659 = vmatpush1.msra.mxu0 %v4002
    %4660 = vmatprep.subr.mxu0 0.0
    %4661 = vmatpush1.msra.mxu0 %v4001
    %4662 = vmatprep.subr.mxu0 0.0
    %4663 = vmatpush1.msra.mxu0 %v4000
    %4664 = vmatprep.subr.mxu0 0.0
    %4665 = vmatpush1.msra.mxu0 %v3999
    %4666 = vmatprep.subr.mxu0 0.0
    %4667 = vmatpush1.msra.mxu0 %v3998
    %4668 = vmatprep.subr.mxu0 0.0
    %4669 = vmatpush1.msra.mxu0 %v3997
    %4670 = vmatprep.subr.mxu0 0.0
    %4671 = vmatpush1.msra.mxu0 %v3996
    %4672 = vmatprep.subr.mxu0 0.0
    %4673 = vmatpush1.msra.mxu0 %v3995
    %4674 = vmatprep.subr.mxu0 0.0
    %4675 = vmatpush1.msra.mxu0 %v3994
    %4676 = vmatprep.subr.mxu0 0.0
    %4677 = vmatpush1.msra.mxu0 %v3993
    %4678 = vmatprep.subr.mxu0 0.0
    %4679 = vmatpush1.msra.mxu0 %v3992
    %4680 = vmatprep.subr.mxu0 0.0
    %4681 = vmatpush2.msra.mxu0 0.0
    %4682 = vmatprep.subr.mxu0 0.0
    %4683 = vmatpush2.msra.mxu0 0.0
    %4684 = vmatprep.subr.mxu0 0.0
    %4685 = vmatpush2.msra.mxu0 0.0
    %4686 = vmatprep.subr.mxu0 0.0
    %4687 = vmatpush2.msra.mxu0 0.0
    %4688 = vmatprep.subr.mxu0 0.0
    %4689 = vmatpush2.msra.mxu0 0.0
    %4690 = vmatprep.subr.mxu0 0.0
    %4691 = vmatpush2.msra.mxu0 0.0
    %4692 = vmatprep.subr.mxu0 0.0
    %4693 = vmatpush2.msra.mxu0 0.0
    %4694 = vmatprep.subr.mxu0 0.0
    %4695 = vmatpush2.msra.mxu0 0.0
    %4696 = vmatprep.subr.mxu0 0.0
    %4697 = vmatpush2.msra.mxu0 0.0
    %4698 = vmatprep.subr.mxu0 0.0
    %4699 = vmatpush2.msra.mxu0 0.0
    %4700 = vmatprep.subr.mxu0 0.0
    %4701 = vmatpush2.msra.mxu0 0.0
    %4702 = vmatprep.subr.mxu0 0.0
    %4703 = vmatpush2.msra.mxu0 0.0
    %4704 = vmatprep.subr.mxu0 0.0
    %4705 = vmatpush2.msra.mxu0 0.0
    %4706 = vmatprep.subr.mxu0 0.0
    %4707 = vmatpush2.msra.mxu0 0.0
    %4708 = vmatprep.subr.mxu0 0.0
    %4709 = vmatpush2.msra.mxu0 0.0
    %4710 = vmatprep.subr.mxu0 0.0
    %4711 = vmatpush2.msra.mxu0 0.0
    %4712 = vmatprep.mubr.f32.mxu0 0.0
    %4713 = vmatmul.mubr.f32.gmra.mxu0 %v4490
    %v4714 = vpop.f32.mrf.mxu0
    %v4715 = vadd.f32 0.0, %v4714
    %v4716 = vpop.f32.mrf.mxu0
    %4717 = vdwg.mxu0
    %v4718 = vadd.f32 %v4647, %v4715
    %v4719 = vtanh.pop %v4718
    %v4720 = vld [vmem:[%s1167 + $0x18] sm:$0xff]
    %4721 = vmatprep.subr.mxu0 0.0
    %4722 = vmatpush1.msra.mxu0 %v4096
    %4723 = vmatprep.subr.mxu0 0.0
    %4724 = vmatpush1.msra.mxu0 %v4095
    %4725 = vmatprep.subr.mxu0 0.0
    %4726 = vmatpush1.msra.mxu0 %v4094
    %4727 = vmatprep.subr.mxu0 0.0
    %4728 = vmatpush1.msra.mxu0 %v4093
    %4729 = vmatprep.subr.mxu0 0.0
    %4730 = vmatpush1.msra.mxu0 %v4092
    %4731 = vmatprep.subr.mxu0 0.0
    %4732 = vmatpush1.msra.mxu0 %v4091
    %4733 = vmatprep.subr.mxu0 0.0
    %4734 = vmatpush1.msra.mxu0 %v4090
    %4735 = vmatprep.subr.mxu0 0.0
    %4736 = vmatpush1.msra.mxu0 %v4089
    %4737 = vmatprep.subr.mxu0 0.0
    %4738 = vmatpush1.msra.mxu0 %v4088
    %4739 = vmatprep.subr.mxu0 0.0
    %4740 = vmatpush1.msra.mxu0 %v4087
    %4741 = vmatprep.subr.mxu0 0.0
    %4742 = vmatpush1.msra.mxu0 %v4086
    %4743 = vmatprep.subr.mxu0 0.0
    %4744 = vmatpush1.msra.mxu0 %v4085
    %4745 = vmatprep.subr.mxu0 0.0
    %4746 = vmatpush1.msra.mxu0 %v4084
    %4747 = vmatprep.subr.mxu0 0.0
    %4748 = vmatpush1.msra.mxu0 %v4083
    %4749 = vmatprep.subr.mxu0 0.0
    %4750 = vmatpush1.msra.mxu0 %v4082
    %4751 = vmatprep.subr.mxu0 0.0
    %4752 = vmatpush1.msra.mxu0 %v4081
    %4753 = vmatprep.subr.mxu0 0.0
    %4754 = vmatpush2.msra.mxu0 0.0
    %4755 = vmatprep.subr.mxu0 0.0
    %4756 = vmatpush2.msra.mxu0 0.0
    %4757 = vmatprep.subr.mxu0 0.0
    %4758 = vmatpush2.msra.mxu0 0.0
    %4759 = vmatprep.subr.mxu0 0.0
    %4760 = vmatpush2.msra.mxu0 0.0
    %4761 = vmatprep.subr.mxu0 0.0
    %4762 = vmatpush2.msra.mxu0 0.0
    %4763 = vmatprep.subr.mxu0 0.0
    %4764 = vmatpush2.msra.mxu0 0.0
    %4765 = vmatprep.subr.mxu0 0.0
    %4766 = vmatpush2.msra.mxu0 0.0
    %4767 = vmatprep.subr.mxu0 0.0
    %4768 = vmatpush2.msra.mxu0 0.0
    %4769 = vmatprep.subr.mxu0 0.0
    %4770 = vmatpush2.msra.mxu0 0.0
    %4771 = vmatprep.subr.mxu0 0.0
    %4772 = vmatpush2.msra.mxu0 0.0
    %4773 = vmatprep.subr.mxu0 0.0
    %4774 = vmatpush2.msra.mxu0 0.0
    %4775 = vmatprep.subr.mxu0 0.0
    %4776 = vmatpush2.msra.mxu0 0.0
    %4777 = vmatprep.subr.mxu0 0.0
    %4778 = vmatpush2.msra.mxu0 0.0
    %4779 = vmatprep.subr.mxu0 0.0
    %4780 = vmatpush2.msra.mxu0 0.0
    %4781 = vmatprep.subr.mxu0 0.0
    %4782 = vmatpush2.msra.mxu0 0.0
    %4783 = vmatprep.subr.mxu0 0.0
    %4784 = vmatpush2.msra.mxu0 0.0
    %4785 = vmatprep.mubr.f32.mxu0 0.0
    %4786 = vmatmul.mubr.f32.gmra.mxu0 %v4490
    %v4787 = vpop.f32.mrf.mxu0
    %v4788 = vadd.f32 0.0, %v4787
    %v4789 = vpop.f32.mrf.mxu0
    %4790 = vdwg.mxu0
    %v4791 = vadd.f32 %v4720, %v4788
    %v4792 = vxor.u32 %v4791, 2147483648
    %v4793 = vmul.f32 %v4792, 1.442695
    %v4794 = vpow.pop %v4793
    %v4795 = vadd.f32 %v4794, 1.0
    %v4796 = vrcp.pop %v4795
    %v4797 = vmul.f32 1.0, %v4796
    %v4798 = vmul.f32 %v4646, %v4488
    %v4799 = vmul.f32 %v4568, %v4719
    %v4800 = vadd.f32 %v4798, %v4799
    %v4801 = vtanh.pop %v4800
    %v4802 = vmul.f32 %v4797, %v4801
    %v4803 = vld [vmem:[%s1548] sm:$0xff]
    %4804 = vmatprep.subr.mxu0 0.0
    %4805 = vmatpush1.msra.mxu0 %v3819
    %4806 = vmatprep.subr.mxu0 0.0
    %4807 = vmatpush1.msra.mxu0 %v3818
    %4808 = vmatprep.subr.mxu0 0.0
    %4809 = vmatpush1.msra.mxu0 %v3817
    %4810 = vmatprep.subr.mxu0 0.0
    %4811 = vmatpush1.msra.mxu0 %v3816
    %4812 = vmatprep.subr.mxu0 0.0
    %4813 = vmatpush1.msra.mxu0 %v3815
    %4814 = vmatprep.subr.mxu0 0.0
    %4815 = vmatpush1.msra.mxu0 %v3814
    %4816 = vmatprep.subr.mxu0 0.0
    %4817 = vmatpush1.msra.mxu0 %v3813
    %4818 = vmatprep.subr.mxu0 0.0
    %4819 = vmatpush1.msra.mxu0 %v3812
    %4820 = vmatprep.subr.mxu0 0.0
    %4821 = vmatpush1.msra.mxu0 %v3811
    %4822 = vmatprep.subr.mxu0 0.0
    %4823 = vmatpush1.msra.mxu0 %v3810
    %4824 = vmatprep.subr.mxu0 0.0
    %4825 = vmatpush1.msra.mxu0 %v3809
    %4826 = vmatprep.subr.mxu0 0.0
    %4827 = vmatpush1.msra.mxu0 %v3808
    %4828 = vmatprep.subr.mxu0 0.0
    %4829 = vmatpush1.msra.mxu0 %v3807
    %4830 = vmatprep.subr.mxu0 0.0
    %4831 = vmatpush1.msra.mxu0 %v3806
    %4832 = vmatprep.subr.mxu0 0.0
    %4833 = vmatpush1.msra.mxu0 %v3805
    %4834 = vmatprep.subr.mxu0 0.0
    %4835 = vmatpush1.msra.mxu0 %v3804
    %4836 = vmatprep.subr.mxu0 0.0
    %4837 = vmatpush2.msra.mxu0 0.0
    %4838 = vmatprep.subr.mxu0 0.0
    %4839 = vmatpush2.msra.mxu0 0.0
    %4840 = vmatprep.subr.mxu0 0.0
    %4841 = vmatpush2.msra.mxu0 0.0
    %4842 = vmatprep.subr.mxu0 0.0
    %4843 = vmatpush2.msra.mxu0 0.0
    %4844 = vmatprep.subr.mxu0 0.0
    %4845 = vmatpush2.msra.mxu0 0.0
    %4846 = vmatprep.subr.mxu0 0.0
    %4847 = vmatpush2.msra.mxu0 0.0
    %4848 = vmatprep.subr.mxu0 0.0
    %4849 = vmatpush2.msra.mxu0 0.0
    %4850 = vmatprep.subr.mxu0 0.0
    %4851 = vmatpush2.msra.mxu0 0.0
    %4852 = vmatprep.subr.mxu0 0.0
    %4853 = vmatpush2.msra.mxu0 0.0
    %4854 = vmatprep.subr.mxu0 0.0
    %4855 = vmatpush2.msra.mxu0 0.0
    %4856 = vmatprep.subr.mxu0 0.0
    %4857 = vmatpush2.msra.mxu0 0.0
    %4858 = vmatprep.subr.mxu0 0.0
    %4859 = vmatpush2.msra.mxu0 0.0
    %4860 = vmatprep.subr.mxu0 0.0
    %4861 = vmatpush2.msra.mxu0 0.0
    %4862 = vmatprep.subr.mxu0 0.0
    %4863 = vmatpush2.msra.mxu0 0.0
    %4864 = vmatprep.subr.mxu0 0.0
    %4865 = vmatpush2.msra.mxu0 0.0
    %4866 = vmatprep.subr.mxu0 0.0
    %4867 = vmatpush2.msra.mxu0 0.0
    %4868 = vmatprep.mubr.f32.mxu0 0.0
    %4869 = vmatmul.mubr.f32.gmra.mxu0 %v4802
    %v4870 = vpop.f32.mrf.mxu0
    %v4871 = vadd.f32 0.0, %v4870
    %v4872 = vpop.f32.mrf.mxu0
    %4873 = vdwg.mxu0
    %v4874 = vadd.f32 %v4803, %v4871
    %v4875 = vxor.u32 %v4874, 2147483648
    %v4876 = vmul.f32 %v4875, 1.442695
    %v4877 = vpow.pop %v4876
    %v4878 = vadd.f32 %v4877, 1.0
    %v4879 = vrcp.pop %v4878
    %v4880 = vmul.f32 1.0, %v4879
    %v4881 = vld [vmem:[%s1548 + $0x8] sm:$0xff]
    %4882 = vmatprep.subr.mxu0 0.0
    %4883 = vmatpush1.msra.mxu0 %v3913
    %4884 = vmatprep.subr.mxu0 0.0
    %4885 = vmatpush1.msra.mxu0 %v3912
    %4886 = vmatprep.subr.mxu0 0.0
    %4887 = vmatpush1.msra.mxu0 %v3911
    %4888 = vmatprep.subr.mxu0 0.0
    %4889 = vmatpush1.msra.mxu0 %v3910
    %4890 = vmatprep.subr.mxu0 0.0
    %4891 = vmatpush1.msra.mxu0 %v3909
    %4892 = vmatprep.subr.mxu0 0.0
    %4893 = vmatpush1.msra.mxu0 %v3908
    %4894 = vmatprep.subr.mxu0 0.0
    %4895 = vmatpush1.msra.mxu0 %v3907
    %4896 = vmatprep.subr.mxu0 0.0
    %4897 = vmatpush1.msra.mxu0 %v3906
    %4898 = vmatprep.subr.mxu0 0.0
    %4899 = vmatpush1.msra.mxu0 %v3905
    %4900 = vmatprep.subr.mxu0 0.0
    %4901 = vmatpush1.msra.mxu0 %v3904
    %4902 = vmatprep.subr.mxu0 0.0
    %4903 = vmatpush1.msra.mxu0 %v3903
    %4904 = vmatprep.subr.mxu0 0.0
    %4905 = vmatpush1.msra.mxu0 %v3902
    %4906 = vmatprep.subr.mxu0 0.0
    %4907 = vmatpush1.msra.mxu0 %v3901
    %4908 = vmatprep.subr.mxu0 0.0
    %4909 = vmatpush1.msra.mxu0 %v3900
    %4910 = vmatprep.subr.mxu0 0.0
    %4911 = vmatpush1.msra.mxu0 %v3899
    %4912 = vmatprep.subr.mxu0 0.0
    %4913 = vmatpush1.msra.mxu0 %v3898
    %4914 = vmatprep.subr.mxu0 0.0
    %4915 = vmatpush2.msra.mxu0 0.0
    %4916 = vmatprep.subr.mxu0 0.0
    %4917 = vmatpush2.msra.mxu0 0.0
    %4918 = vmatprep.subr.mxu0 0.0
    %4919 = vmatpush2.msra.mxu0 0.0
    %4920 = vmatprep.subr.mxu0 0.0
    %4921 = vmatpush2.msra.mxu0 0.0
    %4922 = vmatprep.subr.mxu0 0.0
    %4923 = vmatpush2.msra.mxu0 0.0
    %4924 = vmatprep.subr.mxu0 0.0
    %4925 = vmatpush2.msra.mxu0 0.0
    %4926 = vmatprep.subr.mxu0 0.0
    %4927 = vmatpush2.msra.mxu0 0.0
    %4928 = vmatprep.subr.mxu0 0.0
    %4929 = vmatpush2.msra.mxu0 0.0
    %4930 = vmatprep.subr.mxu0 0.0
    %4931 = vmatpush2.msra.mxu0 0.0
    %4932 = vmatprep.subr.mxu0 0.0
    %4933 = vmatpush2.msra.mxu0 0.0
    %4934 = vmatprep.subr.mxu0 0.0
    %4935 = vmatpush2.msra.mxu0 0.0
    %4936 = vmatprep.subr.mxu0 0.0
    %4937 = vmatpush2.msra.mxu0 0.0
    %4938 = vmatprep.subr.mxu0 0.0
    %4939 = vmatpush2.msra.mxu0 0.0
    %4940 = vmatprep.subr.mxu0 0.0
    %4941 = vmatpush2.msra.mxu0 0.0
    %4942 = vmatprep.subr.mxu0 0.0
    %4943 = vmatpush2.msra.mxu0 0.0
    %4944 = vmatprep.subr.mxu0 0.0
    %4945 = vmatpush2.msra.mxu0 0.0
    %4946 = vmatprep.mubr.f32.mxu0 0.0
    %4947 = vmatmul.mubr.f32.gmra.mxu0 %v4802
    %v4948 = vpop.f32.mrf.mxu0
    %v4949 = vadd.f32 0.0, %v4948
    %v4950 = vpop.f32.mrf.mxu0
    %4951 = vdwg.mxu0
    %v4952 = vadd.f32 %v4881, %v4949
    %v4953 = vxor.u32 %v4952, 2147483648
    %v4954 = vmul.f32 %v4953, 1.442695
    %v4955 = vpow.pop %v4954
    %v4956 = vadd.f32 %v4955, 1.0
    %v4957 = vrcp.pop %v4956
    %v4958 = vmul.f32 1.0, %v4957
    %v4959 = vld [vmem:[%s1548 + $0x10] sm:$0xff]
    %4960 = vmatprep.subr.mxu0 0.0
    %4961 = vmatpush1.msra.mxu0 %v4007
    %4962 = vmatprep.subr.mxu0 0.0
    %4963 = vmatpush1.msra.mxu0 %v4006
    %4964 = vmatprep.subr.mxu0 0.0
    %4965 = vmatpush1.msra.mxu0 %v4005
    %4966 = vmatprep.subr.mxu0 0.0
    %4967 = vmatpush1.msra.mxu0 %v4004
    %4968 = vmatprep.subr.mxu0 0.0
    %4969 = vmatpush1.msra.mxu0 %v4003
    %4970 = vmatprep.subr.mxu0 0.0
    %4971 = vmatpush1.msra.mxu0 %v4002
    %4972 = vmatprep.subr.mxu0 0.0
    %4973 = vmatpush1.msra.mxu0 %v4001
    %4974 = vmatprep.subr.mxu0 0.0
    %4975 = vmatpush1.msra.mxu0 %v4000
    %4976 = vmatprep.subr.mxu0 0.0
    %4977 = vmatpush1.msra.mxu0 %v3999
    %4978 = vmatprep.subr.mxu0 0.0
    %4979 = vmatpush1.msra.mxu0 %v3998
    %4980 = vmatprep.subr.mxu0 0.0
    %4981 = vmatpush1.msra.mxu0 %v3997
    %4982 = vmatprep.subr.mxu0 0.0
    %4983 = vmatpush1.msra.mxu0 %v3996
    %4984 = vmatprep.subr.mxu0 0.0
    %4985 = vmatpush1.msra.mxu0 %v3995
    %4986 = vmatprep.subr.mxu0 0.0
    %4987 = vmatpush1.msra.mxu0 %v3994
    %4988 = vmatprep.subr.mxu0 0.0
    %4989 = vmatpush1.msra.mxu0 %v3993
    %4990 = vmatprep.subr.mxu0 0.0
    %4991 = vmatpush1.msra.mxu0 %v3992
    %4992 = vmatprep.subr.mxu0 0.0
    %4993 = vmatpush2.msra.mxu0 0.0
    %4994 = vmatprep.subr.mxu0 0.0
    %4995 = vmatpush2.msra.mxu0 0.0
    %4996 = vmatprep.subr.mxu0 0.0
    %4997 = vmatpush2.msra.mxu0 0.0
    %4998 = vmatprep.subr.mxu0 0.0
    %4999 = vmatpush2.msra.mxu0 0.0
    %5000 = vmatprep.subr.mxu0 0.0
    %5001 = vmatpush2.msra.mxu0 0.0
    %5002 = vmatprep.subr.mxu0 0.0
    %5003 = vmatpush2.msra.mxu0 0.0
    %5004 = vmatprep.subr.mxu0 0.0
    %5005 = vmatpush2.msra.mxu0 0.0
    %5006 = vmatprep.subr.mxu0 0.0
    %5007 = vmatpush2.msra.mxu0 0.0
    %5008 = vmatprep.subr.mxu0 0.0
    %5009 = vmatpush2.msra.mxu0 0.0
    %5010 = vmatprep.subr.mxu0 0.0
    %5011 = vmatpush2.msra.mxu0 0.0
    %5012 = vmatprep.subr.mxu0 0.0
    %5013 = vmatpush2.msra.mxu0 0.0
    %5014 = vmatprep.subr.mxu0 0.0
    %5015 = vmatpush2.msra.mxu0 0.0
    %5016 = vmatprep.subr.mxu0 0.0
    %5017 = vmatpush2.msra.mxu0 0.0
    %5018 = vmatprep.subr.mxu0 0.0
    %5019 = vmatpush2.msra.mxu0 0.0
    %5020 = vmatprep.subr.mxu0 0.0
    %5021 = vmatpush2.msra.mxu0 0.0
    %5022 = vmatprep.subr.mxu0 0.0
    %5023 = vmatpush2.msra.mxu0 0.0
    %5024 = vmatprep.mubr.f32.mxu0 0.0
    %5025 = vmatmul.mubr.f32.gmra.mxu0 %v4802
    %v5026 = vpop.f32.mrf.mxu0
    %v5027 = vadd.f32 0.0, %v5026
    %v5028 = vpop.f32.mrf.mxu0
    %5029 = vdwg.mxu0
    %v5030 = vadd.f32 %v4959, %v5027
    %v5031 = vtanh.pop %v5030
    %v5032 = vld [vmem:[%s1548 + $0x18] sm:$0xff]
    %5033 = vmatprep.subr.mxu0 0.0
    %5034 = vmatpush1.msra.mxu0 %v4096
    %5035 = vmatprep.subr.mxu0 0.0
    %5036 = vmatpush1.msra.mxu0 %v4095
    %5037 = vmatprep.subr.mxu0 0.0
    %5038 = vmatpush1.msra.mxu0 %v4094
    %5039 = vmatprep.subr.mxu0 0.0
    %5040 = vmatpush1.msra.mxu0 %v4093
    %5041 = vmatprep.subr.mxu0 0.0
    %5042 = vmatpush1.msra.mxu0 %v4092
    %5043 = vmatprep.subr.mxu0 0.0
    %5044 = vmatpush1.msra.mxu0 %v4091
    %5045 = vmatprep.subr.mxu0 0.0
    %5046 = vmatpush1.msra.mxu0 %v4090
    %5047 = vmatprep.subr.mxu0 0.0
    %5048 = vmatpush1.msra.mxu0 %v4089
    %5049 = vmatprep.subr.mxu0 0.0
    %5050 = vmatpush1.msra.mxu0 %v4088
    %5051 = vmatprep.subr.mxu0 0.0
    %5052 = vmatpush1.msra.mxu0 %v4087
    %5053 = vmatprep.subr.mxu0 0.0
    %5054 = vmatpush1.msra.mxu0 %v4086
    %5055 = vmatprep.subr.mxu0 0.0
    %5056 = vmatpush1.msra.mxu0 %v4085
    %5057 = vmatprep.subr.mxu0 0.0
    %5058 = vmatpush1.msra.mxu0 %v4084
    %5059 = vmatprep.subr.mxu0 0.0
    %5060 = vmatpush1.msra.mxu0 %v4083
    %5061 = vmatprep.subr.mxu0 0.0
    %5062 = vmatpush1.msra.mxu0 %v4082
    %5063 = vmatprep.subr.mxu0 0.0
    %5064 = vmatpush1.msra.mxu0 %v4081
    %5065 = vmatprep.subr.mxu0 0.0
    %5066 = vmatpush2.msra.mxu0 0.0
    %5067 = vmatprep.subr.mxu0 0.0
    %5068 = vmatpush2.msra.mxu0 0.0
    %5069 = vmatprep.subr.mxu0 0.0
    %5070 = vmatpush2.msra.mxu0 0.0
    %5071 = vmatprep.subr.mxu0 0.0
    %5072 = vmatpush2.msra.mxu0 0.0
    %5073 = vmatprep.subr.mxu0 0.0
    %5074 = vmatpush2.msra.mxu0 0.0
    %5075 = vmatprep.subr.mxu0 0.0
    %5076 = vmatpush2.msra.mxu0 0.0
    %5077 = vmatprep.subr.mxu0 0.0
    %5078 = vmatpush2.msra.mxu0 0.0
    %5079 = vmatprep.subr.mxu0 0.0
    %5080 = vmatpush2.msra.mxu0 0.0
    %5081 = vmatprep.subr.mxu0 0.0
    %5082 = vmatpush2.msra.mxu0 0.0
    %5083 = vmatprep.subr.mxu0 0.0
    %5084 = vmatpush2.msra.mxu0 0.0
    %5085 = vmatprep.subr.mxu0 0.0
    %5086 = vmatpush2.msra.mxu0 0.0
    %5087 = vmatprep.subr.mxu0 0.0
    %5088 = vmatpush2.msra.mxu0 0.0
    %5089 = vmatprep.subr.mxu0 0.0
    %5090 = vmatpush2.msra.mxu0 0.0
    %5091 = vmatprep.subr.mxu0 0.0
    %5092 = vmatpush2.msra.mxu0 0.0
    %5093 = vmatprep.subr.mxu0 0.0
    %5094 = vmatpush2.msra.mxu0 0.0
    %5095 = vmatprep.subr.mxu0 0.0
    %5096 = vmatpush2.msra.mxu0 0.0
    %5097 = vmatprep.mubr.f32.mxu0 0.0
    %5098 = vmatmul.mubr.f32.gmra.mxu0 %v4802
    %v5099 = vpop.f32.mrf.mxu0
    %v5100 = vadd.f32 0.0, %v5099
    %v5101 = vpop.f32.mrf.mxu0
    %5102 = vdwg.mxu0
    %v5103 = vadd.f32 %v5032, %v5100
    %v5104 = vxor.u32 %v5103, 2147483648
    %v5105 = vmul.f32 %v5104, 1.442695
    %v5106 = vpow.pop %v5105
    %v5107 = vadd.f32 %v5106, 1.0
    %v5108 = vrcp.pop %v5107
    %v5109 = vmul.f32 1.0, %v5108
    %v5110 = vmul.f32 %v4958, %v4800
    %v5111 = vmul.f32 %v4880, %v5031
    %v5112 = vadd.f32 %v5110, %v5111
    %v5113 = vtanh.pop %v5112
    %v5114 = vmul.f32 %v5109, %v5113
    %v5115 = vld [vmem:[%s1929] sm:$0xff]
    %5116 = vmatprep.subr.mxu0 0.0
    %5117 = vmatpush1.msra.mxu0 %v3819
    %5118 = vmatprep.subr.mxu0 0.0
    %5119 = vmatpush1.msra.mxu0 %v3818
    %5120 = vmatprep.subr.mxu0 0.0
    %5121 = vmatpush1.msra.mxu0 %v3817
    %5122 = vmatprep.subr.mxu0 0.0
    %5123 = vmatpush1.msra.mxu0 %v3816
    %5124 = vmatprep.subr.mxu0 0.0
    %5125 = vmatpush1.msra.mxu0 %v3815
    %5126 = vmatprep.subr.mxu0 0.0
    %5127 = vmatpush1.msra.mxu0 %v3814
    %5128 = vmatprep.subr.mxu0 0.0
    %5129 = vmatpush1.msra.mxu0 %v3813
    %5130 = vmatprep.subr.mxu0 0.0
    %5131 = vmatpush1.msra.mxu0 %v3812
    %5132 = vmatprep.subr.mxu0 0.0
    %5133 = vmatpush1.msra.mxu0 %v3811
    %5134 = vmatprep.subr.mxu0 0.0
    %5135 = vmatpush1.msra.mxu0 %v3810
    %5136 = vmatprep.subr.mxu0 0.0
    %5137 = vmatpush1.msra.mxu0 %v3809
    %5138 = vmatprep.subr.mxu0 0.0
    %5139 = vmatpush1.msra.mxu0 %v3808
    %5140 = vmatprep.subr.mxu0 0.0
    %5141 = vmatpush1.msra.mxu0 %v3807
    %5142 = vmatprep.subr.mxu0 0.0
    %5143 = vmatpush1.msra.mxu0 %v3806
    %5144 = vmatprep.subr.mxu0 0.0
    %5145 = vmatpush1.msra.mxu0 %v3805
    %5146 = vmatprep.subr.mxu0 0.0
    %5147 = vmatpush1.msra.mxu0 %v3804
    %5148 = vmatprep.subr.mxu0 0.0
    %5149 = vmatpush2.msra.mxu0 0.0
    %5150 = vmatprep.subr.mxu0 0.0
    %5151 = vmatpush2.msra.mxu0 0.0
    %5152 = vmatprep.subr.mxu0 0.0
    %5153 = vmatpush2.msra.mxu0 0.0
    %5154 = vmatprep.subr.mxu0 0.0
    %5155 = vmatpush2.msra.mxu0 0.0
    %5156 = vmatprep.subr.mxu0 0.0
    %5157 = vmatpush2.msra.mxu0 0.0
    %5158 = vmatprep.subr.mxu0 0.0
    %5159 = vmatpush2.msra.mxu0 0.0
    %5160 = vmatprep.subr.mxu0 0.0
    %5161 = vmatpush2.msra.mxu0 0.0
    %5162 = vmatprep.subr.mxu0 0.0
    %5163 = vmatpush2.msra.mxu0 0.0
    %5164 = vmatprep.subr.mxu0 0.0
    %5165 = vmatpush2.msra.mxu0 0.0
    %5166 = vmatprep.subr.mxu0 0.0
    %5167 = vmatpush2.msra.mxu0 0.0
    %5168 = vmatprep.subr.mxu0 0.0
    %5169 = vmatpush2.msra.mxu0 0.0
    %5170 = vmatprep.subr.mxu0 0.0
    %5171 = vmatpush2.msra.mxu0 0.0
    %5172 = vmatprep.subr.mxu0 0.0
    %5173 = vmatpush2.msra.mxu0 0.0
    %5174 = vmatprep.subr.mxu0 0.0
    %5175 = vmatpush2.msra.mxu0 0.0
    %5176 = vmatprep.subr.mxu0 0.0
    %5177 = vmatpush2.msra.mxu0 0.0
    %5178 = vmatprep.subr.mxu0 0.0
    %5179 = vmatpush2.msra.mxu0 0.0
    %5180 = vmatprep.mubr.f32.mxu0 0.0
    %5181 = vmatmul.mubr.f32.gmra.mxu0 %v5114
    %v5182 = vpop.f32.mrf.mxu0
    %v5183 = vadd.f32 0.0, %v5182
    %v5184 = vpop.f32.mrf.mxu0
    %5185 = vdwg.mxu0
    %v5186 = vadd.f32 %v5115, %v5183
    %v5187 = vxor.u32 %v5186, 2147483648
    %v5188 = vmul.f32 %v5187, 1.442695
    %v5189 = vpow.pop %v5188
    %v5190 = vadd.f32 %v5189, 1.0
    %v5191 = vrcp.pop %v5190
    %v5192 = vmul.f32 1.0, %v5191
    %v5193 = vld [vmem:[%s1929 + $0x8] sm:$0xff]
    %5194 = vmatprep.subr.mxu0 0.0
    %5195 = vmatpush1.msra.mxu0 %v3913
    %5196 = vmatprep.subr.mxu0 0.0
    %5197 = vmatpush1.msra.mxu0 %v3912
    %5198 = vmatprep.subr.mxu0 0.0
    %5199 = vmatpush1.msra.mxu0 %v3911
    %5200 = vmatprep.subr.mxu0 0.0
    %5201 = vmatpush1.msra.mxu0 %v3910
    %5202 = vmatprep.subr.mxu0 0.0
    %5203 = vmatpush1.msra.mxu0 %v3909
    %5204 = vmatprep.subr.mxu0 0.0
    %5205 = vmatpush1.msra.mxu0 %v3908
    %5206 = vmatprep.subr.mxu0 0.0
    %5207 = vmatpush1.msra.mxu0 %v3907
    %5208 = vmatprep.subr.mxu0 0.0
    %5209 = vmatpush1.msra.mxu0 %v3906
    %5210 = vmatprep.subr.mxu0 0.0
    %5211 = vmatpush1.msra.mxu0 %v3905
    %5212 = vmatprep.subr.mxu0 0.0
    %5213 = vmatpush1.msra.mxu0 %v3904
    %5214 = vmatprep.subr.mxu0 0.0
    %5215 = vmatpush1.msra.mxu0 %v3903
    %5216 = vmatprep.subr.mxu0 0.0
    %5217 = vmatpush1.msra.mxu0 %v3902
    %5218 = vmatprep.subr.mxu0 0.0
    %5219 = vmatpush1.msra.mxu0 %v3901
    %5220 = vmatprep.subr.mxu0 0.0
    %5221 = vmatpush1.msra.mxu0 %v3900
    %5222 = vmatprep.subr.mxu0 0.0
    %5223 = vmatpush1.msra.mxu0 %v3899
    %5224 = vmatprep.subr.mxu0 0.0
    %5225 = vmatpush1.msra.mxu0 %v3898
    %5226 = vmatprep.subr.mxu0 0.0
    %5227 = vmatpush2.msra.mxu0 0.0
    %5228 = vmatprep.subr.mxu0 0.0
    %5229 = vmatpush2.msra.mxu0 0.0
    %5230 = vmatprep.subr.mxu0 0.0
    %5231 = vmatpush2.msra.mxu0 0.0
    %5232 = vmatprep.subr.mxu0 0.0
    %5233 = vmatpush2.msra.mxu0 0.0
    %5234 = vmatprep.subr.mxu0 0.0
    %5235 = vmatpush2.msra.mxu0 0.0
    %5236 = vmatprep.subr.mxu0 0.0
    %5237 = vmatpush2.msra.mxu0 0.0
    %5238 = vmatprep.subr.mxu0 0.0
    %5239 = vmatpush2.msra.mxu0 0.0
    %5240 = vmatprep.subr.mxu0 0.0
    %5241 = vmatpush2.msra.mxu0 0.0
    %5242 = vmatprep.subr.mxu0 0.0
    %5243 = vmatpush2.msra.mxu0 0.0
    %5244 = vmatprep.subr.mxu0 0.0
    %5245 = vmatpush2.msra.mxu0 0.0
    %5246 = vmatprep.subr.mxu0 0.0
    %5247 = vmatpush2.msra.mxu0 0.0
    %5248 = vmatprep.subr.mxu0 0.0
    %5249 = vmatpush2.msra.mxu0 0.0
    %5250 = vmatprep.subr.mxu0 0.0
    %5251 = vmatpush2.msra.mxu0 0.0
    %5252 = vmatprep.subr.mxu0 0.0
    %5253 = vmatpush2.msra.mxu0 0.0
    %5254 = vmatprep.subr.mxu0 0.0
    %5255 = vmatpush2.msra.mxu0 0.0
    %5256 = vmatprep.subr.mxu0 0.0
    %5257 = vmatpush2.msra.mxu0 0.0
    %5258 = vmatprep.mubr.f32.mxu0 0.0
    %5259 = vmatmul.mubr.f32.gmra.mxu0 %v5114
    %v5260 = vpop.f32.mrf.mxu0
    %v5261 = vadd.f32 0.0, %v5260
    %v5262 = vpop.f32.mrf.mxu0
    %5263 = vdwg.mxu0
    %v5264 = vadd.f32 %v5193, %v5261
    %v5265 = vxor.u32 %v5264, 2147483648
    %v5266 = vmul.f32 %v5265, 1.442695
    %v5267 = vpow.pop %v5266
    %v5268 = vadd.f32 %v5267, 1.0
    %v5269 = vrcp.pop %v5268
    %v5270 = vmul.f32 1.0, %v5269
    %v5271 = vld [vmem:[%s1929 + $0x10] sm:$0xff]
    %5272 = vmatprep.subr.mxu0 0.0
    %5273 = vmatpush1.msra.mxu0 %v4007
    %5274 = vmatprep.subr.mxu0 0.0
    %5275 = vmatpush1.msra.mxu0 %v4006
    %5276 = vmatprep.subr.mxu0 0.0
    %5277 = vmatpush1.msra.mxu0 %v4005
    %5278 = vmatprep.subr.mxu0 0.0
    %5279 = vmatpush1.msra.mxu0 %v4004
    %5280 = vmatprep.subr.mxu0 0.0
    %5281 = vmatpush1.msra.mxu0 %v4003
    %5282 = vmatprep.subr.mxu0 0.0
    %5283 = vmatpush1.msra.mxu0 %v4002
    %5284 = vmatprep.subr.mxu0 0.0
    %5285 = vmatpush1.msra.mxu0 %v4001
    %5286 = vmatprep.subr.mxu0 0.0
    %5287 = vmatpush1.msra.mxu0 %v4000
    %5288 = vmatprep.subr.mxu0 0.0
    %5289 = vmatpush1.msra.mxu0 %v3999
    %5290 = vmatprep.subr.mxu0 0.0
    %5291 = vmatpush1.msra.mxu0 %v3998
    %5292 = vmatprep.subr.mxu0 0.0
    %5293 = vmatpush1.msra.mxu0 %v3997
    %5294 = vmatprep.subr.mxu0 0.0
    %5295 = vmatpush1.msra.mxu0 %v3996
    %5296 = vmatprep.subr.mxu0 0.0
    %5297 = vmatpush1.msra.mxu0 %v3995
    %5298 = vmatprep.subr.mxu0 0.0
    %5299 = vmatpush1.msra.mxu0 %v3994
    %5300 = vmatprep.subr.mxu0 0.0
    %5301 = vmatpush1.msra.mxu0 %v3993
    %5302 = vmatprep.subr.mxu0 0.0
    %5303 = vmatpush1.msra.mxu0 %v3992
    %5304 = vmatprep.subr.mxu0 0.0
    %5305 = vmatpush2.msra.mxu0 0.0
    %5306 = vmatprep.subr.mxu0 0.0
    %5307 = vmatpush2.msra.mxu0 0.0
    %5308 = vmatprep.subr.mxu0 0.0
    %5309 = vmatpush2.msra.mxu0 0.0
    %5310 = vmatprep.subr.mxu0 0.0
    %5311 = vmatpush2.msra.mxu0 0.0
    %5312 = vmatprep.subr.mxu0 0.0
    %5313 = vmatpush2.msra.mxu0 0.0
    %5314 = vmatprep.subr.mxu0 0.0
    %5315 = vmatpush2.msra.mxu0 0.0
    %5316 = vmatprep.subr.mxu0 0.0
    %5317 = vmatpush2.msra.mxu0 0.0
    %5318 = vmatprep.subr.mxu0 0.0
    %5319 = vmatpush2.msra.mxu0 0.0
    %5320 = vmatprep.subr.mxu0 0.0
    %5321 = vmatpush2.msra.mxu0 0.0
    %5322 = vmatprep.subr.mxu0 0.0
    %5323 = vmatpush2.msra.mxu0 0.0
    %5324 = vmatprep.subr.mxu0 0.0
    %5325 = vmatpush2.msra.mxu0 0.0
    %5326 = vmatprep.subr.mxu0 0.0
    %5327 = vmatpush2.msra.mxu0 0.0
    %5328 = vmatprep.subr.mxu0 0.0
    %5329 = vmatpush2.msra.mxu0 0.0
    %5330 = vmatprep.subr.mxu0 0.0
    %5331 = vmatpush2.msra.mxu0 0.0
    %5332 = vmatprep.subr.mxu0 0.0
    %5333 = vmatpush2.msra.mxu0 0.0
    %5334 = vmatprep.subr.mxu0 0.0
    %5335 = vmatpush2.msra.mxu0 0.0
    %5336 = vmatprep.mubr.f32.mxu0 0.0
    %5337 = vmatmul.mubr.f32.gmra.mxu0 %v5114
    %v5338 = vpop.f32.mrf.mxu0
    %v5339 = vadd.f32 0.0, %v5338
    %v5340 = vpop.f32.mrf.mxu0
    %5341 = vdwg.mxu0
    %v5342 = vadd.f32 %v5271, %v5339
    %v5343 = vtanh.pop %v5342
    %v5344 = vld [vmem:[%s1929 + $0x18] sm:$0xff]
    %5345 = vmatprep.subr.mxu0 0.0
    %5346 = vmatpush1.msra.mxu0 %v4096
    %5347 = vmatprep.subr.mxu0 0.0
    %5348 = vmatpush1.msra.mxu0 %v4095
    %5349 = vmatprep.subr.mxu0 0.0
    %5350 = vmatpush1.msra.mxu0 %v4094
    %5351 = vmatprep.subr.mxu0 0.0
    %5352 = vmatpush1.msra.mxu0 %v4093
    %5353 = vmatprep.subr.mxu0 0.0
    %5354 = vmatpush1.msra.mxu0 %v4092
    %5355 = vmatprep.subr.mxu0 0.0
    %5356 = vmatpush1.msra.mxu0 %v4091
    %5357 = vmatprep.subr.mxu0 0.0
    %5358 = vmatpush1.msra.mxu0 %v4090
    %5359 = vmatprep.subr.mxu0 0.0
    %5360 = vmatpush1.msra.mxu0 %v4089
    %5361 = vmatprep.subr.mxu0 0.0
    %5362 = vmatpush1.msra.mxu0 %v4088
    %5363 = vmatprep.subr.mxu0 0.0
    %5364 = vmatpush1.msra.mxu0 %v4087
    %5365 = vmatprep.subr.mxu0 0.0
    %5366 = vmatpush1.msra.mxu0 %v4086
    %5367 = vmatprep.subr.mxu0 0.0
    %5368 = vmatpush1.msra.mxu0 %v4085
    %5369 = vmatprep.subr.mxu0 0.0
    %5370 = vmatpush1.msra.mxu0 %v4084
    %5371 = vmatprep.subr.mxu0 0.0
    %5372 = vmatpush1.msra.mxu0 %v4083
    %5373 = vmatprep.subr.mxu0 0.0
    %5374 = vmatpush1.msra.mxu0 %v4082
    %5375 = vmatprep.subr.mxu0 0.0
    %5376 = vmatpush1.msra.mxu0 %v4081
    %5377 = vmatprep.subr.mxu0 0.0
    %5378 = vmatpush2.msra.mxu0 0.0
    %5379 = vmatprep.subr.mxu0 0.0
    %5380 = vmatpush2.msra.mxu0 0.0
    %5381 = vmatprep.subr.mxu0 0.0
    %5382 = vmatpush2.msra.mxu0 0.0
    %5383 = vmatprep.subr.mxu0 0.0
    %5384 = vmatpush2.msra.mxu0 0.0
    %5385 = vmatprep.subr.mxu0 0.0
    %5386 = vmatpush2.msra.mxu0 0.0
    %5387 = vmatprep.subr.mxu0 0.0
    %5388 = vmatpush2.msra.mxu0 0.0
    %5389 = vmatprep.subr.mxu0 0.0
    %5390 = vmatpush2.msra.mxu0 0.0
    %5391 = vmatprep.subr.mxu0 0.0
    %5392 = vmatpush2.msra.mxu0 0.0
    %5393 = vmatprep.subr.mxu0 0.0
    %5394 = vmatpush2.msra.mxu0 0.0
    %5395 = vmatprep.subr.mxu0 0.0
    %5396 = vmatpush2.msra.mxu0 0.0
    %5397 = vmatprep.subr.mxu0 0.0
    %5398 = vmatpush2.msra.mxu0 0.0
    %5399 = vmatprep.subr.mxu0 0.0
    %5400 = vmatpush2.msra.mxu0 0.0
    %5401 = vmatprep.subr.mxu0 0.0
    %5402 = vmatpush2.msra.mxu0 0.0
    %5403 = vmatprep.subr.mxu0 0.0
    %5404 = vmatpush2.msra.mxu0 0.0
    %5405 = vmatprep.subr.mxu0 0.0
    %5406 = vmatpush2.msra.mxu0 0.0
    %5407 = vmatprep.subr.mxu0 0.0
    %5408 = vmatpush2.msra.mxu0 0.0
    %5409 = vmatprep.mubr.f32.mxu0 0.0
    %5410 = vmatmul.mubr.f32.gmra.mxu0 %v5114
    %v5411 = vpop.f32.mrf.mxu0
    %v5412 = vadd.f32 0.0, %v5411
    %v5413 = vpop.f32.mrf.mxu0
    %5414 = vdwg.mxu0
    %v5415 = vadd.f32 %v5344, %v5412
    %v5416 = vxor.u32 %v5415, 2147483648
    %v5417 = vmul.f32 %v5416, 1.442695
    %v5418 = vpow.pop %v5417
    %v5419 = vadd.f32 %v5418, 1.0
    %v5420 = vrcp.pop %v5419
    %v5421 = vmul.f32 1.0, %v5420
    %v5422 = vmul.f32 %v5270, %v5112
    %v5423 = vmul.f32 %v5192, %v5343
    %v5424 = vadd.f32 %v5422, %v5423
    %v5425 = vtanh.pop %v5424
    %v5426 = vmul.f32 %v5421, %v5425
    %v5427 = vld [vmem:[%s2310] sm:$0xff]
    %5428 = vmatprep.subr.mxu0 0.0
    %5429 = vmatpush1.msra.mxu0 %v3819
    %5430 = vmatprep.subr.mxu0 0.0
    %5431 = vmatpush1.msra.mxu0 %v3818
    %5432 = vmatprep.subr.mxu0 0.0
    %5433 = vmatpush1.msra.mxu0 %v3817
    %5434 = vmatprep.subr.mxu0 0.0
    %5435 = vmatpush1.msra.mxu0 %v3816
    %5436 = vmatprep.subr.mxu0 0.0
    %5437 = vmatpush1.msra.mxu0 %v3815
    %5438 = vmatprep.subr.mxu0 0.0
    %5439 = vmatpush1.msra.mxu0 %v3814
    %5440 = vmatprep.subr.mxu0 0.0
    %5441 = vmatpush1.msra.mxu0 %v3813
    %5442 = vmatprep.subr.mxu0 0.0
    %5443 = vmatpush1.msra.mxu0 %v3812
    %5444 = vmatprep.subr.mxu0 0.0
    %5445 = vmatpush1.msra.mxu0 %v3811
    %5446 = vmatprep.subr.mxu0 0.0
    %5447 = vmatpush1.msra.mxu0 %v3810
    %5448 = vmatprep.subr.mxu0 0.0
    %5449 = vmatpush1.msra.mxu0 %v3809
    %5450 = vmatprep.subr.mxu0 0.0
    %5451 = vmatpush1.msra.mxu0 %v3808
    %5452 = vmatprep.subr.mxu0 0.0
    %5453 = vmatpush1.msra.mxu0 %v3807
    %5454 = vmatprep.subr.mxu0 0.0
    %5455 = vmatpush1.msra.mxu0 %v3806
    %5456 = vmatprep.subr.mxu0 0.0
    %5457 = vmatpush1.msra.mxu0 %v3805
    %5458 = vmatprep.subr.mxu0 0.0
    %5459 = vmatpush1.msra.mxu0 %v3804
    %5460 = vmatprep.subr.mxu0 0.0
    %5461 = vmatpush2.msra.mxu0 0.0
    %5462 = vmatprep.subr.mxu0 0.0
    %5463 = vmatpush2.msra.mxu0 0.0
    %5464 = vmatprep.subr.mxu0 0.0
    %5465 = vmatpush2.msra.mxu0 0.0
    %5466 = vmatprep.subr.mxu0 0.0
    %5467 = vmatpush2.msra.mxu0 0.0
    %5468 = vmatprep.subr.mxu0 0.0
    %5469 = vmatpush2.msra.mxu0 0.0
    %5470 = vmatprep.subr.mxu0 0.0
    %5471 = vmatpush2.msra.mxu0 0.0
    %5472 = vmatprep.subr.mxu0 0.0
    %5473 = vmatpush2.msra.mxu0 0.0
    %5474 = vmatprep.subr.mxu0 0.0
    %5475 = vmatpush2.msra.mxu0 0.0
    %5476 = vmatprep.subr.mxu0 0.0
    %5477 = vmatpush2.msra.mxu0 0.0
    %5478 = vmatprep.subr.mxu0 0.0
    %5479 = vmatpush2.msra.mxu0 0.0
    %5480 = vmatprep.subr.mxu0 0.0
    %5481 = vmatpush2.msra.mxu0 0.0
    %5482 = vmatprep.subr.mxu0 0.0
    %5483 = vmatpush2.msra.mxu0 0.0
    %5484 = vmatprep.subr.mxu0 0.0
    %5485 = vmatpush2.msra.mxu0 0.0
    %5486 = vmatprep.subr.mxu0 0.0
    %5487 = vmatpush2.msra.mxu0 0.0
    %5488 = vmatprep.subr.mxu0 0.0
    %5489 = vmatpush2.msra.mxu0 0.0
    %5490 = vmatprep.subr.mxu0 0.0
    %5491 = vmatpush2.msra.mxu0 0.0
    %5492 = vmatprep.mubr.f32.mxu0 0.0
    %5493 = vmatmul.mubr.f32.gmra.mxu0 %v5426
    %v5494 = vpop.f32.mrf.mxu0
    %v5495 = vadd.f32 0.0, %v5494
    %v5496 = vpop.f32.mrf.mxu0
    %5497 = vdwg.mxu0
    %v5498 = vadd.f32 %v5427, %v5495
    %v5499 = vxor.u32 %v5498, 2147483648
    %v5500 = vmul.f32 %v5499, 1.442695
    %v5501 = vpow.pop %v5500
    %v5502 = vadd.f32 %v5501, 1.0
    %v5503 = vrcp.pop %v5502
    %v5504 = vmul.f32 1.0, %v5503
    %v5505 = vld [vmem:[%s2310 + $0x8] sm:$0xff]
    %5506 = vmatprep.subr.mxu0 0.0
    %5507 = vmatpush1.msra.mxu0 %v3913
    %5508 = vmatprep.subr.mxu0 0.0
    %5509 = vmatpush1.msra.mxu0 %v3912
    %5510 = vmatprep.subr.mxu0 0.0
    %5511 = vmatpush1.msra.mxu0 %v3911
    %5512 = vmatprep.subr.mxu0 0.0
    %5513 = vmatpush1.msra.mxu0 %v3910
    %5514 = vmatprep.subr.mxu0 0.0
    %5515 = vmatpush1.msra.mxu0 %v3909
    %5516 = vmatprep.subr.mxu0 0.0
    %5517 = vmatpush1.msra.mxu0 %v3908
    %5518 = vmatprep.subr.mxu0 0.0
    %5519 = vmatpush1.msra.mxu0 %v3907
    %5520 = vmatprep.subr.mxu0 0.0
    %5521 = vmatpush1.msra.mxu0 %v3906
    %5522 = vmatprep.subr.mxu0 0.0
    %5523 = vmatpush1.msra.mxu0 %v3905
    %5524 = vmatprep.subr.mxu0 0.0
    %5525 = vmatpush1.msra.mxu0 %v3904
    %5526 = vmatprep.subr.mxu0 0.0
    %5527 = vmatpush1.msra.mxu0 %v3903
    %5528 = vmatprep.subr.mxu0 0.0
    %5529 = vmatpush1.msra.mxu0 %v3902
    %5530 = vmatprep.subr.mxu0 0.0
    %5531 = vmatpush1.msra.mxu0 %v3901
    %5532 = vmatprep.subr.mxu0 0.0
    %5533 = vmatpush1.msra.mxu0 %v3900
    %5534 = vmatprep.subr.mxu0 0.0
    %5535 = vmatpush1.msra.mxu0 %v3899
    %5536 = vmatprep.subr.mxu0 0.0
    %5537 = vmatpush1.msra.mxu0 %v3898
    %5538 = vmatprep.subr.mxu0 0.0
    %5539 = vmatpush2.msra.mxu0 0.0
    %5540 = vmatprep.subr.mxu0 0.0
    %5541 = vmatpush2.msra.mxu0 0.0
    %5542 = vmatprep.subr.mxu0 0.0
    %5543 = vmatpush2.msra.mxu0 0.0
    %5544 = vmatprep.subr.mxu0 0.0
    %5545 = vmatpush2.msra.mxu0 0.0
    %5546 = vmatprep.subr.mxu0 0.0
    %5547 = vmatpush2.msra.mxu0 0.0
    %5548 = vmatprep.subr.mxu0 0.0
    %5549 = vmatpush2.msra.mxu0 0.0
    %5550 = vmatprep.subr.mxu0 0.0
    %5551 = vmatpush2.msra.mxu0 0.0
    %5552 = vmatprep.subr.mxu0 0.0
    %5553 = vmatpush2.msra.mxu0 0.0
    %5554 = vmatprep.subr.mxu0 0.0
    %5555 = vmatpush2.msra.mxu0 0.0
    %5556 = vmatprep.subr.mxu0 0.0
    %5557 = vmatpush2.msra.mxu0 0.0
    %5558 = vmatprep.subr.mxu0 0.0
    %5559 = vmatpush2.msra.mxu0 0.0
    %5560 = vmatprep.subr.mxu0 0.0
    %5561 = vmatpush2.msra.mxu0 0.0
    %5562 = vmatprep.subr.mxu0 0.0
    %5563 = vmatpush2.msra.mxu0 0.0
    %5564 = vmatprep.subr.mxu0 0.0
    %5565 = vmatpush2.msra.mxu0 0.0
    %5566 = vmatprep.subr.mxu0 0.0
    %5567 = vmatpush2.msra.mxu0 0.0
    %5568 = vmatprep.subr.mxu0 0.0
    %5569 = vmatpush2.msra.mxu0 0.0
    %5570 = vmatprep.mubr.f32.mxu0 0.0
    %5571 = vmatmul.mubr.f32.gmra.mxu0 %v5426
    %v5572 = vpop.f32.mrf.mxu0
    %v5573 = vadd.f32 0.0, %v5572
    %v5574 = vpop.f32.mrf.mxu0
    %5575 = vdwg.mxu0
    %v5576 = vadd.f32 %v5505, %v5573
    %v5577 = vxor.u32 %v5576, 2147483648
    %v5578 = vmul.f32 %v5577, 1.442695
    %v5579 = vpow.pop %v5578
    %v5580 = vadd.f32 %v5579, 1.0
    %v5581 = vrcp.pop %v5580
    %v5582 = vmul.f32 1.0, %v5581
    %v5583 = vld [vmem:[%s2310 + $0x10] sm:$0xff]
    %5584 = vmatprep.subr.mxu0 0.0
    %5585 = vmatpush1.msra.mxu0 %v4007
    %5586 = vmatprep.subr.mxu0 0.0
    %5587 = vmatpush1.msra.mxu0 %v4006
    %5588 = vmatprep.subr.mxu0 0.0
    %5589 = vmatpush1.msra.mxu0 %v4005
    %5590 = vmatprep.subr.mxu0 0.0
    %5591 = vmatpush1.msra.mxu0 %v4004
    %5592 = vmatprep.subr.mxu0 0.0
    %5593 = vmatpush1.msra.mxu0 %v4003
    %5594 = vmatprep.subr.mxu0 0.0
    %5595 = vmatpush1.msra.mxu0 %v4002
    %5596 = vmatprep.subr.mxu0 0.0
    %5597 = vmatpush1.msra.mxu0 %v4001
    %5598 = vmatprep.subr.mxu0 0.0
    %5599 = vmatpush1.msra.mxu0 %v4000
    %5600 = vmatprep.subr.mxu0 0.0
    %5601 = vmatpush1.msra.mxu0 %v3999
    %5602 = vmatprep.subr.mxu0 0.0
    %5603 = vmatpush1.msra.mxu0 %v3998
    %5604 = vmatprep.subr.mxu0 0.0
    %5605 = vmatpush1.msra.mxu0 %v3997
    %5606 = vmatprep.subr.mxu0 0.0
    %5607 = vmatpush1.msra.mxu0 %v3996
    %5608 = vmatprep.subr.mxu0 0.0
    %5609 = vmatpush1.msra.mxu0 %v3995
    %5610 = vmatprep.subr.mxu0 0.0
    %5611 = vmatpush1.msra.mxu0 %v3994
    %5612 = vmatprep.subr.mxu0 0.0
    %5613 = vmatpush1.msra.mxu0 %v3993
    %5614 = vmatprep.subr.mxu0 0.0
    %5615 = vmatpush1.msra.mxu0 %v3992
    %5616 = vmatprep.subr.mxu0 0.0
    %5617 = vmatpush2.msra.mxu0 0.0
    %5618 = vmatprep.subr.mxu0 0.0
    %5619 = vmatpush2.msra.mxu0 0.0
    %5620 = vmatprep.subr.mxu0 0.0
    %5621 = vmatpush2.msra.mxu0 0.0
    %5622 = vmatprep.subr.mxu0 0.0
    %5623 = vmatpush2.msra.mxu0 0.0
    %5624 = vmatprep.subr.mxu0 0.0
    %5625 = vmatpush2.msra.mxu0 0.0
    %5626 = vmatprep.subr.mxu0 0.0
    %5627 = vmatpush2.msra.mxu0 0.0
    %5628 = vmatprep.subr.mxu0 0.0
    %5629 = vmatpush2.msra.mxu0 0.0
    %5630 = vmatprep.subr.mxu0 0.0
    %5631 = vmatpush2.msra.mxu0 0.0
    %5632 = vmatprep.subr.mxu0 0.0
    %5633 = vmatpush2.msra.mxu0 0.0
    %5634 = vmatprep.subr.mxu0 0.0
    %5635 = vmatpush2.msra.mxu0 0.0
    %5636 = vmatprep.subr.mxu0 0.0
    %5637 = vmatpush2.msra.mxu0 0.0
    %5638 = vmatprep.subr.mxu0 0.0
    %5639 = vmatpush2.msra.mxu0 0.0
    %5640 = vmatprep.subr.mxu0 0.0
    %5641 = vmatpush2.msra.mxu0 0.0
    %5642 = vmatprep.subr.mxu0 0.0
    %5643 = vmatpush2.msra.mxu0 0.0
    %5644 = vmatprep.subr.mxu0 0.0
    %5645 = vmatpush2.msra.mxu0 0.0
    %5646 = vmatprep.subr.mxu0 0.0
    %5647 = vmatpush2.msra.mxu0 0.0
    %5648 = vmatprep.mubr.f32.mxu0 0.0
    %5649 = vmatmul.mubr.f32.gmra.mxu0 %v5426
    %v5650 = vpop.f32.mrf.mxu0
    %v5651 = vadd.f32 0.0, %v5650
    %v5652 = vpop.f32.mrf.mxu0
    %5653 = vdwg.mxu0
    %v5654 = vadd.f32 %v5583, %v5651
    %v5655 = vtanh.pop %v5654
    %v5656 = vld [vmem:[%s2310 + $0x18] sm:$0xff]
    %5657 = vmatprep.subr.mxu0 0.0
    %5658 = vmatpush1.msra.mxu0 %v4096
    %5659 = vmatprep.subr.mxu0 0.0
    %5660 = vmatpush1.msra.mxu0 %v4095
    %5661 = vmatprep.subr.mxu0 0.0
    %5662 = vmatpush1.msra.mxu0 %v4094
    %5663 = vmatprep.subr.mxu0 0.0
    %5664 = vmatpush1.msra.mxu0 %v4093
    %5665 = vmatprep.subr.mxu0 0.0
    %5666 = vmatpush1.msra.mxu0 %v4092
    %5667 = vmatprep.subr.mxu0 0.0
    %5668 = vmatpush1.msra.mxu0 %v4091
    %5669 = vmatprep.subr.mxu0 0.0
    %5670 = vmatpush1.msra.mxu0 %v4090
    %5671 = vmatprep.subr.mxu0 0.0
    %5672 = vmatpush1.msra.mxu0 %v4089
    %5673 = vmatprep.subr.mxu0 0.0
    %5674 = vmatpush1.msra.mxu0 %v4088
    %5675 = vmatprep.subr.mxu0 0.0
    %5676 = vmatpush1.msra.mxu0 %v4087
    %5677 = vmatprep.subr.mxu0 0.0
    %5678 = vmatpush1.msra.mxu0 %v4086
    %5679 = vmatprep.subr.mxu0 0.0
    %5680 = vmatpush1.msra.mxu0 %v4085
    %5681 = vmatprep.subr.mxu0 0.0
    %5682 = vmatpush1.msra.mxu0 %v4084
    %5683 = vmatprep.subr.mxu0 0.0
    %5684 = vmatpush1.msra.mxu0 %v4083
    %5685 = vmatprep.subr.mxu0 0.0
    %5686 = vmatpush1.msra.mxu0 %v4082
    %5687 = vmatprep.subr.mxu0 0.0
    %5688 = vmatpush1.msra.mxu0 %v4081
    %5689 = vmatprep.subr.mxu0 0.0
    %5690 = vmatpush2.msra.mxu0 0.0
    %5691 = vmatprep.subr.mxu0 0.0
    %5692 = vmatpush2.msra.mxu0 0.0
    %5693 = vmatprep.subr.mxu0 0.0
    %5694 = vmatpush2.msra.mxu0 0.0
    %5695 = vmatprep.subr.mxu0 0.0
    %5696 = vmatpush2.msra.mxu0 0.0
    %5697 = vmatprep.subr.mxu0 0.0
    %5698 = vmatpush2.msra.mxu0 0.0
    %5699 = vmatprep.subr.mxu0 0.0
    %5700 = vmatpush2.msra.mxu0 0.0
    %5701 = vmatprep.subr.mxu0 0.0
    %5702 = vmatpush2.msra.mxu0 0.0
    %5703 = vmatprep.subr.mxu0 0.0
    %5704 = vmatpush2.msra.mxu0 0.0
    %5705 = vmatprep.subr.mxu0 0.0
    %5706 = vmatpush2.msra.mxu0 0.0
    %5707 = vmatprep.subr.mxu0 0.0
    %5708 = vmatpush2.msra.mxu0 0.0
    %5709 = vmatprep.subr.mxu0 0.0
    %5710 = vmatpush2.msra.mxu0 0.0
    %5711 = vmatprep.subr.mxu0 0.0
    %5712 = vmatpush2.msra.mxu0 0.0
    %5713 = vmatprep.subr.mxu0 0.0
    %5714 = vmatpush2.msra.mxu0 0.0
    %5715 = vmatprep.subr.mxu0 0.0
    %5716 = vmatpush2.msra.mxu0 0.0
    %5717 = vmatprep.subr.mxu0 0.0
    %5718 = vmatpush2.msra.mxu0 0.0
    %5719 = vmatprep.subr.mxu0 0.0
    %5720 = vmatpush2.msra.mxu0 0.0
    %5721 = vmatprep.mubr.f32.mxu0 0.0
    %5722 = vmatmul.mubr.f32.gmra.mxu0 %v5426
    %v5723 = vpop.f32.mrf.mxu0
    %v5724 = vadd.f32 0.0, %v5723
    %v5725 = vpop.f32.mrf.mxu0
    %5726 = vdwg.mxu0
    %v5727 = vadd.f32 %v5656, %v5724
    %v5728 = vxor.u32 %v5727, 2147483648
    %v5729 = vmul.f32 %v5728, 1.442695
    %v5730 = vpow.pop %v5729
    %v5731 = vadd.f32 %v5730, 1.0
    %v5732 = vrcp.pop %v5731
    %v5733 = vmul.f32 1.0, %v5732
    %v5734 = vmul.f32 %v5582, %v5424
    %v5735 = vmul.f32 %v5504, %v5655
    %v5736 = vadd.f32 %v5734, %v5735
    %v5737 = vtanh.pop %v5736
    %v5738 = vmul.f32 %v5733, %v5737
    %v5739 = vld [vmem:[%s2691] sm:$0xff]
    %5740 = vmatprep.subr.mxu0 0.0
    %5741 = vmatpush1.msra.mxu0 %v3819
    %5742 = vmatprep.subr.mxu0 0.0
    %5743 = vmatpush1.msra.mxu0 %v3818
    %5744 = vmatprep.subr.mxu0 0.0
    %5745 = vmatpush1.msra.mxu0 %v3817
    %5746 = vmatprep.subr.mxu0 0.0
    %5747 = vmatpush1.msra.mxu0 %v3816
    %5748 = vmatprep.subr.mxu0 0.0
    %5749 = vmatpush1.msra.mxu0 %v3815
    %5750 = vmatprep.subr.mxu0 0.0
    %5751 = vmatpush1.msra.mxu0 %v3814
    %5752 = vmatprep.subr.mxu0 0.0
    %5753 = vmatpush1.msra.mxu0 %v3813
    %5754 = vmatprep.subr.mxu0 0.0
    %5755 = vmatpush1.msra.mxu0 %v3812
    %5756 = vmatprep.subr.mxu0 0.0
    %5757 = vmatpush1.msra.mxu0 %v3811
    %5758 = vmatprep.subr.mxu0 0.0
    %5759 = vmatpush1.msra.mxu0 %v3810
    %5760 = vmatprep.subr.mxu0 0.0
    %5761 = vmatpush1.msra.mxu0 %v3809
    %5762 = vmatprep.subr.mxu0 0.0
    %5763 = vmatpush1.msra.mxu0 %v3808
    %5764 = vmatprep.subr.mxu0 0.0
    %5765 = vmatpush1.msra.mxu0 %v3807
    %5766 = vmatprep.subr.mxu0 0.0
    %5767 = vmatpush1.msra.mxu0 %v3806
    %5768 = vmatprep.subr.mxu0 0.0
    %5769 = vmatpush1.msra.mxu0 %v3805
    %5770 = vmatprep.subr.mxu0 0.0
    %5771 = vmatpush1.msra.mxu0 %v3804
    %5772 = vmatprep.subr.mxu0 0.0
    %5773 = vmatpush2.msra.mxu0 0.0
    %5774 = vmatprep.subr.mxu0 0.0
    %5775 = vmatpush2.msra.mxu0 0.0
    %5776 = vmatprep.subr.mxu0 0.0
    %5777 = vmatpush2.msra.mxu0 0.0
    %5778 = vmatprep.subr.mxu0 0.0
    %5779 = vmatpush2.msra.mxu0 0.0
    %5780 = vmatprep.subr.mxu0 0.0
    %5781 = vmatpush2.msra.mxu0 0.0
    %5782 = vmatprep.subr.mxu0 0.0
    %5783 = vmatpush2.msra.mxu0 0.0
    %5784 = vmatprep.subr.mxu0 0.0
    %5785 = vmatpush2.msra.mxu0 0.0
    %5786 = vmatprep.subr.mxu0 0.0
    %5787 = vmatpush2.msra.mxu0 0.0
    %5788 = vmatprep.subr.mxu0 0.0
    %5789 = vmatpush2.msra.mxu0 0.0
    %5790 = vmatprep.subr.mxu0 0.0
    %5791 = vmatpush2.msra.mxu0 0.0
    %5792 = vmatprep.subr.mxu0 0.0
    %5793 = vmatpush2.msra.mxu0 0.0
    %5794 = vmatprep.subr.mxu0 0.0
    %5795 = vmatpush2.msra.mxu0 0.0
    %5796 = vmatprep.subr.mxu0 0.0
    %5797 = vmatpush2.msra.mxu0 0.0
    %5798 = vmatprep.subr.mxu0 0.0
    %5799 = vmatpush2.msra.mxu0 0.0
    %5800 = vmatprep.subr.mxu0 0.0
    %5801 = vmatpush2.msra.mxu0 0.0
    %5802 = vmatprep.subr.mxu0 0.0
    %5803 = vmatpush2.msra.mxu0 0.0
    %5804 = vmatprep.mubr.f32.mxu0 0.0
    %5805 = vmatmul.mubr.f32.gmra.mxu0 %v5738
    %v5806 = vpop.f32.mrf.mxu0
    %v5807 = vadd.f32 0.0, %v5806
    %v5808 = vpop.f32.mrf.mxu0
    %5809 = vdwg.mxu0
    %v5810 = vadd.f32 %v5739, %v5807
    %v5811 = vxor.u32 %v5810, 2147483648
    %v5812 = vmul.f32 %v5811, 1.442695
    %v5813 = vpow.pop %v5812
    %v5814 = vadd.f32 %v5813, 1.0
    %v5815 = vrcp.pop %v5814
    %v5816 = vmul.f32 1.0, %v5815
    %v5817 = vld [vmem:[%s2691 + $0x8] sm:$0xff]
    %5818 = vmatprep.subr.mxu0 0.0
    %5819 = vmatpush1.msra.mxu0 %v3913
    %5820 = vmatprep.subr.mxu0 0.0
    %5821 = vmatpush1.msra.mxu0 %v3912
    %5822 = vmatprep.subr.mxu0 0.0
    %5823 = vmatpush1.msra.mxu0 %v3911
    %5824 = vmatprep.subr.mxu0 0.0
    %5825 = vmatpush1.msra.mxu0 %v3910
    %5826 = vmatprep.subr.mxu0 0.0
    %5827 = vmatpush1.msra.mxu0 %v3909
    %5828 = vmatprep.subr.mxu0 0.0
    %5829 = vmatpush1.msra.mxu0 %v3908
    %5830 = vmatprep.subr.mxu0 0.0
    %5831 = vmatpush1.msra.mxu0 %v3907
    %5832 = vmatprep.subr.mxu0 0.0
    %5833 = vmatpush1.msra.mxu0 %v3906
    %5834 = vmatprep.subr.mxu0 0.0
    %5835 = vmatpush1.msra.mxu0 %v3905
    %5836 = vmatprep.subr.mxu0 0.0
    %5837 = vmatpush1.msra.mxu0 %v3904
    %5838 = vmatprep.subr.mxu0 0.0
    %5839 = vmatpush1.msra.mxu0 %v3903
    %5840 = vmatprep.subr.mxu0 0.0
    %5841 = vmatpush1.msra.mxu0 %v3902
    %5842 = vmatprep.subr.mxu0 0.0
    %5843 = vmatpush1.msra.mxu0 %v3901
    %5844 = vmatprep.subr.mxu0 0.0
    %5845 = vmatpush1.msra.mxu0 %v3900
    %5846 = vmatprep.subr.mxu0 0.0
    %5847 = vmatpush1.msra.mxu0 %v3899
    %5848 = vmatprep.subr.mxu0 0.0
    %5849 = vmatpush1.msra.mxu0 %v3898
    %5850 = vmatprep.subr.mxu0 0.0
    %5851 = vmatpush2.msra.mxu0 0.0
    %5852 = vmatprep.subr.mxu0 0.0
    %5853 = vmatpush2.msra.mxu0 0.0
    %5854 = vmatprep.subr.mxu0 0.0
    %5855 = vmatpush2.msra.mxu0 0.0
    %5856 = vmatprep.subr.mxu0 0.0
    %5857 = vmatpush2.msra.mxu0 0.0
    %5858 = vmatprep.subr.mxu0 0.0
    %5859 = vmatpush2.msra.mxu0 0.0
    %5860 = vmatprep.subr.mxu0 0.0
    %5861 = vmatpush2.msra.mxu0 0.0
    %5862 = vmatprep.subr.mxu0 0.0
    %5863 = vmatpush2.msra.mxu0 0.0
    %5864 = vmatprep.subr.mxu0 0.0
    %5865 = vmatpush2.msra.mxu0 0.0
    %5866 = vmatprep.subr.mxu0 0.0
    %5867 = vmatpush2.msra.mxu0 0.0
    %5868 = vmatprep.subr.mxu0 0.0
    %5869 = vmatpush2.msra.mxu0 0.0
    %5870 = vmatprep.subr.mxu0 0.0
    %5871 = vmatpush2.msra.mxu0 0.0
    %5872 = vmatprep.subr.mxu0 0.0
    %5873 = vmatpush2.msra.mxu0 0.0
    %5874 = vmatprep.subr.mxu0 0.0
    %5875 = vmatpush2.msra.mxu0 0.0
    %5876 = vmatprep.subr.mxu0 0.0
    %5877 = vmatpush2.msra.mxu0 0.0
    %5878 = vmatprep.subr.mxu0 0.0
    %5879 = vmatpush2.msra.mxu0 0.0
    %5880 = vmatprep.subr.mxu0 0.0
    %5881 = vmatpush2.msra.mxu0 0.0
    %5882 = vmatprep.mubr.f32.mxu0 0.0
    %5883 = vmatmul.mubr.f32.gmra.mxu0 %v5738
    %v5884 = vpop.f32.mrf.mxu0
    %v5885 = vadd.f32 0.0, %v5884
    %v5886 = vpop.f32.mrf.mxu0
    %5887 = vdwg.mxu0
    %v5888 = vadd.f32 %v5817, %v5885
    %v5889 = vxor.u32 %v5888, 2147483648
    %v5890 = vmul.f32 %v5889, 1.442695
    %v5891 = vpow.pop %v5890
    %v5892 = vadd.f32 %v5891, 1.0
    %v5893 = vrcp.pop %v5892
    %v5894 = vmul.f32 1.0, %v5893
    %v5895 = vld [vmem:[%s2691 + $0x10] sm:$0xff]
    %5896 = vmatprep.subr.mxu0 0.0
    %5897 = vmatpush1.msra.mxu0 %v4007
    %5898 = vmatprep.subr.mxu0 0.0
    %5899 = vmatpush1.msra.mxu0 %v4006
    %5900 = vmatprep.subr.mxu0 0.0
    %5901 = vmatpush1.msra.mxu0 %v4005
    %5902 = vmatprep.subr.mxu0 0.0
    %5903 = vmatpush1.msra.mxu0 %v4004
    %5904 = vmatprep.subr.mxu0 0.0
    %5905 = vmatpush1.msra.mxu0 %v4003
    %5906 = vmatprep.subr.mxu0 0.0
    %5907 = vmatpush1.msra.mxu0 %v4002
    %5908 = vmatprep.subr.mxu0 0.0
    %5909 = vmatpush1.msra.mxu0 %v4001
    %5910 = vmatprep.subr.mxu0 0.0
    %5911 = vmatpush1.msra.mxu0 %v4000
    %5912 = vmatprep.subr.mxu0 0.0
    %5913 = vmatpush1.msra.mxu0 %v3999
    %5914 = vmatprep.subr.mxu0 0.0
    %5915 = vmatpush1.msra.mxu0 %v3998
    %5916 = vmatprep.subr.mxu0 0.0
    %5917 = vmatpush1.msra.mxu0 %v3997
    %5918 = vmatprep.subr.mxu0 0.0
    %5919 = vmatpush1.msra.mxu0 %v3996
    %5920 = vmatprep.subr.mxu0 0.0
    %5921 = vmatpush1.msra.mxu0 %v3995
    %5922 = vmatprep.subr.mxu0 0.0
    %5923 = vmatpush1.msra.mxu0 %v3994
    %5924 = vmatprep.subr.mxu0 0.0
    %5925 = vmatpush1.msra.mxu0 %v3993
    %5926 = vmatprep.subr.mxu0 0.0
    %5927 = vmatpush1.msra.mxu0 %v3992
    %5928 = vmatprep.subr.mxu0 0.0
    %5929 = vmatpush2.msra.mxu0 0.0
    %5930 = vmatprep.subr.mxu0 0.0
    %5931 = vmatpush2.msra.mxu0 0.0
    %5932 = vmatprep.subr.mxu0 0.0
    %5933 = vmatpush2.msra.mxu0 0.0
    %5934 = vmatprep.subr.mxu0 0.0
    %5935 = vmatpush2.msra.mxu0 0.0
    %5936 = vmatprep.subr.mxu0 0.0
    %5937 = vmatpush2.msra.mxu0 0.0
    %5938 = vmatprep.subr.mxu0 0.0
    %5939 = vmatpush2.msra.mxu0 0.0
    %5940 = vmatprep.subr.mxu0 0.0
    %5941 = vmatpush2.msra.mxu0 0.0
    %5942 = vmatprep.subr.mxu0 0.0
    %5943 = vmatpush2.msra.mxu0 0.0
    %5944 = vmatprep.subr.mxu0 0.0
    %5945 = vmatpush2.msra.mxu0 0.0
    %5946 = vmatprep.subr.mxu0 0.0
    %5947 = vmatpush2.msra.mxu0 0.0
    %5948 = vmatprep.subr.mxu0 0.0
    %5949 = vmatpush2.msra.mxu0 0.0
    %5950 = vmatprep.subr.mxu0 0.0
    %5951 = vmatpush2.msra.mxu0 0.0
    %5952 = vmatprep.subr.mxu0 0.0
    %5953 = vmatpush2.msra.mxu0 0.0
    %5954 = vmatprep.subr.mxu0 0.0
    %5955 = vmatpush2.msra.mxu0 0.0
    %5956 = vmatprep.subr.mxu0 0.0
    %5957 = vmatpush2.msra.mxu0 0.0
    %5958 = vmatprep.subr.mxu0 0.0
    %5959 = vmatpush2.msra.mxu0 0.0
    %5960 = vmatprep.mubr.f32.mxu0 0.0
    %5961 = vmatmul.mubr.f32.gmra.mxu0 %v5738
    %v5962 = vpop.f32.mrf.mxu0
    %v5963 = vadd.f32 0.0, %v5962
    %v5964 = vpop.f32.mrf.mxu0
    %5965 = vdwg.mxu0
    %v5966 = vadd.f32 %v5895, %v5963
    %v5967 = vtanh.pop %v5966
    %v5968 = vld [vmem:[%s2691 + $0x18] sm:$0xff]
    %5969 = vmatprep.subr.mxu0 0.0
    %5970 = vmatpush1.msra.mxu0 %v4096
    %5971 = vmatprep.subr.mxu0 0.0
    %5972 = vmatpush1.msra.mxu0 %v4095
    %5973 = vmatprep.subr.mxu0 0.0
    %5974 = vmatpush1.msra.mxu0 %v4094
    %5975 = vmatprep.subr.mxu0 0.0
    %5976 = vmatpush1.msra.mxu0 %v4093
    %5977 = vmatprep.subr.mxu0 0.0
    %5978 = vmatpush1.msra.mxu0 %v4092
    %5979 = vmatprep.subr.mxu0 0.0
    %5980 = vmatpush1.msra.mxu0 %v4091
    %5981 = vmatprep.subr.mxu0 0.0
    %5982 = vmatpush1.msra.mxu0 %v4090
    %5983 = vmatprep.subr.mxu0 0.0
    %5984 = vmatpush1.msra.mxu0 %v4089
    %5985 = vmatprep.subr.mxu0 0.0
    %5986 = vmatpush1.msra.mxu0 %v4088
    %5987 = vmatprep.subr.mxu0 0.0
    %5988 = vmatpush1.msra.mxu0 %v4087
    %5989 = vmatprep.subr.mxu0 0.0
    %5990 = vmatpush1.msra.mxu0 %v4086
    %5991 = vmatprep.subr.mxu0 0.0
    %5992 = vmatpush1.msra.mxu0 %v4085
    %5993 = vmatprep.subr.mxu0 0.0
    %5994 = vmatpush1.msra.mxu0 %v4084
    %5995 = vmatprep.subr.mxu0 0.0
    %5996 = vmatpush1.msra.mxu0 %v4083
    %5997 = vmatprep.subr.mxu0 0.0
    %5998 = vmatpush1.msra.mxu0 %v4082
    %5999 = vmatprep.subr.mxu0 0.0
    %6000 = vmatpush1.msra.mxu0 %v4081
    %6001 = vmatprep.subr.mxu0 0.0
    %6002 = vmatpush2.msra.mxu0 0.0
    %6003 = vmatprep.subr.mxu0 0.0
    %6004 = vmatpush2.msra.mxu0 0.0
    %6005 = vmatprep.subr.mxu0 0.0
    %6006 = vmatpush2.msra.mxu0 0.0
    %6007 = vmatprep.subr.mxu0 0.0
    %6008 = vmatpush2.msra.mxu0 0.0
    %6009 = vmatprep.subr.mxu0 0.0
    %6010 = vmatpush2.msra.mxu0 0.0
    %6011 = vmatprep.subr.mxu0 0.0
    %6012 = vmatpush2.msra.mxu0 0.0
    %6013 = vmatprep.subr.mxu0 0.0
    %6014 = vmatpush2.msra.mxu0 0.0
    %6015 = vmatprep.subr.mxu0 0.0
    %6016 = vmatpush2.msra.mxu0 0.0
    %6017 = vmatprep.subr.mxu0 0.0
    %6018 = vmatpush2.msra.mxu0 0.0
    %6019 = vmatprep.subr.mxu0 0.0
    %6020 = vmatpush2.msra.mxu0 0.0
    %6021 = vmatprep.subr.mxu0 0.0
    %6022 = vmatpush2.msra.mxu0 0.0
    %6023 = vmatprep.subr.mxu0 0.0
    %6024 = vmatpush2.msra.mxu0 0.0
    %6025 = vmatprep.subr.mxu0 0.0
    %6026 = vmatpush2.msra.mxu0 0.0
    %6027 = vmatprep.subr.mxu0 0.0
    %6028 = vmatpush2.msra.mxu0 0.0
    %6029 = vmatprep.subr.mxu0 0.0
    %6030 = vmatpush2.msra.mxu0 0.0
    %6031 = vmatprep.subr.mxu0 0.0
    %6032 = vmatpush2.msra.mxu0 0.0
    %6033 = vmatprep.mubr.f32.mxu0 0.0
    %6034 = vmatmul.mubr.f32.gmra.mxu0 %v5738
    %v6035 = vpop.f32.mrf.mxu0
    %v6036 = vadd.f32 0.0, %v6035
    %v6037 = vpop.f32.mrf.mxu0
    %6038 = vdwg.mxu0
    %v6039 = vadd.f32 %v5968, %v6036
    %v6040 = vxor.u32 %v6039, 2147483648
    %v6041 = vmul.f32 %v6040, 1.442695
    %v6042 = vpow.pop %v6041
    %v6043 = vadd.f32 %v6042, 1.0
    %v6044 = vrcp.pop %v6043
    %v6045 = vmul.f32 1.0, %v6044
    %v6046 = vmul.f32 %v5894, %v5736
    %v6047 = vmul.f32 %v5816, %v5967
    %v6048 = vadd.f32 %v6046, %v6047
    %v6049 = vtanh.pop %v6048
    %v6050 = vmul.f32 %v6045, %v6049
    %v6051 = vld [vmem:[%s3072] sm:$0xff]
    %6052 = vmatprep.subr.mxu0 0.0
    %6053 = vmatpush1.msra.mxu0 %v3819
    %6054 = vmatprep.subr.mxu0 0.0
    %6055 = vmatpush1.msra.mxu0 %v3818
    %6056 = vmatprep.subr.mxu0 0.0
    %6057 = vmatpush1.msra.mxu0 %v3817
    %6058 = vmatprep.subr.mxu0 0.0
    %6059 = vmatpush1.msra.mxu0 %v3816
    %6060 = vmatprep.subr.mxu0 0.0
    %6061 = vmatpush1.msra.mxu0 %v3815
    %6062 = vmatprep.subr.mxu0 0.0
    %6063 = vmatpush1.msra.mxu0 %v3814
    %6064 = vmatprep.subr.mxu0 0.0
    %6065 = vmatpush1.msra.mxu0 %v3813
    %6066 = vmatprep.subr.mxu0 0.0
    %6067 = vmatpush1.msra.mxu0 %v3812
    %6068 = vmatprep.subr.mxu0 0.0
    %6069 = vmatpush1.msra.mxu0 %v3811
    %6070 = vmatprep.subr.mxu0 0.0
    %6071 = vmatpush1.msra.mxu0 %v3810
    %6072 = vmatprep.subr.mxu0 0.0
    %6073 = vmatpush1.msra.mxu0 %v3809
    %6074 = vmatprep.subr.mxu0 0.0
    %6075 = vmatpush1.msra.mxu0 %v3808
    %6076 = vmatprep.subr.mxu0 0.0
    %6077 = vmatpush1.msra.mxu0 %v3807
    %6078 = vmatprep.subr.mxu0 0.0
    %6079 = vmatpush1.msra.mxu0 %v3806
    %6080 = vmatprep.subr.mxu0 0.0
    %6081 = vmatpush1.msra.mxu0 %v3805
    %6082 = vmatprep.subr.mxu0 0.0
    %6083 = vmatpush1.msra.mxu0 %v3804
    %6084 = vmatprep.subr.mxu0 0.0
    %6085 = vmatpush2.msra.mxu0 0.0
    %6086 = vmatprep.subr.mxu0 0.0
    %6087 = vmatpush2.msra.mxu0 0.0
    %6088 = vmatprep.subr.mxu0 0.0
    %6089 = vmatpush2.msra.mxu0 0.0
    %6090 = vmatprep.subr.mxu0 0.0
    %6091 = vmatpush2.msra.mxu0 0.0
    %6092 = vmatprep.subr.mxu0 0.0
    %6093 = vmatpush2.msra.mxu0 0.0
    %6094 = vmatprep.subr.mxu0 0.0
    %6095 = vmatpush2.msra.mxu0 0.0
    %6096 = vmatprep.subr.mxu0 0.0
    %6097 = vmatpush2.msra.mxu0 0.0
    %6098 = vmatprep.subr.mxu0 0.0
    %6099 = vmatpush2.msra.mxu0 0.0
    %6100 = vmatprep.subr.mxu0 0.0
    %6101 = vmatpush2.msra.mxu0 0.0
    %6102 = vmatprep.subr.mxu0 0.0
    %6103 = vmatpush2.msra.mxu0 0.0
    %6104 = vmatprep.subr.mxu0 0.0
    %6105 = vmatpush2.msra.mxu0 0.0
    %6106 = vmatprep.subr.mxu0 0.0
    %6107 = vmatpush2.msra.mxu0 0.0
    %6108 = vmatprep.subr.mxu0 0.0
    %6109 = vmatpush2.msra.mxu0 0.0
    %6110 = vmatprep.subr.mxu0 0.0
    %6111 = vmatpush2.msra.mxu0 0.0
    %6112 = vmatprep.subr.mxu0 0.0
    %6113 = vmatpush2.msra.mxu0 0.0
    %6114 = vmatprep.subr.mxu0 0.0
    %6115 = vmatpush2.msra.mxu0 0.0
    %6116 = vmatprep.mubr.f32.mxu0 0.0
    %6117 = vmatmul.mubr.f32.gmra.mxu0 %v6050
    %v6118 = vpop.f32.mrf.mxu0
    %v6119 = vadd.f32 0.0, %v6118
    %v6120 = vpop.f32.mrf.mxu0
    %6121 = vdwg.mxu0
    %v6122 = vadd.f32 %v6051, %v6119
    %v6123 = vxor.u32 %v6122, 2147483648
    %v6124 = vmul.f32 %v6123, 1.442695
    %v6125 = vpow.pop %v6124
    %v6126 = vadd.f32 %v6125, 1.0
    %v6127 = vrcp.pop %v6126
    %v6128 = vmul.f32 1.0, %v6127
    %v6129 = vld [vmem:[%s3072 + $0x8] sm:$0xff]
    %6130 = vmatprep.subr.mxu0 0.0
    %6131 = vmatpush1.msra.mxu0 %v3913
    %6132 = vmatprep.subr.mxu0 0.0
    %6133 = vmatpush1.msra.mxu0 %v3912
    %6134 = vmatprep.subr.mxu0 0.0
    %6135 = vmatpush1.msra.mxu0 %v3911
    %6136 = vmatprep.subr.mxu0 0.0
    %6137 = vmatpush1.msra.mxu0 %v3910
    %6138 = vmatprep.subr.mxu0 0.0
    %6139 = vmatpush1.msra.mxu0 %v3909
    %6140 = vmatprep.subr.mxu0 0.0
    %6141 = vmatpush1.msra.mxu0 %v3908
    %6142 = vmatprep.subr.mxu0 0.0
    %6143 = vmatpush1.msra.mxu0 %v3907
    %6144 = vmatprep.subr.mxu0 0.0
    %6145 = vmatpush1.msra.mxu0 %v3906
    %6146 = vmatprep.subr.mxu0 0.0
    %6147 = vmatpush1.msra.mxu0 %v3905
    %6148 = vmatprep.subr.mxu0 0.0
    %6149 = vmatpush1.msra.mxu0 %v3904
    %6150 = vmatprep.subr.mxu0 0.0
    %6151 = vmatpush1.msra.mxu0 %v3903
    %6152 = vmatprep.subr.mxu0 0.0
    %6153 = vmatpush1.msra.mxu0 %v3902
    %6154 = vmatprep.subr.mxu0 0.0
    %6155 = vmatpush1.msra.mxu0 %v3901
    %6156 = vmatprep.subr.mxu0 0.0
    %6157 = vmatpush1.msra.mxu0 %v3900
    %6158 = vmatprep.subr.mxu0 0.0
    %6159 = vmatpush1.msra.mxu0 %v3899
    %6160 = vmatprep.subr.mxu0 0.0
    %6161 = vmatpush1.msra.mxu0 %v3898
    %6162 = vmatprep.subr.mxu0 0.0
    %6163 = vmatpush2.msra.mxu0 0.0
    %6164 = vmatprep.subr.mxu0 0.0
    %6165 = vmatpush2.msra.mxu0 0.0
    %6166 = vmatprep.subr.mxu0 0.0
    %6167 = vmatpush2.msra.mxu0 0.0
    %6168 = vmatprep.subr.mxu0 0.0
    %6169 = vmatpush2.msra.mxu0 0.0
    %6170 = vmatprep.subr.mxu0 0.0
    %6171 = vmatpush2.msra.mxu0 0.0
    %6172 = vmatprep.subr.mxu0 0.0
    %6173 = vmatpush2.msra.mxu0 0.0
    %6174 = vmatprep.subr.mxu0 0.0
    %6175 = vmatpush2.msra.mxu0 0.0
    %6176 = vmatprep.subr.mxu0 0.0
    %6177 = vmatpush2.msra.mxu0 0.0
    %6178 = vmatprep.subr.mxu0 0.0
    %6179 = vmatpush2.msra.mxu0 0.0
    %6180 = vmatprep.subr.mxu0 0.0
    %6181 = vmatpush2.msra.mxu0 0.0
    %6182 = vmatprep.subr.mxu0 0.0
    %6183 = vmatpush2.msra.mxu0 0.0
    %6184 = vmatprep.subr.mxu0 0.0
    %6185 = vmatpush2.msra.mxu0 0.0
    %6186 = vmatprep.subr.mxu0 0.0
    %6187 = vmatpush2.msra.mxu0 0.0
    %6188 = vmatprep.subr.mxu0 0.0
    %6189 = vmatpush2.msra.mxu0 0.0
    %6190 = vmatprep.subr.mxu0 0.0
    %6191 = vmatpush2.msra.mxu0 0.0
    %6192 = vmatprep.subr.mxu0 0.0
    %6193 = vmatpush2.msra.mxu0 0.0
    %6194 = vmatprep.mubr.f32.mxu0 0.0
    %6195 = vmatmul.mubr.f32.gmra.mxu0 %v6050
    %v6196 = vpop.f32.mrf.mxu0
    %v6197 = vadd.f32 0.0, %v6196
    %v6198 = vpop.f32.mrf.mxu0
    %6199 = vdwg.mxu0
    %v6200 = vadd.f32 %v6129, %v6197
    %v6201 = vxor.u32 %v6200, 2147483648
    %v6202 = vmul.f32 %v6201, 1.442695
    %v6203 = vpow.pop %v6202
    %v6204 = vadd.f32 %v6203, 1.0
    %v6205 = vrcp.pop %v6204
    %v6206 = vmul.f32 1.0, %v6205
    %v6207 = vld [vmem:[%s3072 + $0x10] sm:$0xff]
    %6208 = vmatprep.subr.mxu0 0.0
    %6209 = vmatpush1.msra.mxu0 %v4007
    %6210 = vmatprep.subr.mxu0 0.0
    %6211 = vmatpush1.msra.mxu0 %v4006
    %6212 = vmatprep.subr.mxu0 0.0
    %6213 = vmatpush1.msra.mxu0 %v4005
    %6214 = vmatprep.subr.mxu0 0.0
    %6215 = vmatpush1.msra.mxu0 %v4004
    %6216 = vmatprep.subr.mxu0 0.0
    %6217 = vmatpush1.msra.mxu0 %v4003
    %6218 = vmatprep.subr.mxu0 0.0
    %6219 = vmatpush1.msra.mxu0 %v4002
    %6220 = vmatprep.subr.mxu0 0.0
    %6221 = vmatpush1.msra.mxu0 %v4001
    %6222 = vmatprep.subr.mxu0 0.0
    %6223 = vmatpush1.msra.mxu0 %v4000
    %6224 = vmatprep.subr.mxu0 0.0
    %6225 = vmatpush1.msra.mxu0 %v3999
    %6226 = vmatprep.subr.mxu0 0.0
    %6227 = vmatpush1.msra.mxu0 %v3998
    %6228 = vmatprep.subr.mxu0 0.0
    %6229 = vmatpush1.msra.mxu0 %v3997
    %6230 = vmatprep.subr.mxu0 0.0
    %6231 = vmatpush1.msra.mxu0 %v3996
    %6232 = vmatprep.subr.mxu0 0.0
    %6233 = vmatpush1.msra.mxu0 %v3995
    %6234 = vmatprep.subr.mxu0 0.0
    %6235 = vmatpush1.msra.mxu0 %v3994
    %6236 = vmatprep.subr.mxu0 0.0
    %6237 = vmatpush1.msra.mxu0 %v3993
    %6238 = vmatprep.subr.mxu0 0.0
    %6239 = vmatpush1.msra.mxu0 %v3992
    %6240 = vmatprep.subr.mxu0 0.0
    %6241 = vmatpush2.msra.mxu0 0.0
    %6242 = vmatprep.subr.mxu0 0.0
    %6243 = vmatpush2.msra.mxu0 0.0
    %6244 = vmatprep.subr.mxu0 0.0
    %6245 = vmatpush2.msra.mxu0 0.0
    %6246 = vmatprep.subr.mxu0 0.0
    %6247 = vmatpush2.msra.mxu0 0.0
    %6248 = vmatprep.subr.mxu0 0.0
    %6249 = vmatpush2.msra.mxu0 0.0
    %6250 = vmatprep.subr.mxu0 0.0
    %6251 = vmatpush2.msra.mxu0 0.0
    %6252 = vmatprep.subr.mxu0 0.0
    %6253 = vmatpush2.msra.mxu0 0.0
    %6254 = vmatprep.subr.mxu0 0.0
    %6255 = vmatpush2.msra.mxu0 0.0
    %6256 = vmatprep.subr.mxu0 0.0
    %6257 = vmatpush2.msra.mxu0 0.0
    %6258 = vmatprep.subr.mxu0 0.0
    %6259 = vmatpush2.msra.mxu0 0.0
    %6260 = vmatprep.subr.mxu0 0.0
    %6261 = vmatpush2.msra.mxu0 0.0
    %6262 = vmatprep.subr.mxu0 0.0
    %6263 = vmatpush2.msra.mxu0 0.0
    %6264 = vmatprep.subr.mxu0 0.0
    %6265 = vmatpush2.msra.mxu0 0.0
    %6266 = vmatprep.subr.mxu0 0.0
    %6267 = vmatpush2.msra.mxu0 0.0
    %6268 = vmatprep.subr.mxu0 0.0
    %6269 = vmatpush2.msra.mxu0 0.0
    %6270 = vmatprep.subr.mxu0 0.0
    %6271 = vmatpush2.msra.mxu0 0.0
    %6272 = vmatprep.mubr.f32.mxu0 0.0
    %6273 = vmatmul.mubr.f32.gmra.mxu0 %v6050
    %v6274 = vpop.f32.mrf.mxu0
    %v6275 = vadd.f32 0.0, %v6274
    %v6276 = vpop.f32.mrf.mxu0
    %6277 = vdwg.mxu0
    %v6278 = vadd.f32 %v6207, %v6275
    %v6279 = vtanh.pop %v6278
    %v6280 = vld [vmem:[%s3072 + $0x18] sm:$0xff]
    %6281 = vmatprep.subr.mxu0 0.0
    %6282 = vmatpush1.msra.mxu0 %v4096
    %6283 = vmatprep.subr.mxu0 0.0
    %6284 = vmatpush1.msra.mxu0 %v4095
    %6285 = vmatprep.subr.mxu0 0.0
    %6286 = vmatpush1.msra.mxu0 %v4094
    %6287 = vmatprep.subr.mxu0 0.0
    %6288 = vmatpush1.msra.mxu0 %v4093
    %6289 = vmatprep.subr.mxu0 0.0
    %6290 = vmatpush1.msra.mxu0 %v4092
    %6291 = vmatprep.subr.mxu0 0.0
    %6292 = vmatpush1.msra.mxu0 %v4091
    %6293 = vmatprep.subr.mxu0 0.0
    %6294 = vmatpush1.msra.mxu0 %v4090
    %6295 = vmatprep.subr.mxu0 0.0
    %6296 = vmatpush1.msra.mxu0 %v4089
    %6297 = vmatprep.subr.mxu0 0.0
    %6298 = vmatpush1.msra.mxu0 %v4088
    %6299 = vmatprep.subr.mxu0 0.0
    %6300 = vmatpush1.msra.mxu0 %v4087
    %6301 = vmatprep.subr.mxu0 0.0
    %6302 = vmatpush1.msra.mxu0 %v4086
    %6303 = vmatprep.subr.mxu0 0.0
    %6304 = vmatpush1.msra.mxu0 %v4085
    %6305 = vmatprep.subr.mxu0 0.0
    %6306 = vmatpush1.msra.mxu0 %v4084
    %6307 = vmatprep.subr.mxu0 0.0
    %6308 = vmatpush1.msra.mxu0 %v4083
    %6309 = vmatprep.subr.mxu0 0.0
    %6310 = vmatpush1.msra.mxu0 %v4082
    %6311 = vmatprep.subr.mxu0 0.0
    %6312 = vmatpush1.msra.mxu0 %v4081
    %6313 = vmatprep.subr.mxu0 0.0
    %6314 = vmatpush2.msra.mxu0 0.0
    %6315 = vmatprep.subr.mxu0 0.0
    %6316 = vmatpush2.msra.mxu0 0.0
    %6317 = vmatprep.subr.mxu0 0.0
    %6318 = vmatpush2.msra.mxu0 0.0
    %6319 = vmatprep.subr.mxu0 0.0
    %6320 = vmatpush2.msra.mxu0 0.0
    %6321 = vmatprep.subr.mxu0 0.0
    %6322 = vmatpush2.msra.mxu0 0.0
    %6323 = vmatprep.subr.mxu0 0.0
    %6324 = vmatpush2.msra.mxu0 0.0
    %6325 = vmatprep.subr.mxu0 0.0
    %6326 = vmatpush2.msra.mxu0 0.0
    %6327 = vmatprep.subr.mxu0 0.0
    %6328 = vmatpush2.msra.mxu0 0.0
    %6329 = vmatprep.subr.mxu0 0.0
    %6330 = vmatpush2.msra.mxu0 0.0
    %6331 = vmatprep.subr.mxu0 0.0
    %6332 = vmatpush2.msra.mxu0 0.0
    %6333 = vmatprep.subr.mxu0 0.0
    %6334 = vmatpush2.msra.mxu0 0.0
    %6335 = vmatprep.subr.mxu0 0.0
    %6336 = vmatpush2.msra.mxu0 0.0
    %6337 = vmatprep.subr.mxu0 0.0
    %6338 = vmatpush2.msra.mxu0 0.0
    %6339 = vmatprep.subr.mxu0 0.0
    %6340 = vmatpush2.msra.mxu0 0.0
    %6341 = vmatprep.subr.mxu0 0.0
    %6342 = vmatpush2.msra.mxu0 0.0
    %6343 = vmatprep.subr.mxu0 0.0
    %6344 = vmatpush2.msra.mxu0 0.0
    %6345 = vmatprep.mubr.f32.mxu0 0.0
    %6346 = vmatmul.mubr.f32.gmra.mxu0 %v6050
    %v6347 = vpop.f32.mrf.mxu0
    %v6348 = vadd.f32 0.0, %v6347
    %v6349 = vpop.f32.mrf.mxu0
    %6350 = vdwg.mxu0
    %v6351 = vadd.f32 %v6280, %v6348
    %v6352 = vxor.u32 %v6351, 2147483648
    %v6353 = vmul.f32 %v6352, 1.442695
    %v6354 = vpow.pop %v6353
    %v6355 = vadd.f32 %v6354, 1.0
    %v6356 = vrcp.pop %v6355
    %v6357 = vmul.f32 1.0, %v6356
    %v6358 = vmul.f32 %v6206, %v6048
    %v6359 = vmul.f32 %v6128, %v6279
    %v6360 = vadd.f32 %v6358, %v6359
    %v6361 = vtanh.pop %v6360
    %v6362 = vmul.f32 %v6357, %v6361
    %v6363 = vld [vmem:[#allocation9] sm:$0xff]
    %v6364 = vld [vmem:[#allocation9 + $0x8] sm:$0xff]
    %v6365 = vld [vmem:[#allocation9 + $0x10] sm:$0xff]
    %v6366 = vld [vmem:[#allocation9 + $0x18] sm:$0xff]
    %v6367 = vld [vmem:[#allocation9 + $0x20] sm:$0xff]
    %v6368 = vld [vmem:[#allocation9 + $0x28] sm:$0xff]
    %v6369 = vld [vmem:[#allocation9 + $0x30] sm:$0xff]
    %v6370 = vld [vmem:[#allocation9 + $0x38] sm:$0xff]
    %v6371 = vld [vmem:[#allocation9 + $0x40] sm:$0xff]
    %v6372 = vld [vmem:[#allocation9 + $0x48] sm:$0xff]
    %v6373 = vld [vmem:[#allocation9 + $0x50] sm:$0xff]
    %v6374 = vld [vmem:[#allocation9 + $0x58] sm:$0xff]
    %v6375 = vld [vmem:[#allocation9 + $0x60] sm:$0xff]
    %v6376 = vld [vmem:[#allocation9 + $0x68] sm:$0xff]
    %v6377 = vld [vmem:[#allocation9 + $0x70] sm:$0xff]
    %v6378 = vld [vmem:[#allocation9 + $0x78] sm:$0xff]
    %v6379 = vld [vmem:[%s8] sm:$0x1]
    %v6381 = vlaneseq
    %v6382 = vshrl.u32 %v6381, 7
    %v6383 = vsub.s32 0, %v6382
    %v6384 = vrot.slane %v6379, %v6383
    %6386 = vmatprep.subr.mxu0 0.0
    %6387 = vmatpush1.msra.mxu0 %v6378
    %6388 = vmatprep.subr.mxu0 0.0
    %6389 = vmatpush1.msra.mxu0 %v6377
    %6390 = vmatprep.subr.mxu0 0.0
    %6391 = vmatpush1.msra.mxu0 %v6376
    %6392 = vmatprep.subr.mxu0 0.0
    %6393 = vmatpush1.msra.mxu0 %v6375
    %6394 = vmatprep.subr.mxu0 0.0
    %6395 = vmatpush1.msra.mxu0 %v6374
    %6396 = vmatprep.subr.mxu0 0.0
    %6397 = vmatpush1.msra.mxu0 %v6373
    %6398 = vmatprep.subr.mxu0 0.0
    %6399 = vmatpush1.msra.mxu0 %v6372
    %6400 = vmatprep.subr.mxu0 0.0
    %6401 = vmatpush1.msra.mxu0 %v6371
    %6402 = vmatprep.subr.mxu0 0.0
    %6403 = vmatpush1.msra.mxu0 %v6370
    %6404 = vmatprep.subr.mxu0 0.0
    %6405 = vmatpush1.msra.mxu0 %v6369
    %6406 = vmatprep.subr.mxu0 0.0
    %6407 = vmatpush1.msra.mxu0 %v6368
    %6408 = vmatprep.subr.mxu0 0.0
    %6409 = vmatpush1.msra.mxu0 %v6367
    %6410 = vmatprep.subr.mxu0 0.0
    %6411 = vmatpush1.msra.mxu0 %v6366
    %6412 = vmatprep.subr.mxu0 0.0
    %6413 = vmatpush1.msra.mxu0 %v6365
    %6414 = vmatprep.subr.mxu0 0.0
    %6415 = vmatpush1.msra.mxu0 %v6364
    %6416 = vmatprep.subr.mxu0 0.0
    %6417 = vmatpush1.msra.mxu0 %v6363
    %6418 = vmatprep.subr.mxu0 0.0
    %6419 = vmatpush2.msra.mxu0 0.0
    %6420 = vmatprep.subr.mxu0 0.0
    %6421 = vmatpush2.msra.mxu0 0.0
    %6422 = vmatprep.subr.mxu0 0.0
    %6423 = vmatpush2.msra.mxu0 0.0
    %6424 = vmatprep.subr.mxu0 0.0
    %6425 = vmatpush2.msra.mxu0 0.0
    %6426 = vmatprep.subr.mxu0 0.0
    %6427 = vmatpush2.msra.mxu0 0.0
    %6428 = vmatprep.subr.mxu0 0.0
    %6429 = vmatpush2.msra.mxu0 0.0
    %6430 = vmatprep.subr.mxu0 0.0
    %6431 = vmatpush2.msra.mxu0 0.0
    %6432 = vmatprep.subr.mxu0 0.0
    %6433 = vmatpush2.msra.mxu0 0.0
    %6434 = vmatprep.subr.mxu0 0.0
    %6435 = vmatpush2.msra.mxu0 0.0
    %6436 = vmatprep.subr.mxu0 0.0
    %6437 = vmatpush2.msra.mxu0 0.0
    %6438 = vmatprep.subr.mxu0 0.0
    %6439 = vmatpush2.msra.mxu0 0.0
    %6440 = vmatprep.subr.mxu0 0.0
    %6441 = vmatpush2.msra.mxu0 0.0
    %6442 = vmatprep.subr.mxu0 0.0
    %6443 = vmatpush2.msra.mxu0 0.0
    %6444 = vmatprep.subr.mxu0 0.0
    %6445 = vmatpush2.msra.mxu0 0.0
    %6446 = vmatprep.subr.mxu0 0.0
    %6447 = vmatpush2.msra.mxu0 0.0
    %6448 = vmatprep.subr.mxu0 0.0
    %6449 = vmatpush2.msra.mxu0 0.0
    %6450 = vmatprep.mubr.f32.mxu0 0.0
    %6451 = vmatmul.mubr.f32.gmra.mxu0 %v6362
    %v6452 = vpop.f32.mrf.mxu0
    %v6453 = vadd.f32 %v6384, %v6452
    %v6454 = vpop.f32.mrf.mxu0
    %6455 = vdwg.mxu0
    %6456 = vst [vmem:[%s9] sm:$0xff] %v6453
    // Predicated region
    $region54: #{multi_step_lstm_forward.1} parent=1 // pred_check
      _
    $region55: #{multi_step_lstm_forward.1} parent=1 // pred_check_branch
      %6458 = sbr.rel (0) target = $region57
    $region56: #{multi_step_lstm_forward.1} parent=1 // pred_region
      _
    $region57: #{multi_step_lstm_forward.1} parent=1 // pred_fallthru
      _
    // Predicated region
    $region58: #{multi_step_lstm_forward.1} parent=1 // pred_check
      _
    $region59: #{multi_step_lstm_forward.1} parent=1 // pred_check_branch
      %6460 = sbr.rel (0) target = $region61
    $region60: #{multi_step_lstm_forward.1} parent=1 // pred_region
      _
    $region61: #{multi_step_lstm_forward.1} parent=1 // pred_fallthru
      _
    %6461 = vsyncpa [#allocation5], 1
    %6462 = vsyncpa [#allocation7], 1
    %6463 = vsyncpa [#allocation10], 1

</llo_original>
